<compile_context>
chip_gen: v7x
topology: tpu7x:2x2x1
jax: 0.10.0
libtpu: 0.0.40
codegen_flags: <defaults>
</compile_context>

<pallas_src>
import math
import functools

import jax
import jax.numpy as jnp
from jax.experimental import pallas as pl
from jax.experimental.pallas import tpu as pltpu

VMEM_LIMIT = 32 * 1024 * 1024
PF = 128                                    # lane-aligned front halo slack (>= W+1)
TAPS_3x3 = tuple((dy, dx) for dy in (-1, 0, 1) for dx in (-1, 0, 1))

# ConvTranspose2d(k=4, s=2, p=1) sub-pixel decomposition:
# output parity r/c -> ((input shift dy|dx, kernel tap kh|kw), ...)
_CT_PAIRS = {0: ((0, 1), (-1, 3)), 1: ((0, 2), (1, 0))}


def _round_up(v, m):
    return ((v + m - 1) // m) * m


def _compiler_params():
    return pltpu.CompilerParams(dimension_semantics=("parallel",),
                                vmem_limit_bytes=VMEM_LIMIT)


# ---------------------------------------------------------------------------
# In-kernel helpers (shared by the up-sample kernel and the fused layer kernel)
# ---------------------------------------------------------------------------
def _dx_masks(taps, W, S):
    """(1, S) boolean lane masks zeroing the W-boundary wrap of horizontal shifts."""
    dxs = sorted({dx for (_, dx) in taps if dx != 0})
    if not dxs:
        return {}
    lane = jax.lax.broadcasted_iota(jnp.int32, (1, S), 1)
    ow = jnp.bitwise_and(lane, W - 1) if (W & (W - 1)) == 0 else lane % W
    return {dx: (ow + dx >= 0) & (ow + dx < W) for dx in dxs}


def _zero_halo(pad_buf, S):
    """Zero only the halo strips (both 128-wide, lane aligned); data goes in between."""
    rows, Lp = pad_buf.shape
    pad_buf[:, 0:PF] = jnp.zeros((rows, PF), pad_buf.dtype)
    pad_buf[:, PF + S:Lp] = jnp.zeros((rows, Lp - PF - S), pad_buf.dtype)


def _fill_center(pad_buf, h_bf, cin, S):
    pad_buf[0:cin, PF:PF + S] = h_bf        # lane-aligned store (PF = 128)


def _im2col(pad_buf, col_buf, taps, masks, cin, W, S):
    """Stage len(taps) shifted copies of the image region into col_buf and return
    the (len(taps)*cin, S) bf16 GEMM operand (one big-K block, paid-once relayout)."""
    for t, (dy, dx) in enumerate(taps):
        start = PF + dy * W + dx                       # static python int
        sl = pad_buf[0:cin, start:start + S]
        if dx != 0:
            sl = jnp.where(masks[dx], sl, jnp.zeros_like(sl))
        col_buf[t * cin:(t + 1) * cin, :] = sl
    return col_buf[0:len(taps) * cin, :]


def _group_norm(z, gamma, beta, groups, eps, silu):
    """GroupNorm over (C/groups)*S per group; stats in f32; optional fused SiLU.
       z: (c, S) f32; gamma/beta: (c, 1) f32."""
    c, S = z.shape
    cg = c // groups
    inv_n = 1.0 / float(cg * S)
    rs = jnp.sum(z, axis=1, keepdims=True)             # (c, 1)  per-channel sum
    rs2 = jnp.sum(z * z, axis=1, keepdims=True)        # (c, 1)  per-channel sum sq
    cidx = jax.lax.broadcasted_iota(jnp.int32, (c, 1), 0)
    mean = jnp.zeros((c, 1), jnp.float32)
    ex2 = jnp.zeros((c, 1), jnp.float32)
    for g in range(groups):                            # tiny: groups x (c,1) work
        sel = ((cidx >= g * cg) & (cidx < (g + 1) * cg)).astype(jnp.float32)
        mean = mean + sel * jnp.sum(rs * sel, axis=0, keepdims=True)
        ex2 = ex2 + sel * jnp.sum(rs2 * sel, axis=0, keepdims=True)
    mean = mean * inv_n
    var = ex2 * inv_n - mean * mean
    y = (z - mean) * (jax.lax.rsqrt(var + eps) * gamma) + beta
    return y * jax.nn.sigmoid(y) if silu else y


# ---------------------------------------------------------------------------
# Fused UNet layer kernel: GN1+SiLU -> conv1(+t-emb) -> GN2+SiLU -> conv2
#                          -> 1x1 res conv -> add -> attn-GN -> MHA -> add
# ---------------------------------------------------------------------------
def _layer_kernel(x_ref, tadd_ref,
                  g1_ref, b1_ref, w1_ref,
                  g2_ref, b2_ref, w2_ref, cb2_ref,
                  wr_ref, br_ref,
                  ga_ref, ba_ref, wqkv_ref, bqkv_ref, wo_ref, bo_ref,
                  o_ref,
                  pad_buf, col_buf, head_buf,
                  *, H, W, groups, num_heads, eps):
    S = H * W
    cin = x_ref.shape[1]
    cout = o_ref.shape[1]
    hd = cout // num_heads
    scale = 1.0 / math.sqrt(hd)
    masks = _dx_masks(TAPS_3x3, W, S)

    _zero_halo(pad_buf, S)
    x = x_ref[0]                                              # (cin, S) f32

    # ---- ResNet: GN1 + SiLU -> 3x3 conv (+ bias + time-embedding, pre-folded) ----
    h1 = _group_norm(x, g1_ref[...], b1_ref[...], groups, eps, True)
    _fill_center(pad_buf, h1.astype(jnp.bfloat16), cin, S)
    col1 = _im2col(pad_buf, col_buf, TAPS_3x3, masks, cin, W, S)   # (9*cin, S)
    out1 = jnp.dot(w1_ref[...], col1,
                   preferred_element_type=jnp.float32) + tadd_ref[0]

    # ---- GN2 + SiLU -> 3x3 conv + bias -------------------------------------------
    h2 = _group_norm(out1, g2_ref[...], b2_ref[...], groups, eps, True)
    _fill_center(pad_buf, h2.astype(jnp.bfloat16), cout, S)
    col2 = _im2col(pad_buf, col_buf, TAPS_3x3, masks, cout, W, S)  # (9*cout, S)
    out2 = jnp.dot(w2_ref[...], col2,
                   preferred_element_type=jnp.float32) + cb2_ref[...]

    # ---- 1x1 residual conv on the layer input + residual add ---------------------
    res = jnp.dot(wr_ref[...], x.astype(jnp.bfloat16),
                  preferred_element_type=jnp.float32) + br_ref[...]
    pre_attn = out2 + res                                     # (cout, S) f32

    # ---- Attention: GN -> QKV -> per-head softmax -> out-proj -> residual --------
    xn = _group_norm(pre_attn, ga_ref[...], ba_ref[...], groups, eps, False)
    qkv = jnp.dot(wqkv_ref[...], xn.astype(jnp.bfloat16),
                  preferred_element_type=jnp.float32) + bqkv_ref[...]   # (3*cout, S)
    # fold 1/sqrt(hd) into q; cast to bf16 *before* the single (cout,S)->(S,cout)
    # transpose (halves the XLU transpose traffic).
    q_t = (qkv[0:cout, :] * scale).astype(jnp.bfloat16).T               # (S, cout)
    ones_row = jnp.ones((1, S), jnp.bfloat16)
    TQ = 128 if S % 128 == 0 else S
    for h in range(num_heads):
        lo = h * hd
        k = qkv[cout + lo:cout + lo + hd, :].astype(jnp.bfloat16)        # (hd, S)
        v = qkv[2 * cout + lo:2 * cout + lo + hd, :].astype(jnp.bfloat16)
        v_aug = jnp.concatenate([v, ones_row], axis=0)                   # (hd+1, S)
        for c in range(S // TQ):          # 128-row q tiles bound the live p block
            s = jnp.dot(q_t[c * TQ:(c + 1) * TQ, lo:lo + hd], k,
                        preferred_element_type=jnp.float32)              # (TQ, S)
            p = jnp.exp(s - jnp.max(s, axis=-1, keepdims=True))          # unnormalized
            # one PV matmul also yields the softmax denominator (appended ones row)
            o_aug = jax.lax.dot_general(v_aug, p.astype(jnp.bfloat16),
                                        (((1,), (1,)), ((), ())),
                                        preferred_element_type=jnp.float32)  # (hd+1,TQ)
            o_c = o_aug[0:hd, :] * pl.reciprocal(o_aug[hd:hd + 1, :], approx=True)
            head_buf[lo:lo + hd, c * TQ:(c + 1) * TQ] = o_c.astype(jnp.bfloat16)
    attn = jnp.dot(wo_ref[...], head_buf[...],
                   preferred_element_type=jnp.float32) + bo_ref[...]     # one K=C GEMM
    o_ref[0] = pre_attn + attn


def fused_layer(x, t_emb, lp, H, W, num_heads, *, groups=8, eps=1e-5):
    """x: (B, Cin, S) f32 -> (B, Cout, S) f32.  One pallas_call for the whole layer."""
    B, cin, S = x.shape
    cout = lp['conv1']['w'].shape[0]
    assert S == H * W and W + 1 <= PF
    assert cin % groups == 0 and cout % groups == 0 and cout % num_heads == 0
    cmax = max(cin, cout)
    Lp = _round_up(PF + S + W + 1, 128)

    as_col = lambda v: v.reshape(-1, 1).astype(jnp.float32)
    w1 = lp['conv1']['w'].transpose(0, 2, 3, 1).reshape(cout, 9 * cin).astype(jnp.bfloat16)
    w2 = lp['conv2']['w'].transpose(0, 2, 3, 1).reshape(cout, 9 * cout).astype(jnp.bfloat16)
    wr = lp['res']['w'].reshape(cout, cin).astype(jnp.bfloat16)
    # conv1 bias + time-embedding projection folded into one additive (B,Cout,1)
    # term (tiny (B,t_dim) matmul stays in XLA on purpose).
    tadd = (jnp.dot(jax.nn.silu(t_emb), lp['t']['w'].T) + lp['t']['b']
            + lp['conv1']['b'])[:, :, None].astype(jnp.float32)
    ap = lp['attn']

    vec = lambda c: pl.BlockSpec((c, 1), lambda i: (0, 0))
    kernel = functools.partial(_layer_kernel, H=H, W=W, groups=groups,
                               num_heads=num_heads, eps=eps)
    return pl.pallas_call(
        kernel,
        grid=(B,),
        in_specs=[
            pl.BlockSpec((1, cin, S), lambda i: (i, 0, 0)),        # layer input
            pl.BlockSpec((1, cout, 1), lambda i: (i, 0, 0)),       # conv1 bias + t-emb
            vec(cin), vec(cin),                                    # gn1 gamma/beta
            pl.BlockSpec((cout, 9 * cin), lambda i: (0, 0)),       # conv1 weight (im2col)
            vec(cout), vec(cout),                                  # gn2 gamma/beta
            pl.BlockSpec((cout, 9 * cout), lambda i: (0, 0)),      # conv2 weight (im2col)
            vec(cout),                                             # conv2 bias
            pl.BlockSpec((cout, cin), lambda i: (0, 0)),           # 1x1 residual weight
            vec(cout),                                             # residual bias
            vec(cout), vec(cout),                                  # attn-norm gamma/beta
            pl.BlockSpec((3 * cout, cout), lambda i: (0, 0)),      # qkv weight
            vec(3 * cout),                                         # qkv bias
            pl.BlockSpec((cout, cout), lambda i: (0, 0)),          # out-proj weight
            vec(cout),                                             # out-proj bias
        ],
        out_specs=pl.BlockSpec((1, cout, S), lambda i: (i, 0, 0)),
        out_shape=jax.ShapeDtypeStruct((B, cout, S), jnp.float32),
        scratch_shapes=[pltpu.VMEM((cmax, Lp), jnp.bfloat16),      # conv halo buffer
                        pltpu.VMEM((9 * cmax, S), jnp.bfloat16),   # im2col block
                        pltpu.VMEM((cout, S), jnp.bfloat16)],      # attention heads
        compiler_params=_compiler_params(),
    )(x, tadd,
      as_col(lp['gn1']['w']), as_col(lp['gn1']['b']), w1,
      as_col(lp['gn2']['w']), as_col(lp['gn2']['b']), w2, as_col(lp['conv2']['b']),
      wr, as_col(lp['res']['b']),
      as_col(ap['norm']['w']), as_col(ap['norm']['b']),
      ap['in_w'].astype(jnp.bfloat16), as_col(ap['in_b']),
      ap['out_w'].astype(jnp.bfloat16), as_col(ap['out_b']))


# ---------------------------------------------------------------------------
# ConvTranspose2d(k=4, s=2, p=1) via sub-pixel (output-parity) decomposition
# ---------------------------------------------------------------------------
def _upsample_kernel(x_ref, w_ref, b_ref, o_ref, pad_buf, col_buf, *, H, W, groups):
    S = H * W
    cin = x_ref.shape[1]
    all_taps = [t for g in groups for t in g]
    masks = _dx_masks(all_taps, W, S)
    _zero_halo(pad_buf, S)
    _fill_center(pad_buf, x_ref[0].astype(jnp.bfloat16), cin, S)
    for g, taps in enumerate(groups):
        col = _im2col(pad_buf, col_buf, taps, masks, cin, W, S)    # (4*cin, S)
        o_ref[0, g] = jnp.dot(w_ref[g], col,
                              preferred_element_type=jnp.float32) + b_ref[...]


def conv_transpose_up(x, w, b):
    """ConvTranspose2d(k=4,s=2,p=1). x: (B,Cin,H,W) f32; w: (Cin,Cout,4,4); b: (Cout,)."""
    B, Cin, H, W = x.shape
    Cout = w.shape[1]
    S = H * W
    assert W + 1 <= PF
    groups, w_groups = [], []
    for r in (0, 1):
        for c in (0, 1):
            taps, wt = [], []
            for (dy, kh) in _CT_PAIRS[r]:
                for (dx, kw) in _CT_PAIRS[c]:
                    taps.append((dy, dx))
                    wt.append(jnp.transpose(w[:, :, kh, kw]))        # (Cout, Cin)
            groups.append(taps)
            w_groups.append(jnp.concatenate(wt, axis=1))             # (Cout, 4*Cin)
    w_stack = jnp.stack(w_groups, axis=0).astype(jnp.bfloat16)       # (4, Cout, 4*Cin)
    Lp = _round_up(PF + S + W + 1, 128)

    y = pl.pallas_call(
        functools.partial(_upsample_kernel, H=H, W=W, groups=groups),
        grid=(B,),
        in_specs=[
            pl.BlockSpec((1, Cin, S), lambda i: (i, 0, 0)),
            pl.BlockSpec((4, Cout, 4 * Cin), lambda i: (0, 0, 0)),
            pl.BlockSpec((Cout, 1), lambda i: (0, 0)),
        ],
        out_specs=pl.BlockSpec((1, 4, Cout, S), lambda i: (i, 0, 0, 0)),
        out_shape=jax.ShapeDtypeStruct((B, 4, Cout, S), jnp.float32),
        scratch_shapes=[pltpu.VMEM((Cin, Lp), jnp.bfloat16),
                        pltpu.VMEM((4 * Cin, S), jnp.bfloat16)],
        compiler_params=_compiler_params(),
    )(x.reshape(B, Cin, S), w_stack, b.reshape(Cout, 1).astype(jnp.float32))
    # interleave the 4 output parities: (B, r, c, Cout, H, W) -> (B, Cout, 2H, 2W)
    y = y.reshape(B, 2, 2, Cout, H, W).transpose(0, 3, 4, 1, 5, 2)
    return y.reshape(B, Cout, 2 * H, 2 * W)


# ---------------------------------------------------------------------------
# UpBlock forward (matches the PyTorch module semantics)
# ---------------------------------------------------------------------------
def up_block_forward(params, x, out_down, t_emb, *, num_heads=4):
    B = x.shape[0]
    if 'up_conv' in params:
        x = conv_transpose_up(x, params['up_conv']['w'], params['up_conv']['b'])
    _, c_up, H, W = x.shape
    S = H * W
    out = jnp.concatenate(
        [x.reshape(B, c_up, S), out_down.reshape(B, out_down.shape[1], S)], axis=1)
    for lp in params['layers']:
        out = fused_layer(out, t_emb, lp, H, W, num_heads)
    return out.reshape(B, out.shape[1], H, W)


# ---------------------------------------------------------------------------
# Deterministic synthetic parameters (matches the PyTorch UpBlock layout)
# ---------------------------------------------------------------------------
class ParamGen:
    def __init__(self, key):
        self.key = key

    def normal(self, shape, scale=0.05):
        self.key, k = jax.random.split(self.key)
        return scale * jax.random.normal(k, shape, jnp.float32)


def _init_gn(c):
    return {'w': jnp.ones((c,), jnp.float32), 'b': jnp.zeros((c,), jnp.float32)}


def init_up_block(key, in_ch, out_ch, t_dim, *, up_sample=True, num_layers=1):
    pg = ParamGen(key)
    p = {'layers': []}
    if up_sample:
        p['up_conv'] = {'w': pg.normal((in_ch // 2, in_ch // 2, 4, 4)),
                        'b': pg.normal((in_ch // 2,))}
    for i in range(num_layers):
        ic = in_ch if i == 0 else out_ch
        p['layers'].append({
            'gn1': _init_gn(ic),
            'conv1': {'w': pg.normal((out_ch, ic, 3, 3)), 'b': pg.normal((out_ch,))},
            't': {'w': pg.normal((out_ch, t_dim)), 'b': pg.normal((out_ch,))},
            'gn2': _init_gn(out_ch),
            'conv2': {'w': pg.normal((out_ch, out_ch, 3, 3)), 'b': pg.normal((out_ch,))},
            'res': {'w': pg.normal((out_ch, ic, 1, 1)), 'b': pg.normal((out_ch,))},
            'attn': {'norm': _init_gn(out_ch),
                     'in_w': pg.normal((3 * out_ch, out_ch)),
                     'in_b': pg.normal((3 * out_ch,)),
                     'out_w': pg.normal((out_ch, out_ch)),
                     'out_b': pg.normal((out_ch,))},
        })
    return p


# ---------------------------------------------------------------------------
if __name__ == "__main__":
    in_channels, out_channels, t_emb_dim = 64, 32, 32
    num_heads, num_layers = 4, 1

    key = jax.random.PRNGKey(0)
    k_p, k_x, k_d, k_t = jax.random.split(key, 4)
    params = init_up_block(k_p, in_channels, out_channels, t_emb_dim,
                           up_sample=True, num_layers=num_layers)

    # UpBlock inputs: x from the lower resolution (in_channels//2 channels),
    # out_down is the skip connection at the target resolution.
    x = jax.random.normal(k_x, (2, in_channels // 2, 8, 8), jnp.float32)
    out_down = jax.random.normal(k_d, (2, in_channels // 2, 16, 16), jnp.float32)
    t_emb = jax.random.normal(k_t, (2, t_emb_dim), jnp.float32)

    fwd = jax.jit(functools.partial(up_block_forward, params, num_heads=num_heads))
    out = jax.block_until_ready(fwd(x, out_down, t_emb))
    assert out.shape == (2, out_channels, 16, 16), out.shape
    assert out.dtype == jnp.float32
    print("KERNEL_OK")
</pallas_src>

<mosaic_0001>
module attributes {stable_mosaic.version = 11 : i64} {
  func.func @_upsample_kernel(%arg0: i32, %arg1: memref<1x32x64xf32, #tpu.memory_space<vmem>>, %arg2: memref<4x32x128xbf16, #tpu.memory_space<vmem>>, %arg3: memref<32x1xf32, #tpu.memory_space<vmem>>, %arg4: memref<1x4x32x64xf32, #tpu.memory_space<vmem>>, %arg5: memref<32x256xbf16, #tpu.memory_space<vmem>>, %arg6: memref<128x64xbf16, #tpu.memory_space<vmem>>) attributes {dimension_semantics = [#tpu.dimension_semantics<parallel>], iteration_bounds = array<i64: 2>, scalar_prefetch = 0 : i64, scratch_operands = 2 : i64, tpu.core_type = #tpu.core_type<tc>, window_params = [{transform_indices = @transform_0, window_bounds = array<i64: 1, 32, 64>}, {pipeline_mode = #tpu.pipeline_mode<synchronous>, transform_indices = @transform_1, window_bounds = array<i64: 4, 32, 128>}, {pipeline_mode = #tpu.pipeline_mode<synchronous>, transform_indices = @transform_2, window_bounds = array<i64: 32, 1>}, {transform_indices = @transform_3, window_bounds = array<i64: 1, 4, 32, 64>}]} {
    %0 = tpu.iota {dimensions = array<i32: 1>} : vector<1x64xi32>
    %c7_i32 = arith.constant 7 : i32
    %1 = vector.broadcast %c7_i32 : i32 to vector<1x64xi32>
    %2 = arith.andi %0, %1 : vector<1x64xi32>
    %c-1_i32 = arith.constant -1 : i32
    %3 = vector.broadcast %c-1_i32 : i32 to vector<1x64xi32>
    %4 = arith.addi %2, %3 : vector<1x64xi32>
    %c0_i32 = arith.constant 0 : i32
    %5 = vector.broadcast %c0_i32 : i32 to vector<1x64xi32>
    %6 = arith.cmpi sge, %4, %5 : vector<1x64xi32>
    %c-1_i32_0 = arith.constant -1 : i32
    %7 = vector.broadcast %c-1_i32_0 : i32 to vector<1x64xi32>
    %8 = arith.addi %2, %7 : vector<1x64xi32>
    %c8_i32 = arith.constant 8 : i32
    %9 = vector.broadcast %c8_i32 : i32 to vector<1x64xi32>
    %10 = arith.cmpi slt, %8, %9 : vector<1x64xi32>
    %11 = arith.andi %6, %10 : vector<1x64xi1>
    %c1_i32 = arith.constant 1 : i32
    %12 = vector.broadcast %c1_i32 : i32 to vector<1x64xi32>
    %13 = arith.addi %2, %12 : vector<1x64xi32>
    %c0_i32_1 = arith.constant 0 : i32
    %14 = vector.broadcast %c0_i32_1 : i32 to vector<1x64xi32>
    %15 = arith.cmpi sge, %13, %14 : vector<1x64xi32>
    %c1_i32_2 = arith.constant 1 : i32
    %16 = vector.broadcast %c1_i32_2 : i32 to vector<1x64xi32>
    %17 = arith.addi %2, %16 : vector<1x64xi32>
    %c8_i32_3 = arith.constant 8 : i32
    %18 = vector.broadcast %c8_i32_3 : i32 to vector<1x64xi32>
    %19 = arith.cmpi slt, %17, %18 : vector<1x64xi32>
    %20 = arith.andi %15, %19 : vector<1x64xi1>
    %cst = arith.constant 0.000000e+00 : bf16
    %21 = vector.broadcast %cst : bf16 to vector<32x128xbf16>
    %c0 = arith.constant 0 : index
    %c0_4 = arith.constant 0 : index
    %22 = vector.load %arg5[%c0, %c0_4] : memref<32x256xbf16, #tpu.memory_space<vmem>>, vector<32x128xbf16>
    tpu.vector_store %arg5[%c0, %c0_4], %21 {strides = array<i32>} : memref<32x256xbf16, #tpu.memory_space<vmem>>, vector<32x128xbf16>,
    %cst_5 = arith.constant 0.000000e+00 : bf16
    %23 = vector.broadcast %cst_5 : bf16 to vector<32x64xbf16>
    %c0_6 = arith.constant 0 : index
    %c192 = arith.constant 192 : index
    %24 = vector.load %arg5[%c0_6, %c192] : memref<32x256xbf16, #tpu.memory_space<vmem>>, vector<32x64xbf16>
    tpu.vector_store %arg5[%c0_6, %c192], %23 {strides = array<i32>} : memref<32x256xbf16, #tpu.memory_space<vmem>>, vector<32x64xbf16>,
    %c0_7 = arith.constant 0 : index
    %c0_8 = arith.constant 0 : index
    %c0_9 = arith.constant 0 : index
    %25 = vector.load %arg1[%c0_7, %c0_8, %c0_9] : memref<1x32x64xf32, #tpu.memory_space<vmem>>, vector<1x32x64xf32>
    %26 = vector.shape_cast %25 : vector<1x32x64xf32> to vector<32x64xf32>
    %27 = arith.truncf %26 : vector<32x64xf32> to vector<32x64xbf16>
    %c0_10 = arith.constant 0 : index
    %c128 = arith.constant 128 : index
    %28 = vector.load %arg5[%c0_10, %c128] : memref<32x256xbf16, #tpu.memory_space<vmem>>, vector<32x64xbf16>
    tpu.vector_store %arg5[%c0_10, %c128], %27 {strides = array<i32>} : memref<32x256xbf16, #tpu.memory_space<vmem>>, vector<32x64xbf16>,
    %c0_11 = arith.constant 0 : index
    %c128_12 = arith.constant 128 : index
    %29 = vector.load %arg5[%c0_11, %c128_12] : memref<32x256xbf16, #tpu.memory_space<vmem>>, vector<32x64xbf16>
    %c0_13 = arith.constant 0 : index
    %c0_14 = arith.constant 0 : index
    %30 = vector.load %arg6[%c0_13, %c0_14] : memref<128x64xbf16, #tpu.memory_space<vmem>>, vector<32x64xbf16>
    tpu.vector_store %arg6[%c0_13, %c0_14], %29 {strides = array<i32>} : memref<128x64xbf16, #tpu.memory_space<vmem>>, vector<32x64xbf16>,
    %c0_15 = arith.constant 0 : index
    %c127 = arith.constant 127 : index
    %31 = vector.load %arg5[%c0_15, %c127] : memref<32x256xbf16, #tpu.memory_space<vmem>>, vector<32x64xbf16>
    %cst_16 = arith.constant 0.000000e+00 : bf16
    %32 = vector.broadcast %cst_16 : bf16 to vector<32x64xbf16>
    %33 = vector.shape_cast %11 : vector<1x64xi1> to vector<1x64xi1>
    %34 = vector.broadcast %33 : vector<1x64xi1> to vector<32x64xi1>
    %35 = arith.select %34, %31, %32 : vector<32x64xi1>, vector<32x64xbf16>
    %c32 = arith.constant 32 : index
    %c0_17 = arith.constant 0 : index
    %36 = vector.load %arg6[%c32, %c0_17] : memref<128x64xbf16, #tpu.memory_space<vmem>>, vector<32x64xbf16>
    tpu.vector_store %arg6[%c32, %c0_17], %35 {strides = array<i32>} : memref<128x64xbf16, #tpu.memory_space<vmem>>, vector<32x64xbf16>,
    %c0_18 = arith.constant 0 : index
    %c120 = arith.constant 120 : index
    %37 = vector.load %arg5[%c0_18, %c120] : memref<32x256xbf16, #tpu.memory_space<vmem>>, vector<32x64xbf16>
    %c64 = arith.constant 64 : index
    %c0_19 = arith.constant 0 : index
    %38 = vector.load %arg6[%c64, %c0_19] : memref<128x64xbf16, #tpu.memory_space<vmem>>, vector<32x64xbf16>
    tpu.vector_store %arg6[%c64, %c0_19], %37 {strides = array<i32>} : memref<128x64xbf16, #tpu.memory_space<vmem>>, vector<32x64xbf16>,
    %c0_20 = arith.constant 0 : index
    %c119 = arith.constant 119 : index
    %39 = vector.load %arg5[%c0_20, %c119] : memref<32x256xbf16, #tpu.memory_space<vmem>>, vector<32x64xbf16>
    %cst_21 = arith.constant 0.000000e+00 : bf16
    %40 = vector.broadcast %cst_21 : bf16 to vector<32x64xbf16>
    %41 = vector.shape_cast %11 : vector<1x64xi1> to vector<1x64xi1>
    %42 = vector.broadcast %41 : vector<1x64xi1> to vector<32x64xi1>
    %43 = arith.select %42, %39, %40 : vector<32x64xi1>, vector<32x64xbf16>
    %c96 = arith.constant 96 : index
    %c0_22 = arith.constant 0 : index
    %44 = vector.load %arg6[%c96, %c0_22] : memref<128x64xbf16, #tpu.memory_space<vmem>>, vector<32x64xbf16>
    tpu.vector_store %arg6[%c96, %c0_22], %43 {strides = array<i32>} : memref<128x64xbf16, #tpu.memory_space<vmem>>, vector<32x64xbf16>,
    %c0_23 = arith.constant 0 : index
    %c0_24 = arith.constant 0 : index
    %45 = vector.load %arg6[%c0_23, %c0_24] : memref<128x64xbf16, #tpu.memory_space<vmem>>, vector<128x64xbf16>
    %c0_25 = arith.constant 0 : index
    %c0_26 = arith.constant 0 : index
    %c0_27 = arith.constant 0 : index
    %46 = vector.load %arg2[%c0_25, %c0_26, %c0_27] : memref<4x32x128xbf16, #tpu.memory_space<vmem>>, vector<1x32x128xbf16>
    %47 = vector.shape_cast %46 : vector<1x32x128xbf16> to vector<32x128xbf16>
    %cst_28 = arith.constant dense<0.000000e+00> : vector<32x64xf32>
    %48 = tpu.matmul %47, %45, %cst_28 {dimension_numbers = #tpu.dot_dimension_numbers<[1], [0], [0], [1], [0, 0, 1, 1], [], []>} : vector<32x128xbf16>, vector<128x64xbf16>, vector<32x64xf32> -> vector<32x64xf32>
    %c0_29 = arith.constant 0 : index
    %c0_30 = arith.constant 0 : index
    %49 = vector.load %arg3[%c0_29, %c0_30] : memref<32x1xf32, #tpu.memory_space<vmem>>, vector<32x1xf32>
    %50 = vector.broadcast %49 : vector<32x1xf32> to vector<32x64xf32>
    %51 = arith.addf %48, %50 : vector<32x64xf32>
    %c0_31 = arith.constant 0 : index
    %c0_32 = arith.constant 0 : index
    %c0_33 = arith.constant 0 : index
    %c0_34 = arith.constant 0 : index
    %52 = vector.load %arg4[%c0_31, %c0_32, %c0_33, %c0_34] : memref<1x4x32x64xf32, #tpu.memory_space<vmem>>, vector<1x1x32x64xf32>
    %53 = vector.shape_cast %52 : vector<1x1x32x64xf32> to vector<32x64xf32>
    %54 = vector.shape_cast %51 : vector<32x64xf32> to vector<1x1x32x64xf32>
    tpu.vector_store %arg4[%c0_31, %c0_32, %c0_33, %c0_34], %54 {strides = array<i32>} : memref<1x4x32x64xf32, #tpu.memory_space<vmem>>, vector<1x1x32x64xf32>,
    %c0_35 = arith.constant 0 : index
    %c128_36 = arith.constant 128 : index
    %55 = vector.load %arg5[%c0_35, %c128_36] : memref<32x256xbf16, #tpu.memory_space<vmem>>, vector<32x64xbf16>
    %c0_37 = arith.constant 0 : index
    %c0_38 = arith.constant 0 : index
    %56 = vector.load %arg6[%c0_37, %c0_38] : memref<128x64xbf16, #tpu.memory_space<vmem>>, vector<32x64xbf16>
    tpu.vector_store %arg6[%c0_37, %c0_38], %55 {strides = array<i32>} : memref<128x64xbf16, #tpu.memory_space<vmem>>, vector<32x64xbf16>,
    %c0_39 = arith.constant 0 : index
    %c129 = arith.constant 129 : index
    %57 = vector.load %arg5[%c0_39, %c129] : memref<32x256xbf16, #tpu.memory_space<vmem>>, vector<32x64xbf16>
    %cst_40 = arith.constant 0.000000e+00 : bf16
    %58 = vector.broadcast %cst_40 : bf16 to vector<32x64xbf16>
    %59 = vector.shape_cast %20 : vector<1x64xi1> to vector<1x64xi1>
    %60 = vector.broadcast %59 : vector<1x64xi1> to vector<32x64xi1>
    %61 = arith.select %60, %57, %58 : vector<32x64xi1>, vector<32x64xbf16>
    %c32_41 = arith.constant 32 : index
    %c0_42 = arith.constant 0 : index
    %62 = vector.load %arg6[%c32_41, %c0_42] : memref<128x64xbf16, #tpu.memory_space<vmem>>, vector<32x64xbf16>
    tpu.vector_store %arg6[%c32_41, %c0_42], %61 {strides = array<i32>} : memref<128x64xbf16, #tpu.memory_space<vmem>>, vector<32x64xbf16>,
    %c0_43 = arith.constant 0 : index
    %c120_44 = arith.constant 120 : index
    %63 = vector.load %arg5[%c0_43, %c120_44] : memref<32x256xbf16, #tpu.memory_space<vmem>>, vector<32x64xbf16>
    %c64_45 = arith.constant 64 : index
    %c0_46 = arith.constant 0 : index
    %64 = vector.load %arg6[%c64_45, %c0_46] : memref<128x64xbf16, #tpu.memory_space<vmem>>, vector<32x64xbf16>
    tpu.vector_store %arg6[%c64_45, %c0_46], %63 {strides = array<i32>} : memref<128x64xbf16, #tpu.memory_space<vmem>>, vector<32x64xbf16>,
    %c0_47 = arith.constant 0 : index
    %c121 = arith.constant 121 : index
    %65 = vector.load %arg5[%c0_47, %c121] : memref<32x256xbf16, #tpu.memory_space<vmem>>, vector<32x64xbf16>
    %cst_48 = arith.constant 0.000000e+00 : bf16
    %66 = vector.broadcast %cst_48 : bf16 to vector<32x64xbf16>
    %67 = vector.shape_cast %20 : vector<1x64xi1> to vector<1x64xi1>
    %68 = vector.broadcast %67 : vector<1x64xi1> to vector<32x64xi1>
    %69 = arith.select %68, %65, %66 : vector<32x64xi1>, vector<32x64xbf16>
    %c96_49 = arith.constant 96 : index
    %c0_50 = arith.constant 0 : index
    %70 = vector.load %arg6[%c96_49, %c0_50] : memref<128x64xbf16, #tpu.memory_space<vmem>>, vector<32x64xbf16>
    tpu.vector_store %arg6[%c96_49, %c0_50], %69 {strides = array<i32>} : memref<128x64xbf16, #tpu.memory_space<vmem>>, vector<32x64xbf16>,
    %c0_51 = arith.constant 0 : index
    %c0_52 = arith.constant 0 : index
    %71 = vector.load %arg6[%c0_51, %c0_52] : memref<128x64xbf16, #tpu.memory_space<vmem>>, vector<128x64xbf16>
    %c1 = arith.constant 1 : index
    %c0_53 = arith.constant 0 : index
    %c0_54 = arith.constant 0 : index
    %72 = vector.load %arg2[%c1, %c0_53, %c0_54] : memref<4x32x128xbf16, #tpu.memory_space<vmem>>, vector<1x32x128xbf16>
    %73 = vector.shape_cast %72 : vector<1x32x128xbf16> to vector<32x128xbf16>
    %cst_55 = arith.constant dense<0.000000e+00> : vector<32x64xf32>
    %74 = tpu.matmul %73, %71, %cst_55 {dimension_numbers = #tpu.dot_dimension_numbers<[1], [0], [0], [1], [0, 0, 1, 1], [], []>} : vector<32x128xbf16>, vector<128x64xbf16>, vector<32x64xf32> -> vector<32x64xf32>
    %c0_56 = arith.constant 0 : index
    %c0_57 = arith.constant 0 : index
    %75 = vector.load %arg3[%c0_56, %c0_57] : memref<32x1xf32, #tpu.memory_space<vmem>>, vector<32x1xf32>
    %76 = vector.broadcast %75 : vector<32x1xf32> to vector<32x64xf32>
    %77 = arith.addf %74, %76 : vector<32x64xf32>
    %c0_58 = arith.constant 0 : index
    %c1_59 = arith.constant 1 : index
    %c0_60 = arith.constant 0 : index
    %c0_61 = arith.constant 0 : index
    %78 = vector.load %arg4[%c0_58, %c1_59, %c0_60, %c0_61] : memref<1x4x32x64xf32, #tpu.memory_space<vmem>>, vector<1x1x32x64xf32>
    %79 = vector.shape_cast %78 : vector<1x1x32x64xf32> to vector<32x64xf32>
    %80 = vector.shape_cast %77 : vector<32x64xf32> to vector<1x1x32x64xf32>
    tpu.vector_store %arg4[%c0_58, %c1_59, %c0_60, %c0_61], %80 {strides = array<i32>} : memref<1x4x32x64xf32, #tpu.memory_space<vmem>>, vector<1x1x32x64xf32>,
    %c0_62 = arith.constant 0 : index
    %c128_63 = arith.constant 128 : index
    %81 = vector.load %arg5[%c0_62, %c128_63] : memref<32x256xbf16, #tpu.memory_space<vmem>>, vector<32x64xbf16>
    %c0_64 = arith.constant 0 : index
    %c0_65 = arith.constant 0 : index
    %82 = vector.load %arg6[%c0_64, %c0_65] : memref<128x64xbf16, #tpu.memory_space<vmem>>, vector<32x64xbf16>
    tpu.vector_store %arg6[%c0_64, %c0_65], %81 {strides = array<i32>} : memref<128x64xbf16, #tpu.memory_space<vmem>>, vector<32x64xbf16>,
    %c0_66 = arith.constant 0 : index
    %c127_67 = arith.constant 127 : index
    %83 = vector.load %arg5[%c0_66, %c127_67] : memref<32x256xbf16, #tpu.memory_space<vmem>>, vector<32x64xbf16>
    %cst_68 = arith.constant 0.000000e+00 : bf16
    %84 = vector.broadcast %cst_68 : bf16 to vector<32x64xbf16>
    %85 = vector.shape_cast %11 : vector<1x64xi1> to vector<1x64xi1>
    %86 = vector.broadcast %85 : vector<1x64xi1> to vector<32x64xi1>
    %87 = arith.select %86, %83, %84 : vector<32x64xi1>, vector<32x64xbf16>
    %c32_69 = arith.constant 32 : index
    %c0_70 = arith.constant 0 : index
    %88 = vector.load %arg6[%c32_69, %c0_70] : memref<128x64xbf16, #tpu.memory_space<vmem>>, vector<32x64xbf16>
    tpu.vector_store %arg6[%c32_69, %c0_70], %87 {strides = array<i32>} : memref<128x64xbf16, #tpu.memory_space<vmem>>, vector<32x64xbf16>,
    %c0_71 = arith.constant 0 : index
    %c136 = arith.constant 136 : index
    %89 = vector.load %arg5[%c0_71, %c136] : memref<32x256xbf16, #tpu.memory_space<vmem>>, vector<32x64xbf16>
    %c64_72 = arith.constant 64 : index
    %c0_73 = arith.constant 0 : index
    %90 = vector.load %arg6[%c64_72, %c0_73] : memref<128x64xbf16, #tpu.memory_space<vmem>>, vector<32x64xbf16>
    tpu.vector_store %arg6[%c64_72, %c0_73], %89 {strides = array<i32>} : memref<128x64xbf16, #tpu.memory_space<vmem>>, vector<32x64xbf16>,
    %c0_74 = arith.constant 0 : index
    %c135 = arith.constant 135 : index
    %91 = vector.load %arg5[%c0_74, %c135] : memref<32x256xbf16, #tpu.memory_space<vmem>>, vector<32x64xbf16>
    %cst_75 = arith.constant 0.000000e+00 : bf16
    %92 = vector.broadcast %cst_75 : bf16 to vector<32x64xbf16>
    %93 = vector.shape_cast %11 : vector<1x64xi1> to vector<1x64xi1>
    %94 = vector.broadcast %93 : vector<1x64xi1> to vector<32x64xi1>
    %95 = arith.select %94, %91, %92 : vector<32x64xi1>, vector<32x64xbf16>
    %c96_76 = arith.constant 96 : index
    %c0_77 = arith.constant 0 : index
    %96 = vector.load %arg6[%c96_76, %c0_77] : memref<128x64xbf16, #tpu.memory_space<vmem>>, vector<32x64xbf16>
    tpu.vector_store %arg6[%c96_76, %c0_77], %95 {strides = array<i32>} : memref<128x64xbf16, #tpu.memory_space<vmem>>, vector<32x64xbf16>,
    %c0_78 = arith.constant 0 : index
    %c0_79 = arith.constant 0 : index
    %97 = vector.load %arg6[%c0_78, %c0_79] : memref<128x64xbf16, #tpu.memory_space<vmem>>, vector<128x64xbf16>
    %c2 = arith.constant 2 : index
    %c0_80 = arith.constant 0 : index
    %c0_81 = arith.constant 0 : index
    %98 = vector.load %arg2[%c2, %c0_80, %c0_81] : memref<4x32x128xbf16, #tpu.memory_space<vmem>>, vector<1x32x128xbf16>
    %99 = vector.shape_cast %98 : vector<1x32x128xbf16> to vector<32x128xbf16>
    %cst_82 = arith.constant dense<0.000000e+00> : vector<32x64xf32>
    %100 = tpu.matmul %99, %97, %cst_82 {dimension_numbers = #tpu.dot_dimension_numbers<[1], [0], [0], [1], [0, 0, 1, 1], [], []>} : vector<32x128xbf16>, vector<128x64xbf16>, vector<32x64xf32> -> vector<32x64xf32>
    %c0_83 = arith.constant 0 : index
    %c0_84 = arith.constant 0 : index
    %101 = vector.load %arg3[%c0_83, %c0_84] : memref<32x1xf32, #tpu.memory_space<vmem>>, vector<32x1xf32>
    %102 = vector.broadcast %101 : vector<32x1xf32> to vector<32x64xf32>
    %103 = arith.addf %100, %102 : vector<32x64xf32>
    %c0_85 = arith.constant 0 : index
    %c2_86 = arith.constant 2 : index
    %c0_87 = arith.constant 0 : index
    %c0_88 = arith.constant 0 : index
    %104 = vector.load %arg4[%c0_85, %c2_86, %c0_87, %c0_88] : memref<1x4x32x64xf32, #tpu.memory_space<vmem>>, vector<1x1x32x64xf32>
    %105 = vector.shape_cast %104 : vector<1x1x32x64xf32> to vector<32x64xf32>
    %106 = vector.shape_cast %103 : vector<32x64xf32> to vector<1x1x32x64xf32>
    tpu.vector_store %arg4[%c0_85, %c2_86, %c0_87, %c0_88], %106 {strides = array<i32>} : memref<1x4x32x64xf32, #tpu.memory_space<vmem>>, vector<1x1x32x64xf32>,
    %c0_89 = arith.constant 0 : index
    %c128_90 = arith.constant 128 : index
    %107 = vector.load %arg5[%c0_89, %c128_90] : memref<32x256xbf16, #tpu.memory_space<vmem>>, vector<32x64xbf16>
    %c0_91 = arith.constant 0 : index
    %c0_92 = arith.constant 0 : index
    %108 = vector.load %arg6[%c0_91, %c0_92] : memref<128x64xbf16, #tpu.memory_space<vmem>>, vector<32x64xbf16>
    tpu.vector_store %arg6[%c0_91, %c0_92], %107 {strides = array<i32>} : memref<128x64xbf16, #tpu.memory_space<vmem>>, vector<32x64xbf16>,
    %c0_93 = arith.constant 0 : index
    %c129_94 = arith.constant 129 : index
    %109 = vector.load %arg5[%c0_93, %c129_94] : memref<32x256xbf16, #tpu.memory_space<vmem>>, vector<32x64xbf16>
    %cst_95 = arith.constant 0.000000e+00 : bf16
    %110 = vector.broadcast %cst_95 : bf16 to vector<32x64xbf16>
    %111 = vector.shape_cast %20 : vector<1x64xi1> to vector<1x64xi1>
    %112 = vector.broadcast %111 : vector<1x64xi1> to vector<32x64xi1>
    %113 = arith.select %112, %109, %110 : vector<32x64xi1>, vector<32x64xbf16>
    %c32_96 = arith.constant 32 : index
    %c0_97 = arith.constant 0 : index
    %114 = vector.load %arg6[%c32_96, %c0_97] : memref<128x64xbf16, #tpu.memory_space<vmem>>, vector<32x64xbf16>
    tpu.vector_store %arg6[%c32_96, %c0_97], %113 {strides = array<i32>} : memref<128x64xbf16, #tpu.memory_space<vmem>>, vector<32x64xbf16>,
    %c0_98 = arith.constant 0 : index
    %c136_99 = arith.constant 136 : index
    %115 = vector.load %arg5[%c0_98, %c136_99] : memref<32x256xbf16, #tpu.memory_space<vmem>>, vector<32x64xbf16>
    %c64_100 = arith.constant 64 : index
    %c0_101 = arith.constant 0 : index
    %116 = vector.load %arg6[%c64_100, %c0_101] : memref<128x64xbf16, #tpu.memory_space<vmem>>, vector<32x64xbf16>
    tpu.vector_store %arg6[%c64_100, %c0_101], %115 {strides = array<i32>} : memref<128x64xbf16, #tpu.memory_space<vmem>>, vector<32x64xbf16>,
    %c0_102 = arith.constant 0 : index
    %c137 = arith.constant 137 : index
    %117 = vector.load %arg5[%c0_102, %c137] : memref<32x256xbf16, #tpu.memory_space<vmem>>, vector<32x64xbf16>
    %cst_103 = arith.constant 0.000000e+00 : bf16
    %118 = vector.broadcast %cst_103 : bf16 to vector<32x64xbf16>
    %119 = vector.shape_cast %20 : vector<1x64xi1> to vector<1x64xi1>
    %120 = vector.broadcast %119 : vector<1x64xi1> to vector<32x64xi1>
    %121 = arith.select %120, %117, %118 : vector<32x64xi1>, vector<32x64xbf16>
    %c96_104 = arith.constant 96 : index
    %c0_105 = arith.constant 0 : index
    %122 = vector.load %arg6[%c96_104, %c0_105] : memref<128x64xbf16, #tpu.memory_space<vmem>>, vector<32x64xbf16>
    tpu.vector_store %arg6[%c96_104, %c0_105], %121 {strides = array<i32>} : memref<128x64xbf16, #tpu.memory_space<vmem>>, vector<32x64xbf16>,
    %c0_106 = arith.constant 0 : index
    %c0_107 = arith.constant 0 : index
    %123 = vector.load %arg6[%c0_106, %c0_107] : memref<128x64xbf16, #tpu.memory_space<vmem>>, vector<128x64xbf16>
    %c3 = arith.constant 3 : index
    %c0_108 = arith.constant 0 : index
    %c0_109 = arith.constant 0 : index
    %124 = vector.load %arg2[%c3, %c0_108, %c0_109] : memref<4x32x128xbf16, #tpu.memory_space<vmem>>, vector<1x32x128xbf16>
    %125 = vector.shape_cast %124 : vector<1x32x128xbf16> to vector<32x128xbf16>
    %cst_110 = arith.constant dense<0.000000e+00> : vector<32x64xf32>
    %126 = tpu.matmul %125, %123, %cst_110 {dimension_numbers = #tpu.dot_dimension_numbers<[1], [0], [0], [1], [0, 0, 1, 1], [], []>} : vector<32x128xbf16>, vector<128x64xbf16>, vector<32x64xf32> -> vector<32x64xf32>
    %c0_111 = arith.constant 0 : index
    %c0_112 = arith.constant 0 : index
    %127 = vector.load %arg3[%c0_111, %c0_112] : memref<32x1xf32, #tpu.memory_space<vmem>>, vector<32x1xf32>
    %128 = vector.broadcast %127 : vector<32x1xf32> to vector<32x64xf32>
    %129 = arith.addf %126, %128 : vector<32x64xf32>
    %c0_113 = arith.constant 0 : index
    %c3_114 = arith.constant 3 : index
    %c0_115 = arith.constant 0 : index
    %c0_116 = arith.constant 0 : index
    %130 = vector.load %arg4[%c0_113, %c3_114, %c0_115, %c0_116] : memref<1x4x32x64xf32, #tpu.memory_space<vmem>>, vector<1x1x32x64xf32>
    %131 = vector.shape_cast %130 : vector<1x1x32x64xf32> to vector<32x64xf32>
    %132 = vector.shape_cast %129 : vector<32x64xf32> to vector<1x1x32x64xf32>
    tpu.vector_store %arg4[%c0_113, %c3_114, %c0_115, %c0_116], %132 {strides = array<i32>} : memref<1x4x32x64xf32, #tpu.memory_space<vmem>>, vector<1x1x32x64xf32>,
    return
  }
  func.func @transform_0(%arg0: i32) -> (i32, i32, i32) {
    %c0_i32 = arith.constant 0 : i32
    %c0_i32_0 = arith.constant 0 : i32
    %c0_i32_1 = arith.constant 0 : i32
    return %arg0, %c0_i32, %c0_i32_0 : i32, i32, i32
  }
  func.func @transform_1(%arg0: i32) -> (i32, i32, i32) {
    %c0_i32 = arith.constant 0 : i32
    %c0_i32_0 = arith.constant 0 : i32
    %c0_i32_1 = arith.constant 0 : i32
    %c0_i32_2 = arith.constant 0 : i32
    return %c0_i32, %c0_i32_0, %c0_i32_1 : i32, i32, i32
  }
  func.func @transform_2(%arg0: i32) -> (i32, i32) {
    %c0_i32 = arith.constant 0 : i32
    %c0_i32_0 = arith.constant 0 : i32
    %c0_i32_1 = arith.constant 0 : i32
    return %c0_i32, %c0_i32_0 : i32, i32
  }
  func.func @transform_3(%arg0: i32) -> (i32, i32, i32, i32) {
    %c0_i32 = arith.constant 0 : i32
    %c0_i32_0 = arith.constant 0 : i32
    %c0_i32_1 = arith.constant 0 : i32
    %c0_i32_2 = arith.constant 0 : i32
    return %arg0, %c0_i32, %c0_i32_0, %c0_i32_1 : i32, i32, i32, i32
  }
}

module attributes {stable_mosaic.version = 11 : i64} {
  func.func @_layer_kernel(%arg0: i32, %arg1: memref<1x64x256xf32, #tpu.memory_space<vmem>>, %arg2: memref<1x32x1xf32, #tpu.memory_space<vmem>>, %arg3: memref<64x1xf32, #tpu.memory_space<vmem>>, %arg4: memref<64x1xf32, #tpu.memory_space<vmem>>, %arg5: memref<32x576xbf16, #tpu.memory_space<vmem>>, %arg6: memref<32x1xf32, #tpu.memory_space<vmem>>, %arg7: memref<32x1xf32, #tpu.memory_space<vmem>>, %arg8: memref<32x288xbf16, #tpu.memory_space<vmem>>, %arg9: memref<32x1xf32, #tpu.memory_space<vmem>>, %arg10: memref<32x64xbf16, #tpu.memory_space<vmem>>, %arg11: memref<32x1xf32, #tpu.memory_space<vmem>>, %arg12: memref<32x1xf32, #tpu.memory_space<vmem>>, %arg13: memref<32x1xf32, #tpu.memory_space<vmem>>, %arg14: memref<96x32xbf16, #tpu.memory_space<vmem>>, %arg15: memref<96x1xf32, #tpu.memory_space<vmem>>, %arg16: memref<32x32xbf16, #tpu.memory_space<vmem>>, %arg17: memref<32x1xf32, #tpu.memory_space<vmem>>, %arg18: memref<1x32x256xf32, #tpu.memory_space<vmem>>, %arg19: memref<64x512xbf16, #tpu.memory_space<vmem>>, %arg20: memref<576x256xbf16, #tpu.memory_space<vmem>>, %arg21: memref<32x256xbf16, #tpu.memory_space<vmem>>) attributes {dimension_semantics = [#tpu.dimension_semantics<parallel>], iteration_bounds = array<i64: 2>, scalar_prefetch = 0 : i64, scratch_operands = 3 : i64, tpu.core_type = #tpu.core_type<tc>, window_params = [{transform_indices = @transform_0, window_bounds = array<i64: 1, 64, 256>}, {transform_indices = @transform_1, window_bounds = array<i64: 1, 32, 1>}, {pipeline_mode = #tpu.pipeline_mode<synchronous>, transform_indices = @transform_2, window_bounds = array<i64: 64, 1>}, {pipeline_mode = #tpu.pipeline_mode<synchronous>, transform_indices = @transform_3, window_bounds = array<i64: 64, 1>}, {pipeline_mode = #tpu.pipeline_mode<synchronous>, transform_indices = @transform_4, window_bounds = array<i64: 32, 576>}, {pipeline_mode = #tpu.pipeline_mode<synchronous>, transform_indices = @transform_5, window_bounds = array<i64: 32, 1>}, {pipeline_mode = #tpu.pipeline_mode<synchronous>, transform_indices = @transform_6, window_bounds = array<i64: 32, 1>}, {pipeline_mode = #tpu.pipeline_mode<synchronous>, transform_indices = @transform_7, window_bounds = array<i64: 32, 288>}, {pipeline_mode = #tpu.pipeline_mode<synchronous>, transform_indices = @transform_8, window_bounds = array<i64: 32, 1>}, {pipeline_mode = #tpu.pipeline_mode<synchronous>, transform_indices = @transform_9, window_bounds = array<i64: 32, 64>}, {pipeline_mode = #tpu.pipeline_mode<synchronous>, transform_indices = @transform_10, window_bounds = array<i64: 32, 1>}, {pipeline_mode = #tpu.pipeline_mode<synchronous>, transform_indices = @transform_11, window_bounds = array<i64: 32, 1>}, {pipeline_mode = #tpu.pipeline_mode<synchronous>, transform_indices = @transform_12, window_bounds = array<i64: 32, 1>}, {pipeline_mode = #tpu.pipeline_mode<synchronous>, transform_indices = @transform_13, window_bounds = array<i64: 96, 32>}, {pipeline_mode = #tpu.pipeline_mode<synchronous>, transform_indices = @transform_14, window_bounds = array<i64: 96, 1>}, {pipeline_mode = #tpu.pipeline_mode<synchronous>, transform_indices = @transform_15, window_bounds = array<i64: 32, 32>}, {pipeline_mode = #tpu.pipeline_mode<synchronous>, transform_indices = @transform_16, window_bounds = array<i64: 32, 1>}, {transform_indices = @transform_17, window_bounds = array<i64: 1, 32, 256>}]} {
    %0 = tpu.iota {dimensions = array<i32: 1>} : vector<1x256xi32>
    %c15_i32 = arith.constant 15 : i32
    %1 = vector.broadcast %c15_i32 : i32 to vector<1x256xi32>
    %2 = arith.andi %0, %1 : vector<1x256xi32>
    %c-1_i32 = arith.constant -1 : i32
    %3 = vector.broadcast %c-1_i32 : i32 to vector<1x256xi32>
    %4 = arith.addi %2, %3 : vector<1x256xi32>
    %c0_i32 = arith.constant 0 : i32
    %5 = vector.broadcast %c0_i32 : i32 to vector<1x256xi32>
    %6 = arith.cmpi sge, %4, %5 : vector<1x256xi32>
    %c-1_i32_0 = arith.constant -1 : i32
    %7 = vector.broadcast %c-1_i32_0 : i32 to vector<1x256xi32>
    %8 = arith.addi %2, %7 : vector<1x256xi32>
    %c16_i32 = arith.constant 16 : i32
    %9 = vector.broadcast %c16_i32 : i32 to vector<1x256xi32>
    %10 = arith.cmpi slt, %8, %9 : vector<1x256xi32>
    %11 = arith.andi %6, %10 : vector<1x256xi1>
    %c1_i32 = arith.constant 1 : i32
    %12 = vector.broadcast %c1_i32 : i32 to vector<1x256xi32>
    %13 = arith.addi %2, %12 : vector<1x256xi32>
    %c0_i32_1 = arith.constant 0 : i32
    %14 = vector.broadcast %c0_i32_1 : i32 to vector<1x256xi32>
    %15 = arith.cmpi sge, %13, %14 : vector<1x256xi32>
    %c1_i32_2 = arith.constant 1 : i32
    %16 = vector.broadcast %c1_i32_2 : i32 to vector<1x256xi32>
    %17 = arith.addi %2, %16 : vector<1x256xi32>
    %c16_i32_3 = arith.constant 16 : i32
    %18 = vector.broadcast %c16_i32_3 : i32 to vector<1x256xi32>
    %19 = arith.cmpi slt, %17, %18 : vector<1x256xi32>
    %20 = arith.andi %15, %19 : vector<1x256xi1>
    %cst = arith.constant 0.000000e+00 : bf16
    %21 = vector.broadcast %cst : bf16 to vector<64x128xbf16>
    %c0 = arith.constant 0 : index
    %c0_4 = arith.constant 0 : index
    %22 = vector.load %arg19[%c0, %c0_4] : memref<64x512xbf16, #tpu.memory_space<vmem>>, vector<64x128xbf16>
    tpu.vector_store %arg19[%c0, %c0_4], %21 {strides = array<i32>} : memref<64x512xbf16, #tpu.memory_space<vmem>>, vector<64x128xbf16>,
    %cst_5 = arith.constant 0.000000e+00 : bf16
    %23 = vector.broadcast %cst_5 : bf16 to vector<64x128xbf16>
    %c0_6 = arith.constant 0 : index
    %c384 = arith.constant 384 : index
    %24 = vector.load %arg19[%c0_6, %c384] : memref<64x512xbf16, #tpu.memory_space<vmem>>, vector<64x128xbf16>
    tpu.vector_store %arg19[%c0_6, %c384], %23 {strides = array<i32>} : memref<64x512xbf16, #tpu.memory_space<vmem>>, vector<64x128xbf16>,
    %c0_7 = arith.constant 0 : index
    %c0_8 = arith.constant 0 : index
    %c0_9 = arith.constant 0 : index
    %25 = vector.load %arg1[%c0_7, %c0_8, %c0_9] : memref<1x64x256xf32, #tpu.memory_space<vmem>>, vector<1x64x256xf32>
    %26 = vector.shape_cast %25 : vector<1x64x256xf32> to vector<64x256xf32>
    %c0_10 = arith.constant 0 : index
    %c0_11 = arith.constant 0 : index
    %27 = vector.load %arg3[%c0_10, %c0_11] : memref<64x1xf32, #tpu.memory_space<vmem>>, vector<64x1xf32>
    %c0_12 = arith.constant 0 : index
    %c0_13 = arith.constant 0 : index
    %28 = vector.load %arg4[%c0_12, %c0_13] : memref<64x1xf32, #tpu.memory_space<vmem>>, vector<64x1xf32>
    %cst_14 = arith.constant dense<0.000000e+00> : vector<64xf32>
    %29 = vector.multi_reduction <add>, %26, %cst_14 [1] : vector<64x256xf32> to vector<64xf32>
    %30 = vector.shape_cast %29 : vector<64xf32> to vector<64x1xf32>
    %31 = arith.mulf %26, %26 : vector<64x256xf32>
    %cst_15 = arith.constant dense<0.000000e+00> : vector<64xf32>
    %32 = vector.multi_reduction <add>, %31, %cst_15 [1] : vector<64x256xf32> to vector<64xf32>
    %33 = vector.shape_cast %32 : vector<64xf32> to vector<64x1xf32>
    %34 = tpu.iota {dimensions = array<i32: 0>} : vector<64x1xi32>
    %cst_16 = arith.constant 0.000000e+00 : f32
    %35 = vector.broadcast %cst_16 : f32 to vector<64x1xf32>
    %cst_17 = arith.constant 0.000000e+00 : f32
    %36 = vector.broadcast %cst_17 : f32 to vector<64x1xf32>
    %c0_i32_18 = arith.constant 0 : i32
    %37 = vector.broadcast %c0_i32_18 : i32 to vector<64x1xi32>
    %38 = arith.cmpi sge, %34, %37 : vector<64x1xi32>
    %c8_i32 = arith.constant 8 : i32
    %39 = vector.broadcast %c8_i32 : i32 to vector<64x1xi32>
    %40 = arith.cmpi slt, %34, %39 : vector<64x1xi32>
    %41 = arith.andi %38, %40 : vector<64x1xi1>
    %42 = arith.extui %41 : vector<64x1xi1> to vector<64x1xi32>
    %43 = arith.sitofp %42 : vector<64x1xi32> to vector<64x1xf32>
    %44 = arith.mulf %30, %43 : vector<64x1xf32>
    %cst_19 = arith.constant dense<0.000000e+00> : vector<1xf32>
    %45 = vector.multi_reduction <add>, %44, %cst_19 [0] : vector<64x1xf32> to vector<1xf32>
    %46 = vector.shape_cast %45 : vector<1xf32> to vector<1x1xf32>
    %47 = vector.broadcast %46 : vector<1x1xf32> to vector<64x1xf32>
    %48 = arith.mulf %43, %47 : vector<64x1xf32>
    %49 = arith.addf %35, %48 : vector<64x1xf32>
    %50 = arith.mulf %33, %43 : vector<64x1xf32>
    %cst_20 = arith.constant dense<0.000000e+00> : vector<1xf32>
    %51 = vector.multi_reduction <add>, %50, %cst_20 [0] : vector<64x1xf32> to vector<1xf32>
    %52 = vector.shape_cast %51 : vector<1xf32> to vector<1x1xf32>
    %53 = vector.broadcast %52 : vector<1x1xf32> to vector<64x1xf32>
    %54 = arith.mulf %43, %53 : vector<64x1xf32>
    %55 = arith.addf %36, %54 : vector<64x1xf32>
    %c8_i32_21 = arith.constant 8 : i32
    %56 = vector.broadcast %c8_i32_21 : i32 to vector<64x1xi32>
    %57 = arith.cmpi sge, %34, %56 : vector<64x1xi32>
    %c16_i32_22 = arith.constant 16 : i32
    %58 = vector.broadcast %c16_i32_22 : i32 to vector<64x1xi32>
    %59 = arith.cmpi slt, %34, %58 : vector<64x1xi32>
    %60 = arith.andi %57, %59 : vector<64x1xi1>
    %61 = arith.extui %60 : vector<64x1xi1> to vector<64x1xi32>
    %62 = arith.sitofp %61 : vector<64x1xi32> to vector<64x1xf32>
    %63 = arith.mulf %30, %62 : vector<64x1xf32>
    %cst_23 = arith.constant dense<0.000000e+00> : vector<1xf32>
    %64 = vector.multi_reduction <add>, %63, %cst_23 [0] : vector<64x1xf32> to vector<1xf32>
    %65 = vector.shape_cast %64 : vector<1xf32> to vector<1x1xf32>
    %66 = vector.broadcast %65 : vector<1x1xf32> to vector<64x1xf32>
    %67 = arith.mulf %62, %66 : vector<64x1xf32>
    %68 = arith.addf %49, %67 : vector<64x1xf32>
    %69 = arith.mulf %33, %62 : vector<64x1xf32>
    %cst_24 = arith.constant dense<0.000000e+00> : vector<1xf32>
    %70 = vector.multi_reduction <add>, %69, %cst_24 [0] : vector<64x1xf32> to vector<1xf32>
    %71 = vector.shape_cast %70 : vector<1xf32> to vector<1x1xf32>
    %72 = vector.broadcast %71 : vector<1x1xf32> to vector<64x1xf32>
    %73 = arith.mulf %62, %72 : vector<64x1xf32>
    %74 = arith.addf %55, %73 : vector<64x1xf32>
    %c16_i32_25 = arith.constant 16 : i32
    %75 = vector.broadcast %c16_i32_25 : i32 to vector<64x1xi32>
    %76 = arith.cmpi sge, %34, %75 : vector<64x1xi32>
    %c24_i32 = arith.constant 24 : i32
    %77 = vector.broadcast %c24_i32 : i32 to vector<64x1xi32>
    %78 = arith.cmpi slt, %34, %77 : vector<64x1xi32>
    %79 = arith.andi %76, %78 : vector<64x1xi1>
    %80 = arith.extui %79 : vector<64x1xi1> to vector<64x1xi32>
    %81 = arith.sitofp %80 : vector<64x1xi32> to vector<64x1xf32>
    %82 = arith.mulf %30, %81 : vector<64x1xf32>
    %cst_26 = arith.constant dense<0.000000e+00> : vector<1xf32>
    %83 = vector.multi_reduction <add>, %82, %cst_26 [0] : vector<64x1xf32> to vector<1xf32>
    %84 = vector.shape_cast %83 : vector<1xf32> to vector<1x1xf32>
    %85 = vector.broadcast %84 : vector<1x1xf32> to vector<64x1xf32>
    %86 = arith.mulf %81, %85 : vector<64x1xf32>
    %87 = arith.addf %68, %86 : vector<64x1xf32>
    %88 = arith.mulf %33, %81 : vector<64x1xf32>
    %cst_27 = arith.constant dense<0.000000e+00> : vector<1xf32>
    %89 = vector.multi_reduction <add>, %88, %cst_27 [0] : vector<64x1xf32> to vector<1xf32>
    %90 = vector.shape_cast %89 : vector<1xf32> to vector<1x1xf32>
    %91 = vector.broadcast %90 : vector<1x1xf32> to vector<64x1xf32>
    %92 = arith.mulf %81, %91 : vector<64x1xf32>
    %93 = arith.addf %74, %92 : vector<64x1xf32>
    %c24_i32_28 = arith.constant 24 : i32
    %94 = vector.broadcast %c24_i32_28 : i32 to vector<64x1xi32>
    %95 = arith.cmpi sge, %34, %94 : vector<64x1xi32>
    %c32_i32 = arith.constant 32 : i32
    %96 = vector.broadcast %c32_i32 : i32 to vector<64x1xi32>
    %97 = arith.cmpi slt, %34, %96 : vector<64x1xi32>
    %98 = arith.andi %95, %97 : vector<64x1xi1>
    %99 = arith.extui %98 : vector<64x1xi1> to vector<64x1xi32>
    %100 = arith.sitofp %99 : vector<64x1xi32> to vector<64x1xf32>
    %101 = arith.mulf %30, %100 : vector<64x1xf32>
    %cst_29 = arith.constant dense<0.000000e+00> : vector<1xf32>
    %102 = vector.multi_reduction <add>, %101, %cst_29 [0] : vector<64x1xf32> to vector<1xf32>
    %103 = vector.shape_cast %102 : vector<1xf32> to vector<1x1xf32>
    %104 = vector.broadcast %103 : vector<1x1xf32> to vector<64x1xf32>
    %105 = arith.mulf %100, %104 : vector<64x1xf32>
    %106 = arith.addf %87, %105 : vector<64x1xf32>
    %107 = arith.mulf %33, %100 : vector<64x1xf32>
    %cst_30 = arith.constant dense<0.000000e+00> : vector<1xf32>
    %108 = vector.multi_reduction <add>, %107, %cst_30 [0] : vector<64x1xf32> to vector<1xf32>
    %109 = vector.shape_cast %108 : vector<1xf32> to vector<1x1xf32>
    %110 = vector.broadcast %109 : vector<1x1xf32> to vector<64x1xf32>
    %111 = arith.mulf %100, %110 : vector<64x1xf32>
    %112 = arith.addf %93, %111 : vector<64x1xf32>
    %c32_i32_31 = arith.constant 32 : i32
    %113 = vector.broadcast %c32_i32_31 : i32 to vector<64x1xi32>
    %114 = arith.cmpi sge, %34, %113 : vector<64x1xi32>
    %c40_i32 = arith.constant 40 : i32
    %115 = vector.broadcast %c40_i32 : i32 to vector<64x1xi32>
    %116 = arith.cmpi slt, %34, %115 : vector<64x1xi32>
    %117 = arith.andi %114, %116 : vector<64x1xi1>
    %118 = arith.extui %117 : vector<64x1xi1> to vector<64x1xi32>
    %119 = arith.sitofp %118 : vector<64x1xi32> to vector<64x1xf32>
    %120 = arith.mulf %30, %119 : vector<64x1xf32>
    %cst_32 = arith.constant dense<0.000000e+00> : vector<1xf32>
    %121 = vector.multi_reduction <add>, %120, %cst_32 [0] : vector<64x1xf32> to vector<1xf32>
    %122 = vector.shape_cast %121 : vector<1xf32> to vector<1x1xf32>
    %123 = vector.broadcast %122 : vector<1x1xf32> to vector<64x1xf32>
    %124 = arith.mulf %119, %123 : vector<64x1xf32>
    %125 = arith.addf %106, %124 : vector<64x1xf32>
    %126 = arith.mulf %33, %119 : vector<64x1xf32>
    %cst_33 = arith.constant dense<0.000000e+00> : vector<1xf32>
    %127 = vector.multi_reduction <add>, %126, %cst_33 [0] : vector<64x1xf32> to vector<1xf32>
    %128 = vector.shape_cast %127 : vector<1xf32> to vector<1x1xf32>
    %129 = vector.broadcast %128 : vector<1x1xf32> to vector<64x1xf32>
    %130 = arith.mulf %119, %129 : vector<64x1xf32>
    %131 = arith.addf %112, %130 : vector<64x1xf32>
    %c40_i32_34 = arith.constant 40 : i32
    %132 = vector.broadcast %c40_i32_34 : i32 to vector<64x1xi32>
    %133 = arith.cmpi sge, %34, %132 : vector<64x1xi32>
    %c48_i32 = arith.constant 48 : i32
    %134 = vector.broadcast %c48_i32 : i32 to vector<64x1xi32>
    %135 = arith.cmpi slt, %34, %134 : vector<64x1xi32>
    %136 = arith.andi %133, %135 : vector<64x1xi1>
    %137 = arith.extui %136 : vector<64x1xi1> to vector<64x1xi32>
    %138 = arith.sitofp %137 : vector<64x1xi32> to vector<64x1xf32>
    %139 = arith.mulf %30, %138 : vector<64x1xf32>
    %cst_35 = arith.constant dense<0.000000e+00> : vector<1xf32>
    %140 = vector.multi_reduction <add>, %139, %cst_35 [0] : vector<64x1xf32> to vector<1xf32>
    %141 = vector.shape_cast %140 : vector<1xf32> to vector<1x1xf32>
    %142 = vector.broadcast %141 : vector<1x1xf32> to vector<64x1xf32>
    %143 = arith.mulf %138, %142 : vector<64x1xf32>
    %144 = arith.addf %125, %143 : vector<64x1xf32>
    %145 = arith.mulf %33, %138 : vector<64x1xf32>
    %cst_36 = arith.constant dense<0.000000e+00> : vector<1xf32>
    %146 = vector.multi_reduction <add>, %145, %cst_36 [0] : vector<64x1xf32> to vector<1xf32>
    %147 = vector.shape_cast %146 : vector<1xf32> to vector<1x1xf32>
    %148 = vector.broadcast %147 : vector<1x1xf32> to vector<64x1xf32>
    %149 = arith.mulf %138, %148 : vector<64x1xf32>
    %150 = arith.addf %131, %149 : vector<64x1xf32>
    %c48_i32_37 = arith.constant 48 : i32
    %151 = vector.broadcast %c48_i32_37 : i32 to vector<64x1xi32>
    %152 = arith.cmpi sge, %34, %151 : vector<64x1xi32>
    %c56_i32 = arith.constant 56 : i32
    %153 = vector.broadcast %c56_i32 : i32 to vector<64x1xi32>
    %154 = arith.cmpi slt, %34, %153 : vector<64x1xi32>
    %155 = arith.andi %152, %154 : vector<64x1xi1>
    %156 = arith.extui %155 : vector<64x1xi1> to vector<64x1xi32>
    %157 = arith.sitofp %156 : vector<64x1xi32> to vector<64x1xf32>
    %158 = arith.mulf %30, %157 : vector<64x1xf32>
    %cst_38 = arith.constant dense<0.000000e+00> : vector<1xf32>
    %159 = vector.multi_reduction <add>, %158, %cst_38 [0] : vector<64x1xf32> to vector<1xf32>
    %160 = vector.shape_cast %159 : vector<1xf32> to vector<1x1xf32>
    %161 = vector.broadcast %160 : vector<1x1xf32> to vector<64x1xf32>
    %162 = arith.mulf %157, %161 : vector<64x1xf32>
    %163 = arith.addf %144, %162 : vector<64x1xf32>
    %164 = arith.mulf %33, %157 : vector<64x1xf32>
    %cst_39 = arith.constant dense<0.000000e+00> : vector<1xf32>
    %165 = vector.multi_reduction <add>, %164, %cst_39 [0] : vector<64x1xf32> to vector<1xf32>
    %166 = vector.shape_cast %165 : vector<1xf32> to vector<1x1xf32>
    %167 = vector.broadcast %166 : vector<1x1xf32> to vector<64x1xf32>
    %168 = arith.mulf %157, %167 : vector<64x1xf32>
    %169 = arith.addf %150, %168 : vector<64x1xf32>
    %c56_i32_40 = arith.constant 56 : i32
    %170 = vector.broadcast %c56_i32_40 : i32 to vector<64x1xi32>
    %171 = arith.cmpi sge, %34, %170 : vector<64x1xi32>
    %c64_i32 = arith.constant 64 : i32
    %172 = vector.broadcast %c64_i32 : i32 to vector<64x1xi32>
    %173 = arith.cmpi slt, %34, %172 : vector<64x1xi32>
    %174 = arith.andi %171, %173 : vector<64x1xi1>
    %175 = arith.extui %174 : vector<64x1xi1> to vector<64x1xi32>
    %176 = arith.sitofp %175 : vector<64x1xi32> to vector<64x1xf32>
    %177 = arith.mulf %30, %176 : vector<64x1xf32>
    %cst_41 = arith.constant dense<0.000000e+00> : vector<1xf32>
    %178 = vector.multi_reduction <add>, %177, %cst_41 [0] : vector<64x1xf32> to vector<1xf32>
    %179 = vector.shape_cast %178 : vector<1xf32> to vector<1x1xf32>
    %180 = vector.broadcast %179 : vector<1x1xf32> to vector<64x1xf32>
    %181 = arith.mulf %176, %180 : vector<64x1xf32>
    %182 = arith.addf %163, %181 : vector<64x1xf32>
    %183 = arith.mulf %33, %176 : vector<64x1xf32>
    %cst_42 = arith.constant dense<0.000000e+00> : vector<1xf32>
    %184 = vector.multi_reduction <add>, %183, %cst_42 [0] : vector<64x1xf32> to vector<1xf32>
    %185 = vector.shape_cast %184 : vector<1xf32> to vector<1x1xf32>
    %186 = vector.broadcast %185 : vector<1x1xf32> to vector<64x1xf32>
    %187 = arith.mulf %176, %186 : vector<64x1xf32>
    %188 = arith.addf %169, %187 : vector<64x1xf32>
    %cst_43 = arith.constant 4.8828125E-4 : f32
    %189 = vector.broadcast %cst_43 : f32 to vector<64x1xf32>
    %190 = arith.mulf %182, %189 : vector<64x1xf32>
    %cst_44 = arith.constant 4.8828125E-4 : f32
    %191 = vector.broadcast %cst_44 : f32 to vector<64x1xf32>
    %192 = arith.mulf %188, %191 : vector<64x1xf32>
    %193 = arith.mulf %190, %190 : vector<64x1xf32>
    %194 = arith.subf %192, %193 : vector<64x1xf32>
    %195 = vector.broadcast %190 : vector<64x1xf32> to vector<64x256xf32>
    %196 = arith.subf %26, %195 : vector<64x256xf32>
    %cst_45 = arith.constant 9.99999974E-6 : f32
    %197 = vector.broadcast %cst_45 : f32 to vector<64x1xf32>
    %198 = arith.addf %194, %197 : vector<64x1xf32>
    %199 = math.rsqrt %198 : vector<64x1xf32>
    %200 = arith.mulf %199, %27 : vector<64x1xf32>
    %201 = vector.broadcast %200 : vector<64x1xf32> to vector<64x256xf32>
    %202 = arith.mulf %196, %201 : vector<64x256xf32>
    %203 = vector.broadcast %28 : vector<64x1xf32> to vector<64x256xf32>
    %204 = arith.addf %202, %203 : vector<64x256xf32>
    %205 = arith.negf %204 : vector<64x256xf32>
    %206 = math.exp %205 : vector<64x256xf32>
    %cst_46 = arith.constant 1.000000e+00 : f32
    %207 = vector.broadcast %cst_46 : f32 to vector<64x256xf32>
    %208 = arith.addf %207, %206 : vector<64x256xf32>
    %209 = arith.divf %207, %208 : vector<64x256xf32>
    %210 = arith.mulf %204, %209 : vector<64x256xf32>
    %211 = arith.truncf %210 : vector<64x256xf32> to vector<64x256xbf16>
    %c0_47 = arith.constant 0 : index
    %c128 = arith.constant 128 : index
    %212 = vector.load %arg19[%c0_47, %c128] : memref<64x512xbf16, #tpu.memory_space<vmem>>, vector<64x256xbf16>
    tpu.vector_store %arg19[%c0_47, %c128], %211 {strides = array<i32>} : memref<64x512xbf16, #tpu.memory_space<vmem>>, vector<64x256xbf16>,
    %c0_48 = arith.constant 0 : index
    %c111 = arith.constant 111 : index
    %213 = vector.load %arg19[%c0_48, %c111] : memref<64x512xbf16, #tpu.memory_space<vmem>>, vector<64x256xbf16>
    %cst_49 = arith.constant 0.000000e+00 : bf16
    %214 = vector.broadcast %cst_49 : bf16 to vector<64x256xbf16>
    %215 = vector.shape_cast %11 : vector<1x256xi1> to vector<1x256xi1>
    %216 = vector.broadcast %215 : vector<1x256xi1> to vector<64x256xi1>
    %217 = arith.select %216, %213, %214 : vector<64x256xi1>, vector<64x256xbf16>
    %c0_50 = arith.constant 0 : index
    %c0_51 = arith.constant 0 : index
    %218 = vector.load %arg20[%c0_50, %c0_51] : memref<576x256xbf16, #tpu.memory_space<vmem>>, vector<64x256xbf16>
    tpu.vector_store %arg20[%c0_50, %c0_51], %217 {strides = array<i32>} : memref<576x256xbf16, #tpu.memory_space<vmem>>, vector<64x256xbf16>,
    %c0_52 = arith.constant 0 : index
    %c112 = arith.constant 112 : index
    %219 = vector.load %arg19[%c0_52, %c112] : memref<64x512xbf16, #tpu.memory_space<vmem>>, vector<64x256xbf16>
    %c64 = arith.constant 64 : index
    %c0_53 = arith.constant 0 : index
    %220 = vector.load %arg20[%c64, %c0_53] : memref<576x256xbf16, #tpu.memory_space<vmem>>, vector<64x256xbf16>
    tpu.vector_store %arg20[%c64, %c0_53], %219 {strides = array<i32>} : memref<576x256xbf16, #tpu.memory_space<vmem>>, vector<64x256xbf16>,
    %c0_54 = arith.constant 0 : index
    %c113 = arith.constant 113 : index
    %221 = vector.load %arg19[%c0_54, %c113] : memref<64x512xbf16, #tpu.memory_space<vmem>>, vector<64x256xbf16>
    %cst_55 = arith.constant 0.000000e+00 : bf16
    %222 = vector.broadcast %cst_55 : bf16 to vector<64x256xbf16>
    %223 = vector.shape_cast %20 : vector<1x256xi1> to vector<1x256xi1>
    %224 = vector.broadcast %223 : vector<1x256xi1> to vector<64x256xi1>
    %225 = arith.select %224, %221, %222 : vector<64x256xi1>, vector<64x256xbf16>
    %c128_56 = arith.constant 128 : index
    %c0_57 = arith.constant 0 : index
    %226 = vector.load %arg20[%c128_56, %c0_57] : memref<576x256xbf16, #tpu.memory_space<vmem>>, vector<64x256xbf16>
    tpu.vector_store %arg20[%c128_56, %c0_57], %225 {strides = array<i32>} : memref<576x256xbf16, #tpu.memory_space<vmem>>, vector<64x256xbf16>,
    %c0_58 = arith.constant 0 : index
    %c127 = arith.constant 127 : index
    %227 = vector.load %arg19[%c0_58, %c127] : memref<64x512xbf16, #tpu.memory_space<vmem>>, vector<64x256xbf16>
    %cst_59 = arith.constant 0.000000e+00 : bf16
    %228 = vector.broadcast %cst_59 : bf16 to vector<64x256xbf16>
    %229 = vector.shape_cast %11 : vector<1x256xi1> to vector<1x256xi1>
    %230 = vector.broadcast %229 : vector<1x256xi1> to vector<64x256xi1>
    %231 = arith.select %230, %227, %228 : vector<64x256xi1>, vector<64x256xbf16>
    %c192 = arith.constant 192 : index
    %c0_60 = arith.constant 0 : index
    %232 = vector.load %arg20[%c192, %c0_60] : memref<576x256xbf16, #tpu.memory_space<vmem>>, vector<64x256xbf16>
    tpu.vector_store %arg20[%c192, %c0_60], %231 {strides = array<i32>} : memref<576x256xbf16, #tpu.memory_space<vmem>>, vector<64x256xbf16>,
    %c0_61 = arith.constant 0 : index
    %c128_62 = arith.constant 128 : index
    %233 = vector.load %arg19[%c0_61, %c128_62] : memref<64x512xbf16, #tpu.memory_space<vmem>>, vector<64x256xbf16>
    %c256 = arith.constant 256 : index
    %c0_63 = arith.constant 0 : index
    %234 = vector.load %arg20[%c256, %c0_63] : memref<576x256xbf16, #tpu.memory_space<vmem>>, vector<64x256xbf16>
    tpu.vector_store %arg20[%c256, %c0_63], %233 {strides = array<i32>} : memref<576x256xbf16, #tpu.memory_space<vmem>>, vector<64x256xbf16>,
    %c0_64 = arith.constant 0 : index
    %c129 = arith.constant 129 : index
    %235 = vector.load %arg19[%c0_64, %c129] : memref<64x512xbf16, #tpu.memory_space<vmem>>, vector<64x256xbf16>
    %cst_65 = arith.constant 0.000000e+00 : bf16
    %236 = vector.broadcast %cst_65 : bf16 to vector<64x256xbf16>
    %237 = vector.shape_cast %20 : vector<1x256xi1> to vector<1x256xi1>
    %238 = vector.broadcast %237 : vector<1x256xi1> to vector<64x256xi1>
    %239 = arith.select %238, %235, %236 : vector<64x256xi1>, vector<64x256xbf16>
    %c320 = arith.constant 320 : index
    %c0_66 = arith.constant 0 : index
    %240 = vector.load %arg20[%c320, %c0_66] : memref<576x256xbf16, #tpu.memory_space<vmem>>, vector<64x256xbf16>
    tpu.vector_store %arg20[%c320, %c0_66], %239 {strides = array<i32>} : memref<576x256xbf16, #tpu.memory_space<vmem>>, vector<64x256xbf16>,
    %c0_67 = arith.constant 0 : index
    %c143 = arith.constant 143 : index
    %241 = vector.load %arg19[%c0_67, %c143] : memref<64x512xbf16, #tpu.memory_space<vmem>>, vector<64x256xbf16>
    %cst_68 = arith.constant 0.000000e+00 : bf16
    %242 = vector.broadcast %cst_68 : bf16 to vector<64x256xbf16>
    %243 = vector.shape_cast %11 : vector<1x256xi1> to vector<1x256xi1>
    %244 = vector.broadcast %243 : vector<1x256xi1> to vector<64x256xi1>
    %245 = arith.select %244, %241, %242 : vector<64x256xi1>, vector<64x256xbf16>
    %c384_69 = arith.constant 384 : index
    %c0_70 = arith.constant 0 : index
    %246 = vector.load %arg20[%c384_69, %c0_70] : memref<576x256xbf16, #tpu.memory_space<vmem>>, vector<64x256xbf16>
    tpu.vector_store %arg20[%c384_69, %c0_70], %245 {strides = array<i32>} : memref<576x256xbf16, #tpu.memory_space<vmem>>, vector<64x256xbf16>,
    %c0_71 = arith.constant 0 : index
    %c144 = arith.constant 144 : index
    %247 = vector.load %arg19[%c0_71, %c144] : memref<64x512xbf16, #tpu.memory_space<vmem>>, vector<64x256xbf16>
    %c448 = arith.constant 448 : index
    %c0_72 = arith.constant 0 : index
    %248 = vector.load %arg20[%c448, %c0_72] : memref<576x256xbf16, #tpu.memory_space<vmem>>, vector<64x256xbf16>
    tpu.vector_store %arg20[%c448, %c0_72], %247 {strides = array<i32>} : memref<576x256xbf16, #tpu.memory_space<vmem>>, vector<64x256xbf16>,
    %c0_73 = arith.constant 0 : index
    %c145 = arith.constant 145 : index
    %249 = vector.load %arg19[%c0_73, %c145] : memref<64x512xbf16, #tpu.memory_space<vmem>>, vector<64x256xbf16>
    %cst_74 = arith.constant 0.000000e+00 : bf16
    %250 = vector.broadcast %cst_74 : bf16 to vector<64x256xbf16>
    %251 = vector.shape_cast %20 : vector<1x256xi1> to vector<1x256xi1>
    %252 = vector.broadcast %251 : vector<1x256xi1> to vector<64x256xi1>
    %253 = arith.select %252, %249, %250 : vector<64x256xi1>, vector<64x256xbf16>
    %c512 = arith.constant 512 : index
    %c0_75 = arith.constant 0 : index
    %254 = vector.load %arg20[%c512, %c0_75] : memref<576x256xbf16, #tpu.memory_space<vmem>>, vector<64x256xbf16>
    tpu.vector_store %arg20[%c512, %c0_75], %253 {strides = array<i32>} : memref<576x256xbf16, #tpu.memory_space<vmem>>, vector<64x256xbf16>,
    %c0_76 = arith.constant 0 : index
    %c0_77 = arith.constant 0 : index
    %255 = vector.load %arg20[%c0_76, %c0_77] : memref<576x256xbf16, #tpu.memory_space<vmem>>, vector<576x256xbf16>
    %c0_78 = arith.constant 0 : index
    %c0_79 = arith.constant 0 : index
    %256 = vector.load %arg5[%c0_78, %c0_79] : memref<32x576xbf16, #tpu.memory_space<vmem>>, vector<32x576xbf16>
    %cst_80 = arith.constant dense<0.000000e+00> : vector<32x256xf32>
    %257 = tpu.matmul %256, %255, %cst_80 {dimension_numbers = #tpu.dot_dimension_numbers<[1], [0], [0], [1], [0, 0, 1, 1], [], []>} : vector<32x576xbf16>, vector<576x256xbf16>, vector<32x256xf32> -> vector<32x256xf32>
    %c0_81 = arith.constant 0 : index
    %c0_82 = arith.constant 0 : index
    %c0_83 = arith.constant 0 : index
    %258 = vector.load %arg2[%c0_81, %c0_82, %c0_83] : memref<1x32x1xf32, #tpu.memory_space<vmem>>, vector<1x32x1xf32>
    %259 = vector.shape_cast %258 : vector<1x32x1xf32> to vector<32x1xf32>
    %260 = vector.broadcast %259 : vector<32x1xf32> to vector<32x256xf32>
    %261 = arith.addf %257, %260 : vector<32x256xf32>
    %c0_84 = arith.constant 0 : index
    %c0_85 = arith.constant 0 : index
    %262 = vector.load %arg6[%c0_84, %c0_85] : memref<32x1xf32, #tpu.memory_space<vmem>>, vector<32x1xf32>
    %c0_86 = arith.constant 0 : index
    %c0_87 = arith.constant 0 : index
    %263 = vector.load %arg7[%c0_86, %c0_87] : memref<32x1xf32, #tpu.memory_space<vmem>>, vector<32x1xf32>
    %cst_88 = arith.constant dense<0.000000e+00> : vector<32xf32>
    %264 = vector.multi_reduction <add>, %261, %cst_88 [1] : vector<32x256xf32> to vector<32xf32>
    %265 = vector.shape_cast %264 : vector<32xf32> to vector<32x1xf32>
    %266 = arith.mulf %261, %261 : vector<32x256xf32>
    %cst_89 = arith.constant dense<0.000000e+00> : vector<32xf32>
    %267 = vector.multi_reduction <add>, %266, %cst_89 [1] : vector<32x256xf32> to vector<32xf32>
    %268 = vector.shape_cast %267 : vector<32xf32> to vector<32x1xf32>
    %269 = tpu.iota {dimensions = array<i32: 0>} : vector<32x1xi32>
    %cst_90 = arith.constant 0.000000e+00 : f32
    %270 = vector.broadcast %cst_90 : f32 to vector<32x1xf32>
    %cst_91 = arith.constant 0.000000e+00 : f32
    %271 = vector.broadcast %cst_91 : f32 to vector<32x1xf32>
    %c0_i32_92 = arith.constant 0 : i32
    %272 = vector.broadcast %c0_i32_92 : i32 to vector<32x1xi32>
    %273 = arith.cmpi sge, %269, %272 : vector<32x1xi32>
    %c4_i32 = arith.constant 4 : i32
    %274 = vector.broadcast %c4_i32 : i32 to vector<32x1xi32>
    %275 = arith.cmpi slt, %269, %274 : vector<32x1xi32>
    %276 = arith.andi %273, %275 : vector<32x1xi1>
    %277 = arith.extui %276 : vector<32x1xi1> to vector<32x1xi32>
    %278 = arith.sitofp %277 : vector<32x1xi32> to vector<32x1xf32>
    %279 = arith.mulf %265, %278 : vector<32x1xf32>
    %cst_93 = arith.constant dense<0.000000e+00> : vector<1xf32>
    %280 = vector.multi_reduction <add>, %279, %cst_93 [0] : vector<32x1xf32> to vector<1xf32>
    %281 = vector.shape_cast %280 : vector<1xf32> to vector<1x1xf32>
    %282 = vector.broadcast %281 : vector<1x1xf32> to vector<32x1xf32>
    %283 = arith.mulf %278, %282 : vector<32x1xf32>
    %284 = arith.addf %270, %283 : vector<32x1xf32>
    %285 = arith.mulf %268, %278 : vector<32x1xf32>
    %cst_94 = arith.constant dense<0.000000e+00> : vector<1xf32>
    %286 = vector.multi_reduction <add>, %285, %cst_94 [0] : vector<32x1xf32> to vector<1xf32>
    %287 = vector.shape_cast %286 : vector<1xf32> to vector<1x1xf32>
    %288 = vector.broadcast %287 : vector<1x1xf32> to vector<32x1xf32>
    %289 = arith.mulf %278, %288 : vector<32x1xf32>
    %290 = arith.addf %271, %289 : vector<32x1xf32>
    %c4_i32_95 = arith.constant 4 : i32
    %291 = vector.broadcast %c4_i32_95 : i32 to vector<32x1xi32>
    %292 = arith.cmpi sge, %269, %291 : vector<32x1xi32>
    %c8_i32_96 = arith.constant 8 : i32
    %293 = vector.broadcast %c8_i32_96 : i32 to vector<32x1xi32>
    %294 = arith.cmpi slt, %269, %293 : vector<32x1xi32>
    %295 = arith.andi %292, %294 : vector<32x1xi1>
    %296 = arith.extui %295 : vector<32x1xi1> to vector<32x1xi32>
    %297 = arith.sitofp %296 : vector<32x1xi32> to vector<32x1xf32>
    %298 = arith.mulf %265, %297 : vector<32x1xf32>
    %cst_97 = arith.constant dense<0.000000e+00> : vector<1xf32>
    %299 = vector.multi_reduction <add>, %298, %cst_97 [0] : vector<32x1xf32> to vector<1xf32>
    %300 = vector.shape_cast %299 : vector<1xf32> to vector<1x1xf32>
    %301 = vector.broadcast %300 : vector<1x1xf32> to vector<32x1xf32>
    %302 = arith.mulf %297, %301 : vector<32x1xf32>
    %303 = arith.addf %284, %302 : vector<32x1xf32>
    %304 = arith.mulf %268, %297 : vector<32x1xf32>
    %cst_98 = arith.constant dense<0.000000e+00> : vector<1xf32>
    %305 = vector.multi_reduction <add>, %304, %cst_98 [0] : vector<32x1xf32> to vector<1xf32>
    %306 = vector.shape_cast %305 : vector<1xf32> to vector<1x1xf32>
    %307 = vector.broadcast %306 : vector<1x1xf32> to vector<32x1xf32>
    %308 = arith.mulf %297, %307 : vector<32x1xf32>
    %309 = arith.addf %290, %308 : vector<32x1xf32>
    %c8_i32_99 = arith.constant 8 : i32
    %310 = vector.broadcast %c8_i32_99 : i32 to vector<32x1xi32>
    %311 = arith.cmpi sge, %269, %310 : vector<32x1xi32>
    %c12_i32 = arith.constant 12 : i32
    %312 = vector.broadcast %c12_i32 : i32 to vector<32x1xi32>
    %313 = arith.cmpi slt, %269, %312 : vector<32x1xi32>
    %314 = arith.andi %311, %313 : vector<32x1xi1>
    %315 = arith.extui %314 : vector<32x1xi1> to vector<32x1xi32>
    %316 = arith.sitofp %315 : vector<32x1xi32> to vector<32x1xf32>
    %317 = arith.mulf %265, %316 : vector<32x1xf32>
    %cst_100 = arith.constant dense<0.000000e+00> : vector<1xf32>
    %318 = vector.multi_reduction <add>, %317, %cst_100 [0] : vector<32x1xf32> to vector<1xf32>
    %319 = vector.shape_cast %318 : vector<1xf32> to vector<1x1xf32>
    %320 = vector.broadcast %319 : vector<1x1xf32> to vector<32x1xf32>
    %321 = arith.mulf %316, %320 : vector<32x1xf32>
    %322 = arith.addf %303, %321 : vector<32x1xf32>
    %323 = arith.mulf %268, %316 : vector<32x1xf32>
    %cst_101 = arith.constant dense<0.000000e+00> : vector<1xf32>
    %324 = vector.multi_reduction <add>, %323, %cst_101 [0] : vector<32x1xf32> to vector<1xf32>
    %325 = vector.shape_cast %324 : vector<1xf32> to vector<1x1xf32>
    %326 = vector.broadcast %325 : vector<1x1xf32> to vector<32x1xf32>
    %327 = arith.mulf %316, %326 : vector<32x1xf32>
    %328 = arith.addf %309, %327 : vector<32x1xf32>
    %c12_i32_102 = arith.constant 12 : i32
    %329 = vector.broadcast %c12_i32_102 : i32 to vector<32x1xi32>
    %330 = arith.cmpi sge, %269, %329 : vector<32x1xi32>
    %c16_i32_103 = arith.constant 16 : i32
    %331 = vector.broadcast %c16_i32_103 : i32 to vector<32x1xi32>
    %332 = arith.cmpi slt, %269, %331 : vector<32x1xi32>
    %333 = arith.andi %330, %332 : vector<32x1xi1>
    %334 = arith.extui %333 : vector<32x1xi1> to vector<32x1xi32>
    %335 = arith.sitofp %334 : vector<32x1xi32> to vector<32x1xf32>
    %336 = arith.mulf %265, %335 : vector<32x1xf32>
    %cst_104 = arith.constant dense<0.000000e+00> : vector<1xf32>
    %337 = vector.multi_reduction <add>, %336, %cst_104 [0] : vector<32x1xf32> to vector<1xf32>
    %338 = vector.shape_cast %337 : vector<1xf32> to vector<1x1xf32>
    %339 = vector.broadcast %338 : vector<1x1xf32> to vector<32x1xf32>
    %340 = arith.mulf %335, %339 : vector<32x1xf32>
    %341 = arith.addf %322, %340 : vector<32x1xf32>
    %342 = arith.mulf %268, %335 : vector<32x1xf32>
    %cst_105 = arith.constant dense<0.000000e+00> : vector<1xf32>
    %343 = vector.multi_reduction <add>, %342, %cst_105 [0] : vector<32x1xf32> to vector<1xf32>
    %344 = vector.shape_cast %343 : vector<1xf32> to vector<1x1xf32>
    %345 = vector.broadcast %344 : vector<1x1xf32> to vector<32x1xf32>
    %346 = arith.mulf %335, %345 : vector<32x1xf32>
    %347 = arith.addf %328, %346 : vector<32x1xf32>
    %c16_i32_106 = arith.constant 16 : i32
    %348 = vector.broadcast %c16_i32_106 : i32 to vector<32x1xi32>
    %349 = arith.cmpi sge, %269, %348 : vector<32x1xi32>
    %c20_i32 = arith.constant 20 : i32
    %350 = vector.broadcast %c20_i32 : i32 to vector<32x1xi32>
    %351 = arith.cmpi slt, %269, %350 : vector<32x1xi32>
    %352 = arith.andi %349, %351 : vector<32x1xi1>
    %353 = arith.extui %352 : vector<32x1xi1> to vector<32x1xi32>
    %354 = arith.sitofp %353 : vector<32x1xi32> to vector<32x1xf32>
    %355 = arith.mulf %265, %354 : vector<32x1xf32>
    %cst_107 = arith.constant dense<0.000000e+00> : vector<1xf32>
    %356 = vector.multi_reduction <add>, %355, %cst_107 [0] : vector<32x1xf32> to vector<1xf32>
    %357 = vector.shape_cast %356 : vector<1xf32> to vector<1x1xf32>
    %358 = vector.broadcast %357 : vector<1x1xf32> to vector<32x1xf32>
    %359 = arith.mulf %354, %358 : vector<32x1xf32>
    %360 = arith.addf %341, %359 : vector<32x1xf32>
    %361 = arith.mulf %268, %354 : vector<32x1xf32>
    %cst_108 = arith.constant dense<0.000000e+00> : vector<1xf32>
    %362 = vector.multi_reduction <add>, %361, %cst_108 [0] : vector<32x1xf32> to vector<1xf32>
    %363 = vector.shape_cast %362 : vector<1xf32> to vector<1x1xf32>
    %364 = vector.broadcast %363 : vector<1x1xf32> to vector<32x1xf32>
    %365 = arith.mulf %354, %364 : vector<32x1xf32>
    %366 = arith.addf %347, %365 : vector<32x1xf32>
    %c20_i32_109 = arith.constant 20 : i32
    %367 = vector.broadcast %c20_i32_109 : i32 to vector<32x1xi32>
    %368 = arith.cmpi sge, %269, %367 : vector<32x1xi32>
    %c24_i32_110 = arith.constant 24 : i32
    %369 = vector.broadcast %c24_i32_110 : i32 to vector<32x1xi32>
    %370 = arith.cmpi slt, %269, %369 : vector<32x1xi32>
    %371 = arith.andi %368, %370 : vector<32x1xi1>
    %372 = arith.extui %371 : vector<32x1xi1> to vector<32x1xi32>
    %373 = arith.sitofp %372 : vector<32x1xi32> to vector<32x1xf32>
    %374 = arith.mulf %265, %373 : vector<32x1xf32>
    %cst_111 = arith.constant dense<0.000000e+00> : vector<1xf32>
    %375 = vector.multi_reduction <add>, %374, %cst_111 [0] : vector<32x1xf32> to vector<1xf32>
    %376 = vector.shape_cast %375 : vector<1xf32> to vector<1x1xf32>
    %377 = vector.broadcast %376 : vector<1x1xf32> to vector<32x1xf32>
    %378 = arith.mulf %373, %377 : vector<32x1xf32>
    %379 = arith.addf %360, %378 : vector<32x1xf32>
    %380 = arith.mulf %268, %373 : vector<32x1xf32>
    %cst_112 = arith.constant dense<0.000000e+00> : vector<1xf32>
    %381 = vector.multi_reduction <add>, %380, %cst_112 [0] : vector<32x1xf32> to vector<1xf32>
    %382 = vector.shape_cast %381 : vector<1xf32> to vector<1x1xf32>
    %383 = vector.broadcast %382 : vector<1x1xf32> to vector<32x1xf32>
    %384 = arith.mulf %373, %383 : vector<32x1xf32>
    %385 = arith.addf %366, %384 : vector<32x1xf32>
    %c24_i32_113 = arith.constant 24 : i32
    %386 = vector.broadcast %c24_i32_113 : i32 to vector<32x1xi32>
    %387 = arith.cmpi sge, %269, %386 : vector<32x1xi32>
    %c28_i32 = arith.constant 28 : i32
    %388 = vector.broadcast %c28_i32 : i32 to vector<32x1xi32>
    %389 = arith.cmpi slt, %269, %388 : vector<32x1xi32>
    %390 = arith.andi %387, %389 : vector<32x1xi1>
    %391 = arith.extui %390 : vector<32x1xi1> to vector<32x1xi32>
    %392 = arith.sitofp %391 : vector<32x1xi32> to vector<32x1xf32>
    %393 = arith.mulf %265, %392 : vector<32x1xf32>
    %cst_114 = arith.constant dense<0.000000e+00> : vector<1xf32>
    %394 = vector.multi_reduction <add>, %393, %cst_114 [0] : vector<32x1xf32> to vector<1xf32>
    %395 = vector.shape_cast %394 : vector<1xf32> to vector<1x1xf32>
    %396 = vector.broadcast %395 : vector<1x1xf32> to vector<32x1xf32>
    %397 = arith.mulf %392, %396 : vector<32x1xf32>
    %398 = arith.addf %379, %397 : vector<32x1xf32>
    %399 = arith.mulf %268, %392 : vector<32x1xf32>
    %cst_115 = arith.constant dense<0.000000e+00> : vector<1xf32>
    %400 = vector.multi_reduction <add>, %399, %cst_115 [0] : vector<32x1xf32> to vector<1xf32>
    %401 = vector.shape_cast %400 : vector<1xf32> to vector<1x1xf32>
    %402 = vector.broadcast %401 : vector<1x1xf32> to vector<32x1xf32>
    %403 = arith.mulf %392, %402 : vector<32x1xf32>
    %404 = arith.addf %385, %403 : vector<32x1xf32>
    %c28_i32_116 = arith.constant 28 : i32
    %405 = vector.broadcast %c28_i32_116 : i32 to vector<32x1xi32>
    %406 = arith.cmpi sge, %269, %405 : vector<32x1xi32>
    %c32_i32_117 = arith.constant 32 : i32
    %407 = vector.broadcast %c32_i32_117 : i32 to vector<32x1xi32>
    %408 = arith.cmpi slt, %269, %407 : vector<32x1xi32>
    %409 = arith.andi %406, %408 : vector<32x1xi1>
    %410 = arith.extui %409 : vector<32x1xi1> to vector<32x1xi32>
    %411 = arith.sitofp %410 : vector<32x1xi32> to vector<32x1xf32>
    %412 = arith.mulf %265, %411 : vector<32x1xf32>
    %cst_118 = arith.constant dense<0.000000e+00> : vector<1xf32>
    %413 = vector.multi_reduction <add>, %412, %cst_118 [0] : vector<32x1xf32> to vector<1xf32>
    %414 = vector.shape_cast %413 : vector<1xf32> to vector<1x1xf32>
    %415 = vector.broadcast %414 : vector<1x1xf32> to vector<32x1xf32>
    %416 = arith.mulf %411, %415 : vector<32x1xf32>
    %417 = arith.addf %398, %416 : vector<32x1xf32>
    %418 = arith.mulf %268, %411 : vector<32x1xf32>
    %cst_119 = arith.constant dense<0.000000e+00> : vector<1xf32>
    %419 = vector.multi_reduction <add>, %418, %cst_119 [0] : vector<32x1xf32> to vector<1xf32>
    %420 = vector.shape_cast %419 : vector<1xf32> to vector<1x1xf32>
    %421 = vector.broadcast %420 : vector<1x1xf32> to vector<32x1xf32>
    %422 = arith.mulf %411, %421 : vector<32x1xf32>
    %423 = arith.addf %404, %422 : vector<32x1xf32>
    %cst_120 = arith.constant 9.765625E-4 : f32
    %424 = vector.broadcast %cst_120 : f32 to vector<32x1xf32>
    %425 = arith.mulf %417, %424 : vector<32x1xf32>
    %cst_121 = arith.constant 9.765625E-4 : f32
    %426 = vector.broadcast %cst_121 : f32 to vector<32x1xf32>
    %427 = arith.mulf %423, %426 : vector<32x1xf32>
    %428 = arith.mulf %425, %425 : vector<32x1xf32>
    %429 = arith.subf %427, %428 : vector<32x1xf32>
    %430 = vector.broadcast %425 : vector<32x1xf32> to vector<32x256xf32>
    %431 = arith.subf %261, %430 : vector<32x256xf32>
    %cst_122 = arith.constant 9.99999974E-6 : f32
    %432 = vector.broadcast %cst_122 : f32 to vector<32x1xf32>
    %433 = arith.addf %429, %432 : vector<32x1xf32>
    %434 = math.rsqrt %433 : vector<32x1xf32>
    %435 = arith.mulf %434, %262 : vector<32x1xf32>
    %436 = vector.broadcast %435 : vector<32x1xf32> to vector<32x256xf32>
    %437 = arith.mulf %431, %436 : vector<32x256xf32>
    %438 = vector.broadcast %263 : vector<32x1xf32> to vector<32x256xf32>
    %439 = arith.addf %437, %438 : vector<32x256xf32>
    %440 = arith.negf %439 : vector<32x256xf32>
    %441 = math.exp %440 : vector<32x256xf32>
    %cst_123 = arith.constant 1.000000e+00 : f32
    %442 = vector.broadcast %cst_123 : f32 to vector<32x256xf32>
    %443 = arith.addf %442, %441 : vector<32x256xf32>
    %444 = arith.divf %442, %443 : vector<32x256xf32>
    %445 = arith.mulf %439, %444 : vector<32x256xf32>
    %446 = arith.truncf %445 : vector<32x256xf32> to vector<32x256xbf16>
    %c0_124 = arith.constant 0 : index
    %c128_125 = arith.constant 128 : index
    %447 = vector.load %arg19[%c0_124, %c128_125] : memref<64x512xbf16, #tpu.memory_space<vmem>>, vector<32x256xbf16>
    tpu.vector_store %arg19[%c0_124, %c128_125], %446 {strides = array<i32>} : memref<64x512xbf16, #tpu.memory_space<vmem>>, vector<32x256xbf16>,
    %c0_126 = arith.constant 0 : index
    %c111_127 = arith.constant 111 : index
    %448 = vector.load %arg19[%c0_126, %c111_127] : memref<64x512xbf16, #tpu.memory_space<vmem>>, vector<32x256xbf16>
    %cst_128 = arith.constant 0.000000e+00 : bf16
    %449 = vector.broadcast %cst_128 : bf16 to vector<32x256xbf16>
    %450 = vector.shape_cast %11 : vector<1x256xi1> to vector<1x256xi1>
    %451 = vector.broadcast %450 : vector<1x256xi1> to vector<32x256xi1>
    %452 = arith.select %451, %448, %449 : vector<32x256xi1>, vector<32x256xbf16>
    %c0_129 = arith.constant 0 : index
    %c0_130 = arith.constant 0 : index
    %453 = vector.load %arg20[%c0_129, %c0_130] : memref<576x256xbf16, #tpu.memory_space<vmem>>, vector<32x256xbf16>
    tpu.vector_store %arg20[%c0_129, %c0_130], %452 {strides = array<i32>} : memref<576x256xbf16, #tpu.memory_space<vmem>>, vector<32x256xbf16>,
    %c0_131 = arith.constant 0 : index
    %c112_132 = arith.constant 112 : index
    %454 = vector.load %arg19[%c0_131, %c112_132] : memref<64x512xbf16, #tpu.memory_space<vmem>>, vector<32x256xbf16>
    %c32 = arith.constant 32 : index
    %c0_133 = arith.constant 0 : index
    %455 = vector.load %arg20[%c32, %c0_133] : memref<576x256xbf16, #tpu.memory_space<vmem>>, vector<32x256xbf16>
    tpu.vector_store %arg20[%c32, %c0_133], %454 {strides = array<i32>} : memref<576x256xbf16, #tpu.memory_space<vmem>>, vector<32x256xbf16>,
    %c0_134 = arith.constant 0 : index
    %c113_135 = arith.constant 113 : index
    %456 = vector.load %arg19[%c0_134, %c113_135] : memref<64x512xbf16, #tpu.memory_space<vmem>>, vector<32x256xbf16>
    %cst_136 = arith.constant 0.000000e+00 : bf16
    %457 = vector.broadcast %cst_136 : bf16 to vector<32x256xbf16>
    %458 = vector.shape_cast %20 : vector<1x256xi1> to vector<1x256xi1>
    %459 = vector.broadcast %458 : vector<1x256xi1> to vector<32x256xi1>
    %460 = arith.select %459, %456, %457 : vector<32x256xi1>, vector<32x256xbf16>
    %c64_137 = arith.constant 64 : index
    %c0_138 = arith.constant 0 : index
    %461 = vector.load %arg20[%c64_137, %c0_138] : memref<576x256xbf16, #tpu.memory_space<vmem>>, vector<32x256xbf16>
    tpu.vector_store %arg20[%c64_137, %c0_138], %460 {strides = array<i32>} : memref<576x256xbf16, #tpu.memory_space<vmem>>, vector<32x256xbf16>,
    %c0_139 = arith.constant 0 : index
    %c127_140 = arith.constant 127 : index
    %462 = vector.load %arg19[%c0_139, %c127_140] : memref<64x512xbf16, #tpu.memory_space<vmem>>, vector<32x256xbf16>
    %cst_141 = arith.constant 0.000000e+00 : bf16
    %463 = vector.broadcast %cst_141 : bf16 to vector<32x256xbf16>
    %464 = vector.shape_cast %11 : vector<1x256xi1> to vector<1x256xi1>
    %465 = vector.broadcast %464 : vector<1x256xi1> to vector<32x256xi1>
    %466 = arith.select %465, %462, %463 : vector<32x256xi1>, vector<32x256xbf16>
    %c96 = arith.constant 96 : index
    %c0_142 = arith.constant 0 : index
    %467 = vector.load %arg20[%c96, %c0_142] : memref<576x256xbf16, #tpu.memory_space<vmem>>, vector<32x256xbf16>
    tpu.vector_store %arg20[%c96, %c0_142], %466 {strides = array<i32>} : memref<576x256xbf16, #tpu.memory_space<vmem>>, vector<32x256xbf16>,
    %c0_143 = arith.constant 0 : index
    %c128_144 = arith.constant 128 : index
    %468 = vector.load %arg19[%c0_143, %c128_144] : memref<64x512xbf16, #tpu.memory_space<vmem>>, vector<32x256xbf16>
    %c128_145 = arith.constant 128 : index
    %c0_146 = arith.constant 0 : index
    %469 = vector.load %arg20[%c128_145, %c0_146] : memref<576x256xbf16, #tpu.memory_space<vmem>>, vector<32x256xbf16>
    tpu.vector_store %arg20[%c128_145, %c0_146], %468 {strides = array<i32>} : memref<576x256xbf16, #tpu.memory_space<vmem>>, vector<32x256xbf16>,
    %c0_147 = arith.constant 0 : index
    %c129_148 = arith.constant 129 : index
    %470 = vector.load %arg19[%c0_147, %c129_148] : memref<64x512xbf16, #tpu.memory_space<vmem>>, vector<32x256xbf16>
    %cst_149 = arith.constant 0.000000e+00 : bf16
    %471 = vector.broadcast %cst_149 : bf16 to vector<32x256xbf16>
    %472 = vector.shape_cast %20 : vector<1x256xi1> to vector<1x256xi1>
    %473 = vector.broadcast %472 : vector<1x256xi1> to vector<32x256xi1>
    %474 = arith.select %473, %470, %471 : vector<32x256xi1>, vector<32x256xbf16>
    %c160 = arith.constant 160 : index
    %c0_150 = arith.constant 0 : index
    %475 = vector.load %arg20[%c160, %c0_150] : memref<576x256xbf16, #tpu.memory_space<vmem>>, vector<32x256xbf16>
    tpu.vector_store %arg20[%c160, %c0_150], %474 {strides = array<i32>} : memref<576x256xbf16, #tpu.memory_space<vmem>>, vector<32x256xbf16>,
    %c0_151 = arith.constant 0 : index
    %c143_152 = arith.constant 143 : index
    %476 = vector.load %arg19[%c0_151, %c143_152] : memref<64x512xbf16, #tpu.memory_space<vmem>>, vector<32x256xbf16>
    %cst_153 = arith.constant 0.000000e+00 : bf16
    %477 = vector.broadcast %cst_153 : bf16 to vector<32x256xbf16>
    %478 = vector.shape_cast %11 : vector<1x256xi1> to vector<1x256xi1>
    %479 = vector.broadcast %478 : vector<1x256xi1> to vector<32x256xi1>
    %480 = arith.select %479, %476, %477 : vector<32x256xi1>, vector<32x256xbf16>
    %c192_154 = arith.constant 192 : index
    %c0_155 = arith.constant 0 : index
    %481 = vector.load %arg20[%c192_154, %c0_155] : memref<576x256xbf16, #tpu.memory_space<vmem>>, vector<32x256xbf16>
    tpu.vector_store %arg20[%c192_154, %c0_155], %480 {strides = array<i32>} : memref<576x256xbf16, #tpu.memory_space<vmem>>, vector<32x256xbf16>,
    %c0_156 = arith.constant 0 : index
    %c144_157 = arith.constant 144 : index
    %482 = vector.load %arg19[%c0_156, %c144_157] : memref<64x512xbf16, #tpu.memory_space<vmem>>, vector<32x256xbf16>
    %c224 = arith.constant 224 : index
    %c0_158 = arith.constant 0 : index
    %483 = vector.load %arg20[%c224, %c0_158] : memref<576x256xbf16, #tpu.memory_space<vmem>>, vector<32x256xbf16>
    tpu.vector_store %arg20[%c224, %c0_158], %482 {strides = array<i32>} : memref<576x256xbf16, #tpu.memory_space<vmem>>, vector<32x256xbf16>,
    %c0_159 = arith.constant 0 : index
    %c145_160 = arith.constant 145 : index
    %484 = vector.load %arg19[%c0_159, %c145_160] : memref<64x512xbf16, #tpu.memory_space<vmem>>, vector<32x256xbf16>
    %cst_161 = arith.constant 0.000000e+00 : bf16
    %485 = vector.broadcast %cst_161 : bf16 to vector<32x256xbf16>
    %486 = vector.shape_cast %20 : vector<1x256xi1> to vector<1x256xi1>
    %487 = vector.broadcast %486 : vector<1x256xi1> to vector<32x256xi1>
    %488 = arith.select %487, %484, %485 : vector<32x256xi1>, vector<32x256xbf16>
    %c256_162 = arith.constant 256 : index
    %c0_163 = arith.constant 0 : index
    %489 = vector.load %arg20[%c256_162, %c0_163] : memref<576x256xbf16, #tpu.memory_space<vmem>>, vector<32x256xbf16>
    tpu.vector_store %arg20[%c256_162, %c0_163], %488 {strides = array<i32>} : memref<576x256xbf16, #tpu.memory_space<vmem>>, vector<32x256xbf16>,
    %c0_164 = arith.constant 0 : index
    %c0_165 = arith.constant 0 : index
    %490 = vector.load %arg20[%c0_164, %c0_165] : memref<576x256xbf16, #tpu.memory_space<vmem>>, vector<288x256xbf16>
    %c0_166 = arith.constant 0 : index
    %c0_167 = arith.constant 0 : index
    %491 = vector.load %arg8[%c0_166, %c0_167] : memref<32x288xbf16, #tpu.memory_space<vmem>>, vector<32x288xbf16>
    %cst_168 = arith.constant dense<0.000000e+00> : vector<32x256xf32>
    %492 = tpu.matmul %491, %490, %cst_168 {dimension_numbers = #tpu.dot_dimension_numbers<[1], [0], [0], [1], [0, 0, 1, 1], [], []>} : vector<32x288xbf16>, vector<288x256xbf16>, vector<32x256xf32> -> vector<32x256xf32>
    %c0_169 = arith.constant 0 : index
    %c0_170 = arith.constant 0 : index
    %493 = vector.load %arg9[%c0_169, %c0_170] : memref<32x1xf32, #tpu.memory_space<vmem>>, vector<32x1xf32>
    %494 = vector.broadcast %493 : vector<32x1xf32> to vector<32x256xf32>
    %495 = arith.addf %492, %494 : vector<32x256xf32>
    %c0_171 = arith.constant 0 : index
    %c0_172 = arith.constant 0 : index
    %496 = vector.load %arg10[%c0_171, %c0_172] : memref<32x64xbf16, #tpu.memory_space<vmem>>, vector<32x64xbf16>
    %497 = arith.truncf %26 : vector<64x256xf32> to vector<64x256xbf16>
    %cst_173 = arith.constant dense<0.000000e+00> : vector<32x256xf32>
    %498 = tpu.matmul %496, %497, %cst_173 {dimension_numbers = #tpu.dot_dimension_numbers<[1], [0], [0], [1], [0, 0, 1, 1], [], []>} : vector<32x64xbf16>, vector<64x256xbf16>, vector<32x256xf32> -> vector<32x256xf32>
    %c0_174 = arith.constant 0 : index
    %c0_175 = arith.constant 0 : index
    %499 = vector.load %arg11[%c0_174, %c0_175] : memref<32x1xf32, #tpu.memory_space<vmem>>, vector<32x1xf32>
    %500 = vector.broadcast %499 : vector<32x1xf32> to vector<32x256xf32>
    %501 = arith.addf %498, %500 : vector<32x256xf32>
    %502 = arith.addf %495, %501 : vector<32x256xf32>
    %c0_176 = arith.constant 0 : index
    %c0_177 = arith.constant 0 : index
    %503 = vector.load %arg12[%c0_176, %c0_177] : memref<32x1xf32, #tpu.memory_space<vmem>>, vector<32x1xf32>
    %c0_178 = arith.constant 0 : index
    %c0_179 = arith.constant 0 : index
    %504 = vector.load %arg13[%c0_178, %c0_179] : memref<32x1xf32, #tpu.memory_space<vmem>>, vector<32x1xf32>
    %cst_180 = arith.constant dense<0.000000e+00> : vector<32xf32>
    %505 = vector.multi_reduction <add>, %502, %cst_180 [1] : vector<32x256xf32> to vector<32xf32>
    %506 = vector.shape_cast %505 : vector<32xf32> to vector<32x1xf32>
    %507 = arith.mulf %502, %502 : vector<32x256xf32>
    %cst_181 = arith.constant dense<0.000000e+00> : vector<32xf32>
    %508 = vector.multi_reduction <add>, %507, %cst_181 [1] : vector<32x256xf32> to vector<32xf32>
    %509 = vector.shape_cast %508 : vector<32xf32> to vector<32x1xf32>
    %510 = tpu.iota {dimensions = array<i32: 0>} : vector<32x1xi32>
    %cst_182 = arith.constant 0.000000e+00 : f32
    %511 = vector.broadcast %cst_182 : f32 to vector<32x1xf32>
    %cst_183 = arith.constant 0.000000e+00 : f32
    %512 = vector.broadcast %cst_183 : f32 to vector<32x1xf32>
    %c0_i32_184 = arith.constant 0 : i32
    %513 = vector.broadcast %c0_i32_184 : i32 to vector<32x1xi32>
    %514 = arith.cmpi sge, %510, %513 : vector<32x1xi32>
    %c4_i32_185 = arith.constant 4 : i32
    %515 = vector.broadcast %c4_i32_185 : i32 to vector<32x1xi32>
    %516 = arith.cmpi slt, %510, %515 : vector<32x1xi32>
    %517 = arith.andi %514, %516 : vector<32x1xi1>
    %518 = arith.extui %517 : vector<32x1xi1> to vector<32x1xi32>
    %519 = arith.sitofp %518 : vector<32x1xi32> to vector<32x1xf32>
    %520 = arith.mulf %506, %519 : vector<32x1xf32>
    %cst_186 = arith.constant dense<0.000000e+00> : vector<1xf32>
    %521 = vector.multi_reduction <add>, %520, %cst_186 [0] : vector<32x1xf32> to vector<1xf32>
    %522 = vector.shape_cast %521 : vector<1xf32> to vector<1x1xf32>
    %523 = vector.broadcast %522 : vector<1x1xf32> to vector<32x1xf32>
    %524 = arith.mulf %519, %523 : vector<32x1xf32>
    %525 = arith.addf %511, %524 : vector<32x1xf32>
    %526 = arith.mulf %509, %519 : vector<32x1xf32>
    %cst_187 = arith.constant dense<0.000000e+00> : vector<1xf32>
    %527 = vector.multi_reduction <add>, %526, %cst_187 [0] : vector<32x1xf32> to vector<1xf32>
    %528 = vector.shape_cast %527 : vector<1xf32> to vector<1x1xf32>
    %529 = vector.broadcast %528 : vector<1x1xf32> to vector<32x1xf32>
    %530 = arith.mulf %519, %529 : vector<32x1xf32>
    %531 = arith.addf %512, %530 : vector<32x1xf32>
    %c4_i32_188 = arith.constant 4 : i32
    %532 = vector.broadcast %c4_i32_188 : i32 to vector<32x1xi32>
    %533 = arith.cmpi sge, %510, %532 : vector<32x1xi32>
    %c8_i32_189 = arith.constant 8 : i32
    %534 = vector.broadcast %c8_i32_189 : i32 to vector<32x1xi32>
    %535 = arith.cmpi slt, %510, %534 : vector<32x1xi32>
    %536 = arith.andi %533, %535 : vector<32x1xi1>
    %537 = arith.extui %536 : vector<32x1xi1> to vector<32x1xi32>
    %538 = arith.sitofp %537 : vector<32x1xi32> to vector<32x1xf32>
    %539 = arith.mulf %506, %538 : vector<32x1xf32>
    %cst_190 = arith.constant dense<0.000000e+00> : vector<1xf32>
    %540 = vector.multi_reduction <add>, %539, %cst_190 [0] : vector<32x1xf32> to vector<1xf32>
    %541 = vector.shape_cast %540 : vector<1xf32> to vector<1x1xf32>
    %542 = vector.broadcast %541 : vector<1x1xf32> to vector<32x1xf32>
    %543 = arith.mulf %538, %542 : vector<32x1xf32>
    %544 = arith.addf %525, %543 : vector<32x1xf32>
    %545 = arith.mulf %509, %538 : vector<32x1xf32>
    %cst_191 = arith.constant dense<0.000000e+00> : vector<1xf32>
    %546 = vector.multi_reduction <add>, %545, %cst_191 [0] : vector<32x1xf32> to vector<1xf32>
    %547 = vector.shape_cast %546 : vector<1xf32> to vector<1x1xf32>
    %548 = vector.broadcast %547 : vector<1x1xf32> to vector<32x1xf32>
    %549 = arith.mulf %538, %548 : vector<32x1xf32>
    %550 = arith.addf %531, %549 : vector<32x1xf32>
    %c8_i32_192 = arith.constant 8 : i32
    %551 = vector.broadcast %c8_i32_192 : i32 to vector<32x1xi32>
    %552 = arith.cmpi sge, %510, %551 : vector<32x1xi32>
    %c12_i32_193 = arith.constant 12 : i32
    %553 = vector.broadcast %c12_i32_193 : i32 to vector<32x1xi32>
    %554 = arith.cmpi slt, %510, %553 : vector<32x1xi32>
    %555 = arith.andi %552, %554 : vector<32x1xi1>
    %556 = arith.extui %555 : vector<32x1xi1> to vector<32x1xi32>
    %557 = arith.sitofp %556 : vector<32x1xi32> to vector<32x1xf32>
    %558 = arith.mulf %506, %557 : vector<32x1xf32>
    %cst_194 = arith.constant dense<0.000000e+00> : vector<1xf32>
    %559 = vector.multi_reduction <add>, %558, %cst_194 [0] : vector<32x1xf32> to vector<1xf32>
    %560 = vector.shape_cast %559 : vector<1xf32> to vector<1x1xf32>
    %561 = vector.broadcast %560 : vector<1x1xf32> to vector<32x1xf32>
    %562 = arith.mulf %557, %561 : vector<32x1xf32>
    %563 = arith.addf %544, %562 : vector<32x1xf32>
    %564 = arith.mulf %509, %557 : vector<32x1xf32>
    %cst_195 = arith.constant dense<0.000000e+00> : vector<1xf32>
    %565 = vector.multi_reduction <add>, %564, %cst_195 [0] : vector<32x1xf32> to vector<1xf32>
    %566 = vector.shape_cast %565 : vector<1xf32> to vector<1x1xf32>
    %567 = vector.broadcast %566 : vector<1x1xf32> to vector<32x1xf32>
    %568 = arith.mulf %557, %567 : vector<32x1xf32>
    %569 = arith.addf %550, %568 : vector<32x1xf32>
    %c12_i32_196 = arith.constant 12 : i32
    %570 = vector.broadcast %c12_i32_196 : i32 to vector<32x1xi32>
    %571 = arith.cmpi sge, %510, %570 : vector<32x1xi32>
    %c16_i32_197 = arith.constant 16 : i32
    %572 = vector.broadcast %c16_i32_197 : i32 to vector<32x1xi32>
    %573 = arith.cmpi slt, %510, %572 : vector<32x1xi32>
    %574 = arith.andi %571, %573 : vector<32x1xi1>
    %575 = arith.extui %574 : vector<32x1xi1> to vector<32x1xi32>
    %576 = arith.sitofp %575 : vector<32x1xi32> to vector<32x1xf32>
    %577 = arith.mulf %506, %576 : vector<32x1xf32>
    %cst_198 = arith.constant dense<0.000000e+00> : vector<1xf32>
    %578 = vector.multi_reduction <add>, %577, %cst_198 [0] : vector<32x1xf32> to vector<1xf32>
    %579 = vector.shape_cast %578 : vector<1xf32> to vector<1x1xf32>
    %580 = vector.broadcast %579 : vector<1x1xf32> to vector<32x1xf32>
    %581 = arith.mulf %576, %580 : vector<32x1xf32>
    %582 = arith.addf %563, %581 : vector<32x1xf32>
    %583 = arith.mulf %509, %576 : vector<32x1xf32>
    %cst_199 = arith.constant dense<0.000000e+00> : vector<1xf32>
    %584 = vector.multi_reduction <add>, %583, %cst_199 [0] : vector<32x1xf32> to vector<1xf32>
    %585 = vector.shape_cast %584 : vector<1xf32> to vector<1x1xf32>
    %586 = vector.broadcast %585 : vector<1x1xf32> to vector<32x1xf32>
    %587 = arith.mulf %576, %586 : vector<32x1xf32>
    %588 = arith.addf %569, %587 : vector<32x1xf32>
    %c16_i32_200 = arith.constant 16 : i32
    %589 = vector.broadcast %c16_i32_200 : i32 to vector<32x1xi32>
    %590 = arith.cmpi sge, %510, %589 : vector<32x1xi32>
    %c20_i32_201 = arith.constant 20 : i32
    %591 = vector.broadcast %c20_i32_201 : i32 to vector<32x1xi32>
    %592 = arith.cmpi slt, %510, %591 : vector<32x1xi32>
    %593 = arith.andi %590, %592 : vector<32x1xi1>
    %594 = arith.extui %593 : vector<32x1xi1> to vector<32x1xi32>
    %595 = arith.sitofp %594 : vector<32x1xi32> to vector<32x1xf32>
    %596 = arith.mulf %506, %595 : vector<32x1xf32>
    %cst_202 = arith.constant dense<0.000000e+00> : vector<1xf32>
    %597 = vector.multi_reduction <add>, %596, %cst_202 [0] : vector<32x1xf32> to vector<1xf32>
    %598 = vector.shape_cast %597 : vector<1xf32> to vector<1x1xf32>
    %599 = vector.broadcast %598 : vector<1x1xf32> to vector<32x1xf32>
    %600 = arith.mulf %595, %599 : vector<32x1xf32>
    %601 = arith.addf %582, %600 : vector<32x1xf32>
    %602 = arith.mulf %509, %595 : vector<32x1xf32>
    %cst_203 = arith.constant dense<0.000000e+00> : vector<1xf32>
    %603 = vector.multi_reduction <add>, %602, %cst_203 [0] : vector<32x1xf32> to vector<1xf32>
    %604 = vector.shape_cast %603 : vector<1xf32> to vector<1x1xf32>
    %605 = vector.broadcast %604 : vector<1x1xf32> to vector<32x1xf32>
    %606 = arith.mulf %595, %605 : vector<32x1xf32>
    %607 = arith.addf %588, %606 : vector<32x1xf32>
    %c20_i32_204 = arith.constant 20 : i32
    %608 = vector.broadcast %c20_i32_204 : i32 to vector<32x1xi32>
    %609 = arith.cmpi sge, %510, %608 : vector<32x1xi32>
    %c24_i32_205 = arith.constant 24 : i32
    %610 = vector.broadcast %c24_i32_205 : i32 to vector<32x1xi32>
    %611 = arith.cmpi slt, %510, %610 : vector<32x1xi32>
    %612 = arith.andi %609, %611 : vector<32x1xi1>
    %613 = arith.extui %612 : vector<32x1xi1> to vector<32x1xi32>
    %614 = arith.sitofp %613 : vector<32x1xi32> to vector<32x1xf32>
    %615 = arith.mulf %506, %614 : vector<32x1xf32>
    %cst_206 = arith.constant dense<0.000000e+00> : vector<1xf32>
    %616 = vector.multi_reduction <add>, %615, %cst_206 [0] : vector<32x1xf32> to vector<1xf32>
    %617 = vector.shape_cast %616 : vector<1xf32> to vector<1x1xf32>
    %618 = vector.broadcast %617 : vector<1x1xf32> to vector<32x1xf32>
    %619 = arith.mulf %614, %618 : vector<32x1xf32>
    %620 = arith.addf %601, %619 : vector<32x1xf32>
    %621 = arith.mulf %509, %614 : vector<32x1xf32>
    %cst_207 = arith.constant dense<0.000000e+00> : vector<1xf32>
    %622 = vector.multi_reduction <add>, %621, %cst_207 [0] : vector<32x1xf32> to vector<1xf32>
    %623 = vector.shape_cast %622 : vector<1xf32> to vector<1x1xf32>
    %624 = vector.broadcast %623 : vector<1x1xf32> to vector<32x1xf32>
    %625 = arith.mulf %614, %624 : vector<32x1xf32>
    %626 = arith.addf %607, %625 : vector<32x1xf32>
    %c24_i32_208 = arith.constant 24 : i32
    %627 = vector.broadcast %c24_i32_208 : i32 to vector<32x1xi32>
    %628 = arith.cmpi sge, %510, %627 : vector<32x1xi32>
    %c28_i32_209 = arith.constant 28 : i32
    %629 = vector.broadcast %c28_i32_209 : i32 to vector<32x1xi32>
    %630 = arith.cmpi slt, %510, %629 : vector<32x1xi32>
    %631 = arith.andi %628, %630 : vector<32x1xi1>
    %632 = arith.extui %631 : vector<32x1xi1> to vector<32x1xi32>
    %633 = arith.sitofp %632 : vector<32x1xi32> to vector<32x1xf32>
    %634 = arith.mulf %506, %633 : vector<32x1xf32>
    %cst_210 = arith.constant dense<0.000000e+00> : vector<1xf32>
    %635 = vector.multi_reduction <add>, %634, %cst_210 [0] : vector<32x1xf32> to vector<1xf32>
    %636 = vector.shape_cast %635 : vector<1xf32> to vector<1x1xf32>
    %637 = vector.broadcast %636 : vector<1x1xf32> to vector<32x1xf32>
    %638 = arith.mulf %633, %637 : vector<32x1xf32>
    %639 = arith.addf %620, %638 : vector<32x1xf32>
    %640 = arith.mulf %509, %633 : vector<32x1xf32>
    %cst_211 = arith.constant dense<0.000000e+00> : vector<1xf32>
    %641 = vector.multi_reduction <add>, %640, %cst_211 [0] : vector<32x1xf32> to vector<1xf32>
    %642 = vector.shape_cast %641 : vector<1xf32> to vector<1x1xf32>
    %643 = vector.broadcast %642 : vector<1x1xf32> to vector<32x1xf32>
    %644 = arith.mulf %633, %643 : vector<32x1xf32>
    %645 = arith.addf %626, %644 : vector<32x1xf32>
    %c28_i32_212 = arith.constant 28 : i32
    %646 = vector.broadcast %c28_i32_212 : i32 to vector<32x1xi32>
    %647 = arith.cmpi sge, %510, %646 : vector<32x1xi32>
    %c32_i32_213 = arith.constant 32 : i32
    %648 = vector.broadcast %c32_i32_213 : i32 to vector<32x1xi32>
    %649 = arith.cmpi slt, %510, %648 : vector<32x1xi32>
    %650 = arith.andi %647, %649 : vector<32x1xi1>
    %651 = arith.extui %650 : vector<32x1xi1> to vector<32x1xi32>
    %652 = arith.sitofp %651 : vector<32x1xi32> to vector<32x1xf32>
    %653 = arith.mulf %506, %652 : vector<32x1xf32>
    %cst_214 = arith.constant dense<0.000000e+00> : vector<1xf32>
    %654 = vector.multi_reduction <add>, %653, %cst_214 [0] : vector<32x1xf32> to vector<1xf32>
    %655 = vector.shape_cast %654 : vector<1xf32> to vector<1x1xf32>
    %656 = vector.broadcast %655 : vector<1x1xf32> to vector<32x1xf32>
    %657 = arith.mulf %652, %656 : vector<32x1xf32>
    %658 = arith.addf %639, %657 : vector<32x1xf32>
    %659 = arith.mulf %509, %652 : vector<32x1xf32>
    %cst_215 = arith.constant dense<0.000000e+00> : vector<1xf32>
    %660 = vector.multi_reduction <add>, %659, %cst_215 [0] : vector<32x1xf32> to vector<1xf32>
    %661 = vector.shape_cast %660 : vector<1xf32> to vector<1x1xf32>
    %662 = vector.broadcast %661 : vector<1x1xf32> to vector<32x1xf32>
    %663 = arith.mulf %652, %662 : vector<32x1xf32>
    %664 = arith.addf %645, %663 : vector<32x1xf32>
    %cst_216 = arith.constant 9.765625E-4 : f32
    %665 = vector.broadcast %cst_216 : f32 to vector<32x1xf32>
    %666 = arith.mulf %658, %665 : vector<32x1xf32>
    %cst_217 = arith.constant 9.765625E-4 : f32
    %667 = vector.broadcast %cst_217 : f32 to vector<32x1xf32>
    %668 = arith.mulf %664, %667 : vector<32x1xf32>
    %669 = arith.mulf %666, %666 : vector<32x1xf32>
    %670 = arith.subf %668, %669 : vector<32x1xf32>
    %671 = vector.broadcast %666 : vector<32x1xf32> to vector<32x256xf32>
    %672 = arith.subf %502, %671 : vector<32x256xf32>
    %cst_218 = arith.constant 9.99999974E-6 : f32
    %673 = vector.broadcast %cst_218 : f32 to vector<32x1xf32>
    %674 = arith.addf %670, %673 : vector<32x1xf32>
    %675 = math.rsqrt %674 : vector<32x1xf32>
    %676 = arith.mulf %675, %503 : vector<32x1xf32>
    %677 = vector.broadcast %676 : vector<32x1xf32> to vector<32x256xf32>
    %678 = arith.mulf %672, %677 : vector<32x256xf32>
    %679 = vector.broadcast %504 : vector<32x1xf32> to vector<32x256xf32>
    %680 = arith.addf %678, %679 : vector<32x256xf32>
    %c0_219 = arith.constant 0 : index
    %c0_220 = arith.constant 0 : index
    %681 = vector.load %arg14[%c0_219, %c0_220] : memref<96x32xbf16, #tpu.memory_space<vmem>>, vector<96x32xbf16>
    %682 = arith.truncf %680 : vector<32x256xf32> to vector<32x256xbf16>
    %cst_221 = arith.constant dense<0.000000e+00> : vector<96x256xf32>
    %683 = tpu.matmul %681, %682, %cst_221 {dimension_numbers = #tpu.dot_dimension_numbers<[1], [0], [0], [1], [0, 0, 1, 1], [], []>} : vector<96x32xbf16>, vector<32x256xbf16>, vector<96x256xf32> -> vector<96x256xf32>
    %c0_222 = arith.constant 0 : index
    %c0_223 = arith.constant 0 : index
    %684 = vector.load %arg15[%c0_222, %c0_223] : memref<96x1xf32, #tpu.memory_space<vmem>>, vector<96x1xf32>
    %685 = vector.broadcast %684 : vector<96x1xf32> to vector<96x256xf32>
    %686 = arith.addf %683, %685 : vector<96x256xf32>
    %687 = vector.extract_strided_slice %686 {offsets = [0, 0], sizes = [32, 256], strides = [1, 1]} : vector<96x256xf32> to vector<32x256xf32>
    %cst_224 = arith.constant 0.353553385 : f32
    %688 = vector.broadcast %cst_224 : f32 to vector<32x256xf32>
    %689 = arith.mulf %687, %688 : vector<32x256xf32>
    %690 = arith.truncf %689 : vector<32x256xf32> to vector<32x256xbf16>
    %691 = tpu.transpose %690, [1, 0] : vector<32x256xbf16> -> vector<256x32xbf16>
    %cst_225 = arith.constant 1.000000e+00 : bf16
    %692 = vector.broadcast %cst_225 : bf16 to vector<1x256xbf16>
    %693 = vector.extract_strided_slice %686 {offsets = [32, 0], sizes = [8, 256], strides = [1, 1]} : vector<96x256xf32> to vector<8x256xf32>
    %694 = arith.truncf %693 : vector<8x256xf32> to vector<8x256xbf16>
    %695 = vector.extract_strided_slice %686 {offsets = [64, 0], sizes = [8, 256], strides = [1, 1]} : vector<96x256xf32> to vector<8x256xf32>
    %696 = arith.truncf %695 : vector<8x256xf32> to vector<8x256xbf16>
    %697 = tpu.concatenate %696, %692 in 0 : vector<8x256xbf16>, vector<1x256xbf16> -> vector<9x256xbf16>
    %698 = vector.extract_strided_slice %691 {offsets = [0, 0], sizes = [128, 8], strides = [1, 1]} : vector<256x32xbf16> to vector<128x8xbf16>
    %cst_226 = arith.constant dense<0.000000e+00> : vector<128x256xf32>
    %699 = tpu.matmul %698, %694, %cst_226 {dimension_numbers = #tpu.dot_dimension_numbers<[1], [0], [0], [1], [0, 0, 1, 1], [], []>} : vector<128x8xbf16>, vector<8x256xbf16>, vector<128x256xf32> -> vector<128x256xf32>
    %cst_227 = arith.constant dense<0xFF800000> : vector<128xf32>
    %700 = vector.multi_reduction <maximumf>, %699, %cst_227 [1] : vector<128x256xf32> to vector<128xf32>
    %701 = vector.shape_cast %700 : vector<128xf32> to vector<128x1xf32>
    %702 = vector.broadcast %701 : vector<128x1xf32> to vector<128x256xf32>
    %703 = arith.subf %699, %702 : vector<128x256xf32>
    %704 = math.exp %703 : vector<128x256xf32>
    %705 = arith.truncf %704 : vector<128x256xf32> to vector<128x256xbf16>
    %cst_228 = arith.constant dense<0.000000e+00> : vector<9x128xf32>
    %706 = tpu.matmul %697, %705, %cst_228 {dimension_numbers = #tpu.dot_dimension_numbers<[1], [1], [0], [0], [0, 0, 1, 0], [], []>} : vector<9x256xbf16>, vector<128x256xbf16>, vector<9x128xf32> -> vector<9x128xf32>
    %707 = vector.extract_strided_slice %706 {offsets = [0, 0], sizes = [8, 128], strides = [1, 1]} : vector<9x128xf32> to vector<8x128xf32>
    %708 = vector.extract_strided_slice %706 {offsets = [8, 0], sizes = [1, 128], strides = [1, 1]} : vector<9x128xf32> to vector<1x128xf32>
    %709 = tpu.reciprocal %708 {approx = true} : vector<1x128xf32> -> vector<1x128xf32>
    %710 = vector.broadcast %709 : vector<1x128xf32> to vector<8x128xf32>
    %711 = arith.mulf %707, %710 : vector<8x128xf32>
    %712 = arith.truncf %711 : vector<8x128xf32> to vector<8x128xbf16>
    %c0_229 = arith.constant 0 : index
    %c0_230 = arith.constant 0 : index
    %713 = vector.load %arg21[%c0_229, %c0_230] : memref<32x256xbf16, #tpu.memory_space<vmem>>, vector<8x128xbf16>
    tpu.vector_store %arg21[%c0_229, %c0_230], %712 {strides = array<i32>} : memref<32x256xbf16, #tpu.memory_space<vmem>>, vector<8x128xbf16>,
    %714 = vector.extract_strided_slice %691 {offsets = [128, 0], sizes = [128, 8], strides = [1, 1]} : vector<256x32xbf16> to vector<128x8xbf16>
    %cst_231 = arith.constant dense<0.000000e+00> : vector<128x256xf32>
    %715 = tpu.matmul %714, %694, %cst_231 {dimension_numbers = #tpu.dot_dimension_numbers<[1], [0], [0], [1], [0, 0, 1, 1], [], []>} : vector<128x8xbf16>, vector<8x256xbf16>, vector<128x256xf32> -> vector<128x256xf32>
    %cst_232 = arith.constant dense<0xFF800000> : vector<128xf32>
    %716 = vector.multi_reduction <maximumf>, %715, %cst_232 [1] : vector<128x256xf32> to vector<128xf32>
    %717 = vector.shape_cast %716 : vector<128xf32> to vector<128x1xf32>
    %718 = vector.broadcast %717 : vector<128x1xf32> to vector<128x256xf32>
    %719 = arith.subf %715, %718 : vector<128x256xf32>
    %720 = math.exp %719 : vector<128x256xf32>
    %721 = arith.truncf %720 : vector<128x256xf32> to vector<128x256xbf16>
    %cst_233 = arith.constant dense<0.000000e+00> : vector<9x128xf32>
    %722 = tpu.matmul %697, %721, %cst_233 {dimension_numbers = #tpu.dot_dimension_numbers<[1], [1], [0], [0], [0, 0, 1, 0], [], []>} : vector<9x256xbf16>, vector<128x256xbf16>, vector<9x128xf32> -> vector<9x128xf32>
    %723 = vector.extract_strided_slice %722 {offsets = [0, 0], sizes = [8, 128], strides = [1, 1]} : vector<9x128xf32> to vector<8x128xf32>
    %724 = vector.extract_strided_slice %722 {offsets = [8, 0], sizes = [1, 128], strides = [1, 1]} : vector<9x128xf32> to vector<1x128xf32>
    %725 = tpu.reciprocal %724 {approx = true} : vector<1x128xf32> -> vector<1x128xf32>
    %726 = vector.broadcast %725 : vector<1x128xf32> to vector<8x128xf32>
    %727 = arith.mulf %723, %726 : vector<8x128xf32>
    %728 = arith.truncf %727 : vector<8x128xf32> to vector<8x128xbf16>
    %c0_234 = arith.constant 0 : index
    %c128_235 = arith.constant 128 : index
    %729 = vector.load %arg21[%c0_234, %c128_235] : memref<32x256xbf16, #tpu.memory_space<vmem>>, vector<8x128xbf16>
    tpu.vector_store %arg21[%c0_234, %c128_235], %728 {strides = array<i32>} : memref<32x256xbf16, #tpu.memory_space<vmem>>, vector<8x128xbf16>,
    %730 = vector.extract_strided_slice %686 {offsets = [40, 0], sizes = [8, 256], strides = [1, 1]} : vector<96x256xf32> to vector<8x256xf32>
    %731 = arith.truncf %730 : vector<8x256xf32> to vector<8x256xbf16>
    %732 = vector.extract_strided_slice %686 {offsets = [72, 0], sizes = [8, 256], strides = [1, 1]} : vector<96x256xf32> to vector<8x256xf32>
    %733 = arith.truncf %732 : vector<8x256xf32> to vector<8x256xbf16>
    %734 = tpu.concatenate %733, %692 in 0 : vector<8x256xbf16>, vector<1x256xbf16> -> vector<9x256xbf16>
    %735 = vector.extract_strided_slice %691 {offsets = [0, 8], sizes = [128, 8], strides = [1, 1]} : vector<256x32xbf16> to vector<128x8xbf16>
    %cst_236 = arith.constant dense<0.000000e+00> : vector<128x256xf32>
    %736 = tpu.matmul %735, %731, %cst_236 {dimension_numbers = #tpu.dot_dimension_numbers<[1], [0], [0], [1], [0, 0, 1, 1], [], []>} : vector<128x8xbf16>, vector<8x256xbf16>, vector<128x256xf32> -> vector<128x256xf32>
    %cst_237 = arith.constant dense<0xFF800000> : vector<128xf32>
    %737 = vector.multi_reduction <maximumf>, %736, %cst_237 [1] : vector<128x256xf32> to vector<128xf32>
    %738 = vector.shape_cast %737 : vector<128xf32> to vector<128x1xf32>
    %739 = vector.broadcast %738 : vector<128x1xf32> to vector<128x256xf32>
    %740 = arith.subf %736, %739 : vector<128x256xf32>
    %741 = math.exp %740 : vector<128x256xf32>
    %742 = arith.truncf %741 : vector<128x256xf32> to vector<128x256xbf16>
    %cst_238 = arith.constant dense<0.000000e+00> : vector<9x128xf32>
    %743 = tpu.matmul %734, %742, %cst_238 {dimension_numbers = #tpu.dot_dimension_numbers<[1], [1], [0], [0], [0, 0, 1, 0], [], []>} : vector<9x256xbf16>, vector<128x256xbf16>, vector<9x128xf32> -> vector<9x128xf32>
    %744 = vector.extract_strided_slice %743 {offsets = [0, 0], sizes = [8, 128], strides = [1, 1]} : vector<9x128xf32> to vector<8x128xf32>
    %745 = vector.extract_strided_slice %743 {offsets = [8, 0], sizes = [1, 128], strides = [1, 1]} : vector<9x128xf32> to vector<1x128xf32>
    %746 = tpu.reciprocal %745 {approx = true} : vector<1x128xf32> -> vector<1x128xf32>
    %747 = vector.broadcast %746 : vector<1x128xf32> to vector<8x128xf32>
    %748 = arith.mulf %744, %747 : vector<8x128xf32>
    %749 = arith.truncf %748 : vector<8x128xf32> to vector<8x128xbf16>
    %c8 = arith.constant 8 : index
    %c0_239 = arith.constant 0 : index
    %750 = vector.load %arg21[%c8, %c0_239] : memref<32x256xbf16, #tpu.memory_space<vmem>>, vector<8x128xbf16>
    tpu.vector_store %arg21[%c8, %c0_239], %749 {strides = array<i32>} : memref<32x256xbf16, #tpu.memory_space<vmem>>, vector<8x128xbf16>,
    %751 = vector.extract_strided_slice %691 {offsets = [128, 8], sizes = [128, 8], strides = [1, 1]} : vector<256x32xbf16> to vector<128x8xbf16>
    %cst_240 = arith.constant dense<0.000000e+00> : vector<128x256xf32>
    %752 = tpu.matmul %751, %731, %cst_240 {dimension_numbers = #tpu.dot_dimension_numbers<[1], [0], [0], [1], [0, 0, 1, 1], [], []>} : vector<128x8xbf16>, vector<8x256xbf16>, vector<128x256xf32> -> vector<128x256xf32>
    %cst_241 = arith.constant dense<0xFF800000> : vector<128xf32>
    %753 = vector.multi_reduction <maximumf>, %752, %cst_241 [1] : vector<128x256xf32> to vector<128xf32>
    %754 = vector.shape_cast %753 : vector<128xf32> to vector<128x1xf32>
    %755 = vector.broadcast %754 : vector<128x1xf32> to vector<128x256xf32>
    %756 = arith.subf %752, %755 : vector<128x256xf32>
    %757 = math.exp %756 : vector<128x256xf32>
    %758 = arith.truncf %757 : vector<128x256xf32> to vector<128x256xbf16>
    %cst_242 = arith.constant dense<0.000000e+00> : vector<9x128xf32>
    %759 = tpu.matmul %734, %758, %cst_242 {dimension_numbers = #tpu.dot_dimension_numbers<[1], [1], [0], [0], [0, 0, 1, 0], [], []>} : vector<9x256xbf16>, vector<128x256xbf16>, vector<9x128xf32> -> vector<9x128xf32>
    %760 = vector.extract_strided_slice %759 {offsets = [0, 0], sizes = [8, 128], strides = [1, 1]} : vector<9x128xf32> to vector<8x128xf32>
    %761 = vector.extract_strided_slice %759 {offsets = [8, 0], sizes = [1, 128], strides = [1, 1]} : vector<9x128xf32> to vector<1x128xf32>
    %762 = tpu.reciprocal %761 {approx = true} : vector<1x128xf32> -> vector<1x128xf32>
    %763 = vector.broadcast %762 : vector<1x128xf32> to vector<8x128xf32>
    %764 = arith.mulf %760, %763 : vector<8x128xf32>
    %765 = arith.truncf %764 : vector<8x128xf32> to vector<8x128xbf16>
    %c8_243 = arith.constant 8 : index
    %c128_244 = arith.constant 128 : index
    %766 = vector.load %arg21[%c8_243, %c128_244] : memref<32x256xbf16, #tpu.memory_space<vmem>>, vector<8x128xbf16>
    tpu.vector_store %arg21[%c8_243, %c128_244], %765 {strides = array<i32>} : memref<32x256xbf16, #tpu.memory_space<vmem>>, vector<8x128xbf16>,
    %767 = vector.extract_strided_slice %686 {offsets = [48, 0], sizes = [8, 256], strides = [1, 1]} : vector<96x256xf32> to vector<8x256xf32>
    %768 = arith.truncf %767 : vector<8x256xf32> to vector<8x256xbf16>
    %769 = vector.extract_strided_slice %686 {offsets = [80, 0], sizes = [8, 256], strides = [1, 1]} : vector<96x256xf32> to vector<8x256xf32>
    %770 = arith.truncf %769 : vector<8x256xf32> to vector<8x256xbf16>
    %771 = tpu.concatenate %770, %692 in 0 : vector<8x256xbf16>, vector<1x256xbf16> -> vector<9x256xbf16>
    %772 = vector.extract_strided_slice %691 {offsets = [0, 16], sizes = [128, 8], strides = [1, 1]} : vector<256x32xbf16> to vector<128x8xbf16>
    %cst_245 = arith.constant dense<0.000000e+00> : vector<128x256xf32>
    %773 = tpu.matmul %772, %768, %cst_245 {dimension_numbers = #tpu.dot_dimension_numbers<[1], [0], [0], [1], [0, 0, 1, 1], [], []>} : vector<128x8xbf16>, vector<8x256xbf16>, vector<128x256xf32> -> vector<128x256xf32>
    %cst_246 = arith.constant dense<0xFF800000> : vector<128xf32>
    %774 = vector.multi_reduction <maximumf>, %773, %cst_246 [1] : vector<128x256xf32> to vector<128xf32>
    %775 = vector.shape_cast %774 : vector<128xf32> to vector<128x1xf32>
    %776 = vector.broadcast %775 : vector<128x1xf32> to vector<128x256xf32>
    %777 = arith.subf %773, %776 : vector<128x256xf32>
    %778 = math.exp %777 : vector<128x256xf32>
    %779 = arith.truncf %778 : vector<128x256xf32> to vector<128x256xbf16>
    %cst_247 = arith.constant dense<0.000000e+00> : vector<9x128xf32>
    %780 = tpu.matmul %771, %779, %cst_247 {dimension_numbers = #tpu.dot_dimension_numbers<[1], [1], [0], [0], [0, 0, 1, 0], [], []>} : vector<9x256xbf16>, vector<128x256xbf16>, vector<9x128xf32> -> vector<9x128xf32>
    %781 = vector.extract_strided_slice %780 {offsets = [0, 0], sizes = [8, 128], strides = [1, 1]} : vector<9x128xf32> to vector<8x128xf32>
    %782 = vector.extract_strided_slice %780 {offsets = [8, 0], sizes = [1, 128], strides = [1, 1]} : vector<9x128xf32> to vector<1x128xf32>
    %783 = tpu.reciprocal %782 {approx = true} : vector<1x128xf32> -> vector<1x128xf32>
    %784 = vector.broadcast %783 : vector<1x128xf32> to vector<8x128xf32>
    %785 = arith.mulf %781, %784 : vector<8x128xf32>
    %786 = arith.truncf %785 : vector<8x128xf32> to vector<8x128xbf16>
    %c16 = arith.constant 16 : index
    %c0_248 = arith.constant 0 : index
    %787 = vector.load %arg21[%c16, %c0_248] : memref<32x256xbf16, #tpu.memory_space<vmem>>, vector<8x128xbf16>
    tpu.vector_store %arg21[%c16, %c0_248], %786 {strides = array<i32>} : memref<32x256xbf16, #tpu.memory_space<vmem>>, vector<8x128xbf16>,
    %788 = vector.extract_strided_slice %691 {offsets = [128, 16], sizes = [128, 8], strides = [1, 1]} : vector<256x32xbf16> to vector<128x8xbf16>
    %cst_249 = arith.constant dense<0.000000e+00> : vector<128x256xf32>
    %789 = tpu.matmul %788, %768, %cst_249 {dimension_numbers = #tpu.dot_dimension_numbers<[1], [0], [0], [1], [0, 0, 1, 1], [], []>} : vector<128x8xbf16>, vector<8x256xbf16>, vector<128x256xf32> -> vector<128x256xf32>
    %cst_250 = arith.constant dense<0xFF800000> : vector<128xf32>
    %790 = vector.multi_reduction <maximumf>, %789, %cst_250 [1] : vector<128x256xf32> to vector<128xf32>
    %791 = vector.shape_cast %790 : vector<128xf32> to vector<128x1xf32>
    %792 = vector.broadcast %791 : vector<128x1xf32> to vector<128x256xf32>
    %793 = arith.subf %789, %792 : vector<128x256xf32>
    %794 = math.exp %793 : vector<128x256xf32>
    %795 = arith.truncf %794 : vector<128x256xf32> to vector<128x256xbf16>
    %cst_251 = arith.constant dense<0.000000e+00> : vector<9x128xf32>
    %796 = tpu.matmul %771, %795, %cst_251 {dimension_numbers = #tpu.dot_dimension_numbers<[1], [1], [0], [0], [0, 0, 1, 0], [], []>} : vector<9x256xbf16>, vector<128x256xbf16>, vector<9x128xf32> -> vector<9x128xf32>
    %797 = vector.extract_strided_slice %796 {offsets = [0, 0], sizes = [8, 128], strides = [1, 1]} : vector<9x128xf32> to vector<8x128xf32>
    %798 = vector.extract_strided_slice %796 {offsets = [8, 0], sizes = [1, 128], strides = [1, 1]} : vector<9x128xf32> to vector<1x128xf32>
    %799 = tpu.reciprocal %798 {approx = true} : vector<1x128xf32> -> vector<1x128xf32>
    %800 = vector.broadcast %799 : vector<1x128xf32> to vector<8x128xf32>
    %801 = arith.mulf %797, %800 : vector<8x128xf32>
    %802 = arith.truncf %801 : vector<8x128xf32> to vector<8x128xbf16>
    %c16_252 = arith.constant 16 : index
    %c128_253 = arith.constant 128 : index
    %803 = vector.load %arg21[%c16_252, %c128_253] : memref<32x256xbf16, #tpu.memory_space<vmem>>, vector<8x128xbf16>
    tpu.vector_store %arg21[%c16_252, %c128_253], %802 {strides = array<i32>} : memref<32x256xbf16, #tpu.memory_space<vmem>>, vector<8x128xbf16>,
    %804 = vector.extract_strided_slice %686 {offsets = [56, 0], sizes = [8, 256], strides = [1, 1]} : vector<96x256xf32> to vector<8x256xf32>
    %805 = arith.truncf %804 : vector<8x256xf32> to vector<8x256xbf16>
    %806 = vector.extract_strided_slice %686 {offsets = [88, 0], sizes = [8, 256], strides = [1, 1]} : vector<96x256xf32> to vector<8x256xf32>
    %807 = arith.truncf %806 : vector<8x256xf32> to vector<8x256xbf16>
    %808 = tpu.concatenate %807, %692 in 0 : vector<8x256xbf16>, vector<1x256xbf16> -> vector<9x256xbf16>
    %809 = vector.extract_strided_slice %691 {offsets = [0, 24], sizes = [128, 8], strides = [1, 1]} : vector<256x32xbf16> to vector<128x8xbf16>
    %cst_254 = arith.constant dense<0.000000e+00> : vector<128x256xf32>
    %810 = tpu.matmul %809, %805, %cst_254 {dimension_numbers = #tpu.dot_dimension_numbers<[1], [0], [0], [1], [0, 0, 1, 1], [], []>} : vector<128x8xbf16>, vector<8x256xbf16>, vector<128x256xf32> -> vector<128x256xf32>
    %cst_255 = arith.constant dense<0xFF800000> : vector<128xf32>
    %811 = vector.multi_reduction <maximumf>, %810, %cst_255 [1] : vector<128x256xf32> to vector<128xf32>
    %812 = vector.shape_cast %811 : vector<128xf32> to vector<128x1xf32>
    %813 = vector.broadcast %812 : vector<128x1xf32> to vector<128x256xf32>
    %814 = arith.subf %810, %813 : vector<128x256xf32>
    %815 = math.exp %814 : vector<128x256xf32>
    %816 = arith.truncf %815 : vector<128x256xf32> to vector<128x256xbf16>
    %cst_256 = arith.constant dense<0.000000e+00> : vector<9x128xf32>
    %817 = tpu.matmul %808, %816, %cst_256 {dimension_numbers = #tpu.dot_dimension_numbers<[1], [1], [0], [0], [0, 0, 1, 0], [], []>} : vector<9x256xbf16>, vector<128x256xbf16>, vector<9x128xf32> -> vector<9x128xf32>
    %818 = vector.extract_strided_slice %817 {offsets = [0, 0], sizes = [8, 128], strides = [1, 1]} : vector<9x128xf32> to vector<8x128xf32>
    %819 = vector.extract_strided_slice %817 {offsets = [8, 0], sizes = [1, 128], strides = [1, 1]} : vector<9x128xf32> to vector<1x128xf32>
    %820 = tpu.reciprocal %819 {approx = true} : vector<1x128xf32> -> vector<1x128xf32>
    %821 = vector.broadcast %820 : vector<1x128xf32> to vector<8x128xf32>
    %822 = arith.mulf %818, %821 : vector<8x128xf32>
    %823 = arith.truncf %822 : vector<8x128xf32> to vector<8x128xbf16>
    %c24 = arith.constant 24 : index
    %c0_257 = arith.constant 0 : index
    %824 = vector.load %arg21[%c24, %c0_257] : memref<32x256xbf16, #tpu.memory_space<vmem>>, vector<8x128xbf16>
    tpu.vector_store %arg21[%c24, %c0_257], %823 {strides = array<i32>} : memref<32x256xbf16, #tpu.memory_space<vmem>>, vector<8x128xbf16>,
    %825 = vector.extract_strided_slice %691 {offsets = [128, 24], sizes = [128, 8], strides = [1, 1]} : vector<256x32xbf16> to vector<128x8xbf16>
    %cst_258 = arith.constant dense<0.000000e+00> : vector<128x256xf32>
    %826 = tpu.matmul %825, %805, %cst_258 {dimension_numbers = #tpu.dot_dimension_numbers<[1], [0], [0], [1], [0, 0, 1, 1], [], []>} : vector<128x8xbf16>, vector<8x256xbf16>, vector<128x256xf32> -> vector<128x256xf32>
    %cst_259 = arith.constant dense<0xFF800000> : vector<128xf32>
    %827 = vector.multi_reduction <maximumf>, %826, %cst_259 [1] : vector<128x256xf32> to vector<128xf32>
    %828 = vector.shape_cast %827 : vector<128xf32> to vector<128x1xf32>
    %829 = vector.broadcast %828 : vector<128x1xf32> to vector<128x256xf32>
    %830 = arith.subf %826, %829 : vector<128x256xf32>
    %831 = math.exp %830 : vector<128x256xf32>
    %832 = arith.truncf %831 : vector<128x256xf32> to vector<128x256xbf16>
    %cst_260 = arith.constant dense<0.000000e+00> : vector<9x128xf32>
    %833 = tpu.matmul %808, %832, %cst_260 {dimension_numbers = #tpu.dot_dimension_numbers<[1], [1], [0], [0], [0, 0, 1, 0], [], []>} : vector<9x256xbf16>, vector<128x256xbf16>, vector<9x128xf32> -> vector<9x128xf32>
    %834 = vector.extract_strided_slice %833 {offsets = [0, 0], sizes = [8, 128], strides = [1, 1]} : vector<9x128xf32> to vector<8x128xf32>
    %835 = vector.extract_strided_slice %833 {offsets = [8, 0], sizes = [1, 128], strides = [1, 1]} : vector<9x128xf32> to vector<1x128xf32>
    %836 = tpu.reciprocal %835 {approx = true} : vector<1x128xf32> -> vector<1x128xf32>
    %837 = vector.broadcast %836 : vector<1x128xf32> to vector<8x128xf32>
    %838 = arith.mulf %834, %837 : vector<8x128xf32>
    %839 = arith.truncf %838 : vector<8x128xf32> to vector<8x128xbf16>
    %c24_261 = arith.constant 24 : index
    %c128_262 = arith.constant 128 : index
    %840 = vector.load %arg21[%c24_261, %c128_262] : memref<32x256xbf16, #tpu.memory_space<vmem>>, vector<8x128xbf16>
    tpu.vector_store %arg21[%c24_261, %c128_262], %839 {strides = array<i32>} : memref<32x256xbf16, #tpu.memory_space<vmem>>, vector<8x128xbf16>,
    %c0_263 = arith.constant 0 : index
    %c0_264 = arith.constant 0 : index
    %841 = vector.load %arg16[%c0_263, %c0_264] : memref<32x32xbf16, #tpu.memory_space<vmem>>, vector<32x32xbf16>
    %c0_265 = arith.constant 0 : index
    %c0_266 = arith.constant 0 : index
    %842 = vector.load %arg21[%c0_265, %c0_266] : memref<32x256xbf16, #tpu.memory_space<vmem>>, vector<32x256xbf16>
    %cst_267 = arith.constant dense<0.000000e+00> : vector<32x256xf32>
    %843 = tpu.matmul %841, %842, %cst_267 {dimension_numbers = #tpu.dot_dimension_numbers<[1], [0], [0], [1], [0, 0, 1, 1], [], []>} : vector<32x32xbf16>, vector<32x256xbf16>, vector<32x256xf32> -> vector<32x256xf32>
    %c0_268 = arith.constant 0 : index
    %c0_269 = arith.constant 0 : index
    %844 = vector.load %arg17[%c0_268, %c0_269] : memref<32x1xf32, #tpu.memory_space<vmem>>, vector<32x1xf32>
    %845 = vector.broadcast %844 : vector<32x1xf32> to vector<32x256xf32>
    %846 = arith.addf %843, %845 : vector<32x256xf32>
    %847 = arith.addf %502, %846 : vector<32x256xf32>
    %c0_270 = arith.constant 0 : index
    %c0_271 = arith.constant 0 : index
    %c0_272 = arith.constant 0 : index
    %848 = vector.load %arg18[%c0_270, %c0_271, %c0_272] : memref<1x32x256xf32, #tpu.memory_space<vmem>>, vector<1x32x256xf32>
    %849 = vector.shape_cast %848 : vector<1x32x256xf32> to vector<32x256xf32>
    %850 = vector.shape_cast %847 : vector<32x256xf32> to vector<1x32x256xf32>
    tpu.vector_store %arg18[%c0_270, %c0_271, %c0_272], %850 {strides = array<i32>} : memref<1x32x256xf32, #tpu.memory_space<vmem>>, vector<1x32x256xf32>,
    return
  }
  func.func @transform_0(%arg0: i32) -> (i32, i32, i32) {
    %c0_i32 = arith.constant 0 : i32
    %c0_i32_0 = arith.constant 0 : i32
    %c0_i32_1 = arith.constant 0 : i32
    return %arg0, %c0_i32, %c0_i32_0 : i32, i32, i32
  }
  func.func @transform_1(%arg0: i32) -> (i32, i32, i32) {
    %c0_i32 = arith.constant 0 : i32
    %c0_i32_0 = arith.constant 0 : i32
    %c0_i32_1 = arith.constant 0 : i32
    return %arg0, %c0_i32, %c0_i32_0 : i32, i32, i32
  }
  func.func @transform_2(%arg0: i32) -> (i32, i32) {
    %c0_i32 = arith.constant 0 : i32
    %c0_i32_0 = arith.constant 0 : i32
    %c0_i32_1 = arith.constant 0 : i32
    return %c0_i32, %c0_i32_0 : i32, i32
  }
  func.func @transform_3(%arg0: i32) -> (i32, i32) {
    %c0_i32 = arith.constant 0 : i32
    %c0_i32_0 = arith.constant 0 : i32
    %c0_i32_1 = arith.constant 0 : i32
    return %c0_i32, %c0_i32_0 : i32, i32
  }
  func.func @transform_4(%arg0: i32) -> (i32, i32) {
    %c0_i32 = arith.constant 0 : i32
    %c0_i32_0 = arith.constant 0 : i32
    %c0_i32_1 = arith.constant 0 : i32
    return %c0_i32, %c0_i32_0 : i32, i32
  }
  func.func @transform_5(%arg0: i32) -> (i32, i32) {
    %c0_i32 = arith.constant 0 : i32
    %c0_i32_0 = arith.constant 0 : i32
    %c0_i32_1 = arith.constant 0 : i32
    return %c0_i32, %c0_i32_0 : i32, i32
  }
  func.func @transform_6(%arg0: i32) -> (i32, i32) {
    %c0_i32 = arith.constant 0 : i32
    %c0_i32_0 = arith.constant 0 : i32
    %c0_i32_1 = arith.constant 0 : i32
    return %c0_i32, %c0_i32_0 : i32, i32
  }
  func.func @transform_7(%arg0: i32) -> (i32, i32) {
    %c0_i32 = arith.constant 0 : i32
    %c0_i32_0 = arith.constant 0 : i32
    %c0_i32_1 = arith.constant 0 : i32
    return %c0_i32, %c0_i32_0 : i32, i32
  }
  func.func @transform_8(%arg0: i32) -> (i32, i32) {
    %c0_i32 = arith.constant 0 : i32
    %c0_i32_0 = arith.constant 0 : i32
    %c0_i32_1 = arith.constant 0 : i32
    return %c0_i32, %c0_i32_0 : i32, i32
  }
  func.func @transform_9(%arg0: i32) -> (i32, i32) {
    %c0_i32 = arith.constant 0 : i32
    %c0_i32_0 = arith.constant 0 : i32
    %c0_i32_1 = arith.constant 0 : i32
    return %c0_i32, %c0_i32_0 : i32, i32
  }
  func.func @transform_10(%arg0: i32) -> (i32, i32) {
    %c0_i32 = arith.constant 0 : i32
    %c0_i32_0 = arith.constant 0 : i32
    %c0_i32_1 = arith.constant 0 : i32
    return %c0_i32, %c0_i32_0 : i32, i32
  }
  func.func @transform_11(%arg0: i32) -> (i32, i32) {
    %c0_i32 = arith.constant 0 : i32
    %c0_i32_0 = arith.constant 0 : i32
    %c0_i32_1 = arith.constant 0 : i32
    return %c0_i32, %c0_i32_0 : i32, i32
  }
  func.func @transform_12(%arg0: i32) -> (i32, i32) {
    %c0_i32 = arith.constant 0 : i32
    %c0_i32_0 = arith.constant 0 : i32
    %c0_i32_1 = arith.constant 0 : i32
    return %c0_i32, %c0_i32_0 : i32, i32
  }
  func.func @transform_13(%arg0: i32) -> (i32, i32) {
    %c0_i32 = arith.constant 0 : i32
    %c0_i32_0 = arith.constant 0 : i32
    %c0_i32_1 = arith.constant 0 : i32
    return %c0_i32, %c0_i32_0 : i32, i32
  }
  func.func @transform_14(%arg0: i32) -> (i32, i32) {
    %c0_i32 = arith.constant 0 : i32
    %c0_i32_0 = arith.constant 0 : i32
    %c0_i32_1 = arith.constant 0 : i32
    return %c0_i32, %c0_i32_0 : i32, i32
  }
  func.func @transform_15(%arg0: i32) -> (i32, i32) {
    %c0_i32 = arith.constant 0 : i32
    %c0_i32_0 = arith.constant 0 : i32
    %c0_i32_1 = arith.constant 0 : i32
    return %c0_i32, %c0_i32_0 : i32, i32
  }
  func.func @transform_16(%arg0: i32) -> (i32, i32) {
    %c0_i32 = arith.constant 0 : i32
    %c0_i32_0 = arith.constant 0 : i32
    %c0_i32_1 = arith.constant 0 : i32
    return %c0_i32, %c0_i32_0 : i32, i32
  }
  func.func @transform_17(%arg0: i32) -> (i32, i32, i32) {
    %c0_i32 = arith.constant 0 : i32
    %c0_i32_0 = arith.constant 0 : i32
    %c0_i32_1 = arith.constant 0 : i32
    return %arg0, %c0_i32, %c0_i32_0 : i32, i32, i32
  }
}

</mosaic_0001>

<llo_original>
// kernel: up_block_forward.2
$region0: #{up_block_forward.2}
  #allocation0 [shape = 'u32[]', space=smem, size = 0x4, offset = 0x4, fixed_abs, tag = 'smem constant byte address 0x4 - core index']
  #allocation1 [shape = 'u32[144,128]{1,0:T(1,128)}', space=vmem, size = 0x12000, scoped, tag = 'internal scratch']
  #allocation2 [shape = 'bf16[32,256]{1,0:T(16,128)(2,1)}', space=vmem, size = 0x4000, scoped, tag = 'scratch operand']
  #allocation3 [shape = 'bf16[128,64]{1,0:T(16,128)(2,1)}', space=vmem, size = 0x8000, scoped, tag = 'scratch operand']
  %s0 = inlined_call_operand.vmem [shape: f32[2,32,64], index: 0, kind: input, shape index: {}]
  %s1 = inlined_call_operand.vmem [shape: bf16[4,32,128], index: 1, kind: input, shape index: {}]
  %s2 = inlined_call_operand.vmem [shape: f32[32,1], index: 2, kind: input, shape index: {}]
  %s3 = inlined_call_operand.vmem [shape: f32[2,4,32,64], index: 3, kind: output, shape index: {}]
  %s4 = sld [smem:[#allocation0]]
  $region45: #{up_block_forward.2} parent=0
    _
  %s6 = ssub.s32 1, %s4
  %s7 = scalar_select 0, %s6, %s4
  loop: start=0, step=1, limit=4
  $region2: #{up_block_forward.2} parent=0 // loop_pre_header
    _
  $region3: #{up_block_forward.2} parent=0 // loop_header
    %s9 = sphi 0, %s13
    %p10 = scmp.ge.s32.totalorder %s9, 4
    %s19 = sphi 0, %s21
    %s22 = sphi 0, %s19
    %s23 = sphi 0, %s22
    %s39 = sphi 0, %s23
    %s43 = sphi 0, %s43
    %s45 = sphi 0, %s43
    %s46 = sphi 0, %s45
    %s60 = sphi 0, %s46
    %s64 = sphi 0, %s64
    %s66 = sphi 0, %s64
    %s67 = sphi 0, %s66
    %s81 = sphi 0, %s67
    %s87 = sphi 0, %s89
    %s90 = sphi 0, %s87
    %s91 = sphi 0, %s90
    %s107 = sphi 0, %s91
  $region4: #{up_block_forward.2} parent=0 // loop_header_branch
    %12 = sbr.rel (%p10) target = $region8
  $region5: #{up_block_forward.2} parent=0 // loop_body
    %s14 = ssub.s32 %s9, 1
    %s15 = ssub.s32 %s9, 2
    %s16 = sadd.s32 %s9, 1
    %s17 = ssub.s32 %s9, %s16
    %p18 = scmp.eq.s32.totalorder %s17, 0
    %s20 = sadd.s32 %s19, 1
    %s21 = scalar_select %p18, %s19, %s20
    %p24 = pneg %p18
    %p25 = scmp.eq.s32.totalorder %s9, 1
    %p26 = por %p24, %p25
    %p27 = scmp.ne.s32.totalorder %s19, %s22
    %p28 = scmp.eq.s32.totalorder %s9, 0
    %p29 = por %p27, %p28
    %p30 = scmp.ne.s32.totalorder %s19, %s22
    %p31 = scmp.eq.s32.totalorder %s14, 1
    %p32 = por %p30, %p31
    %p33 = scmp.ne.s32.totalorder %s22, %s23
    %p34 = scmp.eq.s32.totalorder %s14, 0
    %p35 = por %p33, %p34
    %p36 = scmp.ne.s32.totalorder %s22, %s23
    %p37 = scmp.eq.s32.totalorder %s15, 1
    %p38 = por %p36, %p37
    %p40 = scmp.ne.s32.totalorder %s23, %s39
    %p41 = scmp.eq.s32.totalorder %s15, 0
    %p42 = por %p40, %p41
    %s44 = sadd.s32 %s43, 1
    %p47 = scmp.eq.s32.totalorder %s9, 1
    %p48 = scmp.ne.s32.totalorder %s43, %s45
    %p49 = scmp.eq.s32.totalorder %s9, 0
    %p50 = por %p48, %p49
    %p51 = scmp.ne.s32.totalorder %s43, %s45
    %p52 = scmp.eq.s32.totalorder %s14, 1
    %p53 = por %p51, %p52
    %p54 = scmp.ne.s32.totalorder %s45, %s46
    %p55 = scmp.eq.s32.totalorder %s14, 0
    %p56 = por %p54, %p55
    %p57 = scmp.ne.s32.totalorder %s45, %s46
    %p58 = scmp.eq.s32.totalorder %s15, 1
    %p59 = por %p57, %p58
    %p61 = scmp.ne.s32.totalorder %s46, %s60
    %p62 = scmp.eq.s32.totalorder %s15, 0
    %p63 = por %p61, %p62
    %s65 = sadd.s32 %s64, 1
    %p68 = scmp.eq.s32.totalorder %s9, 1
    %p69 = scmp.ne.s32.totalorder %s64, %s66
    %p70 = scmp.eq.s32.totalorder %s9, 0
    %p71 = por %p69, %p70
    %p72 = scmp.ne.s32.totalorder %s64, %s66
    %p73 = scmp.eq.s32.totalorder %s14, 1
    %p74 = por %p72, %p73
    %p75 = scmp.ne.s32.totalorder %s66, %s67
    %p76 = scmp.eq.s32.totalorder %s14, 0
    %p77 = por %p75, %p76
    %p78 = scmp.ne.s32.totalorder %s66, %s67
    %p79 = scmp.eq.s32.totalorder %s15, 1
    %p80 = por %p78, %p79
    %p82 = scmp.ne.s32.totalorder %s67, %s81
    %p83 = scmp.eq.s32.totalorder %s15, 0
    %p84 = por %p82, %p83
    %s85 = ssub.s32 %s9, %s16
    %p86 = scmp.eq.s32.totalorder %s85, 0
    %s88 = sadd.s32 %s87, 1
    %s89 = scalar_select %p86, %s87, %s88
    %p92 = pneg %p86
    %p93 = scmp.eq.s32.totalorder %s9, 1
    %p94 = por %p92, %p93
    %p95 = scmp.ne.s32.totalorder %s87, %s90
    %p96 = scmp.eq.s32.totalorder %s9, 0
    %p97 = por %p95, %p96
    %p98 = scmp.ne.s32.totalorder %s87, %s90
    %p99 = scmp.eq.s32.totalorder %s14, 1
    %p100 = por %p98, %p99
    %p101 = scmp.ne.s32.totalorder %s90, %s91
    %p102 = scmp.eq.s32.totalorder %s14, 0
    %p103 = por %p101, %p102
    %p104 = scmp.ne.s32.totalorder %s90, %s91
    %p105 = scmp.eq.s32.totalorder %s15, 1
    %p106 = por %p104, %p105
    %p108 = scmp.ne.s32.totalorder %s91, %s107
    %p109 = scmp.eq.s32.totalorder %s15, 0
    %p110 = por %p108, %p109
    %p111 = scmp.le.s32.totalorder 1, %s9
    %p112 = scmp.lt.s32.totalorder %s9, 3
    %p113 = pnand %p111, %p112
    %p114 = pneg %p113
    // Predicated region
    $region9: #{up_block_forward.2} parent=5 // pred_check
      _
    $region10: #{up_block_forward.2} parent=5 // pred_check_branch
      %116 = sbr.rel (%p113) target = $region12
    $region11: #{up_block_forward.2} parent=5 // pred_region
      %s117 = ssub.s32 %s9, 1
      // Predicated region
      $region13: #{up_block_forward.2} parent=11 // pred_check
        %p118 = pneg %p56
      $region14: #{up_block_forward.2} parent=11 // pred_check_branch
        %120 = sbr.rel (%p118) target = $region16
      $region15: #{up_block_forward.2} parent=11 // pred_region
        _
      $region16: #{up_block_forward.2} parent=11 // pred_fallthru
        _
      // Predicated region
      $region17: #{up_block_forward.2} parent=11 // pred_check
        %p121 = pneg %p77
      $region18: #{up_block_forward.2} parent=11 // pred_check_branch
        %123 = sbr.rel (%p121) target = $region20
      $region19: #{up_block_forward.2} parent=11 // pred_region
        _
      $region20: #{up_block_forward.2} parent=11 // pred_fallthru
        _
    $region12: #{up_block_forward.2} parent=5 // pred_fallthru
      _
    %p124 = scmp.lt.s32.totalorder %s9, 2
    // Predicated region
    $region21: #{up_block_forward.2} parent=5 // pred_check
      %p125 = pneg %p124
    $region22: #{up_block_forward.2} parent=5 // pred_check_branch
      %127 = sbr.rel (%p125) target = $region24
    $region23: #{up_block_forward.2} parent=5 // pred_region
      // Predicated region
      $region25: #{up_block_forward.2} parent=23 // pred_check
        %p128 = pneg %p29
      $region26: #{up_block_forward.2} parent=23 // pred_check_branch
        %130 = sbr.rel (%p128) target = $region28
      $region27: #{up_block_forward.2} parent=23 // pred_region
        %p131 = scmp.lt.s32.totalorder %s9, 1
        %s132 = scalar_select %p131, %s9, 1
        %s133 = smul.addr %s132, 4
        %s134 = smul.addr %s133, 8
        %s135 = scalar_lea.vmem %s0, %s134
      $region28: #{up_block_forward.2} parent=23 // pred_fallthru
        _
    $region24: #{up_block_forward.2} parent=5 // pred_fallthru
      _
    %p136 = scmp.le.s32.totalorder 1, %s9
    %p137 = scmp.lt.s32.totalorder %s9, 3
    %p138 = pnand %p136, %p137
    %p139 = pneg %p138
    // Predicated region
    $region29: #{up_block_forward.2} parent=5 // pred_check
      _
    $region30: #{up_block_forward.2} parent=5 // pred_check_branch
      %141 = sbr.rel (%p138) target = $region32
    $region31: #{up_block_forward.2} parent=5 // pred_region
      %s142 = ssub.s32 %s9, 1
      %p143 = scmp.lt.s32.totalorder %s14, 1
      %s144 = scalar_select %p143, %s14, 1
      %s145 = smul.addr %s144, 4
      %s146 = smul.addr %s145, 8
      %s147 = scalar_lea.vmem %s0, %s146
      %p148 = pneg %p35
      %p149 = pneg %p32
      %p150 = pneg %p56
      %p151 = pneg %p53
      %p152 = pneg %p77
      %p153 = pneg %p74
      %p154 = pneg %p103
      %p155 = pneg %p100
      %p156 = scmp.lt.s32.totalorder %s14, 1
      %s157 = scalar_select %p156, %s14, 1
      %s158 = smul.addr %s157, 16
      %s159 = smul.addr %s158, 8
      %s160 = scalar_lea.vmem %s3, %s159
      %p161 = scmp.lt.s32.totalorder %s14, 1
      %s162 = scalar_select %p161, %s14, 1
      %s163 = smul.addr %s162, 4
      %s164 = smul.addr %s163, 8
      %s165 = scalar_lea.vmem %s0, %s164
      %p166 = scmp.lt.s32.totalorder %s14, 1
      %s167 = scalar_select %p166, %s14, 1
      %s168 = smul.addr %s167, 16
      %s169 = smul.addr %s168, 8
      %s170 = scalar_lea.vmem %s3, %s169
      %v174 = vlaneseq
      %v175 = vand.u32 %v174, 127
      %v176 = vand.u32 %v175, 7
      %v177 = vadd.s32 %v176, 4294967295
      %vm178 = vcmp.ge.s32.totalorder %v177, 0
      %vm179 = vcmp.lt.s32.totalorder %v177, 8
      %vm180 = vmand %vm178, %vm179
      %v181 = vadd.s32 %v176, 1
      %vm182 = vcmp.ge.s32.totalorder %v181, 0
      %vm183 = vcmp.lt.s32.totalorder %v181, 8
      %vm184 = vmand %vm182, %vm183
      %185 = vst [vmem:[#allocation2] sm:$0xff] 0
      %186 = vst [vmem:[#allocation2 + $0x10] sm:$0xff] 0
      %vm187 = vcmask 1048064
      %188 = vst.msk [vmem:[#allocation2 + $0x8] sm:$0xff] %vm187, 0
      %189 = vst.msk [vmem:[#allocation2 + $0x18] sm:$0xff] %vm187, 0
      %v190 = vld [vmem:[%s165] sm:$0xff]
      %v191 = vld [vmem:[%s165 + $0x8] sm:$0xff]
      %v192 = vld [vmem:[%s165 + $0x10] sm:$0xff]
      %v193 = vld [vmem:[%s165 + $0x18] sm:$0xff]
      %v194 = vpack.c.bf16 %v191, %v190
      %v195 = vpack.c.bf16 %v193, %v192
      %vm196 = vcmask 523264
      %197 = vst.msk [vmem:[#allocation2 + $0x8] sm:$0xff] %vm196, %v194
      %198 = vst.msk [vmem:[#allocation2 + $0x18] sm:$0xff] %vm196, %v195
      %v199 = vld [vmem:[#allocation2 + $0x8] sm:$0xff]
      %v200 = vld [vmem:[#allocation2 + $0x18] sm:$0xff]
      %201 = vst.msk [vmem:[#allocation3] sm:$0xff] %vm196, %v199
      %202 = vst.msk [vmem:[#allocation3 + $0x8] sm:$0xff] %vm196, %v200
      %v203 = vld [vmem:[#allocation2] sm:$0xff]
      %v204 = vld [vmem:[#allocation2 + $0x8] sm:$0xff]
      %v205 = vld [vmem:[#allocation2 + $0x10] sm:$0xff]
      %v206 = vld [vmem:[#allocation2 + $0x18] sm:$0xff]
      %v207 = vsel %vm180, 1, 0
      %vm208 = vcmp.eq.s32.totalorder %v207, 1
      %vm209 = vmpackc.low %vm208, %vm208
      %v210 = vsel %vm209, 65537, 0
      %v211 = vlaneseq
      %v212 = vshrl.u32 %v211, 7
      %v213 = vsub.s32 0, %v212
      %v214 = vrot.slane %v210, %v213
      %215 = vrot.lane.b32.xlu0 %v214, 127
      %v216 = vpop.permute.xlu0 %215
      %vm217 = vcmp.ne.s16.totalorder %v216, 0
      %v218 = vsel %vm217, %v203, 0
      %v219 = vsel %vm217, %v204, 0
      %v220 = vsel %vm217, %v205, 0
      %v221 = vsel %vm217, %v206, 0
      %226 = vrot.lane.b32.xlu0 %v218, 1
      %v227 = vpop.permute.xlu0 %226
      %228 = vrot.lane.b32.xlu0 %v219, 1
      %v229 = vpop.permute.xlu0 %228
      %230 = vrot.lane.b32.xlu0 %v220, 1
      %v231 = vpop.permute.xlu0 %230
      %232 = vrot.lane.b32.xlu0 %v221, 1
      %v233 = vpop.permute.xlu0 %232
      %vm234 = vcmask 7168
      %v235 = vsel %vm234, %v227, %v229
      %v236 = vsel %vm234, %v231, %v233
      %239 = vst.msk [vmem:[#allocation3 + $0x10] sm:$0xff] %vm196, %v235
      %240 = vst.msk [vmem:[#allocation3 + $0x18] sm:$0xff] %vm196, %v236
      %v241 = vld [vmem:[#allocation2] sm:$0xff]
      %v242 = vld [vmem:[#allocation2 + $0x8] sm:$0xff]
      %v243 = vld [vmem:[#allocation2 + $0x10] sm:$0xff]
      %v244 = vld [vmem:[#allocation2 + $0x18] sm:$0xff]
      %249 = vrot.lane.b32.xlu0 %v241, 8
      %v250 = vpop.permute.xlu0 %249
      %251 = vrot.lane.b32.xlu0 %v242, 8
      %v252 = vpop.permute.xlu0 %251
      %253 = vrot.lane.b32.xlu0 %v243, 8
      %v254 = vpop.permute.xlu0 %253
      %255 = vrot.lane.b32.xlu0 %v244, 8
      %v256 = vpop.permute.xlu0 %255
      %vm257 = vcmask 64512
      %v258 = vsel %vm257, %v250, %v252
      %v259 = vsel %vm257, %v254, %v256
      %262 = vst.msk [vmem:[#allocation3 + $0x20] sm:$0xff] %vm196, %v258
      %263 = vst.msk [vmem:[#allocation3 + $0x28] sm:$0xff] %vm196, %v259
      %v264 = vld [vmem:[#allocation2] sm:$0xff]
      %v265 = vld [vmem:[#allocation2 + $0x8] sm:$0xff]
      %v266 = vld [vmem:[#allocation2 + $0x10] sm:$0xff]
      %v267 = vld [vmem:[#allocation2 + $0x18] sm:$0xff]
      %268 = vrot.lane.b32.xlu0 %v214, 119
      %v269 = vpop.permute.xlu0 %268
      %vm270 = vcmp.ne.s16.totalorder %v269, 0
      %v271 = vsel %vm270, %v264, 0
      %v272 = vsel %vm270, %v265, 0
      %v273 = vsel %vm270, %v266, 0
      %v274 = vsel %vm270, %v267, 0
      %279 = vrot.lane.b32.xlu0 %v271, 9
      %v280 = vpop.permute.xlu0 %279
      %281 = vrot.lane.b32.xlu0 %v272, 9
      %v282 = vpop.permute.xlu0 %281
      %283 = vrot.lane.b32.xlu0 %v273, 9
      %v284 = vpop.permute.xlu0 %283
      %285 = vrot.lane.b32.xlu0 %v274, 9
      %v286 = vpop.permute.xlu0 %285
      %vm287 = vcmask 72704
      %v288 = vsel %vm287, %v280, %v282
      %v289 = vsel %vm287, %v284, %v286
      %292 = vst.msk [vmem:[#allocation3 + $0x30] sm:$0xff] %vm196, %v288
      %293 = vst.msk [vmem:[#allocation3 + $0x38] sm:$0xff] %vm196, %v289
      %v294 = vld [vmem:[#allocation3] sm:$0xff]
      %v295 = vld [vmem:[#allocation3 + $0x8] sm:$0xff]
      %v296 = vld [vmem:[#allocation3 + $0x10] sm:$0xff]
      %v297 = vld [vmem:[#allocation3 + $0x18] sm:$0xff]
      %v298 = vld [vmem:[#allocation3 + $0x20] sm:$0xff]
      %v299 = vld [vmem:[#allocation3 + $0x28] sm:$0xff]
      %v300 = vld [vmem:[#allocation3 + $0x30] sm:$0xff]
      %v301 = vld [vmem:[#allocation3 + $0x38] sm:$0xff]
      %v302 = vld [vmem:[%s1] sm:$0xf]
      %v303 = vld [vmem:[%s1 + $0x4] sm:$0xf]
      %v304 = vld [vmem:[%s1 + $0x8] sm:$0xf]
      %v305 = vld [vmem:[%s1 + $0xc] sm:$0xf]
      %v306 = vld [vmem:[%s2] sm:$0xff]
      %v307 = vld [vmem:[%s2 + $0x8] sm:$0xff]
      %v308 = vld [vmem:[%s2 + $0x10] sm:$0xff]
      %v309 = vld [vmem:[%s2 + $0x18] sm:$0xff]
      %311 = vset.pattern.permute.xlu0 0
      %312 = vperm.xlu0 %311, %v306
      %v313 = vpop.permute.xlu0 %312
      %316 = vset.pattern.permute.xlu0 0
      %317 = vperm.xlu0 %316, %v307
      %v318 = vpop.permute.xlu0 %317
      %321 = vset.pattern.permute.xlu0 0
      %322 = vperm.xlu0 %321, %v308
      %v323 = vpop.permute.xlu0 %322
      %326 = vset.pattern.permute.xlu0 0
      %327 = vperm.xlu0 %326, %v309
      %v328 = vpop.permute.xlu0 %327
      %v334 = vunpack.c.l.b16 %v302
      %v335 = vunpack.c.l.b16 %v303
      %v336 = vunpack.c.l.b16 %v304
      %v337 = vunpack.c.l.b16 %v305
      %v338 = vpack.c.b16 %v335, %v334
      %v339 = vpack.c.b16 %v337, %v336
      %342 = vmatprep.subr.bf16.mxu0 0
      %343 = vmatpush1.bf16.msra.mxu0 %v294
      %344 = vmatprep.subr.bf16.mxu0 0
      %345 = vmatpush1.bf16.msra.mxu0 %v295
      %346 = vmatprep.subr.bf16.mxu0 0
      %347 = vmatpush1.bf16.msra.mxu0 %v296
      %348 = vmatprep.subr.bf16.mxu0 0
      %349 = vmatpush1.bf16.msra.mxu0 %v297
      %350 = vmatprep.subr.bf16.mxu0 0
      %351 = vmatpush1.bf16.msra.mxu0 %v298
      %352 = vmatprep.subr.bf16.mxu0 0
      %353 = vmatpush1.bf16.msra.mxu0 %v299
      %354 = vmatprep.subr.bf16.mxu0 0
      %355 = vmatpush1.bf16.msra.mxu0 %v300
      %356 = vmatprep.subr.bf16.mxu0 0
      %357 = vmatpush1.bf16.msra.mxu0 %v301
      %358 = vmatprep.subr.bf16.mxu0 0
      %359 = vmatpush1.bf16.msra.mxu0 0
      %360 = vmatprep.subr.bf16.mxu0 0
      %361 = vmatpush1.bf16.msra.mxu0 0
      %362 = vmatprep.subr.bf16.mxu0 0
      %363 = vmatpush1.bf16.msra.mxu0 0
      %364 = vmatprep.subr.bf16.mxu0 0
      %365 = vmatpush1.bf16.msra.mxu0 0
      %366 = vmatprep.subr.bf16.mxu0 0
      %367 = vmatpush1.bf16.msra.mxu0 0
      %368 = vmatprep.subr.bf16.mxu0 0
      %369 = vmatpush1.bf16.msra.mxu0 0
      %370 = vmatprep.subr.bf16.mxu0 0
      %371 = vmatpush1.bf16.msra.mxu0 0
      %372 = vmatprep.subr.bf16.mxu0 0
      %373 = vmatpush1.bf16.msra.mxu0 0
      %374 = vmatprep.mubr.bf16.mxu0 0
      %375 = vmatmul.mubr.bf16.gmra.mrb[0].mxu0 %v338
      %v376 = vpop.f32.mrb[0].mxu0
      %v377 = vadd.f32 %v313, %v376
      %v378 = vpop.f32.mrb[0].mxu0
      %v379 = vpop.f32.mrb[0].mxu0
      %v380 = vadd.f32 %v318, %v379
      %v381 = vpop.f32.mrb[0].mxu0
      %382 = vmatprep.mubr.bf16.mxu0 0
      %383 = vmatmul.mubr.bf16.gmra.mrb[0].mxu0 %v339
      %v384 = vpop.f32.mrb[0].mxu0
      %v385 = vadd.f32 %v323, %v384
      %v386 = vpop.f32.mrb[0].mxu0
      %v387 = vpop.f32.mrb[0].mxu0
      %v388 = vadd.f32 %v328, %v387
      %v389 = vpop.f32.mrb[0].mxu0
      %390 = vdwg.mxu0
      %391 = vst.msk [vmem:[%s170] sm:$0xff] %vm196, %v377
      %392 = vst.msk [vmem:[%s170 + $0x8] sm:$0xff] %vm196, %v380
      %393 = vst.msk [vmem:[%s170 + $0x10] sm:$0xff] %vm196, %v385
      %394 = vst.msk [vmem:[%s170 + $0x18] sm:$0xff] %vm196, %v388
      %v395 = vld [vmem:[#allocation2 + $0x8] sm:$0xff]
      %v396 = vld [vmem:[#allocation2 + $0x18] sm:$0xff]
      %397 = vst.msk [vmem:[#allocation3] sm:$0xff] %vm196, %v395
      %398 = vst.msk [vmem:[#allocation3 + $0x8] sm:$0xff] %vm196, %v396
      %v399 = vld [vmem:[#allocation2 + $0x8] sm:$0xff]
      %v400 = vld [vmem:[#allocation2 + $0x18] sm:$0xff]
      %v401 = vsel %vm184, 1, 0
      %vm402 = vcmp.eq.s32.totalorder %v401, 1
      %vm403 = vmpackc.low %vm402, %vm402
      %v404 = vsel %vm403, 65537, 0
      %v405 = vlaneseq
      %v406 = vshrl.u32 %v405, 7
      %v407 = vsub.s32 0, %v406
      %v408 = vrot.slane %v404, %v407
      %409 = vrot.lane.b32.xlu0 %v408, 1
      %v410 = vpop.permute.xlu0 %409
      %vm411 = vcmp.ne.s16.totalorder %v410, 0
      %v412 = vsel %vm411, %v399, 0
      %v413 = vsel %vm411, %v400, 0
      %416 = vrot.lane.b32.xlu0 %v412, 127
      %v417 = vpop.permute.xlu0 %416
      %418 = vrot.lane.b32.xlu0 %v413, 127
      %v419 = vpop.permute.xlu0 %418
      %422 = vst.msk [vmem:[#allocation3 + $0x10] sm:$0xff] %vm196, %v417
      %423 = vst.msk [vmem:[#allocation3 + $0x18] sm:$0xff] %vm196, %v419
      %v424 = vld [vmem:[#allocation2] sm:$0xff]
      %v425 = vld [vmem:[#allocation2 + $0x8] sm:$0xff]
      %v426 = vld [vmem:[#allocation2 + $0x10] sm:$0xff]
      %v427 = vld [vmem:[#allocation2 + $0x18] sm:$0xff]
      %432 = vrot.lane.b32.xlu0 %v424, 8
      %v433 = vpop.permute.xlu0 %432
      %434 = vrot.lane.b32.xlu0 %v425, 8
      %v435 = vpop.permute.xlu0 %434
      %436 = vrot.lane.b32.xlu0 %v426, 8
      %v437 = vpop.permute.xlu0 %436
      %438 = vrot.lane.b32.xlu0 %v427, 8
      %v439 = vpop.permute.xlu0 %438
      %v440 = vsel %vm257, %v433, %v435
      %v441 = vsel %vm257, %v437, %v439
      %444 = vst.msk [vmem:[#allocation3 + $0x20] sm:$0xff] %vm196, %v440
      %445 = vst.msk [vmem:[#allocation3 + $0x28] sm:$0xff] %vm196, %v441
      %v446 = vld [vmem:[#allocation2] sm:$0xff]
      %v447 = vld [vmem:[#allocation2 + $0x8] sm:$0xff]
      %v448 = vld [vmem:[#allocation2 + $0x10] sm:$0xff]
      %v449 = vld [vmem:[#allocation2 + $0x18] sm:$0xff]
      %450 = vrot.lane.b32.xlu0 %v408, 121
      %v451 = vpop.permute.xlu0 %450
      %vm452 = vcmp.ne.s16.totalorder %v451, 0
      %v453 = vsel %vm452, %v446, 0
      %v454 = vsel %vm452, %v447, 0
      %v455 = vsel %vm452, %v448, 0
      %v456 = vsel %vm452, %v449, 0
      %461 = vrot.lane.b32.xlu0 %v453, 7
      %v462 = vpop.permute.xlu0 %461
      %463 = vrot.lane.b32.xlu0 %v454, 7
      %v464 = vpop.permute.xlu0 %463
      %465 = vrot.lane.b32.xlu0 %v455, 7
      %v466 = vpop.permute.xlu0 %465
      %467 = vrot.lane.b32.xlu0 %v456, 7
      %v468 = vpop.permute.xlu0 %467
      %vm469 = vcmask 56320
      %v470 = vsel %vm469, %v462, %v464
      %v471 = vsel %vm469, %v466, %v468
      %474 = vst.msk [vmem:[#allocation3 + $0x30] sm:$0xff] %vm196, %v470
      %475 = vst.msk [vmem:[#allocation3 + $0x38] sm:$0xff] %vm196, %v471
      %v476 = vld [vmem:[#allocation3] sm:$0xff]
      %v477 = vld [vmem:[#allocation3 + $0x8] sm:$0xff]
      %v478 = vld [vmem:[#allocation3 + $0x10] sm:$0xff]
      %v479 = vld [vmem:[#allocation3 + $0x18] sm:$0xff]
      %v480 = vld [vmem:[#allocation3 + $0x20] sm:$0xff]
      %v481 = vld [vmem:[#allocation3 + $0x28] sm:$0xff]
      %v482 = vld [vmem:[#allocation3 + $0x30] sm:$0xff]
      %v483 = vld [vmem:[#allocation3 + $0x38] sm:$0xff]
      %s484 = scalar_lea.vmem %s1, 16
      %v485 = vld [vmem:[%s484] sm:$0xf]
      %v486 = vld [vmem:[%s484 + $0x4] sm:$0xf]
      %v487 = vld [vmem:[%s484 + $0x8] sm:$0xf]
      %v488 = vld [vmem:[%s484 + $0xc] sm:$0xf]
      %v489 = vld [vmem:[%s2] sm:$0xff]
      %v490 = vld [vmem:[%s2 + $0x8] sm:$0xff]
      %v491 = vld [vmem:[%s2 + $0x10] sm:$0xff]
      %v492 = vld [vmem:[%s2 + $0x18] sm:$0xff]
      %494 = vset.pattern.permute.xlu0 0
      %495 = vperm.xlu0 %494, %v489
      %v496 = vpop.permute.xlu0 %495
      %499 = vset.pattern.permute.xlu0 0
      %500 = vperm.xlu0 %499, %v490
      %v501 = vpop.permute.xlu0 %500
      %504 = vset.pattern.permute.xlu0 0
      %505 = vperm.xlu0 %504, %v491
      %v506 = vpop.permute.xlu0 %505
      %509 = vset.pattern.permute.xlu0 0
      %510 = vperm.xlu0 %509, %v492
      %v511 = vpop.permute.xlu0 %510
      %v517 = vunpack.c.l.b16 %v485
      %v518 = vunpack.c.l.b16 %v486
      %v519 = vunpack.c.l.b16 %v487
      %v520 = vunpack.c.l.b16 %v488
      %v521 = vpack.c.b16 %v518, %v517
      %v522 = vpack.c.b16 %v520, %v519
      %525 = vmatprep.subr.bf16.mxu0 0
      %526 = vmatpush1.bf16.msra.mxu0 %v476
      %527 = vmatprep.subr.bf16.mxu0 0
      %528 = vmatpush1.bf16.msra.mxu0 %v477
      %529 = vmatprep.subr.bf16.mxu0 0
      %530 = vmatpush1.bf16.msra.mxu0 %v478
      %531 = vmatprep.subr.bf16.mxu0 0
      %532 = vmatpush1.bf16.msra.mxu0 %v479
      %533 = vmatprep.subr.bf16.mxu0 0
      %534 = vmatpush1.bf16.msra.mxu0 %v480
      %535 = vmatprep.subr.bf16.mxu0 0
      %536 = vmatpush1.bf16.msra.mxu0 %v481
      %537 = vmatprep.subr.bf16.mxu0 0
      %538 = vmatpush1.bf16.msra.mxu0 %v482
      %539 = vmatprep.subr.bf16.mxu0 0
      %540 = vmatpush1.bf16.msra.mxu0 %v483
      %541 = vmatprep.subr.bf16.mxu0 0
      %542 = vmatpush1.bf16.msra.mxu0 0
      %543 = vmatprep.subr.bf16.mxu0 0
      %544 = vmatpush1.bf16.msra.mxu0 0
      %545 = vmatprep.subr.bf16.mxu0 0
      %546 = vmatpush1.bf16.msra.mxu0 0
      %547 = vmatprep.subr.bf16.mxu0 0
      %548 = vmatpush1.bf16.msra.mxu0 0
      %549 = vmatprep.subr.bf16.mxu0 0
      %550 = vmatpush1.bf16.msra.mxu0 0
      %551 = vmatprep.subr.bf16.mxu0 0
      %552 = vmatpush1.bf16.msra.mxu0 0
      %553 = vmatprep.subr.bf16.mxu0 0
      %554 = vmatpush1.bf16.msra.mxu0 0
      %555 = vmatprep.subr.bf16.mxu0 0
      %556 = vmatpush1.bf16.msra.mxu0 0
      %557 = vmatprep.mubr.bf16.mxu0 0
      %558 = vmatmul.mubr.bf16.gmra.mrb[0].mxu0 %v521
      %v559 = vpop.f32.mrb[0].mxu0
      %v560 = vadd.f32 %v496, %v559
      %v561 = vpop.f32.mrb[0].mxu0
      %v562 = vpop.f32.mrb[0].mxu0
      %v563 = vadd.f32 %v501, %v562
      %v564 = vpop.f32.mrb[0].mxu0
      %565 = vmatprep.mubr.bf16.mxu0 0
      %566 = vmatmul.mubr.bf16.gmra.mrb[0].mxu0 %v522
      %v567 = vpop.f32.mrb[0].mxu0
      %v568 = vadd.f32 %v506, %v567
      %v569 = vpop.f32.mrb[0].mxu0
      %v570 = vpop.f32.mrb[0].mxu0
      %v571 = vadd.f32 %v511, %v570
      %v572 = vpop.f32.mrb[0].mxu0
      %573 = vdwg.mxu0
      %s574 = scalar_lea.vmem %s170, 32
      %575 = vst.msk [vmem:[%s574] sm:$0xff] %vm196, %v560
      %576 = vst.msk [vmem:[%s574 + $0x8] sm:$0xff] %vm196, %v563
      %577 = vst.msk [vmem:[%s574 + $0x10] sm:$0xff] %vm196, %v568
      %578 = vst.msk [vmem:[%s574 + $0x18] sm:$0xff] %vm196, %v571
      %v579 = vld [vmem:[#allocation2 + $0x8] sm:$0xff]
      %v580 = vld [vmem:[#allocation2 + $0x18] sm:$0xff]
      %581 = vst.msk [vmem:[#allocation3] sm:$0xff] %vm196, %v579
      %582 = vst.msk [vmem:[#allocation3 + $0x8] sm:$0xff] %vm196, %v580
      %v583 = vld [vmem:[#allocation2] sm:$0xff]
      %v584 = vld [vmem:[#allocation2 + $0x8] sm:$0xff]
      %v585 = vld [vmem:[#allocation2 + $0x10] sm:$0xff]
      %v586 = vld [vmem:[#allocation2 + $0x18] sm:$0xff]
      %v587 = vsel %vm217, %v583, 0
      %v588 = vsel %vm217, %v584, 0
      %v589 = vsel %vm217, %v585, 0
      %v590 = vsel %vm217, %v586, 0
      %595 = vrot.lane.b32.xlu0 %v587, 1
      %v596 = vpop.permute.xlu0 %595
      %597 = vrot.lane.b32.xlu0 %v588, 1
      %v598 = vpop.permute.xlu0 %597
      %599 = vrot.lane.b32.xlu0 %v589, 1
      %v600 = vpop.permute.xlu0 %599
      %601 = vrot.lane.b32.xlu0 %v590, 1
      %v602 = vpop.permute.xlu0 %601
      %v603 = vsel %vm234, %v596, %v598
      %v604 = vsel %vm234, %v600, %v602
      %607 = vst.msk [vmem:[#allocation3 + $0x10] sm:$0xff] %vm196, %v603
      %608 = vst.msk [vmem:[#allocation3 + $0x18] sm:$0xff] %vm196, %v604
      %v609 = vld [vmem:[#allocation2 + $0x8] sm:$0xff]
      %v610 = vld [vmem:[#allocation2 + $0x18] sm:$0xff]
      %613 = vrot.lane.b32.xlu0 %v609, 120
      %v614 = vpop.permute.xlu0 %613
      %615 = vrot.lane.b32.xlu0 %v610, 120
      %v616 = vpop.permute.xlu0 %615
      %619 = vst.msk [vmem:[#allocation3 + $0x20] sm:$0xff] %vm196, %v614
      %620 = vst.msk [vmem:[#allocation3 + $0x28] sm:$0xff] %vm196, %v616
      %v621 = vld [vmem:[#allocation2 + $0x8] sm:$0xff]
      %v622 = vld [vmem:[#allocation2 + $0x18] sm:$0xff]
      %623 = vrot.lane.b32.xlu0 %v214, 7
      %v624 = vpop.permute.xlu0 %623
      %vm625 = vcmp.ne.s16.totalorder %v624, 0
      %v626 = vsel %vm625, %v621, 0
      %v627 = vsel %vm625, %v622, 0
      %630 = vrot.lane.b32.xlu0 %v626, 121
      %v631 = vpop.permute.xlu0 %630
      %632 = vrot.lane.b32.xlu0 %v627, 121
      %v633 = vpop.permute.xlu0 %632
      %636 = vst.msk [vmem:[#allocation3 + $0x30] sm:$0xff] %vm196, %v631
      %637 = vst.msk [vmem:[#allocation3 + $0x38] sm:$0xff] %vm196, %v633
      %v638 = vld [vmem:[#allocation3] sm:$0xff]
      %v639 = vld [vmem:[#allocation3 + $0x8] sm:$0xff]
      %v640 = vld [vmem:[#allocation3 + $0x10] sm:$0xff]
      %v641 = vld [vmem:[#allocation3 + $0x18] sm:$0xff]
      %v642 = vld [vmem:[#allocation3 + $0x20] sm:$0xff]
      %v643 = vld [vmem:[#allocation3 + $0x28] sm:$0xff]
      %v644 = vld [vmem:[#allocation3 + $0x30] sm:$0xff]
      %v645 = vld [vmem:[#allocation3 + $0x38] sm:$0xff]
      %s646 = scalar_lea.vmem %s1, 32
      %v647 = vld [vmem:[%s646] sm:$0xf]
      %v648 = vld [vmem:[%s646 + $0x4] sm:$0xf]
      %v649 = vld [vmem:[%s646 + $0x8] sm:$0xf]
      %v650 = vld [vmem:[%s646 + $0xc] sm:$0xf]
      %v651 = vld [vmem:[%s2] sm:$0xff]
      %v652 = vld [vmem:[%s2 + $0x8] sm:$0xff]
      %v653 = vld [vmem:[%s2 + $0x10] sm:$0xff]
      %v654 = vld [vmem:[%s2 + $0x18] sm:$0xff]
      %656 = vset.pattern.permute.xlu0 0
      %657 = vperm.xlu0 %656, %v651
      %v658 = vpop.permute.xlu0 %657
      %661 = vset.pattern.permute.xlu0 0
      %662 = vperm.xlu0 %661, %v652
      %v663 = vpop.permute.xlu0 %662
      %666 = vset.pattern.permute.xlu0 0
      %667 = vperm.xlu0 %666, %v653
      %v668 = vpop.permute.xlu0 %667
      %671 = vset.pattern.permute.xlu0 0
      %672 = vperm.xlu0 %671, %v654
      %v673 = vpop.permute.xlu0 %672
      %v679 = vunpack.c.l.b16 %v647
      %v680 = vunpack.c.l.b16 %v648
      %v681 = vunpack.c.l.b16 %v649
      %v682 = vunpack.c.l.b16 %v650
      %v683 = vpack.c.b16 %v680, %v679
      %v684 = vpack.c.b16 %v682, %v681
      %687 = vmatprep.subr.bf16.mxu0 0
      %688 = vmatpush1.bf16.msra.mxu0 %v638
      %689 = vmatprep.subr.bf16.mxu0 0
      %690 = vmatpush1.bf16.msra.mxu0 %v639
      %691 = vmatprep.subr.bf16.mxu0 0
      %692 = vmatpush1.bf16.msra.mxu0 %v640
      %693 = vmatprep.subr.bf16.mxu0 0
      %694 = vmatpush1.bf16.msra.mxu0 %v641
      %695 = vmatprep.subr.bf16.mxu0 0
      %696 = vmatpush1.bf16.msra.mxu0 %v642
      %697 = vmatprep.subr.bf16.mxu0 0
      %698 = vmatpush1.bf16.msra.mxu0 %v643
      %699 = vmatprep.subr.bf16.mxu0 0
      %700 = vmatpush1.bf16.msra.mxu0 %v644
      %701 = vmatprep.subr.bf16.mxu0 0
      %702 = vmatpush1.bf16.msra.mxu0 %v645
      %703 = vmatprep.subr.bf16.mxu0 0
      %704 = vmatpush1.bf16.msra.mxu0 0
      %705 = vmatprep.subr.bf16.mxu0 0
      %706 = vmatpush1.bf16.msra.mxu0 0
      %707 = vmatprep.subr.bf16.mxu0 0
      %708 = vmatpush1.bf16.msra.mxu0 0
      %709 = vmatprep.subr.bf16.mxu0 0
      %710 = vmatpush1.bf16.msra.mxu0 0
      %711 = vmatprep.subr.bf16.mxu0 0
      %712 = vmatpush1.bf16.msra.mxu0 0
      %713 = vmatprep.subr.bf16.mxu0 0
      %714 = vmatpush1.bf16.msra.mxu0 0
      %715 = vmatprep.subr.bf16.mxu0 0
      %716 = vmatpush1.bf16.msra.mxu0 0
      %717 = vmatprep.subr.bf16.mxu0 0
      %718 = vmatpush1.bf16.msra.mxu0 0
      %719 = vmatprep.mubr.bf16.mxu0 0
      %720 = vmatmul.mubr.bf16.gmra.mrb[0].mxu0 %v683
      %v721 = vpop.f32.mrb[0].mxu0
      %v722 = vadd.f32 %v658, %v721
      %v723 = vpop.f32.mrb[0].mxu0
      %v724 = vpop.f32.mrb[0].mxu0
      %v725 = vadd.f32 %v663, %v724
      %v726 = vpop.f32.mrb[0].mxu0
      %727 = vmatprep.mubr.bf16.mxu0 0
      %728 = vmatmul.mubr.bf16.gmra.mrb[0].mxu0 %v684
      %v729 = vpop.f32.mrb[0].mxu0
      %v730 = vadd.f32 %v668, %v729
      %v731 = vpop.f32.mrb[0].mxu0
      %v732 = vpop.f32.mrb[0].mxu0
      %v733 = vadd.f32 %v673, %v732
      %v734 = vpop.f32.mrb[0].mxu0
      %735 = vdwg.mxu0
      %s736 = scalar_lea.vmem %s170, 64
      %737 = vst.msk [vmem:[%s736] sm:$0xff] %vm196, %v722
      %738 = vst.msk [vmem:[%s736 + $0x8] sm:$0xff] %vm196, %v725
      %739 = vst.msk [vmem:[%s736 + $0x10] sm:$0xff] %vm196, %v730
      %740 = vst.msk [vmem:[%s736 + $0x18] sm:$0xff] %vm196, %v733
      %v741 = vld [vmem:[#allocation2 + $0x8] sm:$0xff]
      %v742 = vld [vmem:[#allocation2 + $0x18] sm:$0xff]
      %743 = vst.msk [vmem:[#allocation3] sm:$0xff] %vm196, %v741
      %744 = vst.msk [vmem:[#allocation3 + $0x8] sm:$0xff] %vm196, %v742
      %v745 = vld [vmem:[#allocation2 + $0x8] sm:$0xff]
      %v746 = vld [vmem:[#allocation2 + $0x18] sm:$0xff]
      %v747 = vsel %vm411, %v745, 0
      %v748 = vsel %vm411, %v746, 0
      %751 = vrot.lane.b32.xlu0 %v747, 127
      %v752 = vpop.permute.xlu0 %751
      %753 = vrot.lane.b32.xlu0 %v748, 127
      %v754 = vpop.permute.xlu0 %753
      %757 = vst.msk [vmem:[#allocation3 + $0x10] sm:$0xff] %vm196, %v752
      %758 = vst.msk [vmem:[#allocation3 + $0x18] sm:$0xff] %vm196, %v754
      %v759 = vld [vmem:[#allocation2 + $0x8] sm:$0xff]
      %v760 = vld [vmem:[#allocation2 + $0x18] sm:$0xff]
      %763 = vrot.lane.b32.xlu0 %v759, 120
      %v764 = vpop.permute.xlu0 %763
      %765 = vrot.lane.b32.xlu0 %v760, 120
      %v766 = vpop.permute.xlu0 %765
      %769 = vst.msk [vmem:[#allocation3 + $0x20] sm:$0xff] %vm196, %v764
      %770 = vst.msk [vmem:[#allocation3 + $0x28] sm:$0xff] %vm196, %v766
      %v771 = vld [vmem:[#allocation2 + $0x8] sm:$0xff]
      %v772 = vld [vmem:[#allocation2 + $0x18] sm:$0xff]
      %773 = vrot.lane.b32.xlu0 %v408, 9
      %v774 = vpop.permute.xlu0 %773
      %vm775 = vcmp.ne.s16.totalorder %v774, 0
      %v776 = vsel %vm775, %v771, 0
      %v777 = vsel %vm775, %v772, 0
      %780 = vrot.lane.b32.xlu0 %v776, 119
      %v781 = vpop.permute.xlu0 %780
      %782 = vrot.lane.b32.xlu0 %v777, 119
      %v783 = vpop.permute.xlu0 %782
      %786 = vst.msk [vmem:[#allocation3 + $0x30] sm:$0xff] %vm196, %v781
      %787 = vst.msk [vmem:[#allocation3 + $0x38] sm:$0xff] %vm196, %v783
      %v788 = vld [vmem:[#allocation3] sm:$0xff]
      %v789 = vld [vmem:[#allocation3 + $0x8] sm:$0xff]
      %v790 = vld [vmem:[#allocation3 + $0x10] sm:$0xff]
      %v791 = vld [vmem:[#allocation3 + $0x18] sm:$0xff]
      %v792 = vld [vmem:[#allocation3 + $0x20] sm:$0xff]
      %v793 = vld [vmem:[#allocation3 + $0x28] sm:$0xff]
      %v794 = vld [vmem:[#allocation3 + $0x30] sm:$0xff]
      %v795 = vld [vmem:[#allocation3 + $0x38] sm:$0xff]
      %s796 = scalar_lea.vmem %s1, 48
      %v797 = vld [vmem:[%s796] sm:$0xf]
      %v798 = vld [vmem:[%s796 + $0x4] sm:$0xf]
      %v799 = vld [vmem:[%s796 + $0x8] sm:$0xf]
      %v800 = vld [vmem:[%s796 + $0xc] sm:$0xf]
      %v801 = vld [vmem:[%s2] sm:$0xff]
      %v802 = vld [vmem:[%s2 + $0x8] sm:$0xff]
      %v803 = vld [vmem:[%s2 + $0x10] sm:$0xff]
      %v804 = vld [vmem:[%s2 + $0x18] sm:$0xff]
      %806 = vset.pattern.permute.xlu0 0
      %807 = vperm.xlu0 %806, %v801
      %v808 = vpop.permute.xlu0 %807
      %811 = vset.pattern.permute.xlu0 0
      %812 = vperm.xlu0 %811, %v802
      %v813 = vpop.permute.xlu0 %812
      %816 = vset.pattern.permute.xlu0 0
      %817 = vperm.xlu0 %816, %v803
      %v818 = vpop.permute.xlu0 %817
      %821 = vset.pattern.permute.xlu0 0
      %822 = vperm.xlu0 %821, %v804
      %v823 = vpop.permute.xlu0 %822
      %v829 = vunpack.c.l.b16 %v797
      %v830 = vunpack.c.l.b16 %v798
      %v831 = vunpack.c.l.b16 %v799
      %v832 = vunpack.c.l.b16 %v800
      %v833 = vpack.c.b16 %v830, %v829
      %v834 = vpack.c.b16 %v832, %v831
      %837 = vmatprep.subr.bf16.mxu0 0
      %838 = vmatpush1.bf16.msra.mxu0 %v788
      %839 = vmatprep.subr.bf16.mxu0 0
      %840 = vmatpush1.bf16.msra.mxu0 %v789
      %841 = vmatprep.subr.bf16.mxu0 0
      %842 = vmatpush1.bf16.msra.mxu0 %v790
      %843 = vmatprep.subr.bf16.mxu0 0
      %844 = vmatpush1.bf16.msra.mxu0 %v791
      %845 = vmatprep.subr.bf16.mxu0 0
      %846 = vmatpush1.bf16.msra.mxu0 %v792
      %847 = vmatprep.subr.bf16.mxu0 0
      %848 = vmatpush1.bf16.msra.mxu0 %v793
      %849 = vmatprep.subr.bf16.mxu0 0
      %850 = vmatpush1.bf16.msra.mxu0 %v794
      %851 = vmatprep.subr.bf16.mxu0 0
      %852 = vmatpush1.bf16.msra.mxu0 %v795
      %853 = vmatprep.subr.bf16.mxu0 0
      %854 = vmatpush1.bf16.msra.mxu0 0
      %855 = vmatprep.subr.bf16.mxu0 0
      %856 = vmatpush1.bf16.msra.mxu0 0
      %857 = vmatprep.subr.bf16.mxu0 0
      %858 = vmatpush1.bf16.msra.mxu0 0
      %859 = vmatprep.subr.bf16.mxu0 0
      %860 = vmatpush1.bf16.msra.mxu0 0
      %861 = vmatprep.subr.bf16.mxu0 0
      %862 = vmatpush1.bf16.msra.mxu0 0
      %863 = vmatprep.subr.bf16.mxu0 0
      %864 = vmatpush1.bf16.msra.mxu0 0
      %865 = vmatprep.subr.bf16.mxu0 0
      %866 = vmatpush1.bf16.msra.mxu0 0
      %867 = vmatprep.subr.bf16.mxu0 0
      %868 = vmatpush1.bf16.msra.mxu0 0
      %869 = vmatprep.mubr.bf16.mxu0 0
      %870 = vmatmul.mubr.bf16.gmra.mrb[0].mxu0 %v833
      %v871 = vpop.f32.mrb[0].mxu0
      %v872 = vadd.f32 %v808, %v871
      %v873 = vpop.f32.mrb[0].mxu0
      %v874 = vpop.f32.mrb[0].mxu0
      %v875 = vadd.f32 %v813, %v874
      %v876 = vpop.f32.mrb[0].mxu0
      %877 = vmatprep.mubr.bf16.mxu0 0
      %878 = vmatmul.mubr.bf16.gmra.mrb[0].mxu0 %v834
      %v879 = vpop.f32.mrb[0].mxu0
      %v880 = vadd.f32 %v818, %v879
      %v881 = vpop.f32.mrb[0].mxu0
      %v882 = vpop.f32.mrb[0].mxu0
      %v883 = vadd.f32 %v823, %v882
      %v884 = vpop.f32.mrb[0].mxu0
      %885 = vdwg.mxu0
      %s886 = scalar_lea.vmem %s170, 96
      %887 = vst.msk [vmem:[%s886] sm:$0xff] %vm196, %v872
      %888 = vst.msk [vmem:[%s886 + $0x8] sm:$0xff] %vm196, %v875
      %889 = vst.msk [vmem:[%s886 + $0x10] sm:$0xff] %vm196, %v880
      %890 = vst.msk [vmem:[%s886 + $0x18] sm:$0xff] %vm196, %v883
      %p891 = scmp.lt.s32.totalorder %s14, 1
      %s892 = scalar_select %p891, %s14, 1
      %s893 = smul.addr %s892, 16
      %s894 = smul.addr %s893, 8
      %s895 = scalar_lea.vmem %s3, %s894
      // Predicated region
      $region33: #{up_block_forward.2} parent=31 // pred_check
        %p896 = pneg %p100
      $region34: #{up_block_forward.2} parent=31 // pred_check_branch
        %898 = sbr.rel (%p896) target = $region36
      $region35: #{up_block_forward.2} parent=31 // pred_region
        _
      $region36: #{up_block_forward.2} parent=31 // pred_fallthru
        _
    $region32: #{up_block_forward.2} parent=5 // pred_fallthru
      _
    %p899 = scmp.le.s32.totalorder 2, %s9
    // Predicated region
    $region37: #{up_block_forward.2} parent=5 // pred_check
      %p900 = pneg %p899
    $region38: #{up_block_forward.2} parent=5 // pred_check_branch
      %902 = sbr.rel (%p900) target = $region40
    $region39: #{up_block_forward.2} parent=5 // pred_region
      %s903 = ssub.s32 %s9, 2
      // Predicated region
      $region41: #{up_block_forward.2} parent=39 // pred_check
        %p904 = pneg %p106
      $region42: #{up_block_forward.2} parent=39 // pred_check_branch
        %906 = sbr.rel (%p904) target = $region44
      $region43: #{up_block_forward.2} parent=39 // pred_region
        %p907 = scmp.lt.s32.totalorder %s15, 1
        %s908 = scalar_select %p907, %s15, 1
        %s909 = smul.addr %s908, 16
        %s910 = smul.addr %s909, 8
        %s911 = scalar_lea.vmem %s3, %s910
      $region44: #{up_block_forward.2} parent=39 // pred_fallthru
        _
    $region40: #{up_block_forward.2} parent=5 // pred_fallthru
      _
  $region6: #{up_block_forward.2} parent=0 // loop_footer
    %s13 = sadd.s32 1, %s9
  $region7: #{up_block_forward.2} parent=0 // loop_footer_branch
    %8 = sbr.rel target = $region3
  $region8: #{up_block_forward.2} parent=0 // loop_exit
    _

// kernel: up_block_forward.3
$region0: #{up_block_forward.3}
  #allocation0 [shape = 'u32[]', space=smem, size = 0x4, offset = 0x4, fixed_abs, tag = 'smem constant byte address 0x4 - core index']
  #allocation1 [shape = 'u32[144,128]{1,0:T(1,128)}', space=vmem, size = 0x12000, scoped, tag = 'internal scratch']
  #allocation2 [shape = 'bf16[64,512]{1,0:T(16,128)(2,1)}', space=vmem, size = 0x10000, scoped, tag = 'scratch operand']
  #allocation3 [shape = 'bf16[576,256]{1,0:T(16,128)(2,1)}', space=vmem, size = 0x48000, scoped, tag = 'scratch operand']
  #allocation4 [shape = 'bf16[32,256]{1,0:T(16,128)(2,1)}', space=vmem, size = 0x4000, scoped, tag = 'scratch operand']
  %s0 = inlined_call_operand.vmem [shape: f32[2,64,256], index: 0, kind: input, shape index: {}]
  %s1 = inlined_call_operand.vmem [shape: f32[2,32,1], index: 1, kind: input, shape index: {}]
  %s2 = inlined_call_operand.vmem [shape: f32[64,1], index: 2, kind: input, shape index: {}]
  %s3 = inlined_call_operand.vmem [shape: f32[64,1], index: 3, kind: input, shape index: {}]
  %s4 = inlined_call_operand.vmem [shape: bf16[32,576], index: 4, kind: input, shape index: {}]
  %s5 = inlined_call_operand.vmem [shape: f32[32,1], index: 5, kind: input, shape index: {}, may-alias: {5,11}]
  %s6 = inlined_call_operand.vmem [shape: f32[32,1], index: 6, kind: input, shape index: {}, may-alias: {6,12}]
  %s7 = inlined_call_operand.vmem [shape: bf16[32,288], index: 7, kind: input, shape index: {}]
  %s8 = inlined_call_operand.vmem [shape: f32[32,1], index: 8, kind: input, shape index: {}]
  %s9 = inlined_call_operand.vmem [shape: bf16[32,64], index: 9, kind: input, shape index: {}]
  %s10 = inlined_call_operand.vmem [shape: f32[32,1], index: 10, kind: input, shape index: {}]
  %s11 = inlined_call_operand.vmem [shape: f32[32,1], index: 11, kind: input, shape index: {}, may-alias: {5,11}]
  %s12 = inlined_call_operand.vmem [shape: f32[32,1], index: 12, kind: input, shape index: {}, may-alias: {6,12}]
  %s13 = inlined_call_operand.vmem [shape: bf16[96,32], index: 13, kind: input, shape index: {}]
  %s14 = inlined_call_operand.vmem [shape: f32[96,1], index: 14, kind: input, shape index: {}]
  %s15 = inlined_call_operand.vmem [shape: bf16[32,32], index: 15, kind: input, shape index: {}]
  %s16 = inlined_call_operand.vmem [shape: f32[32,1], index: 16, kind: input, shape index: {}]
  %s17 = inlined_call_operand.vmem [shape: f32[2,32,256], index: 17, kind: output, shape index: {}]
  %s18 = sld [smem:[#allocation0]]
  $region101: #{up_block_forward.3} parent=0
    _
  %s20 = ssub.s32 1, %s18
  %s21 = scalar_select 0, %s20, %s18
  loop: start=0, step=1, limit=4
  $region2: #{up_block_forward.3} parent=0 // loop_pre_header
    _
  $region3: #{up_block_forward.3} parent=0 // loop_header
    %s23 = sphi 0, %s27
    %p24 = scmp.ge.s32.totalorder %s23, 4
    %s33 = sphi 0, %s35
    %s36 = sphi 0, %s33
    %s37 = sphi 0, %s36
    %s53 = sphi 0, %s37
    %s59 = sphi 0, %s61
    %s62 = sphi 0, %s59
    %s63 = sphi 0, %s62
    %s79 = sphi 0, %s63
    %s83 = sphi 0, %s83
    %s85 = sphi 0, %s83
    %s86 = sphi 0, %s85
    %s100 = sphi 0, %s86
    %s104 = sphi 0, %s104
    %s106 = sphi 0, %s104
    %s107 = sphi 0, %s106
    %s121 = sphi 0, %s107
    %s125 = sphi 0, %s125
    %s127 = sphi 0, %s125
    %s128 = sphi 0, %s127
    %s142 = sphi 0, %s128
    %s146 = sphi 0, %s146
    %s148 = sphi 0, %s146
    %s149 = sphi 0, %s148
    %s163 = sphi 0, %s149
    %s167 = sphi 0, %s167
    %s169 = sphi 0, %s167
    %s170 = sphi 0, %s169
    %s184 = sphi 0, %s170
    %s188 = sphi 0, %s188
    %s190 = sphi 0, %s188
    %s191 = sphi 0, %s190
    %s205 = sphi 0, %s191
    %s209 = sphi 0, %s209
    %s211 = sphi 0, %s209
    %s212 = sphi 0, %s211
    %s226 = sphi 0, %s212
    %s230 = sphi 0, %s230
    %s232 = sphi 0, %s230
    %s233 = sphi 0, %s232
    %s247 = sphi 0, %s233
    %s251 = sphi 0, %s251
    %s253 = sphi 0, %s251
    %s254 = sphi 0, %s253
    %s268 = sphi 0, %s254
    %s272 = sphi 0, %s272
    %s274 = sphi 0, %s272
    %s275 = sphi 0, %s274
    %s289 = sphi 0, %s275
    %s293 = sphi 0, %s293
    %s295 = sphi 0, %s293
    %s296 = sphi 0, %s295
    %s310 = sphi 0, %s296
    %s314 = sphi 0, %s314
    %s316 = sphi 0, %s314
    %s317 = sphi 0, %s316
    %s331 = sphi 0, %s317
    %s335 = sphi 0, %s335
    %s337 = sphi 0, %s335
    %s338 = sphi 0, %s337
    %s352 = sphi 0, %s338
    %s356 = sphi 0, %s356
    %s358 = sphi 0, %s356
    %s359 = sphi 0, %s358
    %s373 = sphi 0, %s359
    %s377 = sphi 0, %s377
    %s379 = sphi 0, %s377
    %s380 = sphi 0, %s379
    %s394 = sphi 0, %s380
    %s400 = sphi 0, %s402
    %s403 = sphi 0, %s400
    %s404 = sphi 0, %s403
    %s420 = sphi 0, %s404
  $region4: #{up_block_forward.3} parent=0 // loop_header_branch
    %26 = sbr.rel (%p24) target = $region8
  $region5: #{up_block_forward.3} parent=0 // loop_body
    %s28 = ssub.s32 %s23, 1
    %s29 = ssub.s32 %s23, 2
    %s30 = sadd.s32 %s23, 1
    %s31 = ssub.s32 %s23, %s30
    %p32 = scmp.eq.s32.totalorder %s31, 0
    %s34 = sadd.s32 %s33, 1
    %s35 = scalar_select %p32, %s33, %s34
    %p38 = pneg %p32
    %p39 = scmp.eq.s32.totalorder %s23, 1
    %p40 = por %p38, %p39
    %p41 = scmp.ne.s32.totalorder %s33, %s36
    %p42 = scmp.eq.s32.totalorder %s23, 0
    %p43 = por %p41, %p42
    %p44 = scmp.ne.s32.totalorder %s33, %s36
    %p45 = scmp.eq.s32.totalorder %s28, 1
    %p46 = por %p44, %p45
    %p47 = scmp.ne.s32.totalorder %s36, %s37
    %p48 = scmp.eq.s32.totalorder %s28, 0
    %p49 = por %p47, %p48
    %p50 = scmp.ne.s32.totalorder %s36, %s37
    %p51 = scmp.eq.s32.totalorder %s29, 1
    %p52 = por %p50, %p51
    %p54 = scmp.ne.s32.totalorder %s37, %s53
    %p55 = scmp.eq.s32.totalorder %s29, 0
    %p56 = por %p54, %p55
    %s57 = ssub.s32 %s23, %s30
    %p58 = scmp.eq.s32.totalorder %s57, 0
    %s60 = sadd.s32 %s59, 1
    %s61 = scalar_select %p58, %s59, %s60
    %p64 = pneg %p58
    %p65 = scmp.eq.s32.totalorder %s23, 1
    %p66 = por %p64, %p65
    %p67 = scmp.ne.s32.totalorder %s59, %s62
    %p68 = scmp.eq.s32.totalorder %s23, 0
    %p69 = por %p67, %p68
    %p70 = scmp.ne.s32.totalorder %s59, %s62
    %p71 = scmp.eq.s32.totalorder %s28, 1
    %p72 = por %p70, %p71
    %p73 = scmp.ne.s32.totalorder %s62, %s63
    %p74 = scmp.eq.s32.totalorder %s28, 0
    %p75 = por %p73, %p74
    %p76 = scmp.ne.s32.totalorder %s62, %s63
    %p77 = scmp.eq.s32.totalorder %s29, 1
    %p78 = por %p76, %p77
    %p80 = scmp.ne.s32.totalorder %s63, %s79
    %p81 = scmp.eq.s32.totalorder %s29, 0
    %p82 = por %p80, %p81
    %s84 = sadd.s32 %s83, 1
    %p87 = scmp.eq.s32.totalorder %s23, 1
    %p88 = scmp.ne.s32.totalorder %s83, %s85
    %p89 = scmp.eq.s32.totalorder %s23, 0
    %p90 = por %p88, %p89
    %p91 = scmp.ne.s32.totalorder %s83, %s85
    %p92 = scmp.eq.s32.totalorder %s28, 1
    %p93 = por %p91, %p92
    %p94 = scmp.ne.s32.totalorder %s85, %s86
    %p95 = scmp.eq.s32.totalorder %s28, 0
    %p96 = por %p94, %p95
    %p97 = scmp.ne.s32.totalorder %s85, %s86
    %p98 = scmp.eq.s32.totalorder %s29, 1
    %p99 = por %p97, %p98
    %p101 = scmp.ne.s32.totalorder %s86, %s100
    %p102 = scmp.eq.s32.totalorder %s29, 0
    %p103 = por %p101, %p102
    %s105 = sadd.s32 %s104, 1
    %p108 = scmp.eq.s32.totalorder %s23, 1
    %p109 = scmp.ne.s32.totalorder %s104, %s106
    %p110 = scmp.eq.s32.totalorder %s23, 0
    %p111 = por %p109, %p110
    %p112 = scmp.ne.s32.totalorder %s104, %s106
    %p113 = scmp.eq.s32.totalorder %s28, 1
    %p114 = por %p112, %p113
    %p115 = scmp.ne.s32.totalorder %s106, %s107
    %p116 = scmp.eq.s32.totalorder %s28, 0
    %p117 = por %p115, %p116
    %p118 = scmp.ne.s32.totalorder %s106, %s107
    %p119 = scmp.eq.s32.totalorder %s29, 1
    %p120 = por %p118, %p119
    %p122 = scmp.ne.s32.totalorder %s107, %s121
    %p123 = scmp.eq.s32.totalorder %s29, 0
    %p124 = por %p122, %p123
    %s126 = sadd.s32 %s125, 1
    %p129 = scmp.eq.s32.totalorder %s23, 1
    %p130 = scmp.ne.s32.totalorder %s125, %s127
    %p131 = scmp.eq.s32.totalorder %s23, 0
    %p132 = por %p130, %p131
    %p133 = scmp.ne.s32.totalorder %s125, %s127
    %p134 = scmp.eq.s32.totalorder %s28, 1
    %p135 = por %p133, %p134
    %p136 = scmp.ne.s32.totalorder %s127, %s128
    %p137 = scmp.eq.s32.totalorder %s28, 0
    %p138 = por %p136, %p137
    %p139 = scmp.ne.s32.totalorder %s127, %s128
    %p140 = scmp.eq.s32.totalorder %s29, 1
    %p141 = por %p139, %p140
    %p143 = scmp.ne.s32.totalorder %s128, %s142
    %p144 = scmp.eq.s32.totalorder %s29, 0
    %p145 = por %p143, %p144
    %s147 = sadd.s32 %s146, 1
    %p150 = scmp.eq.s32.totalorder %s23, 1
    %p151 = scmp.ne.s32.totalorder %s146, %s148
    %p152 = scmp.eq.s32.totalorder %s23, 0
    %p153 = por %p151, %p152
    %p154 = scmp.ne.s32.totalorder %s146, %s148
    %p155 = scmp.eq.s32.totalorder %s28, 1
    %p156 = por %p154, %p155
    %p157 = scmp.ne.s32.totalorder %s148, %s149
    %p158 = scmp.eq.s32.totalorder %s28, 0
    %p159 = por %p157, %p158
    %p160 = scmp.ne.s32.totalorder %s148, %s149
    %p161 = scmp.eq.s32.totalorder %s29, 1
    %p162 = por %p160, %p161
    %p164 = scmp.ne.s32.totalorder %s149, %s163
    %p165 = scmp.eq.s32.totalorder %s29, 0
    %p166 = por %p164, %p165
    %s168 = sadd.s32 %s167, 1
    %p171 = scmp.eq.s32.totalorder %s23, 1
    %p172 = scmp.ne.s32.totalorder %s167, %s169
    %p173 = scmp.eq.s32.totalorder %s23, 0
    %p174 = por %p172, %p173
    %p175 = scmp.ne.s32.totalorder %s167, %s169
    %p176 = scmp.eq.s32.totalorder %s28, 1
    %p177 = por %p175, %p176
    %p178 = scmp.ne.s32.totalorder %s169, %s170
    %p179 = scmp.eq.s32.totalorder %s28, 0
    %p180 = por %p178, %p179
    %p181 = scmp.ne.s32.totalorder %s169, %s170
    %p182 = scmp.eq.s32.totalorder %s29, 1
    %p183 = por %p181, %p182
    %p185 = scmp.ne.s32.totalorder %s170, %s184
    %p186 = scmp.eq.s32.totalorder %s29, 0
    %p187 = por %p185, %p186
    %s189 = sadd.s32 %s188, 1
    %p192 = scmp.eq.s32.totalorder %s23, 1
    %p193 = scmp.ne.s32.totalorder %s188, %s190
    %p194 = scmp.eq.s32.totalorder %s23, 0
    %p195 = por %p193, %p194
    %p196 = scmp.ne.s32.totalorder %s188, %s190
    %p197 = scmp.eq.s32.totalorder %s28, 1
    %p198 = por %p196, %p197
    %p199 = scmp.ne.s32.totalorder %s190, %s191
    %p200 = scmp.eq.s32.totalorder %s28, 0
    %p201 = por %p199, %p200
    %p202 = scmp.ne.s32.totalorder %s190, %s191
    %p203 = scmp.eq.s32.totalorder %s29, 1
    %p204 = por %p202, %p203
    %p206 = scmp.ne.s32.totalorder %s191, %s205
    %p207 = scmp.eq.s32.totalorder %s29, 0
    %p208 = por %p206, %p207
    %s210 = sadd.s32 %s209, 1
    %p213 = scmp.eq.s32.totalorder %s23, 1
    %p214 = scmp.ne.s32.totalorder %s209, %s211
    %p215 = scmp.eq.s32.totalorder %s23, 0
    %p216 = por %p214, %p215
    %p217 = scmp.ne.s32.totalorder %s209, %s211
    %p218 = scmp.eq.s32.totalorder %s28, 1
    %p219 = por %p217, %p218
    %p220 = scmp.ne.s32.totalorder %s211, %s212
    %p221 = scmp.eq.s32.totalorder %s28, 0
    %p222 = por %p220, %p221
    %p223 = scmp.ne.s32.totalorder %s211, %s212
    %p224 = scmp.eq.s32.totalorder %s29, 1
    %p225 = por %p223, %p224
    %p227 = scmp.ne.s32.totalorder %s212, %s226
    %p228 = scmp.eq.s32.totalorder %s29, 0
    %p229 = por %p227, %p228
    %s231 = sadd.s32 %s230, 1
    %p234 = scmp.eq.s32.totalorder %s23, 1
    %p235 = scmp.ne.s32.totalorder %s230, %s232
    %p236 = scmp.eq.s32.totalorder %s23, 0
    %p237 = por %p235, %p236
    %p238 = scmp.ne.s32.totalorder %s230, %s232
    %p239 = scmp.eq.s32.totalorder %s28, 1
    %p240 = por %p238, %p239
    %p241 = scmp.ne.s32.totalorder %s232, %s233
    %p242 = scmp.eq.s32.totalorder %s28, 0
    %p243 = por %p241, %p242
    %p244 = scmp.ne.s32.totalorder %s232, %s233
    %p245 = scmp.eq.s32.totalorder %s29, 1
    %p246 = por %p244, %p245
    %p248 = scmp.ne.s32.totalorder %s233, %s247
    %p249 = scmp.eq.s32.totalorder %s29, 0
    %p250 = por %p248, %p249
    %s252 = sadd.s32 %s251, 1
    %p255 = scmp.eq.s32.totalorder %s23, 1
    %p256 = scmp.ne.s32.totalorder %s251, %s253
    %p257 = scmp.eq.s32.totalorder %s23, 0
    %p258 = por %p256, %p257
    %p259 = scmp.ne.s32.totalorder %s251, %s253
    %p260 = scmp.eq.s32.totalorder %s28, 1
    %p261 = por %p259, %p260
    %p262 = scmp.ne.s32.totalorder %s253, %s254
    %p263 = scmp.eq.s32.totalorder %s28, 0
    %p264 = por %p262, %p263
    %p265 = scmp.ne.s32.totalorder %s253, %s254
    %p266 = scmp.eq.s32.totalorder %s29, 1
    %p267 = por %p265, %p266
    %p269 = scmp.ne.s32.totalorder %s254, %s268
    %p270 = scmp.eq.s32.totalorder %s29, 0
    %p271 = por %p269, %p270
    %s273 = sadd.s32 %s272, 1
    %p276 = scmp.eq.s32.totalorder %s23, 1
    %p277 = scmp.ne.s32.totalorder %s272, %s274
    %p278 = scmp.eq.s32.totalorder %s23, 0
    %p279 = por %p277, %p278
    %p280 = scmp.ne.s32.totalorder %s272, %s274
    %p281 = scmp.eq.s32.totalorder %s28, 1
    %p282 = por %p280, %p281
    %p283 = scmp.ne.s32.totalorder %s274, %s275
    %p284 = scmp.eq.s32.totalorder %s28, 0
    %p285 = por %p283, %p284
    %p286 = scmp.ne.s32.totalorder %s274, %s275
    %p287 = scmp.eq.s32.totalorder %s29, 1
    %p288 = por %p286, %p287
    %p290 = scmp.ne.s32.totalorder %s275, %s289
    %p291 = scmp.eq.s32.totalorder %s29, 0
    %p292 = por %p290, %p291
    %s294 = sadd.s32 %s293, 1
    %p297 = scmp.eq.s32.totalorder %s23, 1
    %p298 = scmp.ne.s32.totalorder %s293, %s295
    %p299 = scmp.eq.s32.totalorder %s23, 0
    %p300 = por %p298, %p299
    %p301 = scmp.ne.s32.totalorder %s293, %s295
    %p302 = scmp.eq.s32.totalorder %s28, 1
    %p303 = por %p301, %p302
    %p304 = scmp.ne.s32.totalorder %s295, %s296
    %p305 = scmp.eq.s32.totalorder %s28, 0
    %p306 = por %p304, %p305
    %p307 = scmp.ne.s32.totalorder %s295, %s296
    %p308 = scmp.eq.s32.totalorder %s29, 1
    %p309 = por %p307, %p308
    %p311 = scmp.ne.s32.totalorder %s296, %s310
    %p312 = scmp.eq.s32.totalorder %s29, 0
    %p313 = por %p311, %p312
    %s315 = sadd.s32 %s314, 1
    %p318 = scmp.eq.s32.totalorder %s23, 1
    %p319 = scmp.ne.s32.totalorder %s314, %s316
    %p320 = scmp.eq.s32.totalorder %s23, 0
    %p321 = por %p319, %p320
    %p322 = scmp.ne.s32.totalorder %s314, %s316
    %p323 = scmp.eq.s32.totalorder %s28, 1
    %p324 = por %p322, %p323
    %p325 = scmp.ne.s32.totalorder %s316, %s317
    %p326 = scmp.eq.s32.totalorder %s28, 0
    %p327 = por %p325, %p326
    %p328 = scmp.ne.s32.totalorder %s316, %s317
    %p329 = scmp.eq.s32.totalorder %s29, 1
    %p330 = por %p328, %p329
    %p332 = scmp.ne.s32.totalorder %s317, %s331
    %p333 = scmp.eq.s32.totalorder %s29, 0
    %p334 = por %p332, %p333
    %s336 = sadd.s32 %s335, 1
    %p339 = scmp.eq.s32.totalorder %s23, 1
    %p340 = scmp.ne.s32.totalorder %s335, %s337
    %p341 = scmp.eq.s32.totalorder %s23, 0
    %p342 = por %p340, %p341
    %p343 = scmp.ne.s32.totalorder %s335, %s337
    %p344 = scmp.eq.s32.totalorder %s28, 1
    %p345 = por %p343, %p344
    %p346 = scmp.ne.s32.totalorder %s337, %s338
    %p347 = scmp.eq.s32.totalorder %s28, 0
    %p348 = por %p346, %p347
    %p349 = scmp.ne.s32.totalorder %s337, %s338
    %p350 = scmp.eq.s32.totalorder %s29, 1
    %p351 = por %p349, %p350
    %p353 = scmp.ne.s32.totalorder %s338, %s352
    %p354 = scmp.eq.s32.totalorder %s29, 0
    %p355 = por %p353, %p354
    %s357 = sadd.s32 %s356, 1
    %p360 = scmp.eq.s32.totalorder %s23, 1
    %p361 = scmp.ne.s32.totalorder %s356, %s358
    %p362 = scmp.eq.s32.totalorder %s23, 0
    %p363 = por %p361, %p362
    %p364 = scmp.ne.s32.totalorder %s356, %s358
    %p365 = scmp.eq.s32.totalorder %s28, 1
    %p366 = por %p364, %p365
    %p367 = scmp.ne.s32.totalorder %s358, %s359
    %p368 = scmp.eq.s32.totalorder %s28, 0
    %p369 = por %p367, %p368
    %p370 = scmp.ne.s32.totalorder %s358, %s359
    %p371 = scmp.eq.s32.totalorder %s29, 1
    %p372 = por %p370, %p371
    %p374 = scmp.ne.s32.totalorder %s359, %s373
    %p375 = scmp.eq.s32.totalorder %s29, 0
    %p376 = por %p374, %p375
    %s378 = sadd.s32 %s377, 1
    %p381 = scmp.eq.s32.totalorder %s23, 1
    %p382 = scmp.ne.s32.totalorder %s377, %s379
    %p383 = scmp.eq.s32.totalorder %s23, 0
    %p384 = por %p382, %p383
    %p385 = scmp.ne.s32.totalorder %s377, %s379
    %p386 = scmp.eq.s32.totalorder %s28, 1
    %p387 = por %p385, %p386
    %p388 = scmp.ne.s32.totalorder %s379, %s380
    %p389 = scmp.eq.s32.totalorder %s28, 0
    %p390 = por %p388, %p389
    %p391 = scmp.ne.s32.totalorder %s379, %s380
    %p392 = scmp.eq.s32.totalorder %s29, 1
    %p393 = por %p391, %p392
    %p395 = scmp.ne.s32.totalorder %s380, %s394
    %p396 = scmp.eq.s32.totalorder %s29, 0
    %p397 = por %p395, %p396
    %s398 = ssub.s32 %s23, %s30
    %p399 = scmp.eq.s32.totalorder %s398, 0
    %s401 = sadd.s32 %s400, 1
    %s402 = scalar_select %p399, %s400, %s401
    %p405 = pneg %p399
    %p406 = scmp.eq.s32.totalorder %s23, 1
    %p407 = por %p405, %p406
    %p408 = scmp.ne.s32.totalorder %s400, %s403
    %p409 = scmp.eq.s32.totalorder %s23, 0
    %p410 = por %p408, %p409
    %p411 = scmp.ne.s32.totalorder %s400, %s403
    %p412 = scmp.eq.s32.totalorder %s28, 1
    %p413 = por %p411, %p412
    %p414 = scmp.ne.s32.totalorder %s403, %s404
    %p415 = scmp.eq.s32.totalorder %s28, 0
    %p416 = por %p414, %p415
    %p417 = scmp.ne.s32.totalorder %s403, %s404
    %p418 = scmp.eq.s32.totalorder %s29, 1
    %p419 = por %p417, %p418
    %p421 = scmp.ne.s32.totalorder %s404, %s420
    %p422 = scmp.eq.s32.totalorder %s29, 0
    %p423 = por %p421, %p422
    %p424 = scmp.le.s32.totalorder 1, %s23
    %p425 = scmp.lt.s32.totalorder %s23, 3
    %p426 = pnand %p424, %p425
    %p427 = pneg %p426
    // Predicated region
    $region9: #{up_block_forward.3} parent=5 // pred_check
      _
    $region10: #{up_block_forward.3} parent=5 // pred_check_branch
      %429 = sbr.rel (%p426) target = $region12
    $region11: #{up_block_forward.3} parent=5 // pred_region
      %s430 = ssub.s32 %s23, 1
      // Predicated region
      $region13: #{up_block_forward.3} parent=11 // pred_check
        %p431 = pneg %p96
      $region14: #{up_block_forward.3} parent=11 // pred_check_branch
        %433 = sbr.rel (%p431) target = $region16
      $region15: #{up_block_forward.3} parent=11 // pred_region
        _
      $region16: #{up_block_forward.3} parent=11 // pred_fallthru
        _
      // Predicated region
      $region17: #{up_block_forward.3} parent=11 // pred_check
        %p434 = pneg %p117
      $region18: #{up_block_forward.3} parent=11 // pred_check_branch
        %436 = sbr.rel (%p434) target = $region20
      $region19: #{up_block_forward.3} parent=11 // pred_region
        _
      $region20: #{up_block_forward.3} parent=11 // pred_fallthru
        _
      // Predicated region
      $region21: #{up_block_forward.3} parent=11 // pred_check
        %p437 = pneg %p138
      $region22: #{up_block_forward.3} parent=11 // pred_check_branch
        %439 = sbr.rel (%p437) target = $region24
      $region23: #{up_block_forward.3} parent=11 // pred_region
        _
      $region24: #{up_block_forward.3} parent=11 // pred_fallthru
        _
      // Predicated region
      $region25: #{up_block_forward.3} parent=11 // pred_check
        %p440 = pneg %p159
      $region26: #{up_block_forward.3} parent=11 // pred_check_branch
        %442 = sbr.rel (%p440) target = $region28
      $region27: #{up_block_forward.3} parent=11 // pred_region
        _
      $region28: #{up_block_forward.3} parent=11 // pred_fallthru
        _
      // Predicated region
      $region29: #{up_block_forward.3} parent=11 // pred_check
        %p443 = pneg %p180
      $region30: #{up_block_forward.3} parent=11 // pred_check_branch
        %445 = sbr.rel (%p443) target = $region32
      $region31: #{up_block_forward.3} parent=11 // pred_region
        _
      $region32: #{up_block_forward.3} parent=11 // pred_fallthru
        _
      // Predicated region
      $region33: #{up_block_forward.3} parent=11 // pred_check
        %p446 = pneg %p201
      $region34: #{up_block_forward.3} parent=11 // pred_check_branch
        %448 = sbr.rel (%p446) target = $region36
      $region35: #{up_block_forward.3} parent=11 // pred_region
        _
      $region36: #{up_block_forward.3} parent=11 // pred_fallthru
        _
      // Predicated region
      $region37: #{up_block_forward.3} parent=11 // pred_check
        %p449 = pneg %p222
      $region38: #{up_block_forward.3} parent=11 // pred_check_branch
        %451 = sbr.rel (%p449) target = $region40
      $region39: #{up_block_forward.3} parent=11 // pred_region
        _
      $region40: #{up_block_forward.3} parent=11 // pred_fallthru
        _
      // Predicated region
      $region41: #{up_block_forward.3} parent=11 // pred_check
        %p452 = pneg %p243
      $region42: #{up_block_forward.3} parent=11 // pred_check_branch
        %454 = sbr.rel (%p452) target = $region44
      $region43: #{up_block_forward.3} parent=11 // pred_region
        _
      $region44: #{up_block_forward.3} parent=11 // pred_fallthru
        _
      // Predicated region
      $region45: #{up_block_forward.3} parent=11 // pred_check
        %p455 = pneg %p264
      $region46: #{up_block_forward.3} parent=11 // pred_check_branch
        %457 = sbr.rel (%p455) target = $region48
      $region47: #{up_block_forward.3} parent=11 // pred_region
        _
      $region48: #{up_block_forward.3} parent=11 // pred_fallthru
        _
      // Predicated region
      $region49: #{up_block_forward.3} parent=11 // pred_check
        %p458 = pneg %p285
      $region50: #{up_block_forward.3} parent=11 // pred_check_branch
        %460 = sbr.rel (%p458) target = $region52
      $region51: #{up_block_forward.3} parent=11 // pred_region
        _
      $region52: #{up_block_forward.3} parent=11 // pred_fallthru
        _
      // Predicated region
      $region53: #{up_block_forward.3} parent=11 // pred_check
        %p461 = pneg %p306
      $region54: #{up_block_forward.3} parent=11 // pred_check_branch
        %463 = sbr.rel (%p461) target = $region56
      $region55: #{up_block_forward.3} parent=11 // pred_region
        _
      $region56: #{up_block_forward.3} parent=11 // pred_fallthru
        _
      // Predicated region
      $region57: #{up_block_forward.3} parent=11 // pred_check
        %p464 = pneg %p327
      $region58: #{up_block_forward.3} parent=11 // pred_check_branch
        %466 = sbr.rel (%p464) target = $region60
      $region59: #{up_block_forward.3} parent=11 // pred_region
        _
      $region60: #{up_block_forward.3} parent=11 // pred_fallthru
        _
      // Predicated region
      $region61: #{up_block_forward.3} parent=11 // pred_check
        %p467 = pneg %p348
      $region62: #{up_block_forward.3} parent=11 // pred_check_branch
        %469 = sbr.rel (%p467) target = $region64
      $region63: #{up_block_forward.3} parent=11 // pred_region
        _
      $region64: #{up_block_forward.3} parent=11 // pred_fallthru
        _
      // Predicated region
      $region65: #{up_block_forward.3} parent=11 // pred_check
        %p470 = pneg %p369
      $region66: #{up_block_forward.3} parent=11 // pred_check_branch
        %472 = sbr.rel (%p470) target = $region68
      $region67: #{up_block_forward.3} parent=11 // pred_region
        _
      $region68: #{up_block_forward.3} parent=11 // pred_fallthru
        _
      // Predicated region
      $region69: #{up_block_forward.3} parent=11 // pred_check
        %p473 = pneg %p390
      $region70: #{up_block_forward.3} parent=11 // pred_check_branch
        %475 = sbr.rel (%p473) target = $region72
      $region71: #{up_block_forward.3} parent=11 // pred_region
        _
      $region72: #{up_block_forward.3} parent=11 // pred_fallthru
        _
    $region12: #{up_block_forward.3} parent=5 // pred_fallthru
      _
    %p476 = scmp.lt.s32.totalorder %s23, 2
    // Predicated region
    $region73: #{up_block_forward.3} parent=5 // pred_check
      %p477 = pneg %p476
    $region74: #{up_block_forward.3} parent=5 // pred_check_branch
      %479 = sbr.rel (%p477) target = $region76
    $region75: #{up_block_forward.3} parent=5 // pred_region
      // Predicated region
      $region77: #{up_block_forward.3} parent=75 // pred_check
        %p480 = pneg %p43
      $region78: #{up_block_forward.3} parent=75 // pred_check_branch
        %482 = sbr.rel (%p480) target = $region80
      $region79: #{up_block_forward.3} parent=75 // pred_region
        %p483 = scmp.lt.s32.totalorder %s23, 1
        %s484 = scalar_select %p483, %s23, 1
        %s485 = smul.addr %s484, 16
        %s486 = smul.addr %s485, 8
        %s487 = scalar_lea.vmem %s0, %s486
      $region80: #{up_block_forward.3} parent=75 // pred_fallthru
        _
      // Predicated region
      $region81: #{up_block_forward.3} parent=75 // pred_check
        %p488 = pneg %p69
      $region82: #{up_block_forward.3} parent=75 // pred_check_branch
        %490 = sbr.rel (%p488) target = $region84
      $region83: #{up_block_forward.3} parent=75 // pred_region
        %p491 = scmp.lt.s32.totalorder %s23, 1
        %s492 = scalar_select %p491, %s23, 1
        %s493 = smul.addr %s492, 4
        %s494 = smul.addr %s493, 8
        %s495 = scalar_lea.vmem %s1, %s494
      $region84: #{up_block_forward.3} parent=75 // pred_fallthru
        _
    $region76: #{up_block_forward.3} parent=5 // pred_fallthru
      _
    %p496 = scmp.le.s32.totalorder 1, %s23
    %p497 = scmp.lt.s32.totalorder %s23, 3
    %p498 = pnand %p496, %p497
    %p499 = pneg %p498
    // Predicated region
    $region85: #{up_block_forward.3} parent=5 // pred_check
      _
    $region86: #{up_block_forward.3} parent=5 // pred_check_branch
      %501 = sbr.rel (%p498) target = $region88
    $region87: #{up_block_forward.3} parent=5 // pred_region
      %s502 = ssub.s32 %s23, 1
      %p503 = scmp.lt.s32.totalorder %s28, 1
      %s504 = scalar_select %p503, %s28, 1
      %s505 = smul.addr %s504, 16
      %s506 = smul.addr %s505, 8
      %s507 = scalar_lea.vmem %s0, %s506
      %p508 = pneg %p49
      %p509 = pneg %p46
      %p510 = scmp.lt.s32.totalorder %s28, 1
      %s511 = scalar_select %p510, %s28, 1
      %s512 = smul.addr %s511, 4
      %s513 = smul.addr %s512, 8
      %s514 = scalar_lea.vmem %s1, %s513
      %p515 = pneg %p75
      %p516 = pneg %p72
      %p517 = pneg %p96
      %p518 = pneg %p93
      %p519 = pneg %p117
      %p520 = pneg %p114
      %p521 = pneg %p138
      %p522 = pneg %p135
      %p523 = pneg %p159
      %p524 = pneg %p156
      %p525 = pneg %p180
      %p526 = pneg %p177
      %p527 = pneg %p201
      %p528 = pneg %p198
      %p529 = pneg %p222
      %p530 = pneg %p219
      %p531 = pneg %p243
      %p532 = pneg %p240
      %p533 = pneg %p264
      %p534 = pneg %p261
      %p535 = pneg %p285
      %p536 = pneg %p282
      %p537 = pneg %p306
      %p538 = pneg %p303
      %p539 = pneg %p327
      %p540 = pneg %p324
      %p541 = pneg %p348
      %p542 = pneg %p345
      %p543 = pneg %p369
      %p544 = pneg %p366
      %p545 = pneg %p390
      %p546 = pneg %p387
      %p547 = pneg %p416
      %p548 = pneg %p413
      %p549 = scmp.lt.s32.totalorder %s28, 1
      %s550 = scalar_select %p549, %s28, 1
      %s551 = smul.addr %s550, 8
      %s552 = smul.addr %s551, 8
      %s553 = scalar_lea.vmem %s17, %s552
      %p554 = scmp.lt.s32.totalorder %s28, 1
      %s555 = scalar_select %p554, %s28, 1
      %s556 = smul.addr %s555, 16
      %s557 = smul.addr %s556, 8
      %s558 = scalar_lea.vmem %s0, %s557
      %p559 = scmp.lt.s32.totalorder %s28, 1
      %s560 = scalar_select %p559, %s28, 1
      %s561 = smul.addr %s560, 4
      %s562 = smul.addr %s561, 8
      %s563 = scalar_lea.vmem %s1, %s562
      %p564 = scmp.lt.s32.totalorder %s28, 1
      %s565 = scalar_select %p564, %s28, 1
      %s566 = smul.addr %s565, 8
      %s567 = smul.addr %s566, 8
      %s568 = scalar_lea.vmem %s17, %s567
      %v573 = vlaneseq
      %v574 = vand.u32 %v573, 127
      %v575 = vadd.s32 %v574, 128
      %v576 = vand.u32 %v574, 15
      %v577 = vand.u32 %v575, 15
      %v578 = vadd.s32 %v576, 4294967295
      %v579 = vadd.s32 %v577, 4294967295
      %vm580 = vcmp.ge.s32.totalorder %v578, 0
      %vm581 = vcmp.ge.s32.totalorder %v579, 0
      %vm582 = vcmp.lt.s32.totalorder %v578, 16
      %vm583 = vcmp.lt.s32.totalorder %v579, 16
      %vm584 = vmand %vm580, %vm582
      %vm585 = vmand %vm581, %vm583
      %v586 = vadd.s32 %v576, 1
      %v587 = vadd.s32 %v577, 1
      %vm588 = vcmp.ge.s32.totalorder %v586, 0
      %vm589 = vcmp.ge.s32.totalorder %v587, 0
      %vm590 = vcmp.lt.s32.totalorder %v586, 16
      %vm591 = vcmp.lt.s32.totalorder %v587, 16
      %vm592 = vmand %vm588, %vm590
      %vm593 = vmand %vm589, %vm591
      %594 = vst [vmem:[#allocation2] sm:$0xff] 0
      %595 = vst [vmem:[#allocation2 + $0x20] sm:$0xff] 0
      %596 = vst [vmem:[#allocation2 + $0x40] sm:$0xff] 0
      %597 = vst [vmem:[#allocation2 + $0x60] sm:$0xff] 0
      %598 = vst [vmem:[#allocation2 + $0x18] sm:$0xff] 0
      %599 = vst [vmem:[#allocation2 + $0x38] sm:$0xff] 0
      %600 = vst [vmem:[#allocation2 + $0x58] sm:$0xff] 0
      %601 = vst [vmem:[#allocation2 + $0x78] sm:$0xff] 0
      %v602 = vld [vmem:[%s558] sm:$0xff]
      %v603 = vld [vmem:[%s558 + $0x8] sm:$0xff]
      %v604 = vld [vmem:[%s558 + $0x10] sm:$0xff]
      %v605 = vld [vmem:[%s558 + $0x18] sm:$0xff]
      %v606 = vld [vmem:[%s558 + $0x20] sm:$0xff]
      %v607 = vld [vmem:[%s558 + $0x28] sm:$0xff]
      %v608 = vld [vmem:[%s558 + $0x30] sm:$0xff]
      %v609 = vld [vmem:[%s558 + $0x38] sm:$0xff]
      %v610 = vld [vmem:[%s558 + $0x40] sm:$0xff]
      %v611 = vld [vmem:[%s558 + $0x48] sm:$0xff]
      %v612 = vld [vmem:[%s558 + $0x50] sm:$0xff]
      %v613 = vld [vmem:[%s558 + $0x58] sm:$0xff]
      %v614 = vld [vmem:[%s558 + $0x60] sm:$0xff]
      %v615 = vld [vmem:[%s558 + $0x68] sm:$0xff]
      %v616 = vld [vmem:[%s558 + $0x70] sm:$0xff]
      %v617 = vld [vmem:[%s558 + $0x78] sm:$0xff]
      %v618 = vld [vmem:[%s2] sm:$0xff]
      %v619 = vld [vmem:[%s2 + $0x8] sm:$0xff]
      %v620 = vld [vmem:[%s2 + $0x10] sm:$0xff]
      %v621 = vld [vmem:[%s2 + $0x18] sm:$0xff]
      %v622 = vld [vmem:[%s2 + $0x20] sm:$0xff]
      %v623 = vld [vmem:[%s2 + $0x28] sm:$0xff]
      %v624 = vld [vmem:[%s2 + $0x30] sm:$0xff]
      %v625 = vld [vmem:[%s2 + $0x38] sm:$0xff]
      %v626 = vld [vmem:[%s3] sm:$0xff]
      %v627 = vld [vmem:[%s3 + $0x8] sm:$0xff]
      %v628 = vld [vmem:[%s3 + $0x10] sm:$0xff]
      %v629 = vld [vmem:[%s3 + $0x18] sm:$0xff]
      %v630 = vld [vmem:[%s3 + $0x20] sm:$0xff]
      %v631 = vld [vmem:[%s3 + $0x28] sm:$0xff]
      %v632 = vld [vmem:[%s3 + $0x30] sm:$0xff]
      %v633 = vld [vmem:[%s3 + $0x38] sm:$0xff]
      %v634 = vadd.f32 %v602, %v603
      %635 = vadd.xlane.f32.xlu0 %v634
      %v636 = vpop.xlane.xlu0 %635
      %v637 = vadd.f32 %v604, %v605
      %638 = vadd.xlane.f32.xlu0 %v637
      %v639 = vpop.xlane.xlu0 %638
      %v640 = vadd.f32 %v606, %v607
      %641 = vadd.xlane.f32.xlu0 %v640
      %v642 = vpop.xlane.xlu0 %641
      %v643 = vadd.f32 %v608, %v609
      %644 = vadd.xlane.f32.xlu0 %v643
      %v645 = vpop.xlane.xlu0 %644
      %v646 = vadd.f32 %v610, %v611
      %647 = vadd.xlane.f32.xlu0 %v646
      %v648 = vpop.xlane.xlu0 %647
      %v649 = vadd.f32 %v612, %v613
      %650 = vadd.xlane.f32.xlu0 %v649
      %v651 = vpop.xlane.xlu0 %650
      %v652 = vadd.f32 %v614, %v615
      %653 = vadd.xlane.f32.xlu0 %v652
      %v654 = vpop.xlane.xlu0 %653
      %v655 = vadd.f32 %v616, %v617
      %656 = vadd.xlane.f32.xlu0 %v655
      %v657 = vpop.xlane.xlu0 %656
      %v658 = vmul.f32 %v602, %v602
      %v659 = vmul.f32 %v603, %v603
      %v660 = vmul.f32 %v604, %v604
      %v661 = vmul.f32 %v605, %v605
      %v662 = vmul.f32 %v606, %v606
      %v663 = vmul.f32 %v607, %v607
      %v664 = vmul.f32 %v608, %v608
      %v665 = vmul.f32 %v609, %v609
      %v666 = vmul.f32 %v610, %v610
      %v667 = vmul.f32 %v611, %v611
      %v668 = vmul.f32 %v612, %v612
      %v669 = vmul.f32 %v613, %v613
      %v670 = vmul.f32 %v614, %v614
      %v671 = vmul.f32 %v615, %v615
      %v672 = vmul.f32 %v616, %v616
      %v673 = vmul.f32 %v617, %v617
      %v674 = vadd.f32 %v658, %v659
      %675 = vadd.xlane.f32.xlu0 %v674
      %v676 = vpop.xlane.xlu0 %675
      %v677 = vadd.f32 %v660, %v661
      %678 = vadd.xlane.f32.xlu0 %v677
      %v679 = vpop.xlane.xlu0 %678
      %v680 = vadd.f32 %v662, %v663
      %681 = vadd.xlane.f32.xlu0 %v680
      %v682 = vpop.xlane.xlu0 %681
      %v683 = vadd.f32 %v664, %v665
      %684 = vadd.xlane.f32.xlu0 %v683
      %v685 = vpop.xlane.xlu0 %684
      %v686 = vadd.f32 %v666, %v667
      %687 = vadd.xlane.f32.xlu0 %v686
      %v688 = vpop.xlane.xlu0 %687
      %v689 = vadd.f32 %v668, %v669
      %690 = vadd.xlane.f32.xlu0 %v689
      %v691 = vpop.xlane.xlu0 %690
      %v692 = vadd.f32 %v670, %v671
      %693 = vadd.xlane.f32.xlu0 %v692
      %v694 = vpop.xlane.xlu0 %693
      %v695 = vadd.f32 %v672, %v673
      %696 = vadd.xlane.f32.xlu0 %v695
      %v697 = vpop.xlane.xlu0 %696
      %v698 = vlaneseq
      %v699 = vshrl.u32 %v698, 7
      %v700 = vadd.s32 %v699, 8
      %v701 = vadd.s32 %v699, 16
      %v702 = vadd.s32 %v699, 24
      %v703 = vadd.s32 %v699, 32
      %v704 = vadd.s32 %v699, 40
      %v705 = vadd.s32 %v699, 48
      %v706 = vadd.s32 %v699, 56
      %vm707 = vcmp.ge.s32.totalorder %v699, 0
      %vm708 = vcmp.ge.s32.totalorder %v700, 0
      %vm709 = vcmp.ge.s32.totalorder %v701, 0
      %vm710 = vcmp.ge.s32.totalorder %v702, 0
      %vm711 = vcmp.ge.s32.totalorder %v703, 0
      %vm712 = vcmp.ge.s32.totalorder %v704, 0
      %vm713 = vcmp.ge.s32.totalorder %v705, 0
      %vm714 = vcmp.ge.s32.totalorder %v706, 0
      %vm715 = vcmp.lt.s32.totalorder %v699, 8
      %vm716 = vcmp.lt.s32.totalorder %v700, 8
      %vm717 = vcmp.lt.s32.totalorder %v701, 8
      %vm718 = vcmp.lt.s32.totalorder %v702, 8
      %vm719 = vcmp.lt.s32.totalorder %v703, 8
      %vm720 = vcmp.lt.s32.totalorder %v704, 8
      %vm721 = vcmp.lt.s32.totalorder %v705, 8
      %vm722 = vcmp.lt.s32.totalorder %v706, 8
      %vm723 = vmand %vm707, %vm715
      %vm724 = vmand %vm708, %vm716
      %vm725 = vmand %vm709, %vm717
      %vm726 = vmand %vm710, %vm718
      %vm727 = vmand %vm711, %vm719
      %vm728 = vmand %vm712, %vm720
      %vm729 = vmand %vm713, %vm721
      %vm730 = vmand %vm714, %vm722
      %v731 = vsel %vm723, 1, 0
      %v732 = vsel %vm724, 1, 0
      %v733 = vsel %vm725, 1, 0
      %v734 = vsel %vm726, 1, 0
      %v735 = vsel %vm727, 1, 0
      %v736 = vsel %vm728, 1, 0
      %v737 = vsel %vm729, 1, 0
      %v738 = vsel %vm730, 1, 0
      %v739 = vcvt.s32.f32 %v731
      %v740 = vcvt.s32.f32 %v732
      %v741 = vcvt.s32.f32 %v733
      %v742 = vcvt.s32.f32 %v734
      %v743 = vcvt.s32.f32 %v735
      %v744 = vcvt.s32.f32 %v736
      %v745 = vcvt.s32.f32 %v737
      %v746 = vcvt.s32.f32 %v738
      %v747 = vmul.f32 %v636, %v739
      %v748 = vmul.f32 %v639, %v740
      %v749 = vmul.f32 %v642, %v741
      %v750 = vmul.f32 %v645, %v742
      %v751 = vmul.f32 %v648, %v743
      %v752 = vmul.f32 %v651, %v744
      %v753 = vmul.f32 %v654, %v745
      %v754 = vmul.f32 %v657, %v746
      %v755 = vadd.f32 %v747, %v748
      %v756 = vadd.f32 %v755, %v749
      %v757 = vadd.f32 %v756, %v750
      %v758 = vadd.f32 %v757, %v751
      %v759 = vadd.f32 %v758, %v752
      %v760 = vadd.f32 %v759, %v753
      %v761 = vadd.f32 %v760, %v754
      %v762 = vrot.slane %v761, 4
      %v763 = vadd.f32 %v761, %v762
      %v764 = vrot.slane %v763, 2
      %v765 = vadd.f32 %v763, %v764
      %v766 = vrot.slane %v765, 1
      %v767 = vadd.f32 %v765, %v766
      %v768 = vmul.f32 %v739, %v767
      %v769 = vmul.f32 %v740, %v767
      %v770 = vmul.f32 %v741, %v767
      %v771 = vmul.f32 %v742, %v767
      %v772 = vmul.f32 %v743, %v767
      %v773 = vmul.f32 %v744, %v767
      %v774 = vmul.f32 %v745, %v767
      %v775 = vmul.f32 %v746, %v767
      %v776 = vadd.f32 %v768, 0.0
      %v777 = vadd.f32 %v769, 0.0
      %v778 = vadd.f32 %v770, 0.0
      %v779 = vadd.f32 %v771, 0.0
      %v780 = vadd.f32 %v772, 0.0
      %v781 = vadd.f32 %v773, 0.0
      %v782 = vadd.f32 %v774, 0.0
      %v783 = vadd.f32 %v775, 0.0
      %v784 = vmul.f32 %v676, %v739
      %v785 = vmul.f32 %v679, %v740
      %v786 = vmul.f32 %v682, %v741
      %v787 = vmul.f32 %v685, %v742
      %v788 = vmul.f32 %v688, %v743
      %v789 = vmul.f32 %v691, %v744
      %v790 = vmul.f32 %v694, %v745
      %v791 = vmul.f32 %v697, %v746
      %v792 = vadd.f32 %v784, %v785
      %v793 = vadd.f32 %v792, %v786
      %v794 = vadd.f32 %v793, %v787
      %v795 = vadd.f32 %v794, %v788
      %v796 = vadd.f32 %v795, %v789
      %v797 = vadd.f32 %v796, %v790
      %v798 = vadd.f32 %v797, %v791
      %v799 = vrot.slane %v798, 4
      %v800 = vadd.f32 %v798, %v799
      %v801 = vrot.slane %v800, 2
      %v802 = vadd.f32 %v800, %v801
      %v803 = vrot.slane %v802, 1
      %v804 = vadd.f32 %v802, %v803
      %v805 = vmul.f32 %v739, %v804
      %v806 = vmul.f32 %v740, %v804
      %v807 = vmul.f32 %v741, %v804
      %v808 = vmul.f32 %v742, %v804
      %v809 = vmul.f32 %v743, %v804
      %v810 = vmul.f32 %v744, %v804
      %v811 = vmul.f32 %v745, %v804
      %v812 = vmul.f32 %v746, %v804
      %v813 = vadd.f32 %v805, 0.0
      %v814 = vadd.f32 %v806, 0.0
      %v815 = vadd.f32 %v807, 0.0
      %v816 = vadd.f32 %v808, 0.0
      %v817 = vadd.f32 %v809, 0.0
      %v818 = vadd.f32 %v810, 0.0
      %v819 = vadd.f32 %v811, 0.0
      %v820 = vadd.f32 %v812, 0.0
      %vm821 = vcmp.ge.s32.totalorder %v699, 8
      %vm822 = vcmp.ge.s32.totalorder %v700, 8
      %vm823 = vcmp.ge.s32.totalorder %v701, 8
      %vm824 = vcmp.ge.s32.totalorder %v702, 8
      %vm825 = vcmp.ge.s32.totalorder %v703, 8
      %vm826 = vcmp.ge.s32.totalorder %v704, 8
      %vm827 = vcmp.ge.s32.totalorder %v705, 8
      %vm828 = vcmp.ge.s32.totalorder %v706, 8
      %vm829 = vcmp.lt.s32.totalorder %v699, 16
      %vm830 = vcmp.lt.s32.totalorder %v700, 16
      %vm831 = vcmp.lt.s32.totalorder %v701, 16
      %vm832 = vcmp.lt.s32.totalorder %v702, 16
      %vm833 = vcmp.lt.s32.totalorder %v703, 16
      %vm834 = vcmp.lt.s32.totalorder %v704, 16
      %vm835 = vcmp.lt.s32.totalorder %v705, 16
      %vm836 = vcmp.lt.s32.totalorder %v706, 16
      %vm837 = vmand %vm821, %vm829
      %vm838 = vmand %vm822, %vm830
      %vm839 = vmand %vm823, %vm831
      %vm840 = vmand %vm824, %vm832
      %vm841 = vmand %vm825, %vm833
      %vm842 = vmand %vm826, %vm834
      %vm843 = vmand %vm827, %vm835
      %vm844 = vmand %vm828, %vm836
      %v845 = vsel %vm837, 1, 0
      %v846 = vsel %vm838, 1, 0
      %v847 = vsel %vm839, 1, 0
      %v848 = vsel %vm840, 1, 0
      %v849 = vsel %vm841, 1, 0
      %v850 = vsel %vm842, 1, 0
      %v851 = vsel %vm843, 1, 0
      %v852 = vsel %vm844, 1, 0
      %v853 = vcvt.s32.f32 %v845
      %v854 = vcvt.s32.f32 %v846
      %v855 = vcvt.s32.f32 %v847
      %v856 = vcvt.s32.f32 %v848
      %v857 = vcvt.s32.f32 %v849
      %v858 = vcvt.s32.f32 %v850
      %v859 = vcvt.s32.f32 %v851
      %v860 = vcvt.s32.f32 %v852
      %v861 = vmul.f32 %v636, %v853
      %v862 = vmul.f32 %v639, %v854
      %v863 = vmul.f32 %v642, %v855
      %v864 = vmul.f32 %v645, %v856
      %v865 = vmul.f32 %v648, %v857
      %v866 = vmul.f32 %v651, %v858
      %v867 = vmul.f32 %v654, %v859
      %v868 = vmul.f32 %v657, %v860
      %v869 = vadd.f32 %v861, %v862
      %v870 = vadd.f32 %v869, %v863
      %v871 = vadd.f32 %v870, %v864
      %v872 = vadd.f32 %v871, %v865
      %v873 = vadd.f32 %v872, %v866
      %v874 = vadd.f32 %v873, %v867
      %v875 = vadd.f32 %v874, %v868
      %v876 = vrot.slane %v875, 4
      %v877 = vadd.f32 %v875, %v876
      %v878 = vrot.slane %v877, 2
      %v879 = vadd.f32 %v877, %v878
      %v880 = vrot.slane %v879, 1
      %v881 = vadd.f32 %v879, %v880
      %v882 = vmul.f32 %v853, %v881
      %v883 = vmul.f32 %v854, %v881
      %v884 = vmul.f32 %v855, %v881
      %v885 = vmul.f32 %v856, %v881
      %v886 = vmul.f32 %v857, %v881
      %v887 = vmul.f32 %v858, %v881
      %v888 = vmul.f32 %v859, %v881
      %v889 = vmul.f32 %v860, %v881
      %v890 = vadd.f32 %v776, %v882
      %v891 = vadd.f32 %v777, %v883
      %v892 = vadd.f32 %v778, %v884
      %v893 = vadd.f32 %v779, %v885
      %v894 = vadd.f32 %v780, %v886
      %v895 = vadd.f32 %v781, %v887
      %v896 = vadd.f32 %v782, %v888
      %v897 = vadd.f32 %v783, %v889
      %v898 = vmul.f32 %v676, %v853
      %v899 = vmul.f32 %v679, %v854
      %v900 = vmul.f32 %v682, %v855
      %v901 = vmul.f32 %v685, %v856
      %v902 = vmul.f32 %v688, %v857
      %v903 = vmul.f32 %v691, %v858
      %v904 = vmul.f32 %v694, %v859
      %v905 = vmul.f32 %v697, %v860
      %v906 = vadd.f32 %v898, %v899
      %v907 = vadd.f32 %v906, %v900
      %v908 = vadd.f32 %v907, %v901
      %v909 = vadd.f32 %v908, %v902
      %v910 = vadd.f32 %v909, %v903
      %v911 = vadd.f32 %v910, %v904
      %v912 = vadd.f32 %v911, %v905
      %v913 = vrot.slane %v912, 4
      %v914 = vadd.f32 %v912, %v913
      %v915 = vrot.slane %v914, 2
      %v916 = vadd.f32 %v914, %v915
      %v917 = vrot.slane %v916, 1
      %v918 = vadd.f32 %v916, %v917
      %v919 = vmul.f32 %v853, %v918
      %v920 = vmul.f32 %v854, %v918
      %v921 = vmul.f32 %v855, %v918
      %v922 = vmul.f32 %v856, %v918
      %v923 = vmul.f32 %v857, %v918
      %v924 = vmul.f32 %v858, %v918
      %v925 = vmul.f32 %v859, %v918
      %v926 = vmul.f32 %v860, %v918
      %v927 = vadd.f32 %v813, %v919
      %v928 = vadd.f32 %v814, %v920
      %v929 = vadd.f32 %v815, %v921
      %v930 = vadd.f32 %v816, %v922
      %v931 = vadd.f32 %v817, %v923
      %v932 = vadd.f32 %v818, %v924
      %v933 = vadd.f32 %v819, %v925
      %v934 = vadd.f32 %v820, %v926
      %vm935 = vcmp.ge.s32.totalorder %v699, 16
      %vm936 = vcmp.ge.s32.totalorder %v700, 16
      %vm937 = vcmp.ge.s32.totalorder %v701, 16
      %vm938 = vcmp.ge.s32.totalorder %v702, 16
      %vm939 = vcmp.ge.s32.totalorder %v703, 16
      %vm940 = vcmp.ge.s32.totalorder %v704, 16
      %vm941 = vcmp.ge.s32.totalorder %v705, 16
      %vm942 = vcmp.ge.s32.totalorder %v706, 16
      %vm943 = vcmp.lt.s32.totalorder %v699, 24
      %vm944 = vcmp.lt.s32.totalorder %v700, 24
      %vm945 = vcmp.lt.s32.totalorder %v701, 24
      %vm946 = vcmp.lt.s32.totalorder %v702, 24
      %vm947 = vcmp.lt.s32.totalorder %v703, 24
      %vm948 = vcmp.lt.s32.totalorder %v704, 24
      %vm949 = vcmp.lt.s32.totalorder %v705, 24
      %vm950 = vcmp.lt.s32.totalorder %v706, 24
      %vm951 = vmand %vm935, %vm943
      %vm952 = vmand %vm936, %vm944
      %vm953 = vmand %vm937, %vm945
      %vm954 = vmand %vm938, %vm946
      %vm955 = vmand %vm939, %vm947
      %vm956 = vmand %vm940, %vm948
      %vm957 = vmand %vm941, %vm949
      %vm958 = vmand %vm942, %vm950
      %v959 = vsel %vm951, 1, 0
      %v960 = vsel %vm952, 1, 0
      %v961 = vsel %vm953, 1, 0
      %v962 = vsel %vm954, 1, 0
      %v963 = vsel %vm955, 1, 0
      %v964 = vsel %vm956, 1, 0
      %v965 = vsel %vm957, 1, 0
      %v966 = vsel %vm958, 1, 0
      %v967 = vcvt.s32.f32 %v959
      %v968 = vcvt.s32.f32 %v960
      %v969 = vcvt.s32.f32 %v961
      %v970 = vcvt.s32.f32 %v962
      %v971 = vcvt.s32.f32 %v963
      %v972 = vcvt.s32.f32 %v964
      %v973 = vcvt.s32.f32 %v965
      %v974 = vcvt.s32.f32 %v966
      %v975 = vmul.f32 %v636, %v967
      %v976 = vmul.f32 %v639, %v968
      %v977 = vmul.f32 %v642, %v969
      %v978 = vmul.f32 %v645, %v970
      %v979 = vmul.f32 %v648, %v971
      %v980 = vmul.f32 %v651, %v972
      %v981 = vmul.f32 %v654, %v973
      %v982 = vmul.f32 %v657, %v974
      %v983 = vadd.f32 %v975, %v976
      %v984 = vadd.f32 %v983, %v977
      %v985 = vadd.f32 %v984, %v978
      %v986 = vadd.f32 %v985, %v979
      %v987 = vadd.f32 %v986, %v980
      %v988 = vadd.f32 %v987, %v981
      %v989 = vadd.f32 %v988, %v982
      %v990 = vrot.slane %v989, 4
      %v991 = vadd.f32 %v989, %v990
      %v992 = vrot.slane %v991, 2
      %v993 = vadd.f32 %v991, %v992
      %v994 = vrot.slane %v993, 1
      %v995 = vadd.f32 %v993, %v994
      %v996 = vmul.f32 %v967, %v995
      %v997 = vmul.f32 %v968, %v995
      %v998 = vmul.f32 %v969, %v995
      %v999 = vmul.f32 %v970, %v995
      %v1000 = vmul.f32 %v971, %v995
      %v1001 = vmul.f32 %v972, %v995
      %v1002 = vmul.f32 %v973, %v995
      %v1003 = vmul.f32 %v974, %v995
      %v1004 = vadd.f32 %v890, %v996
      %v1005 = vadd.f32 %v891, %v997
      %v1006 = vadd.f32 %v892, %v998
      %v1007 = vadd.f32 %v893, %v999
      %v1008 = vadd.f32 %v894, %v1000
      %v1009 = vadd.f32 %v895, %v1001
      %v1010 = vadd.f32 %v896, %v1002
      %v1011 = vadd.f32 %v897, %v1003
      %v1012 = vmul.f32 %v676, %v967
      %v1013 = vmul.f32 %v679, %v968
      %v1014 = vmul.f32 %v682, %v969
      %v1015 = vmul.f32 %v685, %v970
      %v1016 = vmul.f32 %v688, %v971
      %v1017 = vmul.f32 %v691, %v972
      %v1018 = vmul.f32 %v694, %v973
      %v1019 = vmul.f32 %v697, %v974
      %v1020 = vadd.f32 %v1012, %v1013
      %v1021 = vadd.f32 %v1020, %v1014
      %v1022 = vadd.f32 %v1021, %v1015
      %v1023 = vadd.f32 %v1022, %v1016
      %v1024 = vadd.f32 %v1023, %v1017
      %v1025 = vadd.f32 %v1024, %v1018
      %v1026 = vadd.f32 %v1025, %v1019
      %v1027 = vrot.slane %v1026, 4
      %v1028 = vadd.f32 %v1026, %v1027
      %v1029 = vrot.slane %v1028, 2
      %v1030 = vadd.f32 %v1028, %v1029
      %v1031 = vrot.slane %v1030, 1
      %v1032 = vadd.f32 %v1030, %v1031
      %v1033 = vmul.f32 %v967, %v1032
      %v1034 = vmul.f32 %v968, %v1032
      %v1035 = vmul.f32 %v969, %v1032
      %v1036 = vmul.f32 %v970, %v1032
      %v1037 = vmul.f32 %v971, %v1032
      %v1038 = vmul.f32 %v972, %v1032
      %v1039 = vmul.f32 %v973, %v1032
      %v1040 = vmul.f32 %v974, %v1032
      %v1041 = vadd.f32 %v927, %v1033
      %v1042 = vadd.f32 %v928, %v1034
      %v1043 = vadd.f32 %v929, %v1035
      %v1044 = vadd.f32 %v930, %v1036
      %v1045 = vadd.f32 %v931, %v1037
      %v1046 = vadd.f32 %v932, %v1038
      %v1047 = vadd.f32 %v933, %v1039
      %v1048 = vadd.f32 %v934, %v1040
      %vm1049 = vcmp.ge.s32.totalorder %v699, 24
      %vm1050 = vcmp.ge.s32.totalorder %v700, 24
      %vm1051 = vcmp.ge.s32.totalorder %v701, 24
      %vm1052 = vcmp.ge.s32.totalorder %v702, 24
      %vm1053 = vcmp.ge.s32.totalorder %v703, 24
      %vm1054 = vcmp.ge.s32.totalorder %v704, 24
      %vm1055 = vcmp.ge.s32.totalorder %v705, 24
      %vm1056 = vcmp.ge.s32.totalorder %v706, 24
      %vm1057 = vcmp.lt.s32.totalorder %v699, 32
      %vm1058 = vcmp.lt.s32.totalorder %v700, 32
      %vm1059 = vcmp.lt.s32.totalorder %v701, 32
      %vm1060 = vcmp.lt.s32.totalorder %v702, 32
      %vm1061 = vcmp.lt.s32.totalorder %v703, 32
      %vm1062 = vcmp.lt.s32.totalorder %v704, 32
      %vm1063 = vcmp.lt.s32.totalorder %v705, 32
      %vm1064 = vcmp.lt.s32.totalorder %v706, 32
      %vm1065 = vmand %vm1049, %vm1057
      %vm1066 = vmand %vm1050, %vm1058
      %vm1067 = vmand %vm1051, %vm1059
      %vm1068 = vmand %vm1052, %vm1060
      %vm1069 = vmand %vm1053, %vm1061
      %vm1070 = vmand %vm1054, %vm1062
      %vm1071 = vmand %vm1055, %vm1063
      %vm1072 = vmand %vm1056, %vm1064
      %v1073 = vsel %vm1065, 1, 0
      %v1074 = vsel %vm1066, 1, 0
      %v1075 = vsel %vm1067, 1, 0
      %v1076 = vsel %vm1068, 1, 0
      %v1077 = vsel %vm1069, 1, 0
      %v1078 = vsel %vm1070, 1, 0
      %v1079 = vsel %vm1071, 1, 0
      %v1080 = vsel %vm1072, 1, 0
      %v1081 = vcvt.s32.f32 %v1073
      %v1082 = vcvt.s32.f32 %v1074
      %v1083 = vcvt.s32.f32 %v1075
      %v1084 = vcvt.s32.f32 %v1076
      %v1085 = vcvt.s32.f32 %v1077
      %v1086 = vcvt.s32.f32 %v1078
      %v1087 = vcvt.s32.f32 %v1079
      %v1088 = vcvt.s32.f32 %v1080
      %v1089 = vmul.f32 %v636, %v1081
      %v1090 = vmul.f32 %v639, %v1082
      %v1091 = vmul.f32 %v642, %v1083
      %v1092 = vmul.f32 %v645, %v1084
      %v1093 = vmul.f32 %v648, %v1085
      %v1094 = vmul.f32 %v651, %v1086
      %v1095 = vmul.f32 %v654, %v1087
      %v1096 = vmul.f32 %v657, %v1088
      %v1097 = vadd.f32 %v1089, %v1090
      %v1098 = vadd.f32 %v1097, %v1091
      %v1099 = vadd.f32 %v1098, %v1092
      %v1100 = vadd.f32 %v1099, %v1093
      %v1101 = vadd.f32 %v1100, %v1094
      %v1102 = vadd.f32 %v1101, %v1095
      %v1103 = vadd.f32 %v1102, %v1096
      %v1104 = vrot.slane %v1103, 4
      %v1105 = vadd.f32 %v1103, %v1104
      %v1106 = vrot.slane %v1105, 2
      %v1107 = vadd.f32 %v1105, %v1106
      %v1108 = vrot.slane %v1107, 1
      %v1109 = vadd.f32 %v1107, %v1108
      %v1110 = vmul.f32 %v1081, %v1109
      %v1111 = vmul.f32 %v1082, %v1109
      %v1112 = vmul.f32 %v1083, %v1109
      %v1113 = vmul.f32 %v1084, %v1109
      %v1114 = vmul.f32 %v1085, %v1109
      %v1115 = vmul.f32 %v1086, %v1109
      %v1116 = vmul.f32 %v1087, %v1109
      %v1117 = vmul.f32 %v1088, %v1109
      %v1118 = vadd.f32 %v1004, %v1110
      %v1119 = vadd.f32 %v1005, %v1111
      %v1120 = vadd.f32 %v1006, %v1112
      %v1121 = vadd.f32 %v1007, %v1113
      %v1122 = vadd.f32 %v1008, %v1114
      %v1123 = vadd.f32 %v1009, %v1115
      %v1124 = vadd.f32 %v1010, %v1116
      %v1125 = vadd.f32 %v1011, %v1117
      %v1126 = vmul.f32 %v676, %v1081
      %v1127 = vmul.f32 %v679, %v1082
      %v1128 = vmul.f32 %v682, %v1083
      %v1129 = vmul.f32 %v685, %v1084
      %v1130 = vmul.f32 %v688, %v1085
      %v1131 = vmul.f32 %v691, %v1086
      %v1132 = vmul.f32 %v694, %v1087
      %v1133 = vmul.f32 %v697, %v1088
      %v1134 = vadd.f32 %v1126, %v1127
      %v1135 = vadd.f32 %v1134, %v1128
      %v1136 = vadd.f32 %v1135, %v1129
      %v1137 = vadd.f32 %v1136, %v1130
      %v1138 = vadd.f32 %v1137, %v1131
      %v1139 = vadd.f32 %v1138, %v1132
      %v1140 = vadd.f32 %v1139, %v1133
      %v1141 = vrot.slane %v1140, 4
      %v1142 = vadd.f32 %v1140, %v1141
      %v1143 = vrot.slane %v1142, 2
      %v1144 = vadd.f32 %v1142, %v1143
      %v1145 = vrot.slane %v1144, 1
      %v1146 = vadd.f32 %v1144, %v1145
      %v1147 = vmul.f32 %v1081, %v1146
      %v1148 = vmul.f32 %v1082, %v1146
      %v1149 = vmul.f32 %v1083, %v1146
      %v1150 = vmul.f32 %v1084, %v1146
      %v1151 = vmul.f32 %v1085, %v1146
      %v1152 = vmul.f32 %v1086, %v1146
      %v1153 = vmul.f32 %v1087, %v1146
      %v1154 = vmul.f32 %v1088, %v1146
      %v1155 = vadd.f32 %v1041, %v1147
      %v1156 = vadd.f32 %v1042, %v1148
      %v1157 = vadd.f32 %v1043, %v1149
      %v1158 = vadd.f32 %v1044, %v1150
      %v1159 = vadd.f32 %v1045, %v1151
      %v1160 = vadd.f32 %v1046, %v1152
      %v1161 = vadd.f32 %v1047, %v1153
      %v1162 = vadd.f32 %v1048, %v1154
      %vm1163 = vcmp.ge.s32.totalorder %v699, 32
      %vm1164 = vcmp.ge.s32.totalorder %v700, 32
      %vm1165 = vcmp.ge.s32.totalorder %v701, 32
      %vm1166 = vcmp.ge.s32.totalorder %v702, 32
      %vm1167 = vcmp.ge.s32.totalorder %v703, 32
      %vm1168 = vcmp.ge.s32.totalorder %v704, 32
      %vm1169 = vcmp.ge.s32.totalorder %v705, 32
      %vm1170 = vcmp.ge.s32.totalorder %v706, 32
      %vm1171 = vcmp.lt.s32.totalorder %v699, 40
      %vm1172 = vcmp.lt.s32.totalorder %v700, 40
      %vm1173 = vcmp.lt.s32.totalorder %v701, 40
      %vm1174 = vcmp.lt.s32.totalorder %v702, 40
      %vm1175 = vcmp.lt.s32.totalorder %v703, 40
      %vm1176 = vcmp.lt.s32.totalorder %v704, 40
      %vm1177 = vcmp.lt.s32.totalorder %v705, 40
      %vm1178 = vcmp.lt.s32.totalorder %v706, 40
      %vm1179 = vmand %vm1163, %vm1171
      %vm1180 = vmand %vm1164, %vm1172
      %vm1181 = vmand %vm1165, %vm1173
      %vm1182 = vmand %vm1166, %vm1174
      %vm1183 = vmand %vm1167, %vm1175
      %vm1184 = vmand %vm1168, %vm1176
      %vm1185 = vmand %vm1169, %vm1177
      %vm1186 = vmand %vm1170, %vm1178
      %v1187 = vsel %vm1179, 1, 0
      %v1188 = vsel %vm1180, 1, 0
      %v1189 = vsel %vm1181, 1, 0
      %v1190 = vsel %vm1182, 1, 0
      %v1191 = vsel %vm1183, 1, 0
      %v1192 = vsel %vm1184, 1, 0
      %v1193 = vsel %vm1185, 1, 0
      %v1194 = vsel %vm1186, 1, 0
      %v1195 = vcvt.s32.f32 %v1187
      %v1196 = vcvt.s32.f32 %v1188
      %v1197 = vcvt.s32.f32 %v1189
      %v1198 = vcvt.s32.f32 %v1190
      %v1199 = vcvt.s32.f32 %v1191
      %v1200 = vcvt.s32.f32 %v1192
      %v1201 = vcvt.s32.f32 %v1193
      %v1202 = vcvt.s32.f32 %v1194
      %v1203 = vmul.f32 %v636, %v1195
      %v1204 = vmul.f32 %v639, %v1196
      %v1205 = vmul.f32 %v642, %v1197
      %v1206 = vmul.f32 %v645, %v1198
      %v1207 = vmul.f32 %v648, %v1199
      %v1208 = vmul.f32 %v651, %v1200
      %v1209 = vmul.f32 %v654, %v1201
      %v1210 = vmul.f32 %v657, %v1202
      %v1211 = vadd.f32 %v1203, %v1204
      %v1212 = vadd.f32 %v1211, %v1205
      %v1213 = vadd.f32 %v1212, %v1206
      %v1214 = vadd.f32 %v1213, %v1207
      %v1215 = vadd.f32 %v1214, %v1208
      %v1216 = vadd.f32 %v1215, %v1209
      %v1217 = vadd.f32 %v1216, %v1210
      %v1218 = vrot.slane %v1217, 4
      %v1219 = vadd.f32 %v1217, %v1218
      %v1220 = vrot.slane %v1219, 2
      %v1221 = vadd.f32 %v1219, %v1220
      %v1222 = vrot.slane %v1221, 1
      %v1223 = vadd.f32 %v1221, %v1222
      %v1224 = vmul.f32 %v1195, %v1223
      %v1225 = vmul.f32 %v1196, %v1223
      %v1226 = vmul.f32 %v1197, %v1223
      %v1227 = vmul.f32 %v1198, %v1223
      %v1228 = vmul.f32 %v1199, %v1223
      %v1229 = vmul.f32 %v1200, %v1223
      %v1230 = vmul.f32 %v1201, %v1223
      %v1231 = vmul.f32 %v1202, %v1223
      %v1232 = vadd.f32 %v1118, %v1224
      %v1233 = vadd.f32 %v1119, %v1225
      %v1234 = vadd.f32 %v1120, %v1226
      %v1235 = vadd.f32 %v1121, %v1227
      %v1236 = vadd.f32 %v1122, %v1228
      %v1237 = vadd.f32 %v1123, %v1229
      %v1238 = vadd.f32 %v1124, %v1230
      %v1239 = vadd.f32 %v1125, %v1231
      %v1240 = vmul.f32 %v676, %v1195
      %v1241 = vmul.f32 %v679, %v1196
      %v1242 = vmul.f32 %v682, %v1197
      %v1243 = vmul.f32 %v685, %v1198
      %v1244 = vmul.f32 %v688, %v1199
      %v1245 = vmul.f32 %v691, %v1200
      %v1246 = vmul.f32 %v694, %v1201
      %v1247 = vmul.f32 %v697, %v1202
      %v1248 = vadd.f32 %v1240, %v1241
      %v1249 = vadd.f32 %v1248, %v1242
      %v1250 = vadd.f32 %v1249, %v1243
      %v1251 = vadd.f32 %v1250, %v1244
      %v1252 = vadd.f32 %v1251, %v1245
      %v1253 = vadd.f32 %v1252, %v1246
      %v1254 = vadd.f32 %v1253, %v1247
      %v1255 = vrot.slane %v1254, 4
      %v1256 = vadd.f32 %v1254, %v1255
      %v1257 = vrot.slane %v1256, 2
      %v1258 = vadd.f32 %v1256, %v1257
      %v1259 = vrot.slane %v1258, 1
      %v1260 = vadd.f32 %v1258, %v1259
      %v1261 = vmul.f32 %v1195, %v1260
      %v1262 = vmul.f32 %v1196, %v1260
      %v1263 = vmul.f32 %v1197, %v1260
      %v1264 = vmul.f32 %v1198, %v1260
      %v1265 = vmul.f32 %v1199, %v1260
      %v1266 = vmul.f32 %v1200, %v1260
      %v1267 = vmul.f32 %v1201, %v1260
      %v1268 = vmul.f32 %v1202, %v1260
      %v1269 = vadd.f32 %v1155, %v1261
      %v1270 = vadd.f32 %v1156, %v1262
      %v1271 = vadd.f32 %v1157, %v1263
      %v1272 = vadd.f32 %v1158, %v1264
      %v1273 = vadd.f32 %v1159, %v1265
      %v1274 = vadd.f32 %v1160, %v1266
      %v1275 = vadd.f32 %v1161, %v1267
      %v1276 = vadd.f32 %v1162, %v1268
      %vm1277 = vcmp.ge.s32.totalorder %v699, 40
      %vm1278 = vcmp.ge.s32.totalorder %v700, 40
      %vm1279 = vcmp.ge.s32.totalorder %v701, 40
      %vm1280 = vcmp.ge.s32.totalorder %v702, 40
      %vm1281 = vcmp.ge.s32.totalorder %v703, 40
      %vm1282 = vcmp.ge.s32.totalorder %v704, 40
      %vm1283 = vcmp.ge.s32.totalorder %v705, 40
      %vm1284 = vcmp.ge.s32.totalorder %v706, 40
      %vm1285 = vcmp.lt.s32.totalorder %v699, 48
      %vm1286 = vcmp.lt.s32.totalorder %v700, 48
      %vm1287 = vcmp.lt.s32.totalorder %v701, 48
      %vm1288 = vcmp.lt.s32.totalorder %v702, 48
      %vm1289 = vcmp.lt.s32.totalorder %v703, 48
      %vm1290 = vcmp.lt.s32.totalorder %v704, 48
      %vm1291 = vcmp.lt.s32.totalorder %v705, 48
      %vm1292 = vcmp.lt.s32.totalorder %v706, 48
      %vm1293 = vmand %vm1277, %vm1285
      %vm1294 = vmand %vm1278, %vm1286
      %vm1295 = vmand %vm1279, %vm1287
      %vm1296 = vmand %vm1280, %vm1288
      %vm1297 = vmand %vm1281, %vm1289
      %vm1298 = vmand %vm1282, %vm1290
      %vm1299 = vmand %vm1283, %vm1291
      %vm1300 = vmand %vm1284, %vm1292
      %v1301 = vsel %vm1293, 1, 0
      %v1302 = vsel %vm1294, 1, 0
      %v1303 = vsel %vm1295, 1, 0
      %v1304 = vsel %vm1296, 1, 0
      %v1305 = vsel %vm1297, 1, 0
      %v1306 = vsel %vm1298, 1, 0
      %v1307 = vsel %vm1299, 1, 0
      %v1308 = vsel %vm1300, 1, 0
      %v1309 = vcvt.s32.f32 %v1301
      %v1310 = vcvt.s32.f32 %v1302
      %v1311 = vcvt.s32.f32 %v1303
      %v1312 = vcvt.s32.f32 %v1304
      %v1313 = vcvt.s32.f32 %v1305
      %v1314 = vcvt.s32.f32 %v1306
      %v1315 = vcvt.s32.f32 %v1307
      %v1316 = vcvt.s32.f32 %v1308
      %v1317 = vmul.f32 %v636, %v1309
      %v1318 = vmul.f32 %v639, %v1310
      %v1319 = vmul.f32 %v642, %v1311
      %v1320 = vmul.f32 %v645, %v1312
      %v1321 = vmul.f32 %v648, %v1313
      %v1322 = vmul.f32 %v651, %v1314
      %v1323 = vmul.f32 %v654, %v1315
      %v1324 = vmul.f32 %v657, %v1316
      %v1325 = vadd.f32 %v1317, %v1318
      %v1326 = vadd.f32 %v1325, %v1319
      %v1327 = vadd.f32 %v1326, %v1320
      %v1328 = vadd.f32 %v1327, %v1321
      %v1329 = vadd.f32 %v1328, %v1322
      %v1330 = vadd.f32 %v1329, %v1323
      %v1331 = vadd.f32 %v1330, %v1324
      %v1332 = vrot.slane %v1331, 4
      %v1333 = vadd.f32 %v1331, %v1332
      %v1334 = vrot.slane %v1333, 2
      %v1335 = vadd.f32 %v1333, %v1334
      %v1336 = vrot.slane %v1335, 1
      %v1337 = vadd.f32 %v1335, %v1336
      %v1338 = vmul.f32 %v1309, %v1337
      %v1339 = vmul.f32 %v1310, %v1337
      %v1340 = vmul.f32 %v1311, %v1337
      %v1341 = vmul.f32 %v1312, %v1337
      %v1342 = vmul.f32 %v1313, %v1337
      %v1343 = vmul.f32 %v1314, %v1337
      %v1344 = vmul.f32 %v1315, %v1337
      %v1345 = vmul.f32 %v1316, %v1337
      %v1346 = vadd.f32 %v1232, %v1338
      %v1347 = vadd.f32 %v1233, %v1339
      %v1348 = vadd.f32 %v1234, %v1340
      %v1349 = vadd.f32 %v1235, %v1341
      %v1350 = vadd.f32 %v1236, %v1342
      %v1351 = vadd.f32 %v1237, %v1343
      %v1352 = vadd.f32 %v1238, %v1344
      %v1353 = vadd.f32 %v1239, %v1345
      %v1354 = vmul.f32 %v676, %v1309
      %v1355 = vmul.f32 %v679, %v1310
      %v1356 = vmul.f32 %v682, %v1311
      %v1357 = vmul.f32 %v685, %v1312
      %v1358 = vmul.f32 %v688, %v1313
      %v1359 = vmul.f32 %v691, %v1314
      %v1360 = vmul.f32 %v694, %v1315
      %v1361 = vmul.f32 %v697, %v1316
      %v1362 = vadd.f32 %v1354, %v1355
      %v1363 = vadd.f32 %v1362, %v1356
      %v1364 = vadd.f32 %v1363, %v1357
      %v1365 = vadd.f32 %v1364, %v1358
      %v1366 = vadd.f32 %v1365, %v1359
      %v1367 = vadd.f32 %v1366, %v1360
      %v1368 = vadd.f32 %v1367, %v1361
      %v1369 = vrot.slane %v1368, 4
      %v1370 = vadd.f32 %v1368, %v1369
      %v1371 = vrot.slane %v1370, 2
      %v1372 = vadd.f32 %v1370, %v1371
      %v1373 = vrot.slane %v1372, 1
      %v1374 = vadd.f32 %v1372, %v1373
      %v1375 = vmul.f32 %v1309, %v1374
      %v1376 = vmul.f32 %v1310, %v1374
      %v1377 = vmul.f32 %v1311, %v1374
      %v1378 = vmul.f32 %v1312, %v1374
      %v1379 = vmul.f32 %v1313, %v1374
      %v1380 = vmul.f32 %v1314, %v1374
      %v1381 = vmul.f32 %v1315, %v1374
      %v1382 = vmul.f32 %v1316, %v1374
      %v1383 = vadd.f32 %v1269, %v1375
      %v1384 = vadd.f32 %v1270, %v1376
      %v1385 = vadd.f32 %v1271, %v1377
      %v1386 = vadd.f32 %v1272, %v1378
      %v1387 = vadd.f32 %v1273, %v1379
      %v1388 = vadd.f32 %v1274, %v1380
      %v1389 = vadd.f32 %v1275, %v1381
      %v1390 = vadd.f32 %v1276, %v1382
      %vm1391 = vcmp.ge.s32.totalorder %v699, 48
      %vm1392 = vcmp.ge.s32.totalorder %v700, 48
      %vm1393 = vcmp.ge.s32.totalorder %v701, 48
      %vm1394 = vcmp.ge.s32.totalorder %v702, 48
      %vm1395 = vcmp.ge.s32.totalorder %v703, 48
      %vm1396 = vcmp.ge.s32.totalorder %v704, 48
      %vm1397 = vcmp.ge.s32.totalorder %v705, 48
      %vm1398 = vcmp.ge.s32.totalorder %v706, 48
      %vm1399 = vcmp.lt.s32.totalorder %v699, 56
      %vm1400 = vcmp.lt.s32.totalorder %v700, 56
      %vm1401 = vcmp.lt.s32.totalorder %v701, 56
      %vm1402 = vcmp.lt.s32.totalorder %v702, 56
      %vm1403 = vcmp.lt.s32.totalorder %v703, 56
      %vm1404 = vcmp.lt.s32.totalorder %v704, 56
      %vm1405 = vcmp.lt.s32.totalorder %v705, 56
      %vm1406 = vcmp.lt.s32.totalorder %v706, 56
      %vm1407 = vmand %vm1391, %vm1399
      %vm1408 = vmand %vm1392, %vm1400
      %vm1409 = vmand %vm1393, %vm1401
      %vm1410 = vmand %vm1394, %vm1402
      %vm1411 = vmand %vm1395, %vm1403
      %vm1412 = vmand %vm1396, %vm1404
      %vm1413 = vmand %vm1397, %vm1405
      %vm1414 = vmand %vm1398, %vm1406
      %v1415 = vsel %vm1407, 1, 0
      %v1416 = vsel %vm1408, 1, 0
      %v1417 = vsel %vm1409, 1, 0
      %v1418 = vsel %vm1410, 1, 0
      %v1419 = vsel %vm1411, 1, 0
      %v1420 = vsel %vm1412, 1, 0
      %v1421 = vsel %vm1413, 1, 0
      %v1422 = vsel %vm1414, 1, 0
      %v1423 = vcvt.s32.f32 %v1415
      %v1424 = vcvt.s32.f32 %v1416
      %v1425 = vcvt.s32.f32 %v1417
      %v1426 = vcvt.s32.f32 %v1418
      %v1427 = vcvt.s32.f32 %v1419
      %v1428 = vcvt.s32.f32 %v1420
      %v1429 = vcvt.s32.f32 %v1421
      %v1430 = vcvt.s32.f32 %v1422
      %v1431 = vmul.f32 %v636, %v1423
      %v1432 = vmul.f32 %v639, %v1424
      %v1433 = vmul.f32 %v642, %v1425
      %v1434 = vmul.f32 %v645, %v1426
      %v1435 = vmul.f32 %v648, %v1427
      %v1436 = vmul.f32 %v651, %v1428
      %v1437 = vmul.f32 %v654, %v1429
      %v1438 = vmul.f32 %v657, %v1430
      %v1439 = vadd.f32 %v1431, %v1432
      %v1440 = vadd.f32 %v1439, %v1433
      %v1441 = vadd.f32 %v1440, %v1434
      %v1442 = vadd.f32 %v1441, %v1435
      %v1443 = vadd.f32 %v1442, %v1436
      %v1444 = vadd.f32 %v1443, %v1437
      %v1445 = vadd.f32 %v1444, %v1438
      %v1446 = vrot.slane %v1445, 4
      %v1447 = vadd.f32 %v1445, %v1446
      %v1448 = vrot.slane %v1447, 2
      %v1449 = vadd.f32 %v1447, %v1448
      %v1450 = vrot.slane %v1449, 1
      %v1451 = vadd.f32 %v1449, %v1450
      %v1452 = vmul.f32 %v1423, %v1451
      %v1453 = vmul.f32 %v1424, %v1451
      %v1454 = vmul.f32 %v1425, %v1451
      %v1455 = vmul.f32 %v1426, %v1451
      %v1456 = vmul.f32 %v1427, %v1451
      %v1457 = vmul.f32 %v1428, %v1451
      %v1458 = vmul.f32 %v1429, %v1451
      %v1459 = vmul.f32 %v1430, %v1451
      %v1460 = vadd.f32 %v1346, %v1452
      %v1461 = vadd.f32 %v1347, %v1453
      %v1462 = vadd.f32 %v1348, %v1454
      %v1463 = vadd.f32 %v1349, %v1455
      %v1464 = vadd.f32 %v1350, %v1456
      %v1465 = vadd.f32 %v1351, %v1457
      %v1466 = vadd.f32 %v1352, %v1458
      %v1467 = vadd.f32 %v1353, %v1459
      %v1468 = vmul.f32 %v676, %v1423
      %v1469 = vmul.f32 %v679, %v1424
      %v1470 = vmul.f32 %v682, %v1425
      %v1471 = vmul.f32 %v685, %v1426
      %v1472 = vmul.f32 %v688, %v1427
      %v1473 = vmul.f32 %v691, %v1428
      %v1474 = vmul.f32 %v694, %v1429
      %v1475 = vmul.f32 %v697, %v1430
      %v1476 = vadd.f32 %v1468, %v1469
      %v1477 = vadd.f32 %v1476, %v1470
      %v1478 = vadd.f32 %v1477, %v1471
      %v1479 = vadd.f32 %v1478, %v1472
      %v1480 = vadd.f32 %v1479, %v1473
      %v1481 = vadd.f32 %v1480, %v1474
      %v1482 = vadd.f32 %v1481, %v1475
      %v1483 = vrot.slane %v1482, 4
      %v1484 = vadd.f32 %v1482, %v1483
      %v1485 = vrot.slane %v1484, 2
      %v1486 = vadd.f32 %v1484, %v1485
      %v1487 = vrot.slane %v1486, 1
      %v1488 = vadd.f32 %v1486, %v1487
      %v1489 = vmul.f32 %v1423, %v1488
      %v1490 = vmul.f32 %v1424, %v1488
      %v1491 = vmul.f32 %v1425, %v1488
      %v1492 = vmul.f32 %v1426, %v1488
      %v1493 = vmul.f32 %v1427, %v1488
      %v1494 = vmul.f32 %v1428, %v1488
      %v1495 = vmul.f32 %v1429, %v1488
      %v1496 = vmul.f32 %v1430, %v1488
      %v1497 = vadd.f32 %v1383, %v1489
      %v1498 = vadd.f32 %v1384, %v1490
      %v1499 = vadd.f32 %v1385, %v1491
      %v1500 = vadd.f32 %v1386, %v1492
      %v1501 = vadd.f32 %v1387, %v1493
      %v1502 = vadd.f32 %v1388, %v1494
      %v1503 = vadd.f32 %v1389, %v1495
      %v1504 = vadd.f32 %v1390, %v1496
      %vm1505 = vcmp.ge.s32.totalorder %v699, 56
      %vm1506 = vcmp.ge.s32.totalorder %v700, 56
      %vm1507 = vcmp.ge.s32.totalorder %v701, 56
      %vm1508 = vcmp.ge.s32.totalorder %v702, 56
      %vm1509 = vcmp.ge.s32.totalorder %v703, 56
      %vm1510 = vcmp.ge.s32.totalorder %v704, 56
      %vm1511 = vcmp.ge.s32.totalorder %v705, 56
      %vm1512 = vcmp.ge.s32.totalorder %v706, 56
      %vm1513 = vcmp.lt.s32.totalorder %v699, 64
      %vm1514 = vcmp.lt.s32.totalorder %v700, 64
      %vm1515 = vcmp.lt.s32.totalorder %v701, 64
      %vm1516 = vcmp.lt.s32.totalorder %v702, 64
      %vm1517 = vcmp.lt.s32.totalorder %v703, 64
      %vm1518 = vcmp.lt.s32.totalorder %v704, 64
      %vm1519 = vcmp.lt.s32.totalorder %v705, 64
      %vm1520 = vcmp.lt.s32.totalorder %v706, 64
      %vm1521 = vmand %vm1505, %vm1513
      %vm1522 = vmand %vm1506, %vm1514
      %vm1523 = vmand %vm1507, %vm1515
      %vm1524 = vmand %vm1508, %vm1516
      %vm1525 = vmand %vm1509, %vm1517
      %vm1526 = vmand %vm1510, %vm1518
      %vm1527 = vmand %vm1511, %vm1519
      %vm1528 = vmand %vm1512, %vm1520
      %v1529 = vsel %vm1521, 1, 0
      %v1530 = vsel %vm1522, 1, 0
      %v1531 = vsel %vm1523, 1, 0
      %v1532 = vsel %vm1524, 1, 0
      %v1533 = vsel %vm1525, 1, 0
      %v1534 = vsel %vm1526, 1, 0
      %v1535 = vsel %vm1527, 1, 0
      %v1536 = vsel %vm1528, 1, 0
      %v1537 = vcvt.s32.f32 %v1529
      %v1538 = vcvt.s32.f32 %v1530
      %v1539 = vcvt.s32.f32 %v1531
      %v1540 = vcvt.s32.f32 %v1532
      %v1541 = vcvt.s32.f32 %v1533
      %v1542 = vcvt.s32.f32 %v1534
      %v1543 = vcvt.s32.f32 %v1535
      %v1544 = vcvt.s32.f32 %v1536
      %v1545 = vmul.f32 %v636, %v1537
      %v1546 = vmul.f32 %v639, %v1538
      %v1547 = vmul.f32 %v642, %v1539
      %v1548 = vmul.f32 %v645, %v1540
      %v1549 = vmul.f32 %v648, %v1541
      %v1550 = vmul.f32 %v651, %v1542
      %v1551 = vmul.f32 %v654, %v1543
      %v1552 = vmul.f32 %v657, %v1544
      %v1553 = vadd.f32 %v1545, %v1546
      %v1554 = vadd.f32 %v1553, %v1547
      %v1555 = vadd.f32 %v1554, %v1548
      %v1556 = vadd.f32 %v1555, %v1549
      %v1557 = vadd.f32 %v1556, %v1550
      %v1558 = vadd.f32 %v1557, %v1551
      %v1559 = vadd.f32 %v1558, %v1552
      %v1560 = vrot.slane %v1559, 4
      %v1561 = vadd.f32 %v1559, %v1560
      %v1562 = vrot.slane %v1561, 2
      %v1563 = vadd.f32 %v1561, %v1562
      %v1564 = vrot.slane %v1563, 1
      %v1565 = vadd.f32 %v1563, %v1564
      %v1566 = vmul.f32 %v1537, %v1565
      %v1567 = vmul.f32 %v1538, %v1565
      %v1568 = vmul.f32 %v1539, %v1565
      %v1569 = vmul.f32 %v1540, %v1565
      %v1570 = vmul.f32 %v1541, %v1565
      %v1571 = vmul.f32 %v1542, %v1565
      %v1572 = vmul.f32 %v1543, %v1565
      %v1573 = vmul.f32 %v1544, %v1565
      %v1574 = vadd.f32 %v1460, %v1566
      %v1575 = vadd.f32 %v1461, %v1567
      %v1576 = vadd.f32 %v1462, %v1568
      %v1577 = vadd.f32 %v1463, %v1569
      %v1578 = vadd.f32 %v1464, %v1570
      %v1579 = vadd.f32 %v1465, %v1571
      %v1580 = vadd.f32 %v1466, %v1572
      %v1581 = vadd.f32 %v1467, %v1573
      %v1582 = vmul.f32 %v676, %v1537
      %v1583 = vmul.f32 %v679, %v1538
      %v1584 = vmul.f32 %v682, %v1539
      %v1585 = vmul.f32 %v685, %v1540
      %v1586 = vmul.f32 %v688, %v1541
      %v1587 = vmul.f32 %v691, %v1542
      %v1588 = vmul.f32 %v694, %v1543
      %v1589 = vmul.f32 %v697, %v1544
      %v1590 = vadd.f32 %v1582, %v1583
      %v1591 = vadd.f32 %v1590, %v1584
      %v1592 = vadd.f32 %v1591, %v1585
      %v1593 = vadd.f32 %v1592, %v1586
      %v1594 = vadd.f32 %v1593, %v1587
      %v1595 = vadd.f32 %v1594, %v1588
      %v1596 = vadd.f32 %v1595, %v1589
      %v1597 = vrot.slane %v1596, 4
      %v1598 = vadd.f32 %v1596, %v1597
      %v1599 = vrot.slane %v1598, 2
      %v1600 = vadd.f32 %v1598, %v1599
      %v1601 = vrot.slane %v1600, 1
      %v1602 = vadd.f32 %v1600, %v1601
      %v1603 = vmul.f32 %v1537, %v1602
      %v1604 = vmul.f32 %v1538, %v1602
      %v1605 = vmul.f32 %v1539, %v1602
      %v1606 = vmul.f32 %v1540, %v1602
      %v1607 = vmul.f32 %v1541, %v1602
      %v1608 = vmul.f32 %v1542, %v1602
      %v1609 = vmul.f32 %v1543, %v1602
      %v1610 = vmul.f32 %v1544, %v1602
      %v1611 = vadd.f32 %v1497, %v1603
      %v1612 = vadd.f32 %v1498, %v1604
      %v1613 = vadd.f32 %v1499, %v1605
      %v1614 = vadd.f32 %v1500, %v1606
      %v1615 = vadd.f32 %v1501, %v1607
      %v1616 = vadd.f32 %v1502, %v1608
      %v1617 = vadd.f32 %v1503, %v1609
      %v1618 = vadd.f32 %v1504, %v1610
      %v1619 = vmul.f32 %v1574, 0.00048828125
      %v1620 = vmul.f32 %v1575, 0.00048828125
      %v1621 = vmul.f32 %v1576, 0.00048828125
      %v1622 = vmul.f32 %v1577, 0.00048828125
      %v1623 = vmul.f32 %v1578, 0.00048828125
      %v1624 = vmul.f32 %v1579, 0.00048828125
      %v1625 = vmul.f32 %v1580, 0.00048828125
      %v1626 = vmul.f32 %v1581, 0.00048828125
      %v1627 = vmul.f32 %v1611, 0.00048828125
      %v1628 = vmul.f32 %v1612, 0.00048828125
      %v1629 = vmul.f32 %v1613, 0.00048828125
      %v1630 = vmul.f32 %v1614, 0.00048828125
      %v1631 = vmul.f32 %v1615, 0.00048828125
      %v1632 = vmul.f32 %v1616, 0.00048828125
      %v1633 = vmul.f32 %v1617, 0.00048828125
      %v1634 = vmul.f32 %v1618, 0.00048828125
      %v1635 = vmul.f32 %v1619, %v1619
      %v1636 = vmul.f32 %v1620, %v1620
      %v1637 = vmul.f32 %v1621, %v1621
      %v1638 = vmul.f32 %v1622, %v1622
      %v1639 = vmul.f32 %v1623, %v1623
      %v1640 = vmul.f32 %v1624, %v1624
      %v1641 = vmul.f32 %v1625, %v1625
      %v1642 = vmul.f32 %v1626, %v1626
      %v1643 = vsub.f32 %v1627, %v1635
      %v1644 = vsub.f32 %v1628, %v1636
      %v1645 = vsub.f32 %v1629, %v1637
      %v1646 = vsub.f32 %v1630, %v1638
      %v1647 = vsub.f32 %v1631, %v1639
      %v1648 = vsub.f32 %v1632, %v1640
      %v1649 = vsub.f32 %v1633, %v1641
      %v1650 = vsub.f32 %v1634, %v1642
      %v1651 = vsub.f32 %v602, %v1619
      %v1652 = vsub.f32 %v603, %v1619
      %v1653 = vsub.f32 %v604, %v1620
      %v1654 = vsub.f32 %v605, %v1620
      %v1655 = vsub.f32 %v606, %v1621
      %v1656 = vsub.f32 %v607, %v1621
      %v1657 = vsub.f32 %v608, %v1622
      %v1658 = vsub.f32 %v609, %v1622
      %v1659 = vsub.f32 %v610, %v1623
      %v1660 = vsub.f32 %v611, %v1623
      %v1661 = vsub.f32 %v612, %v1624
      %v1662 = vsub.f32 %v613, %v1624
      %v1663 = vsub.f32 %v614, %v1625
      %v1664 = vsub.f32 %v615, %v1625
      %v1665 = vsub.f32 %v616, %v1626
      %v1666 = vsub.f32 %v617, %v1626
      %v1667 = vadd.f32 %v1643, 1e-05
      %v1668 = vadd.f32 %v1644, 1e-05
      %v1669 = vadd.f32 %v1645, 1e-05
      %v1670 = vadd.f32 %v1646, 1e-05
      %v1671 = vadd.f32 %v1647, 1e-05
      %v1672 = vadd.f32 %v1648, 1e-05
      %v1673 = vadd.f32 %v1649, 1e-05
      %v1674 = vadd.f32 %v1650, 1e-05
      %v1675 = vrsqrt.pop %v1667
      %v1676 = vrsqrt.pop %v1668
      %v1677 = vrsqrt.pop %v1669
      %v1678 = vrsqrt.pop %v1670
      %v1679 = vrsqrt.pop %v1671
      %v1680 = vrsqrt.pop %v1672
      %v1681 = vrsqrt.pop %v1673
      %v1682 = vrsqrt.pop %v1674
      %v1683 = vmul.f32 %v1675, %v618
      %v1684 = vmul.f32 %v1676, %v619
      %v1685 = vmul.f32 %v1677, %v620
      %v1686 = vmul.f32 %v1678, %v621
      %v1687 = vmul.f32 %v1679, %v622
      %v1688 = vmul.f32 %v1680, %v623
      %v1689 = vmul.f32 %v1681, %v624
      %v1690 = vmul.f32 %v1682, %v625
      %1692 = vset.pattern.permute.xlu0 0
      %1693 = vperm.xlu0 %1692, %v1683
      %v1694 = vpop.permute.xlu0 %1693
      %1697 = vset.pattern.permute.xlu0 0
      %1698 = vperm.xlu0 %1697, %v1684
      %v1699 = vpop.permute.xlu0 %1698
      %1702 = vset.pattern.permute.xlu0 0
      %1703 = vperm.xlu0 %1702, %v1685
      %v1704 = vpop.permute.xlu0 %1703
      %1707 = vset.pattern.permute.xlu0 0
      %1708 = vperm.xlu0 %1707, %v1686
      %v1709 = vpop.permute.xlu0 %1708
      %1712 = vset.pattern.permute.xlu0 0
      %1713 = vperm.xlu0 %1712, %v1687
      %v1714 = vpop.permute.xlu0 %1713
      %1717 = vset.pattern.permute.xlu0 0
      %1718 = vperm.xlu0 %1717, %v1688
      %v1719 = vpop.permute.xlu0 %1718
      %1722 = vset.pattern.permute.xlu0 0
      %1723 = vperm.xlu0 %1722, %v1689
      %v1724 = vpop.permute.xlu0 %1723
      %1727 = vset.pattern.permute.xlu0 0
      %1728 = vperm.xlu0 %1727, %v1690
      %v1729 = vpop.permute.xlu0 %1728
      %v1731 = vmul.f32 %v1651, %v1694
      %v1732 = vmul.f32 %v1652, %v1694
      %v1733 = vmul.f32 %v1653, %v1699
      %v1734 = vmul.f32 %v1654, %v1699
      %v1735 = vmul.f32 %v1655, %v1704
      %v1736 = vmul.f32 %v1656, %v1704
      %v1737 = vmul.f32 %v1657, %v1709
      %v1738 = vmul.f32 %v1658, %v1709
      %v1739 = vmul.f32 %v1659, %v1714
      %v1740 = vmul.f32 %v1660, %v1714
      %v1741 = vmul.f32 %v1661, %v1719
      %v1742 = vmul.f32 %v1662, %v1719
      %v1743 = vmul.f32 %v1663, %v1724
      %v1744 = vmul.f32 %v1664, %v1724
      %v1745 = vmul.f32 %v1665, %v1729
      %v1746 = vmul.f32 %v1666, %v1729
      %1748 = vset.pattern.permute.xlu0 0
      %1749 = vperm.xlu0 %1748, %v626
      %v1750 = vpop.permute.xlu0 %1749
      %1753 = vset.pattern.permute.xlu0 0
      %1754 = vperm.xlu0 %1753, %v627
      %v1755 = vpop.permute.xlu0 %1754
      %1758 = vset.pattern.permute.xlu0 0
      %1759 = vperm.xlu0 %1758, %v628
      %v1760 = vpop.permute.xlu0 %1759
      %1763 = vset.pattern.permute.xlu0 0
      %1764 = vperm.xlu0 %1763, %v629
      %v1765 = vpop.permute.xlu0 %1764
      %1768 = vset.pattern.permute.xlu0 0
      %1769 = vperm.xlu0 %1768, %v630
      %v1770 = vpop.permute.xlu0 %1769
      %1773 = vset.pattern.permute.xlu0 0
      %1774 = vperm.xlu0 %1773, %v631
      %v1775 = vpop.permute.xlu0 %1774
      %1778 = vset.pattern.permute.xlu0 0
      %1779 = vperm.xlu0 %1778, %v632
      %v1780 = vpop.permute.xlu0 %1779
      %1783 = vset.pattern.permute.xlu0 0
      %1784 = vperm.xlu0 %1783, %v633
      %v1785 = vpop.permute.xlu0 %1784
      %v1787 = vadd.f32 %v1731, %v1750
      %v1788 = vadd.f32 %v1732, %v1750
      %v1789 = vadd.f32 %v1733, %v1755
      %v1790 = vadd.f32 %v1734, %v1755
      %v1791 = vadd.f32 %v1735, %v1760
      %v1792 = vadd.f32 %v1736, %v1760
      %v1793 = vadd.f32 %v1737, %v1765
      %v1794 = vadd.f32 %v1738, %v1765
      %v1795 = vadd.f32 %v1739, %v1770
      %v1796 = vadd.f32 %v1740, %v1770
      %v1797 = vadd.f32 %v1741, %v1775
      %v1798 = vadd.f32 %v1742, %v1775
      %v1799 = vadd.f32 %v1743, %v1780
      %v1800 = vadd.f32 %v1744, %v1780
      %v1801 = vadd.f32 %v1745, %v1785
      %v1802 = vadd.f32 %v1746, %v1785
      %v1803 = vxor.u32 %v1787, 2147483648
      %v1804 = vxor.u32 %v1788, 2147483648
      %v1805 = vxor.u32 %v1789, 2147483648
      %v1806 = vxor.u32 %v1790, 2147483648
      %v1807 = vxor.u32 %v1791, 2147483648
      %v1808 = vxor.u32 %v1792, 2147483648
      %v1809 = vxor.u32 %v1793, 2147483648
      %v1810 = vxor.u32 %v1794, 2147483648
      %v1811 = vxor.u32 %v1795, 2147483648
      %v1812 = vxor.u32 %v1796, 2147483648
      %v1813 = vxor.u32 %v1797, 2147483648
      %v1814 = vxor.u32 %v1798, 2147483648
      %v1815 = vxor.u32 %v1799, 2147483648
      %v1816 = vxor.u32 %v1800, 2147483648
      %v1817 = vxor.u32 %v1801, 2147483648
      %v1818 = vxor.u32 %v1802, 2147483648
      %v1819 = vmul.f32 %v1803, 1.442695
      %v1820 = vpow.pop %v1819
      %v1821 = vmul.f32 %v1804, 1.442695
      %v1822 = vpow.pop %v1821
      %v1823 = vmul.f32 %v1805, 1.442695
      %v1824 = vpow.pop %v1823
      %v1825 = vmul.f32 %v1806, 1.442695
      %v1826 = vpow.pop %v1825
      %v1827 = vmul.f32 %v1807, 1.442695
      %v1828 = vpow.pop %v1827
      %v1829 = vmul.f32 %v1808, 1.442695
      %v1830 = vpow.pop %v1829
      %v1831 = vmul.f32 %v1809, 1.442695
      %v1832 = vpow.pop %v1831
      %v1833 = vmul.f32 %v1810, 1.442695
      %v1834 = vpow.pop %v1833
      %v1835 = vmul.f32 %v1811, 1.442695
      %v1836 = vpow.pop %v1835
      %v1837 = vmul.f32 %v1812, 1.442695
      %v1838 = vpow.pop %v1837
      %v1839 = vmul.f32 %v1813, 1.442695
      %v1840 = vpow.pop %v1839
      %v1841 = vmul.f32 %v1814, 1.442695
      %v1842 = vpow.pop %v1841
      %v1843 = vmul.f32 %v1815, 1.442695
      %v1844 = vpow.pop %v1843
      %v1845 = vmul.f32 %v1816, 1.442695
      %v1846 = vpow.pop %v1845
      %v1847 = vmul.f32 %v1817, 1.442695
      %v1848 = vpow.pop %v1847
      %v1849 = vmul.f32 %v1818, 1.442695
      %v1850 = vpow.pop %v1849
      %v1851 = vadd.f32 %v1820, 1.0
      %v1852 = vadd.f32 %v1822, 1.0
      %v1853 = vadd.f32 %v1824, 1.0
      %v1854 = vadd.f32 %v1826, 1.0
      %v1855 = vadd.f32 %v1828, 1.0
      %v1856 = vadd.f32 %v1830, 1.0
      %v1857 = vadd.f32 %v1832, 1.0
      %v1858 = vadd.f32 %v1834, 1.0
      %v1859 = vadd.f32 %v1836, 1.0
      %v1860 = vadd.f32 %v1838, 1.0
      %v1861 = vadd.f32 %v1840, 1.0
      %v1862 = vadd.f32 %v1842, 1.0
      %v1863 = vadd.f32 %v1844, 1.0
      %v1864 = vadd.f32 %v1846, 1.0
      %v1865 = vadd.f32 %v1848, 1.0
      %v1866 = vadd.f32 %v1850, 1.0
      %v1867 = vrcp.pop %v1851
      %v1868 = vmul.f32 1.0, %v1867
      %v1869 = vrcp.pop %v1852
      %v1870 = vmul.f32 1.0, %v1869
      %v1871 = vrcp.pop %v1853
      %v1872 = vmul.f32 1.0, %v1871
      %v1873 = vrcp.pop %v1854
      %v1874 = vmul.f32 1.0, %v1873
      %v1875 = vrcp.pop %v1855
      %v1876 = vmul.f32 1.0, %v1875
      %v1877 = vrcp.pop %v1856
      %v1878 = vmul.f32 1.0, %v1877
      %v1879 = vrcp.pop %v1857
      %v1880 = vmul.f32 1.0, %v1879
      %v1881 = vrcp.pop %v1858
      %v1882 = vmul.f32 1.0, %v1881
      %v1883 = vrcp.pop %v1859
      %v1884 = vmul.f32 1.0, %v1883
      %v1885 = vrcp.pop %v1860
      %v1886 = vmul.f32 1.0, %v1885
      %v1887 = vrcp.pop %v1861
      %v1888 = vmul.f32 1.0, %v1887
      %v1889 = vrcp.pop %v1862
      %v1890 = vmul.f32 1.0, %v1889
      %v1891 = vrcp.pop %v1863
      %v1892 = vmul.f32 1.0, %v1891
      %v1893 = vrcp.pop %v1864
      %v1894 = vmul.f32 1.0, %v1893
      %v1895 = vrcp.pop %v1865
      %v1896 = vmul.f32 1.0, %v1895
      %v1897 = vrcp.pop %v1866
      %v1898 = vmul.f32 1.0, %v1897
      %v1899 = vmul.f32 %v1787, %v1868
      %v1900 = vmul.f32 %v1788, %v1870
      %v1901 = vmul.f32 %v1789, %v1872
      %v1902 = vmul.f32 %v1790, %v1874
      %v1903 = vmul.f32 %v1791, %v1876
      %v1904 = vmul.f32 %v1792, %v1878
      %v1905 = vmul.f32 %v1793, %v1880
      %v1906 = vmul.f32 %v1794, %v1882
      %v1907 = vmul.f32 %v1795, %v1884
      %v1908 = vmul.f32 %v1796, %v1886
      %v1909 = vmul.f32 %v1797, %v1888
      %v1910 = vmul.f32 %v1798, %v1890
      %v1911 = vmul.f32 %v1799, %v1892
      %v1912 = vmul.f32 %v1800, %v1894
      %v1913 = vmul.f32 %v1801, %v1896
      %v1914 = vmul.f32 %v1802, %v1898
      %v1915 = vpack.c.bf16 %v1901, %v1899
      %v1916 = vpack.c.bf16 %v1902, %v1900
      %v1917 = vpack.c.bf16 %v1905, %v1903
      %v1918 = vpack.c.bf16 %v1906, %v1904
      %v1919 = vpack.c.bf16 %v1909, %v1907
      %v1920 = vpack.c.bf16 %v1910, %v1908
      %v1921 = vpack.c.bf16 %v1913, %v1911
      %v1922 = vpack.c.bf16 %v1914, %v1912
      %1923 = vst [vmem:[#allocation2 + $0x8] sm:$0xff] %v1915
      %1924 = vst [vmem:[#allocation2 + $0x10] sm:$0xff] %v1916
      %1925 = vst [vmem:[#allocation2 + $0x28] sm:$0xff] %v1917
      %1926 = vst [vmem:[#allocation2 + $0x30] sm:$0xff] %v1918
      %1927 = vst [vmem:[#allocation2 + $0x48] sm:$0xff] %v1919
      %1928 = vst [vmem:[#allocation2 + $0x50] sm:$0xff] %v1920
      %1929 = vst [vmem:[#allocation2 + $0x68] sm:$0xff] %v1921
      %1930 = vst [vmem:[#allocation2 + $0x70] sm:$0xff] %v1922
      %v1931 = vld [vmem:[#allocation2] sm:$0xff]
      %v1932 = vld [vmem:[#allocation2 + $0x8] sm:$0xff]
      %v1933 = vld [vmem:[#allocation2 + $0x10] sm:$0xff]
      %v1934 = vld [vmem:[#allocation2 + $0x20] sm:$0xff]
      %v1935 = vld [vmem:[#allocation2 + $0x28] sm:$0xff]
      %v1936 = vld [vmem:[#allocation2 + $0x30] sm:$0xff]
      %v1937 = vld [vmem:[#allocation2 + $0x40] sm:$0xff]
      %v1938 = vld [vmem:[#allocation2 + $0x48] sm:$0xff]
      %v1939 = vld [vmem:[#allocation2 + $0x50] sm:$0xff]
      %v1940 = vld [vmem:[#allocation2 + $0x60] sm:$0xff]
      %v1941 = vld [vmem:[#allocation2 + $0x68] sm:$0xff]
      %v1942 = vld [vmem:[#allocation2 + $0x70] sm:$0xff]
      %v1943 = vsel %vm584, 1, 0
      %v1944 = vsel %vm585, 1, 0
      %vm1945 = vcmp.eq.s32.totalorder %v1943, 1
      %vm1946 = vcmp.eq.s32.totalorder %v1944, 1
      %vm1947 = vmpackc.low %vm1946, %vm1945
      %v1948 = vsel %vm1947, 65537, 0
      %v1949 = vlaneseq
      %v1950 = vshrl.u32 %v1949, 7
      %v1951 = vsub.s32 0, %v1950
      %v1952 = vrot.slane %v1948, %v1951
      %v1953 = vlaneseq
      %v1954 = vshrl.u32 %v1953, 7
      %v1955 = vsub.s32 4, %v1954
      %v1956 = vrot.slane %v1948, %v1955
      %1957 = vrot.lane.b32.xlu0 %v1952, 111
      %v1958 = vpop.permute.xlu0 %1957
      %1959 = vrot.lane.b32.xlu0 %v1956, 111
      %v1960 = vpop.permute.xlu0 %1959
      %vm1961 = vcmask 908288
      %v1962 = vsel %vm1961, %v1958, %v1960
      %vm1963 = vcmp.ne.s16.totalorder %v1958, 0
      %vm1964 = vcmp.ne.s16.totalorder %v1962, 0
      %vm1965 = vcmp.ne.s16.totalorder %v1960, 0
      %v1966 = vsel %vm1963, %v1931, 0
      %v1967 = vsel %vm1964, %v1932, 0
      %v1968 = vsel %vm1965, %v1933, 0
      %v1969 = vsel %vm1963, %v1934, 0
      %v1970 = vsel %vm1964, %v1935, 0
      %v1971 = vsel %vm1965, %v1936, 0
      %v1972 = vsel %vm1963, %v1937, 0
      %v1973 = vsel %vm1964, %v1938, 0
      %v1974 = vsel %vm1965, %v1939, 0
      %v1975 = vsel %vm1963, %v1940, 0
      %v1976 = vsel %vm1964, %v1941, 0
      %v1977 = vsel %vm1965, %v1942, 0
      %1990 = vrot.lane.b32.xlu0 %v1966, 17
      %v1991 = vpop.permute.xlu0 %1990
      %1992 = vrot.lane.b32.xlu0 %v1967, 17
      %v1993 = vpop.permute.xlu0 %1992
      %1994 = vrot.lane.b32.xlu0 %v1968, 17
      %v1995 = vpop.permute.xlu0 %1994
      %1996 = vrot.lane.b32.xlu0 %v1969, 17
      %v1997 = vpop.permute.xlu0 %1996
      %1998 = vrot.lane.b32.xlu0 %v1970, 17
      %v1999 = vpop.permute.xlu0 %1998
      %2000 = vrot.lane.b32.xlu0 %v1971, 17
      %v2001 = vpop.permute.xlu0 %2000
      %2002 = vrot.lane.b32.xlu0 %v1972, 17
      %v2003 = vpop.permute.xlu0 %2002
      %2004 = vrot.lane.b32.xlu0 %v1973, 17
      %v2005 = vpop.permute.xlu0 %2004
      %2006 = vrot.lane.b32.xlu0 %v1974, 17
      %v2007 = vpop.permute.xlu0 %2006
      %2008 = vrot.lane.b32.xlu0 %v1975, 17
      %v2009 = vpop.permute.xlu0 %2008
      %2010 = vrot.lane.b32.xlu0 %v1976, 17
      %v2011 = vpop.permute.xlu0 %2010
      %2012 = vrot.lane.b32.xlu0 %v1977, 17
      %v2013 = vpop.permute.xlu0 %2012
      %vm2014 = vcmask 138240
      %v2015 = vsel %vm2014, %v1991, %v1993
      %v2016 = vsel %vm2014, %v1993, %v1995
      %v2017 = vsel %vm2014, %v1997, %v1999
      %v2018 = vsel %vm2014, %v1999, %v2001
      %v2019 = vsel %vm2014, %v2003, %v2005
      %v2020 = vsel %vm2014, %v2005, %v2007
      %v2021 = vsel %vm2014, %v2009, %v2011
      %v2022 = vsel %vm2014, %v2011, %v2013
      %2031 = vst [vmem:[#allocation3] sm:$0xff] %v2015
      %2032 = vst [vmem:[#allocation3 + $0x8] sm:$0xff] %v2016
      %2033 = vst [vmem:[#allocation3 + $0x10] sm:$0xff] %v2017
      %2034 = vst [vmem:[#allocation3 + $0x18] sm:$0xff] %v2018
      %2035 = vst [vmem:[#allocation3 + $0x20] sm:$0xff] %v2019
      %2036 = vst [vmem:[#allocation3 + $0x28] sm:$0xff] %v2020
      %2037 = vst [vmem:[#allocation3 + $0x30] sm:$0xff] %v2021
      %2038 = vst [vmem:[#allocation3 + $0x38] sm:$0xff] %v2022
      %v2039 = vld [vmem:[#allocation2] sm:$0xff]
      %v2040 = vld [vmem:[#allocation2 + $0x8] sm:$0xff]
      %v2041 = vld [vmem:[#allocation2 + $0x10] sm:$0xff]
      %v2042 = vld [vmem:[#allocation2 + $0x20] sm:$0xff]
      %v2043 = vld [vmem:[#allocation2 + $0x28] sm:$0xff]
      %v2044 = vld [vmem:[#allocation2 + $0x30] sm:$0xff]
      %v2045 = vld [vmem:[#allocation2 + $0x40] sm:$0xff]
      %v2046 = vld [vmem:[#allocation2 + $0x48] sm:$0xff]
      %v2047 = vld [vmem:[#allocation2 + $0x50] sm:$0xff]
      %v2048 = vld [vmem:[#allocation2 + $0x60] sm:$0xff]
      %v2049 = vld [vmem:[#allocation2 + $0x68] sm:$0xff]
      %v2050 = vld [vmem:[#allocation2 + $0x70] sm:$0xff]
      %2063 = vrot.lane.b32.xlu0 %v2039, 16
      %v2064 = vpop.permute.xlu0 %2063
      %2065 = vrot.lane.b32.xlu0 %v2040, 16
      %v2066 = vpop.permute.xlu0 %2065
      %2067 = vrot.lane.b32.xlu0 %v2041, 16
      %v2068 = vpop.permute.xlu0 %2067
      %2069 = vrot.lane.b32.xlu0 %v2042, 16
      %v2070 = vpop.permute.xlu0 %2069
      %2071 = vrot.lane.b32.xlu0 %v2043, 16
      %v2072 = vpop.permute.xlu0 %2071
      %2073 = vrot.lane.b32.xlu0 %v2044, 16
      %v2074 = vpop.permute.xlu0 %2073
      %2075 = vrot.lane.b32.xlu0 %v2045, 16
      %v2076 = vpop.permute.xlu0 %2075
      %2077 = vrot.lane.b32.xlu0 %v2046, 16
      %v2078 = vpop.permute.xlu0 %2077
      %2079 = vrot.lane.b32.xlu0 %v2047, 16
      %v2080 = vpop.permute.xlu0 %2079
      %2081 = vrot.lane.b32.xlu0 %v2048, 16
      %v2082 = vpop.permute.xlu0 %2081
      %2083 = vrot.lane.b32.xlu0 %v2049, 16
      %v2084 = vpop.permute.xlu0 %2083
      %2085 = vrot.lane.b32.xlu0 %v2050, 16
      %v2086 = vpop.permute.xlu0 %2085
      %vm2087 = vcmask 130048
      %v2088 = vsel %vm2087, %v2064, %v2066
      %v2089 = vsel %vm2087, %v2066, %v2068
      %v2090 = vsel %vm2087, %v2070, %v2072
      %v2091 = vsel %vm2087, %v2072, %v2074
      %v2092 = vsel %vm2087, %v2076, %v2078
      %v2093 = vsel %vm2087, %v2078, %v2080
      %v2094 = vsel %vm2087, %v2082, %v2084
      %v2095 = vsel %vm2087, %v2084, %v2086
      %2104 = vst [vmem:[#allocation3 + $0x40] sm:$0xff] %v2088
      %2105 = vst [vmem:[#allocation3 + $0x48] sm:$0xff] %v2089
      %2106 = vst [vmem:[#allocation3 + $0x50] sm:$0xff] %v2090
      %2107 = vst [vmem:[#allocation3 + $0x58] sm:$0xff] %v2091
      %2108 = vst [vmem:[#allocation3 + $0x60] sm:$0xff] %v2092
      %2109 = vst [vmem:[#allocation3 + $0x68] sm:$0xff] %v2093
      %2110 = vst [vmem:[#allocation3 + $0x70] sm:$0xff] %v2094
      %2111 = vst [vmem:[#allocation3 + $0x78] sm:$0xff] %v2095
      %v2112 = vld [vmem:[#allocation2] sm:$0xff]
      %v2113 = vld [vmem:[#allocation2 + $0x8] sm:$0xff]
      %v2114 = vld [vmem:[#allocation2 + $0x10] sm:$0xff]
      %v2115 = vld [vmem:[#allocation2 + $0x20] sm:$0xff]
      %v2116 = vld [vmem:[#allocation2 + $0x28] sm:$0xff]
      %v2117 = vld [vmem:[#allocation2 + $0x30] sm:$0xff]
      %v2118 = vld [vmem:[#allocation2 + $0x40] sm:$0xff]
      %v2119 = vld [vmem:[#allocation2 + $0x48] sm:$0xff]
      %v2120 = vld [vmem:[#allocation2 + $0x50] sm:$0xff]
      %v2121 = vld [vmem:[#allocation2 + $0x60] sm:$0xff]
      %v2122 = vld [vmem:[#allocation2 + $0x68] sm:$0xff]
      %v2123 = vld [vmem:[#allocation2 + $0x70] sm:$0xff]
      %v2124 = vsel %vm592, 1, 0
      %v2125 = vsel %vm593, 1, 0
      %vm2126 = vcmp.eq.s32.totalorder %v2124, 1
      %vm2127 = vcmp.eq.s32.totalorder %v2125, 1
      %vm2128 = vmpackc.low %vm2127, %vm2126
      %v2129 = vsel %vm2128, 65537, 0
      %v2130 = vlaneseq
      %v2131 = vshrl.u32 %v2130, 7
      %v2132 = vsub.s32 0, %v2131
      %v2133 = vrot.slane %v2129, %v2132
      %v2134 = vlaneseq
      %v2135 = vshrl.u32 %v2134, 7
      %v2136 = vsub.s32 4, %v2135
      %v2137 = vrot.slane %v2129, %v2136
      %2138 = vrot.lane.b32.xlu0 %v2133, 113
      %v2139 = vpop.permute.xlu0 %2138
      %2140 = vrot.lane.b32.xlu0 %v2137, 113
      %v2141 = vpop.permute.xlu0 %2140
      %vm2142 = vcmask 924672
      %v2143 = vsel %vm2142, %v2139, %v2141
      %vm2144 = vcmp.ne.s16.totalorder %v2139, 0
      %vm2145 = vcmp.ne.s16.totalorder %v2143, 0
      %vm2146 = vcmp.ne.s16.totalorder %v2141, 0
      %v2147 = vsel %vm2144, %v2112, 0
      %v2148 = vsel %vm2145, %v2113, 0
      %v2149 = vsel %vm2146, %v2114, 0
      %v2150 = vsel %vm2144, %v2115, 0
      %v2151 = vsel %vm2145, %v2116, 0
      %v2152 = vsel %vm2146, %v2117, 0
      %v2153 = vsel %vm2144, %v2118, 0
      %v2154 = vsel %vm2145, %v2119, 0
      %v2155 = vsel %vm2146, %v2120, 0
      %v2156 = vsel %vm2144, %v2121, 0
      %v2157 = vsel %vm2145, %v2122, 0
      %v2158 = vsel %vm2146, %v2123, 0
      %2171 = vrot.lane.b32.xlu0 %v2147, 15
      %v2172 = vpop.permute.xlu0 %2171
      %2173 = vrot.lane.b32.xlu0 %v2148, 15
      %v2174 = vpop.permute.xlu0 %2173
      %2175 = vrot.lane.b32.xlu0 %v2149, 15
      %v2176 = vpop.permute.xlu0 %2175
      %2177 = vrot.lane.b32.xlu0 %v2150, 15
      %v2178 = vpop.permute.xlu0 %2177
      %2179 = vrot.lane.b32.xlu0 %v2151, 15
      %v2180 = vpop.permute.xlu0 %2179
      %2181 = vrot.lane.b32.xlu0 %v2152, 15
      %v2182 = vpop.permute.xlu0 %2181
      %2183 = vrot.lane.b32.xlu0 %v2153, 15
      %v2184 = vpop.permute.xlu0 %2183
      %2185 = vrot.lane.b32.xlu0 %v2154, 15
      %v2186 = vpop.permute.xlu0 %2185
      %2187 = vrot.lane.b32.xlu0 %v2155, 15
      %v2188 = vpop.permute.xlu0 %2187
      %2189 = vrot.lane.b32.xlu0 %v2156, 15
      %v2190 = vpop.permute.xlu0 %2189
      %2191 = vrot.lane.b32.xlu0 %v2157, 15
      %v2192 = vpop.permute.xlu0 %2191
      %2193 = vrot.lane.b32.xlu0 %v2158, 15
      %v2194 = vpop.permute.xlu0 %2193
      %vm2195 = vcmask 121856
      %v2196 = vsel %vm2195, %v2172, %v2174
      %v2197 = vsel %vm2195, %v2174, %v2176
      %v2198 = vsel %vm2195, %v2178, %v2180
      %v2199 = vsel %vm2195, %v2180, %v2182
      %v2200 = vsel %vm2195, %v2184, %v2186
      %v2201 = vsel %vm2195, %v2186, %v2188
      %v2202 = vsel %vm2195, %v2190, %v2192
      %v2203 = vsel %vm2195, %v2192, %v2194
      %2212 = vst [vmem:[#allocation3 + $0x80] sm:$0xff] %v2196
      %2213 = vst [vmem:[#allocation3 + $0x88] sm:$0xff] %v2197
      %2214 = vst [vmem:[#allocation3 + $0x90] sm:$0xff] %v2198
      %2215 = vst [vmem:[#allocation3 + $0x98] sm:$0xff] %v2199
      %2216 = vst [vmem:[#allocation3 + $0xa0] sm:$0xff] %v2200
      %2217 = vst [vmem:[#allocation3 + $0xa8] sm:$0xff] %v2201
      %2218 = vst [vmem:[#allocation3 + $0xb0] sm:$0xff] %v2202
      %2219 = vst [vmem:[#allocation3 + $0xb8] sm:$0xff] %v2203
      %v2220 = vld [vmem:[#allocation2] sm:$0xff]
      %v2221 = vld [vmem:[#allocation2 + $0x8] sm:$0xff]
      %v2222 = vld [vmem:[#allocation2 + $0x10] sm:$0xff]
      %v2223 = vld [vmem:[#allocation2 + $0x20] sm:$0xff]
      %v2224 = vld [vmem:[#allocation2 + $0x28] sm:$0xff]
      %v2225 = vld [vmem:[#allocation2 + $0x30] sm:$0xff]
      %v2226 = vld [vmem:[#allocation2 + $0x40] sm:$0xff]
      %v2227 = vld [vmem:[#allocation2 + $0x48] sm:$0xff]
      %v2228 = vld [vmem:[#allocation2 + $0x50] sm:$0xff]
      %v2229 = vld [vmem:[#allocation2 + $0x60] sm:$0xff]
      %v2230 = vld [vmem:[#allocation2 + $0x68] sm:$0xff]
      %v2231 = vld [vmem:[#allocation2 + $0x70] sm:$0xff]
      %2232 = vrot.lane.b32.xlu0 %v1952, 127
      %v2233 = vpop.permute.xlu0 %2232
      %2234 = vrot.lane.b32.xlu0 %v1956, 127
      %v2235 = vpop.permute.xlu0 %2234
      %vm2236 = vcmask 1039360
      %v2237 = vsel %vm2236, %v2233, %v2235
      %vm2238 = vcmp.ne.s16.totalorder %v2233, 0
      %vm2239 = vcmp.ne.s16.totalorder %v2237, 0
      %vm2240 = vcmp.ne.s16.totalorder %v2235, 0
      %v2241 = vsel %vm2238, %v2220, 0
      %v2242 = vsel %vm2239, %v2221, 0
      %v2243 = vsel %vm2240, %v2222, 0
      %v2244 = vsel %vm2238, %v2223, 0
      %v2245 = vsel %vm2239, %v2224, 0
      %v2246 = vsel %vm2240, %v2225, 0
      %v2247 = vsel %vm2238, %v2226, 0
      %v2248 = vsel %vm2239, %v2227, 0
      %v2249 = vsel %vm2240, %v2228, 0
      %v2250 = vsel %vm2238, %v2229, 0
      %v2251 = vsel %vm2239, %v2230, 0
      %v2252 = vsel %vm2240, %v2231, 0
      %2265 = vrot.lane.b32.xlu0 %v2241, 1
      %v2266 = vpop.permute.xlu0 %2265
      %2267 = vrot.lane.b32.xlu0 %v2242, 1
      %v2268 = vpop.permute.xlu0 %2267
      %2269 = vrot.lane.b32.xlu0 %v2243, 1
      %v2270 = vpop.permute.xlu0 %2269
      %2271 = vrot.lane.b32.xlu0 %v2244, 1
      %v2272 = vpop.permute.xlu0 %2271
      %2273 = vrot.lane.b32.xlu0 %v2245, 1
      %v2274 = vpop.permute.xlu0 %2273
      %2275 = vrot.lane.b32.xlu0 %v2246, 1
      %v2276 = vpop.permute.xlu0 %2275
      %2277 = vrot.lane.b32.xlu0 %v2247, 1
      %v2278 = vpop.permute.xlu0 %2277
      %2279 = vrot.lane.b32.xlu0 %v2248, 1
      %v2280 = vpop.permute.xlu0 %2279
      %2281 = vrot.lane.b32.xlu0 %v2249, 1
      %v2282 = vpop.permute.xlu0 %2281
      %2283 = vrot.lane.b32.xlu0 %v2250, 1
      %v2284 = vpop.permute.xlu0 %2283
      %2285 = vrot.lane.b32.xlu0 %v2251, 1
      %v2286 = vpop.permute.xlu0 %2285
      %2287 = vrot.lane.b32.xlu0 %v2252, 1
      %v2288 = vpop.permute.xlu0 %2287
      %vm2289 = vcmask 7168
      %v2290 = vsel %vm2289, %v2266, %v2268
      %v2291 = vsel %vm2289, %v2268, %v2270
      %v2292 = vsel %vm2289, %v2272, %v2274
      %v2293 = vsel %vm2289, %v2274, %v2276
      %v2294 = vsel %vm2289, %v2278, %v2280
      %v2295 = vsel %vm2289, %v2280, %v2282
      %v2296 = vsel %vm2289, %v2284, %v2286
      %v2297 = vsel %vm2289, %v2286, %v2288
      %2306 = vst [vmem:[#allocation3 + $0xc0] sm:$0xff] %v2290
      %2307 = vst [vmem:[#allocation3 + $0xc8] sm:$0xff] %v2291
      %2308 = vst [vmem:[#allocation3 + $0xd0] sm:$0xff] %v2292
      %2309 = vst [vmem:[#allocation3 + $0xd8] sm:$0xff] %v2293
      %2310 = vst [vmem:[#allocation3 + $0xe0] sm:$0xff] %v2294
      %2311 = vst [vmem:[#allocation3 + $0xe8] sm:$0xff] %v2295
      %2312 = vst [vmem:[#allocation3 + $0xf0] sm:$0xff] %v2296
      %2313 = vst [vmem:[#allocation3 + $0xf8] sm:$0xff] %v2297
      %v2314 = vld [vmem:[#allocation2 + $0x8] sm:$0xff]
      %v2315 = vld [vmem:[#allocation2 + $0x10] sm:$0xff]
      %v2316 = vld [vmem:[#allocation2 + $0x28] sm:$0xff]
      %v2317 = vld [vmem:[#allocation2 + $0x30] sm:$0xff]
      %v2318 = vld [vmem:[#allocation2 + $0x48] sm:$0xff]
      %v2319 = vld [vmem:[#allocation2 + $0x50] sm:$0xff]
      %v2320 = vld [vmem:[#allocation2 + $0x68] sm:$0xff]
      %v2321 = vld [vmem:[#allocation2 + $0x70] sm:$0xff]
      %2322 = vst [vmem:[#allocation3 + $0x100] sm:$0xff] %v2314
      %2323 = vst [vmem:[#allocation3 + $0x108] sm:$0xff] %v2315
      %2324 = vst [vmem:[#allocation3 + $0x110] sm:$0xff] %v2316
      %2325 = vst [vmem:[#allocation3 + $0x118] sm:$0xff] %v2317
      %2326 = vst [vmem:[#allocation3 + $0x120] sm:$0xff] %v2318
      %2327 = vst [vmem:[#allocation3 + $0x128] sm:$0xff] %v2319
      %2328 = vst [vmem:[#allocation3 + $0x130] sm:$0xff] %v2320
      %2329 = vst [vmem:[#allocation3 + $0x138] sm:$0xff] %v2321
      %v2330 = vld [vmem:[#allocation2 + $0x8] sm:$0xff]
      %v2331 = vld [vmem:[#allocation2 + $0x10] sm:$0xff]
      %v2332 = vld [vmem:[#allocation2 + $0x18] sm:$0xff]
      %v2333 = vld [vmem:[#allocation2 + $0x28] sm:$0xff]
      %v2334 = vld [vmem:[#allocation2 + $0x30] sm:$0xff]
      %v2335 = vld [vmem:[#allocation2 + $0x38] sm:$0xff]
      %v2336 = vld [vmem:[#allocation2 + $0x48] sm:$0xff]
      %v2337 = vld [vmem:[#allocation2 + $0x50] sm:$0xff]
      %v2338 = vld [vmem:[#allocation2 + $0x58] sm:$0xff]
      %v2339 = vld [vmem:[#allocation2 + $0x68] sm:$0xff]
      %v2340 = vld [vmem:[#allocation2 + $0x70] sm:$0xff]
      %v2341 = vld [vmem:[#allocation2 + $0x78] sm:$0xff]
      %2342 = vrot.lane.b32.xlu0 %v2133, 1
      %v2343 = vpop.permute.xlu0 %2342
      %2344 = vrot.lane.b32.xlu0 %v2137, 1
      %v2345 = vpop.permute.xlu0 %2344
      %v2346 = vsel %vm2289, %v2343, %v2345
      %vm2347 = vcmp.ne.s16.totalorder %v2343, 0
      %vm2348 = vcmp.ne.s16.totalorder %v2346, 0
      %vm2349 = vcmp.ne.s16.totalorder %v2345, 0
      %v2350 = vsel %vm2347, %v2330, 0
      %v2351 = vsel %vm2348, %v2331, 0
      %v2352 = vsel %vm2349, %v2332, 0
      %v2353 = vsel %vm2347, %v2333, 0
      %v2354 = vsel %vm2348, %v2334, 0
      %v2355 = vsel %vm2349, %v2335, 0
      %v2356 = vsel %vm2347, %v2336, 0
      %v2357 = vsel %vm2348, %v2337, 0
      %v2358 = vsel %vm2349, %v2338, 0
      %v2359 = vsel %vm2347, %v2339, 0
      %v2360 = vsel %vm2348, %v2340, 0
      %v2361 = vsel %vm2349, %v2341, 0
      %2374 = vrot.lane.b32.xlu0 %v2350, 127
      %v2375 = vpop.permute.xlu0 %2374
      %2376 = vrot.lane.b32.xlu0 %v2351, 127
      %v2377 = vpop.permute.xlu0 %2376
      %2378 = vrot.lane.b32.xlu0 %v2352, 127
      %v2379 = vpop.permute.xlu0 %2378
      %2380 = vrot.lane.b32.xlu0 %v2353, 127
      %v2381 = vpop.permute.xlu0 %2380
      %2382 = vrot.lane.b32.xlu0 %v2354, 127
      %v2383 = vpop.permute.xlu0 %2382
      %2384 = vrot.lane.b32.xlu0 %v2355, 127
      %v2385 = vpop.permute.xlu0 %2384
      %2386 = vrot.lane.b32.xlu0 %v2356, 127
      %v2387 = vpop.permute.xlu0 %2386
      %2388 = vrot.lane.b32.xlu0 %v2357, 127
      %v2389 = vpop.permute.xlu0 %2388
      %2390 = vrot.lane.b32.xlu0 %v2358, 127
      %v2391 = vpop.permute.xlu0 %2390
      %2392 = vrot.lane.b32.xlu0 %v2359, 127
      %v2393 = vpop.permute.xlu0 %2392
      %2394 = vrot.lane.b32.xlu0 %v2360, 127
      %v2395 = vpop.permute.xlu0 %2394
      %2396 = vrot.lane.b32.xlu0 %v2361, 127
      %v2397 = vpop.permute.xlu0 %2396
      %v2398 = vsel %vm2236, %v2375, %v2377
      %v2399 = vsel %vm2236, %v2377, %v2379
      %v2400 = vsel %vm2236, %v2381, %v2383
      %v2401 = vsel %vm2236, %v2383, %v2385
      %v2402 = vsel %vm2236, %v2387, %v2389
      %v2403 = vsel %vm2236, %v2389, %v2391
      %v2404 = vsel %vm2236, %v2393, %v2395
      %v2405 = vsel %vm2236, %v2395, %v2397
      %2414 = vst [vmem:[#allocation3 + $0x140] sm:$0xff] %v2398
      %2415 = vst [vmem:[#allocation3 + $0x148] sm:$0xff] %v2399
      %2416 = vst [vmem:[#allocation3 + $0x150] sm:$0xff] %v2400
      %2417 = vst [vmem:[#allocation3 + $0x158] sm:$0xff] %v2401
      %2418 = vst [vmem:[#allocation3 + $0x160] sm:$0xff] %v2402
      %2419 = vst [vmem:[#allocation3 + $0x168] sm:$0xff] %v2403
      %2420 = vst [vmem:[#allocation3 + $0x170] sm:$0xff] %v2404
      %2421 = vst [vmem:[#allocation3 + $0x178] sm:$0xff] %v2405
      %v2422 = vld [vmem:[#allocation2 + $0x8] sm:$0xff]
      %v2423 = vld [vmem:[#allocation2 + $0x10] sm:$0xff]
      %v2424 = vld [vmem:[#allocation2 + $0x18] sm:$0xff]
      %v2425 = vld [vmem:[#allocation2 + $0x28] sm:$0xff]
      %v2426 = vld [vmem:[#allocation2 + $0x30] sm:$0xff]
      %v2427 = vld [vmem:[#allocation2 + $0x38] sm:$0xff]
      %v2428 = vld [vmem:[#allocation2 + $0x48] sm:$0xff]
      %v2429 = vld [vmem:[#allocation2 + $0x50] sm:$0xff]
      %v2430 = vld [vmem:[#allocation2 + $0x58] sm:$0xff]
      %v2431 = vld [vmem:[#allocation2 + $0x68] sm:$0xff]
      %v2432 = vld [vmem:[#allocation2 + $0x70] sm:$0xff]
      %v2433 = vld [vmem:[#allocation2 + $0x78] sm:$0xff]
      %2434 = vrot.lane.b32.xlu0 %v1952, 15
      %v2435 = vpop.permute.xlu0 %2434
      %2436 = vrot.lane.b32.xlu0 %v1956, 15
      %v2437 = vpop.permute.xlu0 %2436
      %v2438 = vsel %vm2195, %v2435, %v2437
      %vm2439 = vcmp.ne.s16.totalorder %v2435, 0
      %vm2440 = vcmp.ne.s16.totalorder %v2438, 0
      %vm2441 = vcmp.ne.s16.totalorder %v2437, 0
      %v2442 = vsel %vm2439, %v2422, 0
      %v2443 = vsel %vm2440, %v2423, 0
      %v2444 = vsel %vm2441, %v2424, 0
      %v2445 = vsel %vm2439, %v2425, 0
      %v2446 = vsel %vm2440, %v2426, 0
      %v2447 = vsel %vm2441, %v2427, 0
      %v2448 = vsel %vm2439, %v2428, 0
      %v2449 = vsel %vm2440, %v2429, 0
      %v2450 = vsel %vm2441, %v2430, 0
      %v2451 = vsel %vm2439, %v2431, 0
      %v2452 = vsel %vm2440, %v2432, 0
      %v2453 = vsel %vm2441, %v2433, 0
      %2466 = vrot.lane.b32.xlu0 %v2442, 113
      %v2467 = vpop.permute.xlu0 %2466
      %2468 = vrot.lane.b32.xlu0 %v2443, 113
      %v2469 = vpop.permute.xlu0 %2468
      %2470 = vrot.lane.b32.xlu0 %v2444, 113
      %v2471 = vpop.permute.xlu0 %2470
      %2472 = vrot.lane.b32.xlu0 %v2445, 113
      %v2473 = vpop.permute.xlu0 %2472
      %2474 = vrot.lane.b32.xlu0 %v2446, 113
      %v2475 = vpop.permute.xlu0 %2474
      %2476 = vrot.lane.b32.xlu0 %v2447, 113
      %v2477 = vpop.permute.xlu0 %2476
      %2478 = vrot.lane.b32.xlu0 %v2448, 113
      %v2479 = vpop.permute.xlu0 %2478
      %2480 = vrot.lane.b32.xlu0 %v2449, 113
      %v2481 = vpop.permute.xlu0 %2480
      %2482 = vrot.lane.b32.xlu0 %v2450, 113
      %v2483 = vpop.permute.xlu0 %2482
      %2484 = vrot.lane.b32.xlu0 %v2451, 113
      %v2485 = vpop.permute.xlu0 %2484
      %2486 = vrot.lane.b32.xlu0 %v2452, 113
      %v2487 = vpop.permute.xlu0 %2486
      %2488 = vrot.lane.b32.xlu0 %v2453, 113
      %v2489 = vpop.permute.xlu0 %2488
      %v2490 = vsel %vm2142, %v2467, %v2469
      %v2491 = vsel %vm2142, %v2469, %v2471
      %v2492 = vsel %vm2142, %v2473, %v2475
      %v2493 = vsel %vm2142, %v2475, %v2477
      %v2494 = vsel %vm2142, %v2479, %v2481
      %v2495 = vsel %vm2142, %v2481, %v2483
      %v2496 = vsel %vm2142, %v2485, %v2487
      %v2497 = vsel %vm2142, %v2487, %v2489
      %2506 = vst [vmem:[#allocation3 + $0x180] sm:$0xff] %v2490
      %2507 = vst [vmem:[#allocation3 + $0x188] sm:$0xff] %v2491
      %2508 = vst [vmem:[#allocation3 + $0x190] sm:$0xff] %v2492
      %2509 = vst [vmem:[#allocation3 + $0x198] sm:$0xff] %v2493
      %2510 = vst [vmem:[#allocation3 + $0x1a0] sm:$0xff] %v2494
      %2511 = vst [vmem:[#allocation3 + $0x1a8] sm:$0xff] %v2495
      %2512 = vst [vmem:[#allocation3 + $0x1b0] sm:$0xff] %v2496
      %2513 = vst [vmem:[#allocation3 + $0x1b8] sm:$0xff] %v2497
      %v2514 = vld [vmem:[#allocation2 + $0x8] sm:$0xff]
      %v2515 = vld [vmem:[#allocation2 + $0x10] sm:$0xff]
      %v2516 = vld [vmem:[#allocation2 + $0x18] sm:$0xff]
      %v2517 = vld [vmem:[#allocation2 + $0x28] sm:$0xff]
      %v2518 = vld [vmem:[#allocation2 + $0x30] sm:$0xff]
      %v2519 = vld [vmem:[#allocation2 + $0x38] sm:$0xff]
      %v2520 = vld [vmem:[#allocation2 + $0x48] sm:$0xff]
      %v2521 = vld [vmem:[#allocation2 + $0x50] sm:$0xff]
      %v2522 = vld [vmem:[#allocation2 + $0x58] sm:$0xff]
      %v2523 = vld [vmem:[#allocation2 + $0x68] sm:$0xff]
      %v2524 = vld [vmem:[#allocation2 + $0x70] sm:$0xff]
      %v2525 = vld [vmem:[#allocation2 + $0x78] sm:$0xff]
      %2538 = vrot.lane.b32.xlu0 %v2514, 112
      %v2539 = vpop.permute.xlu0 %2538
      %2540 = vrot.lane.b32.xlu0 %v2515, 112
      %v2541 = vpop.permute.xlu0 %2540
      %2542 = vrot.lane.b32.xlu0 %v2516, 112
      %v2543 = vpop.permute.xlu0 %2542
      %2544 = vrot.lane.b32.xlu0 %v2517, 112
      %v2545 = vpop.permute.xlu0 %2544
      %2546 = vrot.lane.b32.xlu0 %v2518, 112
      %v2547 = vpop.permute.xlu0 %2546
      %2548 = vrot.lane.b32.xlu0 %v2519, 112
      %v2549 = vpop.permute.xlu0 %2548
      %2550 = vrot.lane.b32.xlu0 %v2520, 112
      %v2551 = vpop.permute.xlu0 %2550
      %2552 = vrot.lane.b32.xlu0 %v2521, 112
      %v2553 = vpop.permute.xlu0 %2552
      %2554 = vrot.lane.b32.xlu0 %v2522, 112
      %v2555 = vpop.permute.xlu0 %2554
      %2556 = vrot.lane.b32.xlu0 %v2523, 112
      %v2557 = vpop.permute.xlu0 %2556
      %2558 = vrot.lane.b32.xlu0 %v2524, 112
      %v2559 = vpop.permute.xlu0 %2558
      %2560 = vrot.lane.b32.xlu0 %v2525, 112
      %v2561 = vpop.permute.xlu0 %2560
      %vm2562 = vcmask 916480
      %v2563 = vsel %vm2562, %v2539, %v2541
      %v2564 = vsel %vm2562, %v2541, %v2543
      %v2565 = vsel %vm2562, %v2545, %v2547
      %v2566 = vsel %vm2562, %v2547, %v2549
      %v2567 = vsel %vm2562, %v2551, %v2553
      %v2568 = vsel %vm2562, %v2553, %v2555
      %v2569 = vsel %vm2562, %v2557, %v2559
      %v2570 = vsel %vm2562, %v2559, %v2561
      %2579 = vst [vmem:[#allocation3 + $0x1c0] sm:$0xff] %v2563
      %2580 = vst [vmem:[#allocation3 + $0x1c8] sm:$0xff] %v2564
      %2581 = vst [vmem:[#allocation3 + $0x1d0] sm:$0xff] %v2565
      %2582 = vst [vmem:[#allocation3 + $0x1d8] sm:$0xff] %v2566
      %2583 = vst [vmem:[#allocation3 + $0x1e0] sm:$0xff] %v2567
      %2584 = vst [vmem:[#allocation3 + $0x1e8] sm:$0xff] %v2568
      %2585 = vst [vmem:[#allocation3 + $0x1f0] sm:$0xff] %v2569
      %2586 = vst [vmem:[#allocation3 + $0x1f8] sm:$0xff] %v2570
      %v2587 = vld [vmem:[#allocation2 + $0x8] sm:$0xff]
      %v2588 = vld [vmem:[#allocation2 + $0x10] sm:$0xff]
      %v2589 = vld [vmem:[#allocation2 + $0x18] sm:$0xff]
      %v2590 = vld [vmem:[#allocation2 + $0x28] sm:$0xff]
      %v2591 = vld [vmem:[#allocation2 + $0x30] sm:$0xff]
      %v2592 = vld [vmem:[#allocation2 + $0x38] sm:$0xff]
      %v2593 = vld [vmem:[#allocation2 + $0x48] sm:$0xff]
      %v2594 = vld [vmem:[#allocation2 + $0x50] sm:$0xff]
      %v2595 = vld [vmem:[#allocation2 + $0x58] sm:$0xff]
      %v2596 = vld [vmem:[#allocation2 + $0x68] sm:$0xff]
      %v2597 = vld [vmem:[#allocation2 + $0x70] sm:$0xff]
      %v2598 = vld [vmem:[#allocation2 + $0x78] sm:$0xff]
      %2599 = vrot.lane.b32.xlu0 %v2133, 17
      %v2600 = vpop.permute.xlu0 %2599
      %2601 = vrot.lane.b32.xlu0 %v2137, 17
      %v2602 = vpop.permute.xlu0 %2601
      %v2603 = vsel %vm2014, %v2600, %v2602
      %vm2604 = vcmp.ne.s16.totalorder %v2600, 0
      %vm2605 = vcmp.ne.s16.totalorder %v2603, 0
      %vm2606 = vcmp.ne.s16.totalorder %v2602, 0
      %v2607 = vsel %vm2604, %v2587, 0
      %v2608 = vsel %vm2605, %v2588, 0
      %v2609 = vsel %vm2606, %v2589, 0
      %v2610 = vsel %vm2604, %v2590, 0
      %v2611 = vsel %vm2605, %v2591, 0
      %v2612 = vsel %vm2606, %v2592, 0
      %v2613 = vsel %vm2604, %v2593, 0
      %v2614 = vsel %vm2605, %v2594, 0
      %v2615 = vsel %vm2606, %v2595, 0
      %v2616 = vsel %vm2604, %v2596, 0
      %v2617 = vsel %vm2605, %v2597, 0
      %v2618 = vsel %vm2606, %v2598, 0
      %2631 = vrot.lane.b32.xlu0 %v2607, 111
      %v2632 = vpop.permute.xlu0 %2631
      %2633 = vrot.lane.b32.xlu0 %v2608, 111
      %v2634 = vpop.permute.xlu0 %2633
      %2635 = vrot.lane.b32.xlu0 %v2609, 111
      %v2636 = vpop.permute.xlu0 %2635
      %2637 = vrot.lane.b32.xlu0 %v2610, 111
      %v2638 = vpop.permute.xlu0 %2637
      %2639 = vrot.lane.b32.xlu0 %v2611, 111
      %v2640 = vpop.permute.xlu0 %2639
      %2641 = vrot.lane.b32.xlu0 %v2612, 111
      %v2642 = vpop.permute.xlu0 %2641
      %2643 = vrot.lane.b32.xlu0 %v2613, 111
      %v2644 = vpop.permute.xlu0 %2643
      %2645 = vrot.lane.b32.xlu0 %v2614, 111
      %v2646 = vpop.permute.xlu0 %2645
      %2647 = vrot.lane.b32.xlu0 %v2615, 111
      %v2648 = vpop.permute.xlu0 %2647
      %2649 = vrot.lane.b32.xlu0 %v2616, 111
      %v2650 = vpop.permute.xlu0 %2649
      %2651 = vrot.lane.b32.xlu0 %v2617, 111
      %v2652 = vpop.permute.xlu0 %2651
      %2653 = vrot.lane.b32.xlu0 %v2618, 111
      %v2654 = vpop.permute.xlu0 %2653
      %v2655 = vsel %vm1961, %v2632, %v2634
      %v2656 = vsel %vm1961, %v2634, %v2636
      %v2657 = vsel %vm1961, %v2638, %v2640
      %v2658 = vsel %vm1961, %v2640, %v2642
      %v2659 = vsel %vm1961, %v2644, %v2646
      %v2660 = vsel %vm1961, %v2646, %v2648
      %v2661 = vsel %vm1961, %v2650, %v2652
      %v2662 = vsel %vm1961, %v2652, %v2654
      %2671 = vst [vmem:[#allocation3 + $0x200] sm:$0xff] %v2655
      %2672 = vst [vmem:[#allocation3 + $0x208] sm:$0xff] %v2656
      %2673 = vst [vmem:[#allocation3 + $0x210] sm:$0xff] %v2657
      %2674 = vst [vmem:[#allocation3 + $0x218] sm:$0xff] %v2658
      %2675 = vst [vmem:[#allocation3 + $0x220] sm:$0xff] %v2659
      %2676 = vst [vmem:[#allocation3 + $0x228] sm:$0xff] %v2660
      %2677 = vst [vmem:[#allocation3 + $0x230] sm:$0xff] %v2661
      %2678 = vst [vmem:[#allocation3 + $0x238] sm:$0xff] %v2662
      %v2679 = vld [vmem:[#allocation3] sm:$0xff]
      %v2680 = vld [vmem:[#allocation3 + $0x8] sm:$0xff]
      %v2681 = vld [vmem:[#allocation3 + $0x10] sm:$0xff]
      %v2682 = vld [vmem:[#allocation3 + $0x18] sm:$0xff]
      %v2683 = vld [vmem:[#allocation3 + $0x20] sm:$0xff]
      %v2684 = vld [vmem:[#allocation3 + $0x28] sm:$0xff]
      %v2685 = vld [vmem:[#allocation3 + $0x30] sm:$0xff]
      %v2686 = vld [vmem:[#allocation3 + $0x38] sm:$0xff]
      %v2687 = vld [vmem:[#allocation3 + $0x40] sm:$0xff]
      %v2688 = vld [vmem:[#allocation3 + $0x48] sm:$0xff]
      %v2689 = vld [vmem:[#allocation3 + $0x50] sm:$0xff]
      %v2690 = vld [vmem:[#allocation3 + $0x58] sm:$0xff]
      %v2691 = vld [vmem:[#allocation3 + $0x60] sm:$0xff]
      %v2692 = vld [vmem:[#allocation3 + $0x68] sm:$0xff]
      %v2693 = vld [vmem:[#allocation3 + $0x70] sm:$0xff]
      %v2694 = vld [vmem:[#allocation3 + $0x78] sm:$0xff]
      %v2695 = vld [vmem:[#allocation3 + $0x80] sm:$0xff]
      %v2696 = vld [vmem:[#allocation3 + $0x88] sm:$0xff]
      %v2697 = vld [vmem:[#allocation3 + $0x90] sm:$0xff]
      %v2698 = vld [vmem:[#allocation3 + $0x98] sm:$0xff]
      %v2699 = vld [vmem:[#allocation3 + $0xa0] sm:$0xff]
      %v2700 = vld [vmem:[#allocation3 + $0xa8] sm:$0xff]
      %v2701 = vld [vmem:[#allocation3 + $0xb0] sm:$0xff]
      %v2702 = vld [vmem:[#allocation3 + $0xb8] sm:$0xff]
      %v2703 = vld [vmem:[#allocation3 + $0xc0] sm:$0xff]
      %v2704 = vld [vmem:[#allocation3 + $0xc8] sm:$0xff]
      %v2705 = vld [vmem:[#allocation3 + $0xd0] sm:$0xff]
      %v2706 = vld [vmem:[#allocation3 + $0xd8] sm:$0xff]
      %v2707 = vld [vmem:[#allocation3 + $0xe0] sm:$0xff]
      %v2708 = vld [vmem:[#allocation3 + $0xe8] sm:$0xff]
      %v2709 = vld [vmem:[#allocation3 + $0xf0] sm:$0xff]
      %v2710 = vld [vmem:[#allocation3 + $0xf8] sm:$0xff]
      %v2711 = vld [vmem:[#allocation3 + $0x100] sm:$0xff]
      %v2712 = vld [vmem:[#allocation3 + $0x108] sm:$0xff]
      %v2713 = vld [vmem:[#allocation3 + $0x110] sm:$0xff]
      %v2714 = vld [vmem:[#allocation3 + $0x118] sm:$0xff]
      %v2715 = vld [vmem:[#allocation3 + $0x120] sm:$0xff]
      %v2716 = vld [vmem:[#allocation3 + $0x128] sm:$0xff]
      %v2717 = vld [vmem:[#allocation3 + $0x130] sm:$0xff]
      %v2718 = vld [vmem:[#allocation3 + $0x138] sm:$0xff]
      %v2719 = vld [vmem:[#allocation3 + $0x140] sm:$0xff]
      %v2720 = vld [vmem:[#allocation3 + $0x148] sm:$0xff]
      %v2721 = vld [vmem:[#allocation3 + $0x150] sm:$0xff]
      %v2722 = vld [vmem:[#allocation3 + $0x158] sm:$0xff]
      %v2723 = vld [vmem:[#allocation3 + $0x160] sm:$0xff]
      %v2724 = vld [vmem:[#allocation3 + $0x168] sm:$0xff]
      %v2725 = vld [vmem:[#allocation3 + $0x170] sm:$0xff]
      %v2726 = vld [vmem:[#allocation3 + $0x178] sm:$0xff]
      %v2727 = vld [vmem:[#allocation3 + $0x180] sm:$0xff]
      %v2728 = vld [vmem:[#allocation3 + $0x188] sm:$0xff]
      %v2729 = vld [vmem:[#allocation3 + $0x190] sm:$0xff]
      %v2730 = vld [vmem:[#allocation3 + $0x198] sm:$0xff]
      %v2731 = vld [vmem:[#allocation3 + $0x1a0] sm:$0xff]
      %v2732 = vld [vmem:[#allocation3 + $0x1a8] sm:$0xff]
      %v2733 = vld [vmem:[#allocation3 + $0x1b0] sm:$0xff]
      %v2734 = vld [vmem:[#allocation3 + $0x1b8] sm:$0xff]
      %v2735 = vld [vmem:[#allocation3 + $0x1c0] sm:$0xff]
      %v2736 = vld [vmem:[#allocation3 + $0x1c8] sm:$0xff]
      %v2737 = vld [vmem:[#allocation3 + $0x1d0] sm:$0xff]
      %v2738 = vld [vmem:[#allocation3 + $0x1d8] sm:$0xff]
      %v2739 = vld [vmem:[#allocation3 + $0x1e0] sm:$0xff]
      %v2740 = vld [vmem:[#allocation3 + $0x1e8] sm:$0xff]
      %v2741 = vld [vmem:[#allocation3 + $0x1f0] sm:$0xff]
      %v2742 = vld [vmem:[#allocation3 + $0x1f8] sm:$0xff]
      %v2743 = vld [vmem:[#allocation3 + $0x200] sm:$0xff]
      %v2744 = vld [vmem:[#allocation3 + $0x208] sm:$0xff]
      %v2745 = vld [vmem:[#allocation3 + $0x210] sm:$0xff]
      %v2746 = vld [vmem:[#allocation3 + $0x218] sm:$0xff]
      %v2747 = vld [vmem:[#allocation3 + $0x220] sm:$0xff]
      %v2748 = vld [vmem:[#allocation3 + $0x228] sm:$0xff]
      %v2749 = vld [vmem:[#allocation3 + $0x230] sm:$0xff]
      %v2750 = vld [vmem:[#allocation3 + $0x238] sm:$0xff]
      %v2751 = vld [vmem:[%s4] sm:$0xff]
      %v2752 = vld [vmem:[%s4 + $0x8] sm:$0xff]
      %v2753 = vld [vmem:[%s4 + $0x10] sm:$0xf]
      %v2754 = vld [vmem:[%s4 + $0x14] sm:$0xff]
      %v2755 = vld [vmem:[%s4 + $0x1c] sm:$0xff]
      %v2756 = vld [vmem:[%s4 + $0x24] sm:$0xf]
      %v2757 = vld [vmem:[%s4 + $0x28] sm:$0xff]
      %v2758 = vld [vmem:[%s4 + $0x30] sm:$0xff]
      %v2759 = vld [vmem:[%s4 + $0x38] sm:$0xf]
      %v2760 = vld [vmem:[%s4 + $0x3c] sm:$0xff]
      %v2761 = vld [vmem:[%s4 + $0x44] sm:$0xff]
      %v2762 = vld [vmem:[%s4 + $0x4c] sm:$0xf]
      %v2763 = vld [vmem:[%s563] sm:$0xff]
      %v2764 = vld [vmem:[%s563 + $0x8] sm:$0xff]
      %v2765 = vld [vmem:[%s563 + $0x10] sm:$0xff]
      %v2766 = vld [vmem:[%s563 + $0x18] sm:$0xff]
      %2768 = vset.pattern.permute.xlu0 0
      %2769 = vperm.xlu0 %2768, %v2763
      %v2770 = vpop.permute.xlu0 %2769
      %2773 = vset.pattern.permute.xlu0 0
      %2774 = vperm.xlu0 %2773, %v2764
      %v2775 = vpop.permute.xlu0 %2774
      %2778 = vset.pattern.permute.xlu0 0
      %2779 = vperm.xlu0 %2778, %v2765
      %v2780 = vpop.permute.xlu0 %2779
      %2783 = vset.pattern.permute.xlu0 0
      %2784 = vperm.xlu0 %2783, %v2766
      %v2785 = vpop.permute.xlu0 %2784
      %v2799 = vunpack.c.l.b16 %v2751
      %v2800 = vunpack.c.h.b16 %v2751
      %v2801 = vunpack.c.l.b16 %v2752
      %v2802 = vunpack.c.h.b16 %v2752
      %v2803 = vunpack.c.l.b16 %v2753
      %v2804 = vunpack.c.l.b16 %v2754
      %v2805 = vunpack.c.h.b16 %v2754
      %v2806 = vunpack.c.l.b16 %v2755
      %v2807 = vunpack.c.h.b16 %v2755
      %v2808 = vunpack.c.l.b16 %v2756
      %v2809 = vunpack.c.l.b16 %v2757
      %v2810 = vunpack.c.h.b16 %v2757
      %v2811 = vunpack.c.l.b16 %v2758
      %v2812 = vunpack.c.h.b16 %v2758
      %v2813 = vunpack.c.l.b16 %v2759
      %v2814 = vunpack.c.l.b16 %v2760
      %v2815 = vunpack.c.h.b16 %v2760
      %v2816 = vunpack.c.l.b16 %v2761
      %v2817 = vunpack.c.h.b16 %v2761
      %v2818 = vunpack.c.l.b16 %v2762
      %v2819 = vpack.c.b16 %v2804, %v2799
      %v2820 = vpack.c.b16 %v2805, %v2800
      %v2821 = vpack.c.b16 %v2806, %v2801
      %v2822 = vpack.c.b16 %v2807, %v2802
      %v2823 = vpack.c.b16 %v2808, %v2803
      %v2824 = vpack.c.b16 %v2814, %v2809
      %v2825 = vpack.c.b16 %v2815, %v2810
      %v2826 = vpack.c.b16 %v2816, %v2811
      %v2827 = vpack.c.b16 %v2817, %v2812
      %v2828 = vpack.c.b16 %v2818, %v2813
      %vm2837 = vcmask 523264
      %v2839 = vsel %vm2837, %v2823, 0
      %v2842 = vsel %vm2837, %v2828, 0
      %2844 = vmatprep.subr.bf16.mxu0 %v2680
      %2845 = vmatpush1.bf16.msra.mxu0 %v2679
      %2846 = vmatprep.subr.bf16.mxu0 %v2682
      %2847 = vmatpush1.bf16.msra.mxu0 %v2681
      %2848 = vmatprep.subr.bf16.mxu0 %v2684
      %2849 = vmatpush1.bf16.msra.mxu0 %v2683
      %2850 = vmatprep.subr.bf16.mxu0 %v2686
      %2851 = vmatpush1.bf16.msra.mxu0 %v2685
      %2852 = vmatprep.subr.bf16.mxu0 %v2688
      %2853 = vmatpush1.bf16.msra.mxu0 %v2687
      %2854 = vmatprep.subr.bf16.mxu0 %v2690
      %2855 = vmatpush1.bf16.msra.mxu0 %v2689
      %2856 = vmatprep.subr.bf16.mxu0 %v2692
      %2857 = vmatpush1.bf16.msra.mxu0 %v2691
      %2858 = vmatprep.subr.bf16.mxu0 %v2694
      %2859 = vmatpush1.bf16.msra.mxu0 %v2693
      %2860 = vmatprep.subr.bf16.mxu0 %v2696
      %2861 = vmatpush1.bf16.msra.mxu0 %v2695
      %2862 = vmatprep.subr.bf16.mxu0 %v2698
      %2863 = vmatpush1.bf16.msra.mxu0 %v2697
      %2864 = vmatprep.subr.bf16.mxu0 %v2700
      %2865 = vmatpush1.bf16.msra.mxu0 %v2699
      %2866 = vmatprep.subr.bf16.mxu0 %v2702
      %2867 = vmatpush1.bf16.msra.mxu0 %v2701
      %2868 = vmatprep.subr.bf16.mxu0 %v2704
      %2869 = vmatpush1.bf16.msra.mxu0 %v2703
      %2870 = vmatprep.subr.bf16.mxu0 %v2706
      %2871 = vmatpush1.bf16.msra.mxu0 %v2705
      %2872 = vmatprep.subr.bf16.mxu0 %v2708
      %2873 = vmatpush1.bf16.msra.mxu0 %v2707
      %2874 = vmatprep.subr.bf16.mxu0 %v2710
      %2875 = vmatpush1.bf16.msra.mxu0 %v2709
      %2876 = vmatprep.mubr.bf16.mxu0 %v2820
      %2877 = vmatmul.mubr.bf16.gmra.mrb[0].mxu0 %v2819
      %v2878 = vpop.f32.mrb[0].mxu0
      %v2879 = vadd.f32 %v2770, %v2878
      %v2880 = vpop.f32.mrb[0].mxu0
      %v2881 = vadd.f32 %v2770, %v2880
      %v2882 = vpop.f32.mrb[0].mxu0
      %v2883 = vadd.f32 %v2775, %v2882
      %v2884 = vpop.f32.mrb[0].mxu0
      %v2885 = vadd.f32 %v2775, %v2884
      %2886 = vmatprep.mubr.bf16.mxu0 %v2825
      %2887 = vmatmul.mubr.bf16.gmra.mrb[0].mxu0 %v2824
      %v2888 = vpop.f32.mrb[0].mxu0
      %v2889 = vadd.f32 %v2780, %v2888
      %v2890 = vpop.f32.mrb[0].mxu0
      %v2891 = vadd.f32 %v2780, %v2890
      %v2892 = vpop.f32.mrb[0].mxu0
      %v2893 = vadd.f32 %v2785, %v2892
      %v2894 = vpop.f32.mrb[0].mxu0
      %v2895 = vadd.f32 %v2785, %v2894
      %2896 = vdwg.mxu0
      %2897 = vmatprep.subr.bf16.mxu0 %v2712
      %2898 = vmatpush1.bf16.msra.mxu0 %v2711
      %2899 = vmatprep.subr.bf16.mxu0 %v2714
      %2900 = vmatpush1.bf16.msra.mxu0 %v2713
      %2901 = vmatprep.subr.bf16.mxu0 %v2716
      %2902 = vmatpush1.bf16.msra.mxu0 %v2715
      %2903 = vmatprep.subr.bf16.mxu0 %v2718
      %2904 = vmatpush1.bf16.msra.mxu0 %v2717
      %2905 = vmatprep.subr.bf16.mxu0 %v2720
      %2906 = vmatpush1.bf16.msra.mxu0 %v2719
      %2907 = vmatprep.subr.bf16.mxu0 %v2722
      %2908 = vmatpush1.bf16.msra.mxu0 %v2721
      %2909 = vmatprep.subr.bf16.mxu0 %v2724
      %2910 = vmatpush1.bf16.msra.mxu0 %v2723
      %2911 = vmatprep.subr.bf16.mxu0 %v2726
      %2912 = vmatpush1.bf16.msra.mxu0 %v2725
      %2913 = vmatprep.subr.bf16.mxu0 %v2728
      %2914 = vmatpush1.bf16.msra.mxu0 %v2727
      %2915 = vmatprep.subr.bf16.mxu0 %v2730
      %2916 = vmatpush1.bf16.msra.mxu0 %v2729
      %2917 = vmatprep.subr.bf16.mxu0 %v2732
      %2918 = vmatpush1.bf16.msra.mxu0 %v2731
      %2919 = vmatprep.subr.bf16.mxu0 %v2734
      %2920 = vmatpush1.bf16.msra.mxu0 %v2733
      %2921 = vmatprep.subr.bf16.mxu0 %v2736
      %2922 = vmatpush1.bf16.msra.mxu0 %v2735
      %2923 = vmatprep.subr.bf16.mxu0 %v2738
      %2924 = vmatpush1.bf16.msra.mxu0 %v2737
      %2925 = vmatprep.subr.bf16.mxu0 %v2740
      %2926 = vmatpush1.bf16.msra.mxu0 %v2739
      %2927 = vmatprep.subr.bf16.mxu0 %v2742
      %2928 = vmatpush1.bf16.msra.mxu0 %v2741
      %2929 = vmatprep.mubr.bf16.mxu0 %v2822
      %2930 = vmatmul.mubr.bf16.gmra.mrb[0].mxu0 %v2821
      %v2931 = vpop.f32.mrb[0].mxu0
      %v2932 = vadd.f32 %v2879, %v2931
      %v2933 = vpop.f32.mrb[0].mxu0
      %v2934 = vadd.f32 %v2881, %v2933
      %v2935 = vpop.f32.mrb[0].mxu0
      %v2936 = vadd.f32 %v2883, %v2935
      %v2937 = vpop.f32.mrb[0].mxu0
      %v2938 = vadd.f32 %v2885, %v2937
      %2939 = vmatprep.mubr.bf16.mxu0 %v2827
      %2940 = vmatmul.mubr.bf16.gmra.mrb[0].mxu0 %v2826
      %v2941 = vpop.f32.mrb[0].mxu0
      %v2942 = vadd.f32 %v2889, %v2941
      %v2943 = vpop.f32.mrb[0].mxu0
      %v2944 = vadd.f32 %v2891, %v2943
      %v2945 = vpop.f32.mrb[0].mxu0
      %v2946 = vadd.f32 %v2893, %v2945
      %v2947 = vpop.f32.mrb[0].mxu0
      %v2948 = vadd.f32 %v2895, %v2947
      %2949 = vdwg.mxu0
      %2950 = vmatprep.subr.bf16.mxu0 %v2744
      %2951 = vmatpush1.bf16.msra.mxu0 %v2743
      %2952 = vmatprep.subr.bf16.mxu0 %v2746
      %2953 = vmatpush1.bf16.msra.mxu0 %v2745
      %2954 = vmatprep.subr.bf16.mxu0 %v2748
      %2955 = vmatpush1.bf16.msra.mxu0 %v2747
      %2956 = vmatprep.subr.bf16.mxu0 %v2750
      %2957 = vmatpush1.bf16.msra.mxu0 %v2749
      %2958 = vmatprep.subr.bf16.mxu0 0
      %2959 = vmatpush1.bf16.msra.mxu0 0
      %2960 = vmatprep.subr.bf16.mxu0 0
      %2961 = vmatpush1.bf16.msra.mxu0 0
      %2962 = vmatprep.subr.bf16.mxu0 0
      %2963 = vmatpush1.bf16.msra.mxu0 0
      %2964 = vmatprep.subr.bf16.mxu0 0
      %2965 = vmatpush1.bf16.msra.mxu0 0
      %2966 = vmatprep.subr.bf16.mxu0 0
      %2967 = vmatpush1.bf16.msra.mxu0 0
      %2968 = vmatprep.subr.bf16.mxu0 0
      %2969 = vmatpush1.bf16.msra.mxu0 0
      %2970 = vmatprep.subr.bf16.mxu0 0
      %2971 = vmatpush1.bf16.msra.mxu0 0
      %2972 = vmatprep.subr.bf16.mxu0 0
      %2973 = vmatpush1.bf16.msra.mxu0 0
      %2974 = vmatprep.subr.bf16.mxu0 0
      %2975 = vmatpush1.bf16.msra.mxu0 0
      %2976 = vmatprep.subr.bf16.mxu0 0
      %2977 = vmatpush1.bf16.msra.mxu0 0
      %2978 = vmatprep.subr.bf16.mxu0 0
      %2979 = vmatpush1.bf16.msra.mxu0 0
      %2980 = vmatprep.subr.bf16.mxu0 0
      %2981 = vmatpush1.bf16.msra.mxu0 0
      %2982 = vmatprep.mubr.bf16.mxu0 0
      %2983 = vmatmul.mubr.bf16.gmra.mrb[0].mxu0 %v2839
      %v2984 = vpop.f32.mrb[0].mxu0
      %v2985 = vadd.f32 %v2932, %v2984
      %v2986 = vpop.f32.mrb[0].mxu0
      %v2987 = vadd.f32 %v2934, %v2986
      %v2988 = vpop.f32.mrb[0].mxu0
      %v2989 = vadd.f32 %v2936, %v2988
      %v2990 = vpop.f32.mrb[0].mxu0
      %v2991 = vadd.f32 %v2938, %v2990
      %2992 = vmatprep.mubr.bf16.mxu0 0
      %2993 = vmatmul.mubr.bf16.gmra.mrb[0].mxu0 %v2842
      %v2994 = vpop.f32.mrb[0].mxu0
      %v2995 = vadd.f32 %v2942, %v2994
      %v2996 = vpop.f32.mrb[0].mxu0
      %v2997 = vadd.f32 %v2944, %v2996
      %v2998 = vpop.f32.mrb[0].mxu0
      %v2999 = vadd.f32 %v2946, %v2998
      %v3000 = vpop.f32.mrb[0].mxu0
      %v3001 = vadd.f32 %v2948, %v3000
      %3002 = vdwg.mxu0
      %v3003 = vld [vmem:[%s5] sm:$0xff]
      %v3004 = vld [vmem:[%s5 + $0x8] sm:$0xff]
      %v3005 = vld [vmem:[%s5 + $0x10] sm:$0xff]
      %v3006 = vld [vmem:[%s5 + $0x18] sm:$0xff]
      %v3007 = vld [vmem:[%s6] sm:$0xff]
      %v3008 = vld [vmem:[%s6 + $0x8] sm:$0xff]
      %v3009 = vld [vmem:[%s6 + $0x10] sm:$0xff]
      %v3010 = vld [vmem:[%s6 + $0x18] sm:$0xff]
      %v3011 = vadd.f32 %v2985, %v2987
      %3012 = vadd.xlane.f32.xlu0 %v3011
      %v3013 = vpop.xlane.xlu0 %3012
      %v3014 = vadd.f32 %v2989, %v2991
      %3015 = vadd.xlane.f32.xlu0 %v3014
      %v3016 = vpop.xlane.xlu0 %3015
      %v3017 = vadd.f32 %v2995, %v2997
      %3018 = vadd.xlane.f32.xlu0 %v3017
      %v3019 = vpop.xlane.xlu0 %3018
      %v3020 = vadd.f32 %v2999, %v3001
      %3021 = vadd.xlane.f32.xlu0 %v3020
      %v3022 = vpop.xlane.xlu0 %3021
      %v3023 = vmul.f32 %v2985, %v2985
      %v3024 = vmul.f32 %v2987, %v2987
      %v3025 = vmul.f32 %v2989, %v2989
      %v3026 = vmul.f32 %v2991, %v2991
      %v3027 = vmul.f32 %v2995, %v2995
      %v3028 = vmul.f32 %v2997, %v2997
      %v3029 = vmul.f32 %v2999, %v2999
      %v3030 = vmul.f32 %v3001, %v3001
      %v3031 = vadd.f32 %v3023, %v3024
      %3032 = vadd.xlane.f32.xlu0 %v3031
      %v3033 = vpop.xlane.xlu0 %3032
      %v3034 = vadd.f32 %v3025, %v3026
      %3035 = vadd.xlane.f32.xlu0 %v3034
      %v3036 = vpop.xlane.xlu0 %3035
      %v3037 = vadd.f32 %v3027, %v3028
      %3038 = vadd.xlane.f32.xlu0 %v3037
      %v3039 = vpop.xlane.xlu0 %3038
      %v3040 = vadd.f32 %v3029, %v3030
      %3041 = vadd.xlane.f32.xlu0 %v3040
      %v3042 = vpop.xlane.xlu0 %3041
      %vm3043 = vcmp.lt.s32.totalorder %v699, 4
      %vm3044 = vcmp.lt.s32.totalorder %v700, 4
      %vm3045 = vcmp.lt.s32.totalorder %v701, 4
      %vm3046 = vcmp.lt.s32.totalorder %v702, 4
      %vm3047 = vmand %vm707, %vm3043
      %vm3048 = vmand %vm708, %vm3044
      %vm3049 = vmand %vm709, %vm3045
      %vm3050 = vmand %vm710, %vm3046
      %v3051 = vsel %vm3047, 1, 0
      %v3052 = vsel %vm3048, 1, 0
      %v3053 = vsel %vm3049, 1, 0
      %v3054 = vsel %vm3050, 1, 0
      %v3055 = vcvt.s32.f32 %v3051
      %v3056 = vcvt.s32.f32 %v3052
      %v3057 = vcvt.s32.f32 %v3053
      %v3058 = vcvt.s32.f32 %v3054
      %v3059 = vmul.f32 %v3013, %v3055
      %v3060 = vmul.f32 %v3016, %v3056
      %v3061 = vmul.f32 %v3019, %v3057
      %v3062 = vmul.f32 %v3022, %v3058
      %v3063 = vadd.f32 %v3059, %v3060
      %v3064 = vadd.f32 %v3063, %v3061
      %v3065 = vadd.f32 %v3064, %v3062
      %v3066 = vrot.slane %v3065, 4
      %v3067 = vadd.f32 %v3065, %v3066
      %v3068 = vrot.slane %v3067, 2
      %v3069 = vadd.f32 %v3067, %v3068
      %v3070 = vrot.slane %v3069, 1
      %v3071 = vadd.f32 %v3069, %v3070
      %v3072 = vmul.f32 %v3055, %v3071
      %v3073 = vmul.f32 %v3056, %v3071
      %v3074 = vmul.f32 %v3057, %v3071
      %v3075 = vmul.f32 %v3058, %v3071
      %v3076 = vadd.f32 %v3072, 0.0
      %v3077 = vadd.f32 %v3073, 0.0
      %v3078 = vadd.f32 %v3074, 0.0
      %v3079 = vadd.f32 %v3075, 0.0
      %v3080 = vmul.f32 %v3033, %v3055
      %v3081 = vmul.f32 %v3036, %v3056
      %v3082 = vmul.f32 %v3039, %v3057
      %v3083 = vmul.f32 %v3042, %v3058
      %v3084 = vadd.f32 %v3080, %v3081
      %v3085 = vadd.f32 %v3084, %v3082
      %v3086 = vadd.f32 %v3085, %v3083
      %v3087 = vrot.slane %v3086, 4
      %v3088 = vadd.f32 %v3086, %v3087
      %v3089 = vrot.slane %v3088, 2
      %v3090 = vadd.f32 %v3088, %v3089
      %v3091 = vrot.slane %v3090, 1
      %v3092 = vadd.f32 %v3090, %v3091
      %v3093 = vmul.f32 %v3055, %v3092
      %v3094 = vmul.f32 %v3056, %v3092
      %v3095 = vmul.f32 %v3057, %v3092
      %v3096 = vmul.f32 %v3058, %v3092
      %v3097 = vadd.f32 %v3093, 0.0
      %v3098 = vadd.f32 %v3094, 0.0
      %v3099 = vadd.f32 %v3095, 0.0
      %v3100 = vadd.f32 %v3096, 0.0
      %vm3101 = vcmp.ge.s32.totalorder %v699, 4
      %vm3102 = vcmp.ge.s32.totalorder %v700, 4
      %vm3103 = vcmp.ge.s32.totalorder %v701, 4
      %vm3104 = vcmp.ge.s32.totalorder %v702, 4
      %vm3105 = vmand %vm3101, %vm715
      %vm3106 = vmand %vm3102, %vm716
      %vm3107 = vmand %vm3103, %vm717
      %vm3108 = vmand %vm3104, %vm718
      %v3109 = vsel %vm3105, 1, 0
      %v3110 = vsel %vm3106, 1, 0
      %v3111 = vsel %vm3107, 1, 0
      %v3112 = vsel %vm3108, 1, 0
      %v3113 = vcvt.s32.f32 %v3109
      %v3114 = vcvt.s32.f32 %v3110
      %v3115 = vcvt.s32.f32 %v3111
      %v3116 = vcvt.s32.f32 %v3112
      %v3117 = vmul.f32 %v3013, %v3113
      %v3118 = vmul.f32 %v3016, %v3114
      %v3119 = vmul.f32 %v3019, %v3115
      %v3120 = vmul.f32 %v3022, %v3116
      %v3121 = vadd.f32 %v3117, %v3118
      %v3122 = vadd.f32 %v3121, %v3119
      %v3123 = vadd.f32 %v3122, %v3120
      %v3124 = vrot.slane %v3123, 4
      %v3125 = vadd.f32 %v3123, %v3124
      %v3126 = vrot.slane %v3125, 2
      %v3127 = vadd.f32 %v3125, %v3126
      %v3128 = vrot.slane %v3127, 1
      %v3129 = vadd.f32 %v3127, %v3128
      %v3130 = vmul.f32 %v3113, %v3129
      %v3131 = vmul.f32 %v3114, %v3129
      %v3132 = vmul.f32 %v3115, %v3129
      %v3133 = vmul.f32 %v3116, %v3129
      %v3134 = vadd.f32 %v3076, %v3130
      %v3135 = vadd.f32 %v3077, %v3131
      %v3136 = vadd.f32 %v3078, %v3132
      %v3137 = vadd.f32 %v3079, %v3133
      %v3138 = vmul.f32 %v3033, %v3113
      %v3139 = vmul.f32 %v3036, %v3114
      %v3140 = vmul.f32 %v3039, %v3115
      %v3141 = vmul.f32 %v3042, %v3116
      %v3142 = vadd.f32 %v3138, %v3139
      %v3143 = vadd.f32 %v3142, %v3140
      %v3144 = vadd.f32 %v3143, %v3141
      %v3145 = vrot.slane %v3144, 4
      %v3146 = vadd.f32 %v3144, %v3145
      %v3147 = vrot.slane %v3146, 2
      %v3148 = vadd.f32 %v3146, %v3147
      %v3149 = vrot.slane %v3148, 1
      %v3150 = vadd.f32 %v3148, %v3149
      %v3151 = vmul.f32 %v3113, %v3150
      %v3152 = vmul.f32 %v3114, %v3150
      %v3153 = vmul.f32 %v3115, %v3150
      %v3154 = vmul.f32 %v3116, %v3150
      %v3155 = vadd.f32 %v3097, %v3151
      %v3156 = vadd.f32 %v3098, %v3152
      %v3157 = vadd.f32 %v3099, %v3153
      %v3158 = vadd.f32 %v3100, %v3154
      %vm3159 = vcmp.lt.s32.totalorder %v699, 12
      %vm3160 = vcmp.lt.s32.totalorder %v700, 12
      %vm3161 = vcmp.lt.s32.totalorder %v701, 12
      %vm3162 = vcmp.lt.s32.totalorder %v702, 12
      %vm3163 = vmand %vm821, %vm3159
      %vm3164 = vmand %vm822, %vm3160
      %vm3165 = vmand %vm823, %vm3161
      %vm3166 = vmand %vm824, %vm3162
      %v3167 = vsel %vm3163, 1, 0
      %v3168 = vsel %vm3164, 1, 0
      %v3169 = vsel %vm3165, 1, 0
      %v3170 = vsel %vm3166, 1, 0
      %v3171 = vcvt.s32.f32 %v3167
      %v3172 = vcvt.s32.f32 %v3168
      %v3173 = vcvt.s32.f32 %v3169
      %v3174 = vcvt.s32.f32 %v3170
      %v3175 = vmul.f32 %v3013, %v3171
      %v3176 = vmul.f32 %v3016, %v3172
      %v3177 = vmul.f32 %v3019, %v3173
      %v3178 = vmul.f32 %v3022, %v3174
      %v3179 = vadd.f32 %v3175, %v3176
      %v3180 = vadd.f32 %v3179, %v3177
      %v3181 = vadd.f32 %v3180, %v3178
      %v3182 = vrot.slane %v3181, 4
      %v3183 = vadd.f32 %v3181, %v3182
      %v3184 = vrot.slane %v3183, 2
      %v3185 = vadd.f32 %v3183, %v3184
      %v3186 = vrot.slane %v3185, 1
      %v3187 = vadd.f32 %v3185, %v3186
      %v3188 = vmul.f32 %v3171, %v3187
      %v3189 = vmul.f32 %v3172, %v3187
      %v3190 = vmul.f32 %v3173, %v3187
      %v3191 = vmul.f32 %v3174, %v3187
      %v3192 = vadd.f32 %v3134, %v3188
      %v3193 = vadd.f32 %v3135, %v3189
      %v3194 = vadd.f32 %v3136, %v3190
      %v3195 = vadd.f32 %v3137, %v3191
      %v3196 = vmul.f32 %v3033, %v3171
      %v3197 = vmul.f32 %v3036, %v3172
      %v3198 = vmul.f32 %v3039, %v3173
      %v3199 = vmul.f32 %v3042, %v3174
      %v3200 = vadd.f32 %v3196, %v3197
      %v3201 = vadd.f32 %v3200, %v3198
      %v3202 = vadd.f32 %v3201, %v3199
      %v3203 = vrot.slane %v3202, 4
      %v3204 = vadd.f32 %v3202, %v3203
      %v3205 = vrot.slane %v3204, 2
      %v3206 = vadd.f32 %v3204, %v3205
      %v3207 = vrot.slane %v3206, 1
      %v3208 = vadd.f32 %v3206, %v3207
      %v3209 = vmul.f32 %v3171, %v3208
      %v3210 = vmul.f32 %v3172, %v3208
      %v3211 = vmul.f32 %v3173, %v3208
      %v3212 = vmul.f32 %v3174, %v3208
      %v3213 = vadd.f32 %v3155, %v3209
      %v3214 = vadd.f32 %v3156, %v3210
      %v3215 = vadd.f32 %v3157, %v3211
      %v3216 = vadd.f32 %v3158, %v3212
      %vm3217 = vcmp.ge.s32.totalorder %v699, 12
      %vm3218 = vcmp.ge.s32.totalorder %v700, 12
      %vm3219 = vcmp.ge.s32.totalorder %v701, 12
      %vm3220 = vcmp.ge.s32.totalorder %v702, 12
      %vm3221 = vmand %vm3217, %vm829
      %vm3222 = vmand %vm3218, %vm830
      %vm3223 = vmand %vm3219, %vm831
      %vm3224 = vmand %vm3220, %vm832
      %v3225 = vsel %vm3221, 1, 0
      %v3226 = vsel %vm3222, 1, 0
      %v3227 = vsel %vm3223, 1, 0
      %v3228 = vsel %vm3224, 1, 0
      %v3229 = vcvt.s32.f32 %v3225
      %v3230 = vcvt.s32.f32 %v3226
      %v3231 = vcvt.s32.f32 %v3227
      %v3232 = vcvt.s32.f32 %v3228
      %v3233 = vmul.f32 %v3013, %v3229
      %v3234 = vmul.f32 %v3016, %v3230
      %v3235 = vmul.f32 %v3019, %v3231
      %v3236 = vmul.f32 %v3022, %v3232
      %v3237 = vadd.f32 %v3233, %v3234
      %v3238 = vadd.f32 %v3237, %v3235
      %v3239 = vadd.f32 %v3238, %v3236
      %v3240 = vrot.slane %v3239, 4
      %v3241 = vadd.f32 %v3239, %v3240
      %v3242 = vrot.slane %v3241, 2
      %v3243 = vadd.f32 %v3241, %v3242
      %v3244 = vrot.slane %v3243, 1
      %v3245 = vadd.f32 %v3243, %v3244
      %v3246 = vmul.f32 %v3229, %v3245
      %v3247 = vmul.f32 %v3230, %v3245
      %v3248 = vmul.f32 %v3231, %v3245
      %v3249 = vmul.f32 %v3232, %v3245
      %v3250 = vadd.f32 %v3192, %v3246
      %v3251 = vadd.f32 %v3193, %v3247
      %v3252 = vadd.f32 %v3194, %v3248
      %v3253 = vadd.f32 %v3195, %v3249
      %v3254 = vmul.f32 %v3033, %v3229
      %v3255 = vmul.f32 %v3036, %v3230
      %v3256 = vmul.f32 %v3039, %v3231
      %v3257 = vmul.f32 %v3042, %v3232
      %v3258 = vadd.f32 %v3254, %v3255
      %v3259 = vadd.f32 %v3258, %v3256
      %v3260 = vadd.f32 %v3259, %v3257
      %v3261 = vrot.slane %v3260, 4
      %v3262 = vadd.f32 %v3260, %v3261
      %v3263 = vrot.slane %v3262, 2
      %v3264 = vadd.f32 %v3262, %v3263
      %v3265 = vrot.slane %v3264, 1
      %v3266 = vadd.f32 %v3264, %v3265
      %v3267 = vmul.f32 %v3229, %v3266
      %v3268 = vmul.f32 %v3230, %v3266
      %v3269 = vmul.f32 %v3231, %v3266
      %v3270 = vmul.f32 %v3232, %v3266
      %v3271 = vadd.f32 %v3213, %v3267
      %v3272 = vadd.f32 %v3214, %v3268
      %v3273 = vadd.f32 %v3215, %v3269
      %v3274 = vadd.f32 %v3216, %v3270
      %vm3275 = vcmp.lt.s32.totalorder %v699, 20
      %vm3276 = vcmp.lt.s32.totalorder %v700, 20
      %vm3277 = vcmp.lt.s32.totalorder %v701, 20
      %vm3278 = vcmp.lt.s32.totalorder %v702, 20
      %vm3279 = vmand %vm935, %vm3275
      %vm3280 = vmand %vm936, %vm3276
      %vm3281 = vmand %vm937, %vm3277
      %vm3282 = vmand %vm938, %vm3278
      %v3283 = vsel %vm3279, 1, 0
      %v3284 = vsel %vm3280, 1, 0
      %v3285 = vsel %vm3281, 1, 0
      %v3286 = vsel %vm3282, 1, 0
      %v3287 = vcvt.s32.f32 %v3283
      %v3288 = vcvt.s32.f32 %v3284
      %v3289 = vcvt.s32.f32 %v3285
      %v3290 = vcvt.s32.f32 %v3286
      %v3291 = vmul.f32 %v3013, %v3287
      %v3292 = vmul.f32 %v3016, %v3288
      %v3293 = vmul.f32 %v3019, %v3289
      %v3294 = vmul.f32 %v3022, %v3290
      %v3295 = vadd.f32 %v3291, %v3292
      %v3296 = vadd.f32 %v3295, %v3293
      %v3297 = vadd.f32 %v3296, %v3294
      %v3298 = vrot.slane %v3297, 4
      %v3299 = vadd.f32 %v3297, %v3298
      %v3300 = vrot.slane %v3299, 2
      %v3301 = vadd.f32 %v3299, %v3300
      %v3302 = vrot.slane %v3301, 1
      %v3303 = vadd.f32 %v3301, %v3302
      %v3304 = vmul.f32 %v3287, %v3303
      %v3305 = vmul.f32 %v3288, %v3303
      %v3306 = vmul.f32 %v3289, %v3303
      %v3307 = vmul.f32 %v3290, %v3303
      %v3308 = vadd.f32 %v3250, %v3304
      %v3309 = vadd.f32 %v3251, %v3305
      %v3310 = vadd.f32 %v3252, %v3306
      %v3311 = vadd.f32 %v3253, %v3307
      %v3312 = vmul.f32 %v3033, %v3287
      %v3313 = vmul.f32 %v3036, %v3288
      %v3314 = vmul.f32 %v3039, %v3289
      %v3315 = vmul.f32 %v3042, %v3290
      %v3316 = vadd.f32 %v3312, %v3313
      %v3317 = vadd.f32 %v3316, %v3314
      %v3318 = vadd.f32 %v3317, %v3315
      %v3319 = vrot.slane %v3318, 4
      %v3320 = vadd.f32 %v3318, %v3319
      %v3321 = vrot.slane %v3320, 2
      %v3322 = vadd.f32 %v3320, %v3321
      %v3323 = vrot.slane %v3322, 1
      %v3324 = vadd.f32 %v3322, %v3323
      %v3325 = vmul.f32 %v3287, %v3324
      %v3326 = vmul.f32 %v3288, %v3324
      %v3327 = vmul.f32 %v3289, %v3324
      %v3328 = vmul.f32 %v3290, %v3324
      %v3329 = vadd.f32 %v3271, %v3325
      %v3330 = vadd.f32 %v3272, %v3326
      %v3331 = vadd.f32 %v3273, %v3327
      %v3332 = vadd.f32 %v3274, %v3328
      %vm3333 = vcmp.ge.s32.totalorder %v699, 20
      %vm3334 = vcmp.ge.s32.totalorder %v700, 20
      %vm3335 = vcmp.ge.s32.totalorder %v701, 20
      %vm3336 = vcmp.ge.s32.totalorder %v702, 20
      %vm3337 = vmand %vm3333, %vm943
      %vm3338 = vmand %vm3334, %vm944
      %vm3339 = vmand %vm3335, %vm945
      %vm3340 = vmand %vm3336, %vm946
      %v3341 = vsel %vm3337, 1, 0
      %v3342 = vsel %vm3338, 1, 0
      %v3343 = vsel %vm3339, 1, 0
      %v3344 = vsel %vm3340, 1, 0
      %v3345 = vcvt.s32.f32 %v3341
      %v3346 = vcvt.s32.f32 %v3342
      %v3347 = vcvt.s32.f32 %v3343
      %v3348 = vcvt.s32.f32 %v3344
      %v3349 = vmul.f32 %v3013, %v3345
      %v3350 = vmul.f32 %v3016, %v3346
      %v3351 = vmul.f32 %v3019, %v3347
      %v3352 = vmul.f32 %v3022, %v3348
      %v3353 = vadd.f32 %v3349, %v3350
      %v3354 = vadd.f32 %v3353, %v3351
      %v3355 = vadd.f32 %v3354, %v3352
      %v3356 = vrot.slane %v3355, 4
      %v3357 = vadd.f32 %v3355, %v3356
      %v3358 = vrot.slane %v3357, 2
      %v3359 = vadd.f32 %v3357, %v3358
      %v3360 = vrot.slane %v3359, 1
      %v3361 = vadd.f32 %v3359, %v3360
      %v3362 = vmul.f32 %v3345, %v3361
      %v3363 = vmul.f32 %v3346, %v3361
      %v3364 = vmul.f32 %v3347, %v3361
      %v3365 = vmul.f32 %v3348, %v3361
      %v3366 = vadd.f32 %v3308, %v3362
      %v3367 = vadd.f32 %v3309, %v3363
      %v3368 = vadd.f32 %v3310, %v3364
      %v3369 = vadd.f32 %v3311, %v3365
      %v3370 = vmul.f32 %v3033, %v3345
      %v3371 = vmul.f32 %v3036, %v3346
      %v3372 = vmul.f32 %v3039, %v3347
      %v3373 = vmul.f32 %v3042, %v3348
      %v3374 = vadd.f32 %v3370, %v3371
      %v3375 = vadd.f32 %v3374, %v3372
      %v3376 = vadd.f32 %v3375, %v3373
      %v3377 = vrot.slane %v3376, 4
      %v3378 = vadd.f32 %v3376, %v3377
      %v3379 = vrot.slane %v3378, 2
      %v3380 = vadd.f32 %v3378, %v3379
      %v3381 = vrot.slane %v3380, 1
      %v3382 = vadd.f32 %v3380, %v3381
      %v3383 = vmul.f32 %v3345, %v3382
      %v3384 = vmul.f32 %v3346, %v3382
      %v3385 = vmul.f32 %v3347, %v3382
      %v3386 = vmul.f32 %v3348, %v3382
      %v3387 = vadd.f32 %v3329, %v3383
      %v3388 = vadd.f32 %v3330, %v3384
      %v3389 = vadd.f32 %v3331, %v3385
      %v3390 = vadd.f32 %v3332, %v3386
      %vm3391 = vcmp.lt.s32.totalorder %v699, 28
      %vm3392 = vcmp.lt.s32.totalorder %v700, 28
      %vm3393 = vcmp.lt.s32.totalorder %v701, 28
      %vm3394 = vcmp.lt.s32.totalorder %v702, 28
      %vm3395 = vmand %vm1049, %vm3391
      %vm3396 = vmand %vm1050, %vm3392
      %vm3397 = vmand %vm1051, %vm3393
      %vm3398 = vmand %vm1052, %vm3394
      %v3399 = vsel %vm3395, 1, 0
      %v3400 = vsel %vm3396, 1, 0
      %v3401 = vsel %vm3397, 1, 0
      %v3402 = vsel %vm3398, 1, 0
      %v3403 = vcvt.s32.f32 %v3399
      %v3404 = vcvt.s32.f32 %v3400
      %v3405 = vcvt.s32.f32 %v3401
      %v3406 = vcvt.s32.f32 %v3402
      %v3407 = vmul.f32 %v3013, %v3403
      %v3408 = vmul.f32 %v3016, %v3404
      %v3409 = vmul.f32 %v3019, %v3405
      %v3410 = vmul.f32 %v3022, %v3406
      %v3411 = vadd.f32 %v3407, %v3408
      %v3412 = vadd.f32 %v3411, %v3409
      %v3413 = vadd.f32 %v3412, %v3410
      %v3414 = vrot.slane %v3413, 4
      %v3415 = vadd.f32 %v3413, %v3414
      %v3416 = vrot.slane %v3415, 2
      %v3417 = vadd.f32 %v3415, %v3416
      %v3418 = vrot.slane %v3417, 1
      %v3419 = vadd.f32 %v3417, %v3418
      %v3420 = vmul.f32 %v3403, %v3419
      %v3421 = vmul.f32 %v3404, %v3419
      %v3422 = vmul.f32 %v3405, %v3419
      %v3423 = vmul.f32 %v3406, %v3419
      %v3424 = vadd.f32 %v3366, %v3420
      %v3425 = vadd.f32 %v3367, %v3421
      %v3426 = vadd.f32 %v3368, %v3422
      %v3427 = vadd.f32 %v3369, %v3423
      %v3428 = vmul.f32 %v3033, %v3403
      %v3429 = vmul.f32 %v3036, %v3404
      %v3430 = vmul.f32 %v3039, %v3405
      %v3431 = vmul.f32 %v3042, %v3406
      %v3432 = vadd.f32 %v3428, %v3429
      %v3433 = vadd.f32 %v3432, %v3430
      %v3434 = vadd.f32 %v3433, %v3431
      %v3435 = vrot.slane %v3434, 4
      %v3436 = vadd.f32 %v3434, %v3435
      %v3437 = vrot.slane %v3436, 2
      %v3438 = vadd.f32 %v3436, %v3437
      %v3439 = vrot.slane %v3438, 1
      %v3440 = vadd.f32 %v3438, %v3439
      %v3441 = vmul.f32 %v3403, %v3440
      %v3442 = vmul.f32 %v3404, %v3440
      %v3443 = vmul.f32 %v3405, %v3440
      %v3444 = vmul.f32 %v3406, %v3440
      %v3445 = vadd.f32 %v3387, %v3441
      %v3446 = vadd.f32 %v3388, %v3442
      %v3447 = vadd.f32 %v3389, %v3443
      %v3448 = vadd.f32 %v3390, %v3444
      %vm3449 = vcmp.ge.s32.totalorder %v699, 28
      %vm3450 = vcmp.ge.s32.totalorder %v700, 28
      %vm3451 = vcmp.ge.s32.totalorder %v701, 28
      %vm3452 = vcmp.ge.s32.totalorder %v702, 28
      %vm3453 = vmand %vm3449, %vm1057
      %vm3454 = vmand %vm3450, %vm1058
      %vm3455 = vmand %vm3451, %vm1059
      %vm3456 = vmand %vm3452, %vm1060
      %v3457 = vsel %vm3453, 1, 0
      %v3458 = vsel %vm3454, 1, 0
      %v3459 = vsel %vm3455, 1, 0
      %v3460 = vsel %vm3456, 1, 0
      %v3461 = vcvt.s32.f32 %v3457
      %v3462 = vcvt.s32.f32 %v3458
      %v3463 = vcvt.s32.f32 %v3459
      %v3464 = vcvt.s32.f32 %v3460
      %v3465 = vmul.f32 %v3013, %v3461
      %v3466 = vmul.f32 %v3016, %v3462
      %v3467 = vmul.f32 %v3019, %v3463
      %v3468 = vmul.f32 %v3022, %v3464
      %v3469 = vadd.f32 %v3465, %v3466
      %v3470 = vadd.f32 %v3469, %v3467
      %v3471 = vadd.f32 %v3470, %v3468
      %v3472 = vrot.slane %v3471, 4
      %v3473 = vadd.f32 %v3471, %v3472
      %v3474 = vrot.slane %v3473, 2
      %v3475 = vadd.f32 %v3473, %v3474
      %v3476 = vrot.slane %v3475, 1
      %v3477 = vadd.f32 %v3475, %v3476
      %v3478 = vmul.f32 %v3461, %v3477
      %v3479 = vmul.f32 %v3462, %v3477
      %v3480 = vmul.f32 %v3463, %v3477
      %v3481 = vmul.f32 %v3464, %v3477
      %v3482 = vadd.f32 %v3424, %v3478
      %v3483 = vadd.f32 %v3425, %v3479
      %v3484 = vadd.f32 %v3426, %v3480
      %v3485 = vadd.f32 %v3427, %v3481
      %v3486 = vmul.f32 %v3033, %v3461
      %v3487 = vmul.f32 %v3036, %v3462
      %v3488 = vmul.f32 %v3039, %v3463
      %v3489 = vmul.f32 %v3042, %v3464
      %v3490 = vadd.f32 %v3486, %v3487
      %v3491 = vadd.f32 %v3490, %v3488
      %v3492 = vadd.f32 %v3491, %v3489
      %v3493 = vrot.slane %v3492, 4
      %v3494 = vadd.f32 %v3492, %v3493
      %v3495 = vrot.slane %v3494, 2
      %v3496 = vadd.f32 %v3494, %v3495
      %v3497 = vrot.slane %v3496, 1
      %v3498 = vadd.f32 %v3496, %v3497
      %v3499 = vmul.f32 %v3461, %v3498
      %v3500 = vmul.f32 %v3462, %v3498
      %v3501 = vmul.f32 %v3463, %v3498
      %v3502 = vmul.f32 %v3464, %v3498
      %v3503 = vadd.f32 %v3445, %v3499
      %v3504 = vadd.f32 %v3446, %v3500
      %v3505 = vadd.f32 %v3447, %v3501
      %v3506 = vadd.f32 %v3448, %v3502
      %v3507 = vmul.f32 %v3482, 0.0009765625
      %v3508 = vmul.f32 %v3483, 0.0009765625
      %v3509 = vmul.f32 %v3484, 0.0009765625
      %v3510 = vmul.f32 %v3485, 0.0009765625
      %v3511 = vmul.f32 %v3503, 0.0009765625
      %v3512 = vmul.f32 %v3504, 0.0009765625
      %v3513 = vmul.f32 %v3505, 0.0009765625
      %v3514 = vmul.f32 %v3506, 0.0009765625
      %v3515 = vmul.f32 %v3507, %v3507
      %v3516 = vmul.f32 %v3508, %v3508
      %v3517 = vmul.f32 %v3509, %v3509
      %v3518 = vmul.f32 %v3510, %v3510
      %v3519 = vsub.f32 %v3511, %v3515
      %v3520 = vsub.f32 %v3512, %v3516
      %v3521 = vsub.f32 %v3513, %v3517
      %v3522 = vsub.f32 %v3514, %v3518
      %v3523 = vsub.f32 %v2985, %v3507
      %v3524 = vsub.f32 %v2987, %v3507
      %v3525 = vsub.f32 %v2989, %v3508
      %v3526 = vsub.f32 %v2991, %v3508
      %v3527 = vsub.f32 %v2995, %v3509
      %v3528 = vsub.f32 %v2997, %v3509
      %v3529 = vsub.f32 %v2999, %v3510
      %v3530 = vsub.f32 %v3001, %v3510
      %v3531 = vadd.f32 %v3519, 1e-05
      %v3532 = vadd.f32 %v3520, 1e-05
      %v3533 = vadd.f32 %v3521, 1e-05
      %v3534 = vadd.f32 %v3522, 1e-05
      %v3535 = vrsqrt.pop %v3531
      %v3536 = vrsqrt.pop %v3532
      %v3537 = vrsqrt.pop %v3533
      %v3538 = vrsqrt.pop %v3534
      %v3539 = vmul.f32 %v3535, %v3003
      %v3540 = vmul.f32 %v3536, %v3004
      %v3541 = vmul.f32 %v3537, %v3005
      %v3542 = vmul.f32 %v3538, %v3006
      %3544 = vset.pattern.permute.xlu0 0
      %3545 = vperm.xlu0 %3544, %v3539
      %v3546 = vpop.permute.xlu0 %3545
      %3549 = vset.pattern.permute.xlu0 0
      %3550 = vperm.xlu0 %3549, %v3540
      %v3551 = vpop.permute.xlu0 %3550
      %3554 = vset.pattern.permute.xlu0 0
      %3555 = vperm.xlu0 %3554, %v3541
      %v3556 = vpop.permute.xlu0 %3555
      %3559 = vset.pattern.permute.xlu0 0
      %3560 = vperm.xlu0 %3559, %v3542
      %v3561 = vpop.permute.xlu0 %3560
      %v3563 = vmul.f32 %v3523, %v3546
      %v3564 = vmul.f32 %v3524, %v3546
      %v3565 = vmul.f32 %v3525, %v3551
      %v3566 = vmul.f32 %v3526, %v3551
      %v3567 = vmul.f32 %v3527, %v3556
      %v3568 = vmul.f32 %v3528, %v3556
      %v3569 = vmul.f32 %v3529, %v3561
      %v3570 = vmul.f32 %v3530, %v3561
      %3572 = vset.pattern.permute.xlu0 0
      %3573 = vperm.xlu0 %3572, %v3007
      %v3574 = vpop.permute.xlu0 %3573
      %3577 = vset.pattern.permute.xlu0 0
      %3578 = vperm.xlu0 %3577, %v3008
      %v3579 = vpop.permute.xlu0 %3578
      %3582 = vset.pattern.permute.xlu0 0
      %3583 = vperm.xlu0 %3582, %v3009
      %v3584 = vpop.permute.xlu0 %3583
      %3587 = vset.pattern.permute.xlu0 0
      %3588 = vperm.xlu0 %3587, %v3010
      %v3589 = vpop.permute.xlu0 %3588
      %v3591 = vadd.f32 %v3563, %v3574
      %v3592 = vadd.f32 %v3564, %v3574
      %v3593 = vadd.f32 %v3565, %v3579
      %v3594 = vadd.f32 %v3566, %v3579
      %v3595 = vadd.f32 %v3567, %v3584
      %v3596 = vadd.f32 %v3568, %v3584
      %v3597 = vadd.f32 %v3569, %v3589
      %v3598 = vadd.f32 %v3570, %v3589
      %v3599 = vxor.u32 %v3591, 2147483648
      %v3600 = vxor.u32 %v3592, 2147483648
      %v3601 = vxor.u32 %v3593, 2147483648
      %v3602 = vxor.u32 %v3594, 2147483648
      %v3603 = vxor.u32 %v3595, 2147483648
      %v3604 = vxor.u32 %v3596, 2147483648
      %v3605 = vxor.u32 %v3597, 2147483648
      %v3606 = vxor.u32 %v3598, 2147483648
      %v3607 = vmul.f32 %v3599, 1.442695
      %v3608 = vpow.pop %v3607
      %v3609 = vmul.f32 %v3600, 1.442695
      %v3610 = vpow.pop %v3609
      %v3611 = vmul.f32 %v3601, 1.442695
      %v3612 = vpow.pop %v3611
      %v3613 = vmul.f32 %v3602, 1.442695
      %v3614 = vpow.pop %v3613
      %v3615 = vmul.f32 %v3603, 1.442695
      %v3616 = vpow.pop %v3615
      %v3617 = vmul.f32 %v3604, 1.442695
      %v3618 = vpow.pop %v3617
      %v3619 = vmul.f32 %v3605, 1.442695
      %v3620 = vpow.pop %v3619
      %v3621 = vmul.f32 %v3606, 1.442695
      %v3622 = vpow.pop %v3621
      %v3623 = vadd.f32 %v3608, 1.0
      %v3624 = vadd.f32 %v3610, 1.0
      %v3625 = vadd.f32 %v3612, 1.0
      %v3626 = vadd.f32 %v3614, 1.0
      %v3627 = vadd.f32 %v3616, 1.0
      %v3628 = vadd.f32 %v3618, 1.0
      %v3629 = vadd.f32 %v3620, 1.0
      %v3630 = vadd.f32 %v3622, 1.0
      %v3631 = vrcp.pop %v3623
      %v3632 = vmul.f32 1.0, %v3631
      %v3633 = vrcp.pop %v3624
      %v3634 = vmul.f32 1.0, %v3633
      %v3635 = vrcp.pop %v3625
      %v3636 = vmul.f32 1.0, %v3635
      %v3637 = vrcp.pop %v3626
      %v3638 = vmul.f32 1.0, %v3637
      %v3639 = vrcp.pop %v3627
      %v3640 = vmul.f32 1.0, %v3639
      %v3641 = vrcp.pop %v3628
      %v3642 = vmul.f32 1.0, %v3641
      %v3643 = vrcp.pop %v3629
      %v3644 = vmul.f32 1.0, %v3643
      %v3645 = vrcp.pop %v3630
      %v3646 = vmul.f32 1.0, %v3645
      %v3647 = vmul.f32 %v3591, %v3632
      %v3648 = vmul.f32 %v3592, %v3634
      %v3649 = vmul.f32 %v3593, %v3636
      %v3650 = vmul.f32 %v3594, %v3638
      %v3651 = vmul.f32 %v3595, %v3640
      %v3652 = vmul.f32 %v3596, %v3642
      %v3653 = vmul.f32 %v3597, %v3644
      %v3654 = vmul.f32 %v3598, %v3646
      %v3655 = vpack.c.bf16 %v3649, %v3647
      %v3656 = vpack.c.bf16 %v3650, %v3648
      %v3657 = vpack.c.bf16 %v3653, %v3651
      %v3658 = vpack.c.bf16 %v3654, %v3652
      %3659 = vst [vmem:[#allocation2 + $0x8] sm:$0xff] %v3655
      %3660 = vst [vmem:[#allocation2 + $0x10] sm:$0xff] %v3656
      %3661 = vst [vmem:[#allocation2 + $0x28] sm:$0xff] %v3657
      %3662 = vst [vmem:[#allocation2 + $0x30] sm:$0xff] %v3658
      %v3663 = vld [vmem:[#allocation2] sm:$0xff]
      %v3664 = vld [vmem:[#allocation2 + $0x8] sm:$0xff]
      %v3665 = vld [vmem:[#allocation2 + $0x10] sm:$0xff]
      %v3666 = vld [vmem:[#allocation2 + $0x20] sm:$0xff]
      %v3667 = vld [vmem:[#allocation2 + $0x28] sm:$0xff]
      %v3668 = vld [vmem:[#allocation2 + $0x30] sm:$0xff]
      %v3669 = vsel %vm1963, %v3663, 0
      %v3670 = vsel %vm1964, %v3664, 0
      %v3671 = vsel %vm1965, %v3665, 0
      %v3672 = vsel %vm1963, %v3666, 0
      %v3673 = vsel %vm1964, %v3667, 0
      %v3674 = vsel %vm1965, %v3668, 0
      %3681 = vrot.lane.b32.xlu0 %v3669, 17
      %v3682 = vpop.permute.xlu0 %3681
      %3683 = vrot.lane.b32.xlu0 %v3670, 17
      %v3684 = vpop.permute.xlu0 %3683
      %3685 = vrot.lane.b32.xlu0 %v3671, 17
      %v3686 = vpop.permute.xlu0 %3685
      %3687 = vrot.lane.b32.xlu0 %v3672, 17
      %v3688 = vpop.permute.xlu0 %3687
      %3689 = vrot.lane.b32.xlu0 %v3673, 17
      %v3690 = vpop.permute.xlu0 %3689
      %3691 = vrot.lane.b32.xlu0 %v3674, 17
      %v3692 = vpop.permute.xlu0 %3691
      %v3693 = vsel %vm2014, %v3682, %v3684
      %v3694 = vsel %vm2014, %v3684, %v3686
      %v3695 = vsel %vm2014, %v3688, %v3690
      %v3696 = vsel %vm2014, %v3690, %v3692
      %3701 = vst [vmem:[#allocation3] sm:$0xff] %v3693
      %3702 = vst [vmem:[#allocation3 + $0x8] sm:$0xff] %v3694
      %3703 = vst [vmem:[#allocation3 + $0x10] sm:$0xff] %v3695
      %3704 = vst [vmem:[#allocation3 + $0x18] sm:$0xff] %v3696
      %v3705 = vld [vmem:[#allocation2] sm:$0xff]
      %v3706 = vld [vmem:[#allocation2 + $0x8] sm:$0xff]
      %v3707 = vld [vmem:[#allocation2 + $0x10] sm:$0xff]
      %v3708 = vld [vmem:[#allocation2 + $0x20] sm:$0xff]
      %v3709 = vld [vmem:[#allocation2 + $0x28] sm:$0xff]
      %v3710 = vld [vmem:[#allocation2 + $0x30] sm:$0xff]
      %3717 = vrot.lane.b32.xlu0 %v3705, 16
      %v3718 = vpop.permute.xlu0 %3717
      %3719 = vrot.lane.b32.xlu0 %v3706, 16
      %v3720 = vpop.permute.xlu0 %3719
      %3721 = vrot.lane.b32.xlu0 %v3707, 16
      %v3722 = vpop.permute.xlu0 %3721
      %3723 = vrot.lane.b32.xlu0 %v3708, 16
      %v3724 = vpop.permute.xlu0 %3723
      %3725 = vrot.lane.b32.xlu0 %v3709, 16
      %v3726 = vpop.permute.xlu0 %3725
      %3727 = vrot.lane.b32.xlu0 %v3710, 16
      %v3728 = vpop.permute.xlu0 %3727
      %v3729 = vsel %vm2087, %v3718, %v3720
      %v3730 = vsel %vm2087, %v3720, %v3722
      %v3731 = vsel %vm2087, %v3724, %v3726
      %v3732 = vsel %vm2087, %v3726, %v3728
      %3737 = vst [vmem:[#allocation3 + $0x20] sm:$0xff] %v3729
      %3738 = vst [vmem:[#allocation3 + $0x28] sm:$0xff] %v3730
      %3739 = vst [vmem:[#allocation3 + $0x30] sm:$0xff] %v3731
      %3740 = vst [vmem:[#allocation3 + $0x38] sm:$0xff] %v3732
      %v3741 = vld [vmem:[#allocation2] sm:$0xff]
      %v3742 = vld [vmem:[#allocation2 + $0x8] sm:$0xff]
      %v3743 = vld [vmem:[#allocation2 + $0x10] sm:$0xff]
      %v3744 = vld [vmem:[#allocation2 + $0x20] sm:$0xff]
      %v3745 = vld [vmem:[#allocation2 + $0x28] sm:$0xff]
      %v3746 = vld [vmem:[#allocation2 + $0x30] sm:$0xff]
      %v3747 = vsel %vm2144, %v3741, 0
      %v3748 = vsel %vm2145, %v3742, 0
      %v3749 = vsel %vm2146, %v3743, 0
      %v3750 = vsel %vm2144, %v3744, 0
      %v3751 = vsel %vm2145, %v3745, 0
      %v3752 = vsel %vm2146, %v3746, 0
      %3759 = vrot.lane.b32.xlu0 %v3747, 15
      %v3760 = vpop.permute.xlu0 %3759
      %3761 = vrot.lane.b32.xlu0 %v3748, 15
      %v3762 = vpop.permute.xlu0 %3761
      %3763 = vrot.lane.b32.xlu0 %v3749, 15
      %v3764 = vpop.permute.xlu0 %3763
      %3765 = vrot.lane.b32.xlu0 %v3750, 15
      %v3766 = vpop.permute.xlu0 %3765
      %3767 = vrot.lane.b32.xlu0 %v3751, 15
      %v3768 = vpop.permute.xlu0 %3767
      %3769 = vrot.lane.b32.xlu0 %v3752, 15
      %v3770 = vpop.permute.xlu0 %3769
      %v3771 = vsel %vm2195, %v3760, %v3762
      %v3772 = vsel %vm2195, %v3762, %v3764
      %v3773 = vsel %vm2195, %v3766, %v3768
      %v3774 = vsel %vm2195, %v3768, %v3770
      %3779 = vst [vmem:[#allocation3 + $0x40] sm:$0xff] %v3771
      %3780 = vst [vmem:[#allocation3 + $0x48] sm:$0xff] %v3772
      %3781 = vst [vmem:[#allocation3 + $0x50] sm:$0xff] %v3773
      %3782 = vst [vmem:[#allocation3 + $0x58] sm:$0xff] %v3774
      %v3783 = vld [vmem:[#allocation2] sm:$0xff]
      %v3784 = vld [vmem:[#allocation2 + $0x8] sm:$0xff]
      %v3785 = vld [vmem:[#allocation2 + $0x10] sm:$0xff]
      %v3786 = vld [vmem:[#allocation2 + $0x20] sm:$0xff]
      %v3787 = vld [vmem:[#allocation2 + $0x28] sm:$0xff]
      %v3788 = vld [vmem:[#allocation2 + $0x30] sm:$0xff]
      %v3789 = vsel %vm2238, %v3783, 0
      %v3790 = vsel %vm2239, %v3784, 0
      %v3791 = vsel %vm2240, %v3785, 0
      %v3792 = vsel %vm2238, %v3786, 0
      %v3793 = vsel %vm2239, %v3787, 0
      %v3794 = vsel %vm2240, %v3788, 0
      %3801 = vrot.lane.b32.xlu0 %v3789, 1
      %v3802 = vpop.permute.xlu0 %3801
      %3803 = vrot.lane.b32.xlu0 %v3790, 1
      %v3804 = vpop.permute.xlu0 %3803
      %3805 = vrot.lane.b32.xlu0 %v3791, 1
      %v3806 = vpop.permute.xlu0 %3805
      %3807 = vrot.lane.b32.xlu0 %v3792, 1
      %v3808 = vpop.permute.xlu0 %3807
      %3809 = vrot.lane.b32.xlu0 %v3793, 1
      %v3810 = vpop.permute.xlu0 %3809
      %3811 = vrot.lane.b32.xlu0 %v3794, 1
      %v3812 = vpop.permute.xlu0 %3811
      %v3813 = vsel %vm2289, %v3802, %v3804
      %v3814 = vsel %vm2289, %v3804, %v3806
      %v3815 = vsel %vm2289, %v3808, %v3810
      %v3816 = vsel %vm2289, %v3810, %v3812
      %3821 = vst [vmem:[#allocation3 + $0x60] sm:$0xff] %v3813
      %3822 = vst [vmem:[#allocation3 + $0x68] sm:$0xff] %v3814
      %3823 = vst [vmem:[#allocation3 + $0x70] sm:$0xff] %v3815
      %3824 = vst [vmem:[#allocation3 + $0x78] sm:$0xff] %v3816
      %v3825 = vld [vmem:[#allocation2 + $0x8] sm:$0xff]
      %v3826 = vld [vmem:[#allocation2 + $0x10] sm:$0xff]
      %v3827 = vld [vmem:[#allocation2 + $0x28] sm:$0xff]
      %v3828 = vld [vmem:[#allocation2 + $0x30] sm:$0xff]
      %3829 = vst [vmem:[#allocation3 + $0x80] sm:$0xff] %v3825
      %3830 = vst [vmem:[#allocation3 + $0x88] sm:$0xff] %v3826
      %3831 = vst [vmem:[#allocation3 + $0x90] sm:$0xff] %v3827
      %3832 = vst [vmem:[#allocation3 + $0x98] sm:$0xff] %v3828
      %v3833 = vld [vmem:[#allocation2 + $0x8] sm:$0xff]
      %v3834 = vld [vmem:[#allocation2 + $0x10] sm:$0xff]
      %v3835 = vld [vmem:[#allocation2 + $0x18] sm:$0xff]
      %v3836 = vld [vmem:[#allocation2 + $0x28] sm:$0xff]
      %v3837 = vld [vmem:[#allocation2 + $0x30] sm:$0xff]
      %v3838 = vld [vmem:[#allocation2 + $0x38] sm:$0xff]
      %v3839 = vsel %vm2347, %v3833, 0
      %v3840 = vsel %vm2348, %v3834, 0
      %v3841 = vsel %vm2349, %v3835, 0
      %v3842 = vsel %vm2347, %v3836, 0
      %v3843 = vsel %vm2348, %v3837, 0
      %v3844 = vsel %vm2349, %v3838, 0
      %3851 = vrot.lane.b32.xlu0 %v3839, 127
      %v3852 = vpop.permute.xlu0 %3851
      %3853 = vrot.lane.b32.xlu0 %v3840, 127
      %v3854 = vpop.permute.xlu0 %3853
      %3855 = vrot.lane.b32.xlu0 %v3841, 127
      %v3856 = vpop.permute.xlu0 %3855
      %3857 = vrot.lane.b32.xlu0 %v3842, 127
      %v3858 = vpop.permute.xlu0 %3857
      %3859 = vrot.lane.b32.xlu0 %v3843, 127
      %v3860 = vpop.permute.xlu0 %3859
      %3861 = vrot.lane.b32.xlu0 %v3844, 127
      %v3862 = vpop.permute.xlu0 %3861
      %v3863 = vsel %vm2236, %v3852, %v3854
      %v3864 = vsel %vm2236, %v3854, %v3856
      %v3865 = vsel %vm2236, %v3858, %v3860
      %v3866 = vsel %vm2236, %v3860, %v3862
      %3871 = vst [vmem:[#allocation3 + $0xa0] sm:$0xff] %v3863
      %3872 = vst [vmem:[#allocation3 + $0xa8] sm:$0xff] %v3864
      %3873 = vst [vmem:[#allocation3 + $0xb0] sm:$0xff] %v3865
      %3874 = vst [vmem:[#allocation3 + $0xb8] sm:$0xff] %v3866
      %v3875 = vld [vmem:[#allocation2 + $0x8] sm:$0xff]
      %v3876 = vld [vmem:[#allocation2 + $0x10] sm:$0xff]
      %v3877 = vld [vmem:[#allocation2 + $0x18] sm:$0xff]
      %v3878 = vld [vmem:[#allocation2 + $0x28] sm:$0xff]
      %v3879 = vld [vmem:[#allocation2 + $0x30] sm:$0xff]
      %v3880 = vld [vmem:[#allocation2 + $0x38] sm:$0xff]
      %v3881 = vsel %vm2439, %v3875, 0
      %v3882 = vsel %vm2440, %v3876, 0
      %v3883 = vsel %vm2441, %v3877, 0
      %v3884 = vsel %vm2439, %v3878, 0
      %v3885 = vsel %vm2440, %v3879, 0
      %v3886 = vsel %vm2441, %v3880, 0
      %3893 = vrot.lane.b32.xlu0 %v3881, 113
      %v3894 = vpop.permute.xlu0 %3893
      %3895 = vrot.lane.b32.xlu0 %v3882, 113
      %v3896 = vpop.permute.xlu0 %3895
      %3897 = vrot.lane.b32.xlu0 %v3883, 113
      %v3898 = vpop.permute.xlu0 %3897
      %3899 = vrot.lane.b32.xlu0 %v3884, 113
      %v3900 = vpop.permute.xlu0 %3899
      %3901 = vrot.lane.b32.xlu0 %v3885, 113
      %v3902 = vpop.permute.xlu0 %3901
      %3903 = vrot.lane.b32.xlu0 %v3886, 113
      %v3904 = vpop.permute.xlu0 %3903
      %v3905 = vsel %vm2142, %v3894, %v3896
      %v3906 = vsel %vm2142, %v3896, %v3898
      %v3907 = vsel %vm2142, %v3900, %v3902
      %v3908 = vsel %vm2142, %v3902, %v3904
      %3913 = vst [vmem:[#allocation3 + $0xc0] sm:$0xff] %v3905
      %3914 = vst [vmem:[#allocation3 + $0xc8] sm:$0xff] %v3906
      %3915 = vst [vmem:[#allocation3 + $0xd0] sm:$0xff] %v3907
      %3916 = vst [vmem:[#allocation3 + $0xd8] sm:$0xff] %v3908
      %v3917 = vld [vmem:[#allocation2 + $0x8] sm:$0xff]
      %v3918 = vld [vmem:[#allocation2 + $0x10] sm:$0xff]
      %v3919 = vld [vmem:[#allocation2 + $0x18] sm:$0xff]
      %v3920 = vld [vmem:[#allocation2 + $0x28] sm:$0xff]
      %v3921 = vld [vmem:[#allocation2 + $0x30] sm:$0xff]
      %v3922 = vld [vmem:[#allocation2 + $0x38] sm:$0xff]
      %3929 = vrot.lane.b32.xlu0 %v3917, 112
      %v3930 = vpop.permute.xlu0 %3929
      %3931 = vrot.lane.b32.xlu0 %v3918, 112
      %v3932 = vpop.permute.xlu0 %3931
      %3933 = vrot.lane.b32.xlu0 %v3919, 112
      %v3934 = vpop.permute.xlu0 %3933
      %3935 = vrot.lane.b32.xlu0 %v3920, 112
      %v3936 = vpop.permute.xlu0 %3935
      %3937 = vrot.lane.b32.xlu0 %v3921, 112
      %v3938 = vpop.permute.xlu0 %3937
      %3939 = vrot.lane.b32.xlu0 %v3922, 112
      %v3940 = vpop.permute.xlu0 %3939
      %v3941 = vsel %vm2562, %v3930, %v3932
      %v3942 = vsel %vm2562, %v3932, %v3934
      %v3943 = vsel %vm2562, %v3936, %v3938
      %v3944 = vsel %vm2562, %v3938, %v3940
      %3949 = vst [vmem:[#allocation3 + $0xe0] sm:$0xff] %v3941
      %3950 = vst [vmem:[#allocation3 + $0xe8] sm:$0xff] %v3942
      %3951 = vst [vmem:[#allocation3 + $0xf0] sm:$0xff] %v3943
      %3952 = vst [vmem:[#allocation3 + $0xf8] sm:$0xff] %v3944
      %v3953 = vld [vmem:[#allocation2 + $0x8] sm:$0xff]
      %v3954 = vld [vmem:[#allocation2 + $0x10] sm:$0xff]
      %v3955 = vld [vmem:[#allocation2 + $0x18] sm:$0xff]
      %v3956 = vld [vmem:[#allocation2 + $0x28] sm:$0xff]
      %v3957 = vld [vmem:[#allocation2 + $0x30] sm:$0xff]
      %v3958 = vld [vmem:[#allocation2 + $0x38] sm:$0xff]
      %v3959 = vsel %vm2604, %v3953, 0
      %v3960 = vsel %vm2605, %v3954, 0
      %v3961 = vsel %vm2606, %v3955, 0
      %v3962 = vsel %vm2604, %v3956, 0
      %v3963 = vsel %vm2605, %v3957, 0
      %v3964 = vsel %vm2606, %v3958, 0
      %3971 = vrot.lane.b32.xlu0 %v3959, 111
      %v3972 = vpop.permute.xlu0 %3971
      %3973 = vrot.lane.b32.xlu0 %v3960, 111
      %v3974 = vpop.permute.xlu0 %3973
      %3975 = vrot.lane.b32.xlu0 %v3961, 111
      %v3976 = vpop.permute.xlu0 %3975
      %3977 = vrot.lane.b32.xlu0 %v3962, 111
      %v3978 = vpop.permute.xlu0 %3977
      %3979 = vrot.lane.b32.xlu0 %v3963, 111
      %v3980 = vpop.permute.xlu0 %3979
      %3981 = vrot.lane.b32.xlu0 %v3964, 111
      %v3982 = vpop.permute.xlu0 %3981
      %v3983 = vsel %vm1961, %v3972, %v3974
      %v3984 = vsel %vm1961, %v3974, %v3976
      %v3985 = vsel %vm1961, %v3978, %v3980
      %v3986 = vsel %vm1961, %v3980, %v3982
      %3991 = vst [vmem:[#allocation3 + $0x100] sm:$0xff] %v3983
      %3992 = vst [vmem:[#allocation3 + $0x108] sm:$0xff] %v3984
      %3993 = vst [vmem:[#allocation3 + $0x110] sm:$0xff] %v3985
      %3994 = vst [vmem:[#allocation3 + $0x118] sm:$0xff] %v3986
      %v3995 = vld [vmem:[#allocation3] sm:$0xff]
      %v3996 = vld [vmem:[#allocation3 + $0x8] sm:$0xff]
      %v3997 = vld [vmem:[#allocation3 + $0x10] sm:$0xff]
      %v3998 = vld [vmem:[#allocation3 + $0x18] sm:$0xff]
      %v3999 = vld [vmem:[#allocation3 + $0x20] sm:$0xff]
      %v4000 = vld [vmem:[#allocation3 + $0x28] sm:$0xff]
      %v4001 = vld [vmem:[#allocation3 + $0x30] sm:$0xff]
      %v4002 = vld [vmem:[#allocation3 + $0x38] sm:$0xff]
      %v4003 = vld [vmem:[#allocation3 + $0x40] sm:$0xff]
      %v4004 = vld [vmem:[#allocation3 + $0x48] sm:$0xff]
      %v4005 = vld [vmem:[#allocation3 + $0x50] sm:$0xff]
      %v4006 = vld [vmem:[#allocation3 + $0x58] sm:$0xff]
      %v4007 = vld [vmem:[#allocation3 + $0x60] sm:$0xff]
      %v4008 = vld [vmem:[#allocation3 + $0x68] sm:$0xff]
      %v4009 = vld [vmem:[#allocation3 + $0x70] sm:$0xff]
      %v4010 = vld [vmem:[#allocation3 + $0x78] sm:$0xff]
      %v4011 = vld [vmem:[#allocation3 + $0x80] sm:$0xff]
      %v4012 = vld [vmem:[#allocation3 + $0x88] sm:$0xff]
      %v4013 = vld [vmem:[#allocation3 + $0x90] sm:$0xff]
      %v4014 = vld [vmem:[#allocation3 + $0x98] sm:$0xff]
      %v4015 = vld [vmem:[#allocation3 + $0xa0] sm:$0xff]
      %v4016 = vld [vmem:[#allocation3 + $0xa8] sm:$0xff]
      %v4017 = vld [vmem:[#allocation3 + $0xb0] sm:$0xff]
      %v4018 = vld [vmem:[#allocation3 + $0xb8] sm:$0xff]
      %v4019 = vld [vmem:[#allocation3 + $0xc0] sm:$0xff]
      %v4020 = vld [vmem:[#allocation3 + $0xc8] sm:$0xff]
      %v4021 = vld [vmem:[#allocation3 + $0xd0] sm:$0xff]
      %v4022 = vld [vmem:[#allocation3 + $0xd8] sm:$0xff]
      %v4023 = vld [vmem:[#allocation3 + $0xe0] sm:$0xff]
      %v4024 = vld [vmem:[#allocation3 + $0xe8] sm:$0xff]
      %v4025 = vld [vmem:[#allocation3 + $0xf0] sm:$0xff]
      %v4026 = vld [vmem:[#allocation3 + $0xf8] sm:$0xff]
      %v4027 = vld [vmem:[#allocation3 + $0x100] sm:$0xff]
      %v4028 = vld [vmem:[#allocation3 + $0x108] sm:$0xff]
      %v4029 = vld [vmem:[#allocation3 + $0x110] sm:$0xff]
      %v4030 = vld [vmem:[#allocation3 + $0x118] sm:$0xff]
      %v4031 = vld [vmem:[%s7] sm:$0xff]
      %v4032 = vld [vmem:[%s7 + $0x8] sm:$0xf]
      %v4033 = vld [vmem:[%s7 + $0xc] sm:$0xff]
      %v4034 = vld [vmem:[%s7 + $0x14] sm:$0xf]
      %v4035 = vld [vmem:[%s7 + $0x18] sm:$0xff]
      %v4036 = vld [vmem:[%s7 + $0x20] sm:$0xf]
      %v4037 = vld [vmem:[%s7 + $0x24] sm:$0xff]
      %v4038 = vld [vmem:[%s7 + $0x2c] sm:$0xf]
      %v4039 = vld [vmem:[%s8] sm:$0xff]
      %v4040 = vld [vmem:[%s8 + $0x8] sm:$0xff]
      %v4041 = vld [vmem:[%s8 + $0x10] sm:$0xff]
      %v4042 = vld [vmem:[%s8 + $0x18] sm:$0xff]
      %4044 = vset.pattern.permute.xlu0 0
      %4045 = vperm.xlu0 %4044, %v4039
      %v4046 = vpop.permute.xlu0 %4045
      %4049 = vset.pattern.permute.xlu0 0
      %4050 = vperm.xlu0 %4049, %v4040
      %v4051 = vpop.permute.xlu0 %4050
      %4054 = vset.pattern.permute.xlu0 0
      %4055 = vperm.xlu0 %4054, %v4041
      %v4056 = vpop.permute.xlu0 %4055
      %4059 = vset.pattern.permute.xlu0 0
      %4060 = vperm.xlu0 %4059, %v4042
      %v4061 = vpop.permute.xlu0 %4060
      %v4071 = vunpack.c.l.b16 %v4031
      %v4072 = vunpack.c.h.b16 %v4031
      %v4073 = vunpack.c.l.b16 %v4032
      %v4074 = vunpack.c.l.b16 %v4033
      %v4075 = vunpack.c.h.b16 %v4033
      %v4076 = vunpack.c.l.b16 %v4034
      %v4077 = vunpack.c.l.b16 %v4035
      %v4078 = vunpack.c.h.b16 %v4035
      %v4079 = vunpack.c.l.b16 %v4036
      %v4080 = vunpack.c.l.b16 %v4037
      %v4081 = vunpack.c.h.b16 %v4037
      %v4082 = vunpack.c.l.b16 %v4038
      %v4083 = vpack.c.b16 %v4074, %v4071
      %v4084 = vpack.c.b16 %v4075, %v4072
      %v4085 = vpack.c.b16 %v4076, %v4073
      %v4086 = vpack.c.b16 %v4080, %v4077
      %v4087 = vpack.c.b16 %v4081, %v4078
      %v4088 = vpack.c.b16 %v4082, %v4079
      %vm4093 = vcmask 261120
      %v4095 = vsel %vm4093, %v4085, 0
      %v4098 = vsel %vm4093, %v4088, 0
      %4100 = vmatprep.subr.bf16.mxu0 %v3996
      %4101 = vmatpush1.bf16.msra.mxu0 %v3995
      %4102 = vmatprep.subr.bf16.mxu0 %v3998
      %4103 = vmatpush1.bf16.msra.mxu0 %v3997
      %4104 = vmatprep.subr.bf16.mxu0 %v4000
      %4105 = vmatpush1.bf16.msra.mxu0 %v3999
      %4106 = vmatprep.subr.bf16.mxu0 %v4002
      %4107 = vmatpush1.bf16.msra.mxu0 %v4001
      %4108 = vmatprep.subr.bf16.mxu0 %v4004
      %4109 = vmatpush1.bf16.msra.mxu0 %v4003
      %4110 = vmatprep.subr.bf16.mxu0 %v4006
      %4111 = vmatpush1.bf16.msra.mxu0 %v4005
      %4112 = vmatprep.subr.bf16.mxu0 %v4008
      %4113 = vmatpush1.bf16.msra.mxu0 %v4007
      %4114 = vmatprep.subr.bf16.mxu0 %v4010
      %4115 = vmatpush1.bf16.msra.mxu0 %v4009
      %4116 = vmatprep.subr.bf16.mxu0 %v4012
      %4117 = vmatpush1.bf16.msra.mxu0 %v4011
      %4118 = vmatprep.subr.bf16.mxu0 %v4014
      %4119 = vmatpush1.bf16.msra.mxu0 %v4013
      %4120 = vmatprep.subr.bf16.mxu0 %v4016
      %4121 = vmatpush1.bf16.msra.mxu0 %v4015
      %4122 = vmatprep.subr.bf16.mxu0 %v4018
      %4123 = vmatpush1.bf16.msra.mxu0 %v4017
      %4124 = vmatprep.subr.bf16.mxu0 %v4020
      %4125 = vmatpush1.bf16.msra.mxu0 %v4019
      %4126 = vmatprep.subr.bf16.mxu0 %v4022
      %4127 = vmatpush1.bf16.msra.mxu0 %v4021
      %4128 = vmatprep.subr.bf16.mxu0 %v4024
      %4129 = vmatpush1.bf16.msra.mxu0 %v4023
      %4130 = vmatprep.subr.bf16.mxu0 %v4026
      %4131 = vmatpush1.bf16.msra.mxu0 %v4025
      %4132 = vmatprep.mubr.bf16.mxu0 %v4084
      %4133 = vmatmul.mubr.bf16.gmra.mrb[0].mxu0 %v4083
      %v4134 = vpop.f32.mrb[0].mxu0
      %v4135 = vadd.f32 %v4046, %v4134
      %v4136 = vpop.f32.mrb[0].mxu0
      %v4137 = vadd.f32 %v4046, %v4136
      %v4138 = vpop.f32.mrb[0].mxu0
      %v4139 = vadd.f32 %v4051, %v4138
      %v4140 = vpop.f32.mrb[0].mxu0
      %v4141 = vadd.f32 %v4051, %v4140
      %4142 = vmatprep.mubr.bf16.mxu0 %v4087
      %4143 = vmatmul.mubr.bf16.gmra.mrb[0].mxu0 %v4086
      %v4144 = vpop.f32.mrb[0].mxu0
      %v4145 = vadd.f32 %v4056, %v4144
      %v4146 = vpop.f32.mrb[0].mxu0
      %v4147 = vadd.f32 %v4056, %v4146
      %v4148 = vpop.f32.mrb[0].mxu0
      %v4149 = vadd.f32 %v4061, %v4148
      %v4150 = vpop.f32.mrb[0].mxu0
      %v4151 = vadd.f32 %v4061, %v4150
      %4152 = vdwg.mxu0
      %4153 = vmatprep.subr.bf16.mxu0 %v4028
      %4154 = vmatpush1.bf16.msra.mxu0 %v4027
      %4155 = vmatprep.subr.bf16.mxu0 %v4030
      %4156 = vmatpush1.bf16.msra.mxu0 %v4029
      %4157 = vmatprep.subr.bf16.mxu0 0
      %4158 = vmatpush1.bf16.msra.mxu0 0
      %4159 = vmatprep.subr.bf16.mxu0 0
      %4160 = vmatpush1.bf16.msra.mxu0 0
      %4161 = vmatprep.subr.bf16.mxu0 0
      %4162 = vmatpush1.bf16.msra.mxu0 0
      %4163 = vmatprep.subr.bf16.mxu0 0
      %4164 = vmatpush1.bf16.msra.mxu0 0
      %4165 = vmatprep.subr.bf16.mxu0 0
      %4166 = vmatpush1.bf16.msra.mxu0 0
      %4167 = vmatprep.subr.bf16.mxu0 0
      %4168 = vmatpush1.bf16.msra.mxu0 0
      %4169 = vmatprep.subr.bf16.mxu0 0
      %4170 = vmatpush1.bf16.msra.mxu0 0
      %4171 = vmatprep.subr.bf16.mxu0 0
      %4172 = vmatpush1.bf16.msra.mxu0 0
      %4173 = vmatprep.subr.bf16.mxu0 0
      %4174 = vmatpush1.bf16.msra.mxu0 0
      %4175 = vmatprep.subr.bf16.mxu0 0
      %4176 = vmatpush1.bf16.msra.mxu0 0
      %4177 = vmatprep.subr.bf16.mxu0 0
      %4178 = vmatpush1.bf16.msra.mxu0 0
      %4179 = vmatprep.subr.bf16.mxu0 0
      %4180 = vmatpush1.bf16.msra.mxu0 0
      %4181 = vmatprep.subr.bf16.mxu0 0
      %4182 = vmatpush1.bf16.msra.mxu0 0
      %4183 = vmatprep.subr.bf16.mxu0 0
      %4184 = vmatpush1.bf16.msra.mxu0 0
      %4185 = vmatprep.mubr.bf16.mxu0 0
      %4186 = vmatmul.mubr.bf16.gmra.mrb[0].mxu0 %v4095
      %v4187 = vpop.f32.mrb[0].mxu0
      %v4188 = vadd.f32 %v4135, %v4187
      %v4189 = vpop.f32.mrb[0].mxu0
      %v4190 = vadd.f32 %v4137, %v4189
      %v4191 = vpop.f32.mrb[0].mxu0
      %v4192 = vadd.f32 %v4139, %v4191
      %v4193 = vpop.f32.mrb[0].mxu0
      %v4194 = vadd.f32 %v4141, %v4193
      %4195 = vmatprep.mubr.bf16.mxu0 0
      %4196 = vmatmul.mubr.bf16.gmra.mrb[0].mxu0 %v4098
      %v4197 = vpop.f32.mrb[0].mxu0
      %v4198 = vadd.f32 %v4145, %v4197
      %v4199 = vpop.f32.mrb[0].mxu0
      %v4200 = vadd.f32 %v4147, %v4199
      %v4201 = vpop.f32.mrb[0].mxu0
      %v4202 = vadd.f32 %v4149, %v4201
      %v4203 = vpop.f32.mrb[0].mxu0
      %v4204 = vadd.f32 %v4151, %v4203
      %4205 = vdwg.mxu0
      %v4206 = vld [vmem:[%s9] sm:$0xf]
      %v4207 = vld [vmem:[%s9 + $0x4] sm:$0xf]
      %v4208 = vld [vmem:[%s9 + $0x8] sm:$0xf]
      %v4209 = vld [vmem:[%s9 + $0xc] sm:$0xf]
      %v4210 = vpack.c.bf16 %v604, %v602
      %v4211 = vpack.c.bf16 %v605, %v603
      %v4212 = vpack.c.bf16 %v608, %v606
      %v4213 = vpack.c.bf16 %v609, %v607
      %v4214 = vpack.c.bf16 %v612, %v610
      %v4215 = vpack.c.bf16 %v613, %v611
      %v4216 = vpack.c.bf16 %v616, %v614
      %v4217 = vpack.c.bf16 %v617, %v615
      %v4218 = vld [vmem:[%s10] sm:$0xff]
      %v4219 = vld [vmem:[%s10 + $0x8] sm:$0xff]
      %v4220 = vld [vmem:[%s10 + $0x10] sm:$0xff]
      %v4221 = vld [vmem:[%s10 + $0x18] sm:$0xff]
      %4223 = vset.pattern.permute.xlu0 0
      %4224 = vperm.xlu0 %4223, %v4218
      %v4225 = vpop.permute.xlu0 %4224
      %4228 = vset.pattern.permute.xlu0 0
      %4229 = vperm.xlu0 %4228, %v4219
      %v4230 = vpop.permute.xlu0 %4229
      %4233 = vset.pattern.permute.xlu0 0
      %4234 = vperm.xlu0 %4233, %v4220
      %v4235 = vpop.permute.xlu0 %4234
      %4238 = vset.pattern.permute.xlu0 0
      %4239 = vperm.xlu0 %4238, %v4221
      %v4240 = vpop.permute.xlu0 %4239
      %v4246 = vunpack.c.l.b16 %v4206
      %v4247 = vunpack.c.l.b16 %v4207
      %v4248 = vunpack.c.l.b16 %v4208
      %v4249 = vunpack.c.l.b16 %v4209
      %v4250 = vpack.c.b16 %v4247, %v4246
      %v4251 = vpack.c.b16 %v4249, %v4248
      %v4253 = vsel %vm2837, %v4250, 0
      %v4256 = vsel %vm2837, %v4251, 0
      %4258 = vmatprep.subr.bf16.mxu0 %v4211
      %4259 = vmatpush1.bf16.msra.mxu0 %v4210
      %4260 = vmatprep.subr.bf16.mxu0 %v4213
      %4261 = vmatpush1.bf16.msra.mxu0 %v4212
      %4262 = vmatprep.subr.bf16.mxu0 %v4215
      %4263 = vmatpush1.bf16.msra.mxu0 %v4214
      %4264 = vmatprep.subr.bf16.mxu0 %v4217
      %4265 = vmatpush1.bf16.msra.mxu0 %v4216
      %4266 = vmatprep.subr.bf16.mxu0 0
      %4267 = vmatpush1.bf16.msra.mxu0 0
      %4268 = vmatprep.subr.bf16.mxu0 0
      %4269 = vmatpush1.bf16.msra.mxu0 0
      %4270 = vmatprep.subr.bf16.mxu0 0
      %4271 = vmatpush1.bf16.msra.mxu0 0
      %4272 = vmatprep.subr.bf16.mxu0 0
      %4273 = vmatpush1.bf16.msra.mxu0 0
      %4274 = vmatprep.subr.bf16.mxu0 0
      %4275 = vmatpush1.bf16.msra.mxu0 0
      %4276 = vmatprep.subr.bf16.mxu0 0
      %4277 = vmatpush1.bf16.msra.mxu0 0
      %4278 = vmatprep.subr.bf16.mxu0 0
      %4279 = vmatpush1.bf16.msra.mxu0 0
      %4280 = vmatprep.subr.bf16.mxu0 0
      %4281 = vmatpush1.bf16.msra.mxu0 0
      %4282 = vmatprep.subr.bf16.mxu0 0
      %4283 = vmatpush1.bf16.msra.mxu0 0
      %4284 = vmatprep.subr.bf16.mxu0 0
      %4285 = vmatpush1.bf16.msra.mxu0 0
      %4286 = vmatprep.subr.bf16.mxu0 0
      %4287 = vmatpush1.bf16.msra.mxu0 0
      %4288 = vmatprep.subr.bf16.mxu0 0
      %4289 = vmatpush1.bf16.msra.mxu0 0
      %4290 = vmatprep.mubr.bf16.mxu0 0
      %4291 = vmatmul.mubr.bf16.gmra.mrb[0].mxu0 %v4253
      %v4292 = vpop.f32.mrb[0].mxu0
      %v4293 = vadd.f32 %v4225, %v4292
      %v4294 = vpop.f32.mrb[0].mxu0
      %v4295 = vadd.f32 %v4225, %v4294
      %v4296 = vpop.f32.mrb[0].mxu0
      %v4297 = vadd.f32 %v4230, %v4296
      %v4298 = vpop.f32.mrb[0].mxu0
      %v4299 = vadd.f32 %v4230, %v4298
      %4300 = vmatprep.mubr.bf16.mxu0 0
      %4301 = vmatmul.mubr.bf16.gmra.mrb[0].mxu0 %v4256
      %v4302 = vpop.f32.mrb[0].mxu0
      %v4303 = vadd.f32 %v4235, %v4302
      %v4304 = vpop.f32.mrb[0].mxu0
      %v4305 = vadd.f32 %v4235, %v4304
      %v4306 = vpop.f32.mrb[0].mxu0
      %v4307 = vadd.f32 %v4240, %v4306
      %v4308 = vpop.f32.mrb[0].mxu0
      %v4309 = vadd.f32 %v4240, %v4308
      %4310 = vdwg.mxu0
      %v4311 = vadd.f32 %v4188, %v4293
      %v4312 = vadd.f32 %v4190, %v4295
      %v4313 = vadd.f32 %v4192, %v4297
      %v4314 = vadd.f32 %v4194, %v4299
      %v4315 = vadd.f32 %v4198, %v4303
      %v4316 = vadd.f32 %v4200, %v4305
      %v4317 = vadd.f32 %v4202, %v4307
      %v4318 = vadd.f32 %v4204, %v4309
      %v4319 = vld [vmem:[%s11] sm:$0xff]
      %v4320 = vld [vmem:[%s11 + $0x8] sm:$0xff]
      %v4321 = vld [vmem:[%s11 + $0x10] sm:$0xff]
      %v4322 = vld [vmem:[%s11 + $0x18] sm:$0xff]
      %v4323 = vld [vmem:[%s12] sm:$0xff]
      %v4324 = vld [vmem:[%s12 + $0x8] sm:$0xff]
      %v4325 = vld [vmem:[%s12 + $0x10] sm:$0xff]
      %v4326 = vld [vmem:[%s12 + $0x18] sm:$0xff]
      %v4327 = vadd.f32 %v4311, %v4312
      %4328 = vadd.xlane.f32.xlu0 %v4327
      %v4329 = vpop.xlane.xlu0 %4328
      %v4330 = vadd.f32 %v4313, %v4314
      %4331 = vadd.xlane.f32.xlu0 %v4330
      %v4332 = vpop.xlane.xlu0 %4331
      %v4333 = vadd.f32 %v4315, %v4316
      %4334 = vadd.xlane.f32.xlu0 %v4333
      %v4335 = vpop.xlane.xlu0 %4334
      %v4336 = vadd.f32 %v4317, %v4318
      %4337 = vadd.xlane.f32.xlu0 %v4336
      %v4338 = vpop.xlane.xlu0 %4337
      %v4339 = vmul.f32 %v4311, %v4311
      %v4340 = vmul.f32 %v4312, %v4312
      %v4341 = vmul.f32 %v4313, %v4313
      %v4342 = vmul.f32 %v4314, %v4314
      %v4343 = vmul.f32 %v4315, %v4315
      %v4344 = vmul.f32 %v4316, %v4316
      %v4345 = vmul.f32 %v4317, %v4317
      %v4346 = vmul.f32 %v4318, %v4318
      %v4347 = vadd.f32 %v4339, %v4340
      %4348 = vadd.xlane.f32.xlu0 %v4347
      %v4349 = vpop.xlane.xlu0 %4348
      %v4350 = vadd.f32 %v4341, %v4342
      %4351 = vadd.xlane.f32.xlu0 %v4350
      %v4352 = vpop.xlane.xlu0 %4351
      %v4353 = vadd.f32 %v4343, %v4344
      %4354 = vadd.xlane.f32.xlu0 %v4353
      %v4355 = vpop.xlane.xlu0 %4354
      %v4356 = vadd.f32 %v4345, %v4346
      %4357 = vadd.xlane.f32.xlu0 %v4356
      %v4358 = vpop.xlane.xlu0 %4357
      %v4359 = vmul.f32 %v4329, %v3055
      %v4360 = vmul.f32 %v4332, %v3056
      %v4361 = vmul.f32 %v4335, %v3057
      %v4362 = vmul.f32 %v4338, %v3058
      %v4363 = vadd.f32 %v4359, %v4360
      %v4364 = vadd.f32 %v4363, %v4361
      %v4365 = vadd.f32 %v4364, %v4362
      %v4366 = vrot.slane %v4365, 4
      %v4367 = vadd.f32 %v4365, %v4366
      %v4368 = vrot.slane %v4367, 2
      %v4369 = vadd.f32 %v4367, %v4368
      %v4370 = vrot.slane %v4369, 1
      %v4371 = vadd.f32 %v4369, %v4370
      %v4372 = vmul.f32 %v3055, %v4371
      %v4373 = vmul.f32 %v3056, %v4371
      %v4374 = vmul.f32 %v3057, %v4371
      %v4375 = vmul.f32 %v3058, %v4371
      %v4376 = vadd.f32 %v4372, 0.0
      %v4377 = vadd.f32 %v4373, 0.0
      %v4378 = vadd.f32 %v4374, 0.0
      %v4379 = vadd.f32 %v4375, 0.0
      %v4380 = vmul.f32 %v4349, %v3055
      %v4381 = vmul.f32 %v4352, %v3056
      %v4382 = vmul.f32 %v4355, %v3057
      %v4383 = vmul.f32 %v4358, %v3058
      %v4384 = vadd.f32 %v4380, %v4381
      %v4385 = vadd.f32 %v4384, %v4382
      %v4386 = vadd.f32 %v4385, %v4383
      %v4387 = vrot.slane %v4386, 4
      %v4388 = vadd.f32 %v4386, %v4387
      %v4389 = vrot.slane %v4388, 2
      %v4390 = vadd.f32 %v4388, %v4389
      %v4391 = vrot.slane %v4390, 1
      %v4392 = vadd.f32 %v4390, %v4391
      %v4393 = vmul.f32 %v3055, %v4392
      %v4394 = vmul.f32 %v3056, %v4392
      %v4395 = vmul.f32 %v3057, %v4392
      %v4396 = vmul.f32 %v3058, %v4392
      %v4397 = vadd.f32 %v4393, 0.0
      %v4398 = vadd.f32 %v4394, 0.0
      %v4399 = vadd.f32 %v4395, 0.0
      %v4400 = vadd.f32 %v4396, 0.0
      %v4401 = vmul.f32 %v4329, %v3113
      %v4402 = vmul.f32 %v4332, %v3114
      %v4403 = vmul.f32 %v4335, %v3115
      %v4404 = vmul.f32 %v4338, %v3116
      %v4405 = vadd.f32 %v4401, %v4402
      %v4406 = vadd.f32 %v4405, %v4403
      %v4407 = vadd.f32 %v4406, %v4404
      %v4408 = vrot.slane %v4407, 4
      %v4409 = vadd.f32 %v4407, %v4408
      %v4410 = vrot.slane %v4409, 2
      %v4411 = vadd.f32 %v4409, %v4410
      %v4412 = vrot.slane %v4411, 1
      %v4413 = vadd.f32 %v4411, %v4412
      %v4414 = vmul.f32 %v3113, %v4413
      %v4415 = vmul.f32 %v3114, %v4413
      %v4416 = vmul.f32 %v3115, %v4413
      %v4417 = vmul.f32 %v3116, %v4413
      %v4418 = vadd.f32 %v4376, %v4414
      %v4419 = vadd.f32 %v4377, %v4415
      %v4420 = vadd.f32 %v4378, %v4416
      %v4421 = vadd.f32 %v4379, %v4417
      %v4422 = vmul.f32 %v4349, %v3113
      %v4423 = vmul.f32 %v4352, %v3114
      %v4424 = vmul.f32 %v4355, %v3115
      %v4425 = vmul.f32 %v4358, %v3116
      %v4426 = vadd.f32 %v4422, %v4423
      %v4427 = vadd.f32 %v4426, %v4424
      %v4428 = vadd.f32 %v4427, %v4425
      %v4429 = vrot.slane %v4428, 4
      %v4430 = vadd.f32 %v4428, %v4429
      %v4431 = vrot.slane %v4430, 2
      %v4432 = vadd.f32 %v4430, %v4431
      %v4433 = vrot.slane %v4432, 1
      %v4434 = vadd.f32 %v4432, %v4433
      %v4435 = vmul.f32 %v3113, %v4434
      %v4436 = vmul.f32 %v3114, %v4434
      %v4437 = vmul.f32 %v3115, %v4434
      %v4438 = vmul.f32 %v3116, %v4434
      %v4439 = vadd.f32 %v4397, %v4435
      %v4440 = vadd.f32 %v4398, %v4436
      %v4441 = vadd.f32 %v4399, %v4437
      %v4442 = vadd.f32 %v4400, %v4438
      %v4443 = vmul.f32 %v4329, %v3171
      %v4444 = vmul.f32 %v4332, %v3172
      %v4445 = vmul.f32 %v4335, %v3173
      %v4446 = vmul.f32 %v4338, %v3174
      %v4447 = vadd.f32 %v4443, %v4444
      %v4448 = vadd.f32 %v4447, %v4445
      %v4449 = vadd.f32 %v4448, %v4446
      %v4450 = vrot.slane %v4449, 4
      %v4451 = vadd.f32 %v4449, %v4450
      %v4452 = vrot.slane %v4451, 2
      %v4453 = vadd.f32 %v4451, %v4452
      %v4454 = vrot.slane %v4453, 1
      %v4455 = vadd.f32 %v4453, %v4454
      %v4456 = vmul.f32 %v3171, %v4455
      %v4457 = vmul.f32 %v3172, %v4455
      %v4458 = vmul.f32 %v3173, %v4455
      %v4459 = vmul.f32 %v3174, %v4455
      %v4460 = vadd.f32 %v4418, %v4456
      %v4461 = vadd.f32 %v4419, %v4457
      %v4462 = vadd.f32 %v4420, %v4458
      %v4463 = vadd.f32 %v4421, %v4459
      %v4464 = vmul.f32 %v4349, %v3171
      %v4465 = vmul.f32 %v4352, %v3172
      %v4466 = vmul.f32 %v4355, %v3173
      %v4467 = vmul.f32 %v4358, %v3174
      %v4468 = vadd.f32 %v4464, %v4465
      %v4469 = vadd.f32 %v4468, %v4466
      %v4470 = vadd.f32 %v4469, %v4467
      %v4471 = vrot.slane %v4470, 4
      %v4472 = vadd.f32 %v4470, %v4471
      %v4473 = vrot.slane %v4472, 2
      %v4474 = vadd.f32 %v4472, %v4473
      %v4475 = vrot.slane %v4474, 1
      %v4476 = vadd.f32 %v4474, %v4475
      %v4477 = vmul.f32 %v3171, %v4476
      %v4478 = vmul.f32 %v3172, %v4476
      %v4479 = vmul.f32 %v3173, %v4476
      %v4480 = vmul.f32 %v3174, %v4476
      %v4481 = vadd.f32 %v4439, %v4477
      %v4482 = vadd.f32 %v4440, %v4478
      %v4483 = vadd.f32 %v4441, %v4479
      %v4484 = vadd.f32 %v4442, %v4480
      %v4485 = vmul.f32 %v4329, %v3229
      %v4486 = vmul.f32 %v4332, %v3230
      %v4487 = vmul.f32 %v4335, %v3231
      %v4488 = vmul.f32 %v4338, %v3232
      %v4489 = vadd.f32 %v4485, %v4486
      %v4490 = vadd.f32 %v4489, %v4487
      %v4491 = vadd.f32 %v4490, %v4488
      %v4492 = vrot.slane %v4491, 4
      %v4493 = vadd.f32 %v4491, %v4492
      %v4494 = vrot.slane %v4493, 2
      %v4495 = vadd.f32 %v4493, %v4494
      %v4496 = vrot.slane %v4495, 1
      %v4497 = vadd.f32 %v4495, %v4496
      %v4498 = vmul.f32 %v3229, %v4497
      %v4499 = vmul.f32 %v3230, %v4497
      %v4500 = vmul.f32 %v3231, %v4497
      %v4501 = vmul.f32 %v3232, %v4497
      %v4502 = vadd.f32 %v4460, %v4498
      %v4503 = vadd.f32 %v4461, %v4499
      %v4504 = vadd.f32 %v4462, %v4500
      %v4505 = vadd.f32 %v4463, %v4501
      %v4506 = vmul.f32 %v4349, %v3229
      %v4507 = vmul.f32 %v4352, %v3230
      %v4508 = vmul.f32 %v4355, %v3231
      %v4509 = vmul.f32 %v4358, %v3232
      %v4510 = vadd.f32 %v4506, %v4507
      %v4511 = vadd.f32 %v4510, %v4508
      %v4512 = vadd.f32 %v4511, %v4509
      %v4513 = vrot.slane %v4512, 4
      %v4514 = vadd.f32 %v4512, %v4513
      %v4515 = vrot.slane %v4514, 2
      %v4516 = vadd.f32 %v4514, %v4515
      %v4517 = vrot.slane %v4516, 1
      %v4518 = vadd.f32 %v4516, %v4517
      %v4519 = vmul.f32 %v3229, %v4518
      %v4520 = vmul.f32 %v3230, %v4518
      %v4521 = vmul.f32 %v3231, %v4518
      %v4522 = vmul.f32 %v3232, %v4518
      %v4523 = vadd.f32 %v4481, %v4519
      %v4524 = vadd.f32 %v4482, %v4520
      %v4525 = vadd.f32 %v4483, %v4521
      %v4526 = vadd.f32 %v4484, %v4522
      %v4527 = vmul.f32 %v4329, %v3287
      %v4528 = vmul.f32 %v4332, %v3288
      %v4529 = vmul.f32 %v4335, %v3289
      %v4530 = vmul.f32 %v4338, %v3290
      %v4531 = vadd.f32 %v4527, %v4528
      %v4532 = vadd.f32 %v4531, %v4529
      %v4533 = vadd.f32 %v4532, %v4530
      %v4534 = vrot.slane %v4533, 4
      %v4535 = vadd.f32 %v4533, %v4534
      %v4536 = vrot.slane %v4535, 2
      %v4537 = vadd.f32 %v4535, %v4536
      %v4538 = vrot.slane %v4537, 1
      %v4539 = vadd.f32 %v4537, %v4538
      %v4540 = vmul.f32 %v3287, %v4539
      %v4541 = vmul.f32 %v3288, %v4539
      %v4542 = vmul.f32 %v3289, %v4539
      %v4543 = vmul.f32 %v3290, %v4539
      %v4544 = vadd.f32 %v4502, %v4540
      %v4545 = vadd.f32 %v4503, %v4541
      %v4546 = vadd.f32 %v4504, %v4542
      %v4547 = vadd.f32 %v4505, %v4543
      %v4548 = vmul.f32 %v4349, %v3287
      %v4549 = vmul.f32 %v4352, %v3288
      %v4550 = vmul.f32 %v4355, %v3289
      %v4551 = vmul.f32 %v4358, %v3290
      %v4552 = vadd.f32 %v4548, %v4549
      %v4553 = vadd.f32 %v4552, %v4550
      %v4554 = vadd.f32 %v4553, %v4551
      %v4555 = vrot.slane %v4554, 4
      %v4556 = vadd.f32 %v4554, %v4555
      %v4557 = vrot.slane %v4556, 2
      %v4558 = vadd.f32 %v4556, %v4557
      %v4559 = vrot.slane %v4558, 1
      %v4560 = vadd.f32 %v4558, %v4559
      %v4561 = vmul.f32 %v3287, %v4560
      %v4562 = vmul.f32 %v3288, %v4560
      %v4563 = vmul.f32 %v3289, %v4560
      %v4564 = vmul.f32 %v3290, %v4560
      %v4565 = vadd.f32 %v4523, %v4561
      %v4566 = vadd.f32 %v4524, %v4562
      %v4567 = vadd.f32 %v4525, %v4563
      %v4568 = vadd.f32 %v4526, %v4564
      %v4569 = vmul.f32 %v4329, %v3345
      %v4570 = vmul.f32 %v4332, %v3346
      %v4571 = vmul.f32 %v4335, %v3347
      %v4572 = vmul.f32 %v4338, %v3348
      %v4573 = vadd.f32 %v4569, %v4570
      %v4574 = vadd.f32 %v4573, %v4571
      %v4575 = vadd.f32 %v4574, %v4572
      %v4576 = vrot.slane %v4575, 4
      %v4577 = vadd.f32 %v4575, %v4576
      %v4578 = vrot.slane %v4577, 2
      %v4579 = vadd.f32 %v4577, %v4578
      %v4580 = vrot.slane %v4579, 1
      %v4581 = vadd.f32 %v4579, %v4580
      %v4582 = vmul.f32 %v3345, %v4581
      %v4583 = vmul.f32 %v3346, %v4581
      %v4584 = vmul.f32 %v3347, %v4581
      %v4585 = vmul.f32 %v3348, %v4581
      %v4586 = vadd.f32 %v4544, %v4582
      %v4587 = vadd.f32 %v4545, %v4583
      %v4588 = vadd.f32 %v4546, %v4584
      %v4589 = vadd.f32 %v4547, %v4585
      %v4590 = vmul.f32 %v4349, %v3345
      %v4591 = vmul.f32 %v4352, %v3346
      %v4592 = vmul.f32 %v4355, %v3347
      %v4593 = vmul.f32 %v4358, %v3348
      %v4594 = vadd.f32 %v4590, %v4591
      %v4595 = vadd.f32 %v4594, %v4592
      %v4596 = vadd.f32 %v4595, %v4593
      %v4597 = vrot.slane %v4596, 4
      %v4598 = vadd.f32 %v4596, %v4597
      %v4599 = vrot.slane %v4598, 2
      %v4600 = vadd.f32 %v4598, %v4599
      %v4601 = vrot.slane %v4600, 1
      %v4602 = vadd.f32 %v4600, %v4601
      %v4603 = vmul.f32 %v3345, %v4602
      %v4604 = vmul.f32 %v3346, %v4602
      %v4605 = vmul.f32 %v3347, %v4602
      %v4606 = vmul.f32 %v3348, %v4602
      %v4607 = vadd.f32 %v4565, %v4603
      %v4608 = vadd.f32 %v4566, %v4604
      %v4609 = vadd.f32 %v4567, %v4605
      %v4610 = vadd.f32 %v4568, %v4606
      %v4611 = vmul.f32 %v4329, %v3403
      %v4612 = vmul.f32 %v4332, %v3404
      %v4613 = vmul.f32 %v4335, %v3405
      %v4614 = vmul.f32 %v4338, %v3406
      %v4615 = vadd.f32 %v4611, %v4612
      %v4616 = vadd.f32 %v4615, %v4613
      %v4617 = vadd.f32 %v4616, %v4614
      %v4618 = vrot.slane %v4617, 4
      %v4619 = vadd.f32 %v4617, %v4618
      %v4620 = vrot.slane %v4619, 2
      %v4621 = vadd.f32 %v4619, %v4620
      %v4622 = vrot.slane %v4621, 1
      %v4623 = vadd.f32 %v4621, %v4622
      %v4624 = vmul.f32 %v3403, %v4623
      %v4625 = vmul.f32 %v3404, %v4623
      %v4626 = vmul.f32 %v3405, %v4623
      %v4627 = vmul.f32 %v3406, %v4623
      %v4628 = vadd.f32 %v4586, %v4624
      %v4629 = vadd.f32 %v4587, %v4625
      %v4630 = vadd.f32 %v4588, %v4626
      %v4631 = vadd.f32 %v4589, %v4627
      %v4632 = vmul.f32 %v4349, %v3403
      %v4633 = vmul.f32 %v4352, %v3404
      %v4634 = vmul.f32 %v4355, %v3405
      %v4635 = vmul.f32 %v4358, %v3406
      %v4636 = vadd.f32 %v4632, %v4633
      %v4637 = vadd.f32 %v4636, %v4634
      %v4638 = vadd.f32 %v4637, %v4635
      %v4639 = vrot.slane %v4638, 4
      %v4640 = vadd.f32 %v4638, %v4639
      %v4641 = vrot.slane %v4640, 2
      %v4642 = vadd.f32 %v4640, %v4641
      %v4643 = vrot.slane %v4642, 1
      %v4644 = vadd.f32 %v4642, %v4643
      %v4645 = vmul.f32 %v3403, %v4644
      %v4646 = vmul.f32 %v3404, %v4644
      %v4647 = vmul.f32 %v3405, %v4644
      %v4648 = vmul.f32 %v3406, %v4644
      %v4649 = vadd.f32 %v4607, %v4645
      %v4650 = vadd.f32 %v4608, %v4646
      %v4651 = vadd.f32 %v4609, %v4647
      %v4652 = vadd.f32 %v4610, %v4648
      %v4653 = vmul.f32 %v4329, %v3461
      %v4654 = vmul.f32 %v4332, %v3462
      %v4655 = vmul.f32 %v4335, %v3463
      %v4656 = vmul.f32 %v4338, %v3464
      %v4657 = vadd.f32 %v4653, %v4654
      %v4658 = vadd.f32 %v4657, %v4655
      %v4659 = vadd.f32 %v4658, %v4656
      %v4660 = vrot.slane %v4659, 4
      %v4661 = vadd.f32 %v4659, %v4660
      %v4662 = vrot.slane %v4661, 2
      %v4663 = vadd.f32 %v4661, %v4662
      %v4664 = vrot.slane %v4663, 1
      %v4665 = vadd.f32 %v4663, %v4664
      %v4666 = vmul.f32 %v3461, %v4665
      %v4667 = vmul.f32 %v3462, %v4665
      %v4668 = vmul.f32 %v3463, %v4665
      %v4669 = vmul.f32 %v3464, %v4665
      %v4670 = vadd.f32 %v4628, %v4666
      %v4671 = vadd.f32 %v4629, %v4667
      %v4672 = vadd.f32 %v4630, %v4668
      %v4673 = vadd.f32 %v4631, %v4669
      %v4674 = vmul.f32 %v4349, %v3461
      %v4675 = vmul.f32 %v4352, %v3462
      %v4676 = vmul.f32 %v4355, %v3463
      %v4677 = vmul.f32 %v4358, %v3464
      %v4678 = vadd.f32 %v4674, %v4675
      %v4679 = vadd.f32 %v4678, %v4676
      %v4680 = vadd.f32 %v4679, %v4677
      %v4681 = vrot.slane %v4680, 4
      %v4682 = vadd.f32 %v4680, %v4681
      %v4683 = vrot.slane %v4682, 2
      %v4684 = vadd.f32 %v4682, %v4683
      %v4685 = vrot.slane %v4684, 1
      %v4686 = vadd.f32 %v4684, %v4685
      %v4687 = vmul.f32 %v3461, %v4686
      %v4688 = vmul.f32 %v3462, %v4686
      %v4689 = vmul.f32 %v3463, %v4686
      %v4690 = vmul.f32 %v3464, %v4686
      %v4691 = vadd.f32 %v4649, %v4687
      %v4692 = vadd.f32 %v4650, %v4688
      %v4693 = vadd.f32 %v4651, %v4689
      %v4694 = vadd.f32 %v4652, %v4690
      %v4695 = vmul.f32 %v4670, 0.0009765625
      %v4696 = vmul.f32 %v4671, 0.0009765625
      %v4697 = vmul.f32 %v4672, 0.0009765625
      %v4698 = vmul.f32 %v4673, 0.0009765625
      %v4699 = vmul.f32 %v4691, 0.0009765625
      %v4700 = vmul.f32 %v4692, 0.0009765625
      %v4701 = vmul.f32 %v4693, 0.0009765625
      %v4702 = vmul.f32 %v4694, 0.0009765625
      %v4703 = vmul.f32 %v4695, %v4695
      %v4704 = vmul.f32 %v4696, %v4696
      %v4705 = vmul.f32 %v4697, %v4697
      %v4706 = vmul.f32 %v4698, %v4698
      %v4707 = vsub.f32 %v4699, %v4703
      %v4708 = vsub.f32 %v4700, %v4704
      %v4709 = vsub.f32 %v4701, %v4705
      %v4710 = vsub.f32 %v4702, %v4706
      %v4711 = vsub.f32 %v4311, %v4695
      %v4712 = vsub.f32 %v4312, %v4695
      %v4713 = vsub.f32 %v4313, %v4696
      %v4714 = vsub.f32 %v4314, %v4696
      %v4715 = vsub.f32 %v4315, %v4697
      %v4716 = vsub.f32 %v4316, %v4697
      %v4717 = vsub.f32 %v4317, %v4698
      %v4718 = vsub.f32 %v4318, %v4698
      %v4719 = vadd.f32 %v4707, 1e-05
      %v4720 = vadd.f32 %v4708, 1e-05
      %v4721 = vadd.f32 %v4709, 1e-05
      %v4722 = vadd.f32 %v4710, 1e-05
      %v4723 = vrsqrt.pop %v4719
      %v4724 = vrsqrt.pop %v4720
      %v4725 = vrsqrt.pop %v4721
      %v4726 = vrsqrt.pop %v4722
      %v4727 = vmul.f32 %v4723, %v4319
      %v4728 = vmul.f32 %v4724, %v4320
      %v4729 = vmul.f32 %v4725, %v4321
      %v4730 = vmul.f32 %v4726, %v4322
      %4732 = vset.pattern.permute.xlu0 0
      %4733 = vperm.xlu0 %4732, %v4727
      %v4734 = vpop.permute.xlu0 %4733
      %4737 = vset.pattern.permute.xlu0 0
      %4738 = vperm.xlu0 %4737, %v4728
      %v4739 = vpop.permute.xlu0 %4738
      %4742 = vset.pattern.permute.xlu0 0
      %4743 = vperm.xlu0 %4742, %v4729
      %v4744 = vpop.permute.xlu0 %4743
      %4747 = vset.pattern.permute.xlu0 0
      %4748 = vperm.xlu0 %4747, %v4730
      %v4749 = vpop.permute.xlu0 %4748
      %v4751 = vmul.f32 %v4711, %v4734
      %v4752 = vmul.f32 %v4712, %v4734
      %v4753 = vmul.f32 %v4713, %v4739
      %v4754 = vmul.f32 %v4714, %v4739
      %v4755 = vmul.f32 %v4715, %v4744
      %v4756 = vmul.f32 %v4716, %v4744
      %v4757 = vmul.f32 %v4717, %v4749
      %v4758 = vmul.f32 %v4718, %v4749
      %4760 = vset.pattern.permute.xlu0 0
      %4761 = vperm.xlu0 %4760, %v4323
      %v4762 = vpop.permute.xlu0 %4761
      %4765 = vset.pattern.permute.xlu0 0
      %4766 = vperm.xlu0 %4765, %v4324
      %v4767 = vpop.permute.xlu0 %4766
      %4770 = vset.pattern.permute.xlu0 0
      %4771 = vperm.xlu0 %4770, %v4325
      %v4772 = vpop.permute.xlu0 %4771
      %4775 = vset.pattern.permute.xlu0 0
      %4776 = vperm.xlu0 %4775, %v4326
      %v4777 = vpop.permute.xlu0 %4776
      %v4779 = vadd.f32 %v4751, %v4762
      %v4780 = vadd.f32 %v4752, %v4762
      %v4781 = vadd.f32 %v4753, %v4767
      %v4782 = vadd.f32 %v4754, %v4767
      %v4783 = vadd.f32 %v4755, %v4772
      %v4784 = vadd.f32 %v4756, %v4772
      %v4785 = vadd.f32 %v4757, %v4777
      %v4786 = vadd.f32 %v4758, %v4777
      %v4787 = vld [vmem:[%s13] sm:$0xf]
      %v4788 = vld [vmem:[%s13 + $0x4] sm:$0xf]
      %v4789 = vld [vmem:[%s13 + $0x8] sm:$0xf]
      %v4790 = vld [vmem:[%s13 + $0xc] sm:$0xf]
      %v4791 = vld [vmem:[%s13 + $0x10] sm:$0xf]
      %v4792 = vld [vmem:[%s13 + $0x14] sm:$0xf]
      %v4793 = vld [vmem:[%s13 + $0x18] sm:$0xf]
      %v4794 = vld [vmem:[%s13 + $0x1c] sm:$0xf]
      %v4795 = vld [vmem:[%s13 + $0x20] sm:$0xf]
      %v4796 = vld [vmem:[%s13 + $0x24] sm:$0xf]
      %v4797 = vld [vmem:[%s13 + $0x28] sm:$0xf]
      %v4798 = vld [vmem:[%s13 + $0x2c] sm:$0xf]
      %v4799 = vpack.c.bf16 %v4781, %v4779
      %v4800 = vpack.c.bf16 %v4782, %v4780
      %v4801 = vpack.c.bf16 %v4785, %v4783
      %v4802 = vpack.c.bf16 %v4786, %v4784
      %v4803 = vld [vmem:[%s14] sm:$0xff]
      %v4804 = vld [vmem:[%s14 + $0x8] sm:$0xff]
      %v4805 = vld [vmem:[%s14 + $0x10] sm:$0xff]
      %v4806 = vld [vmem:[%s14 + $0x18] sm:$0xff]
      %v4807 = vld [vmem:[%s14 + $0x20] sm:$0xff]
      %v4808 = vld [vmem:[%s14 + $0x28] sm:$0xff]
      %v4809 = vld [vmem:[%s14 + $0x30] sm:$0xff]
      %v4810 = vld [vmem:[%s14 + $0x38] sm:$0xff]
      %v4811 = vld [vmem:[%s14 + $0x40] sm:$0xff]
      %v4812 = vld [vmem:[%s14 + $0x48] sm:$0xff]
      %v4813 = vld [vmem:[%s14 + $0x50] sm:$0xff]
      %v4814 = vld [vmem:[%s14 + $0x58] sm:$0xff]
      %4816 = vset.pattern.permute.xlu0 0
      %4817 = vperm.xlu0 %4816, %v4803
      %v4818 = vpop.permute.xlu0 %4817
      %4821 = vset.pattern.permute.xlu0 0
      %4822 = vperm.xlu0 %4821, %v4804
      %v4823 = vpop.permute.xlu0 %4822
      %4826 = vset.pattern.permute.xlu0 0
      %4827 = vperm.xlu0 %4826, %v4805
      %v4828 = vpop.permute.xlu0 %4827
      %4831 = vset.pattern.permute.xlu0 0
      %4832 = vperm.xlu0 %4831, %v4806
      %v4833 = vpop.permute.xlu0 %4832
      %4836 = vset.pattern.permute.xlu0 0
      %4837 = vperm.xlu0 %4836, %v4807
      %v4838 = vpop.permute.xlu0 %4837
      %4841 = vset.pattern.permute.xlu0 0
      %4842 = vperm.xlu0 %4841, %v4808
      %v4843 = vpop.permute.xlu0 %4842
      %4846 = vset.pattern.permute.xlu0 0
      %4847 = vperm.xlu0 %4846, %v4809
      %v4848 = vpop.permute.xlu0 %4847
      %4851 = vset.pattern.permute.xlu0 0
      %4852 = vperm.xlu0 %4851, %v4810
      %v4853 = vpop.permute.xlu0 %4852
      %4856 = vset.pattern.permute.xlu0 0
      %4857 = vperm.xlu0 %4856, %v4811
      %v4858 = vpop.permute.xlu0 %4857
      %4861 = vset.pattern.permute.xlu0 0
      %4862 = vperm.xlu0 %4861, %v4812
      %v4863 = vpop.permute.xlu0 %4862
      %4866 = vset.pattern.permute.xlu0 0
      %4867 = vperm.xlu0 %4866, %v4813
      %v4868 = vpop.permute.xlu0 %4867
      %4871 = vset.pattern.permute.xlu0 0
      %4872 = vperm.xlu0 %4871, %v4814
      %v4873 = vpop.permute.xlu0 %4872
      %v4887 = vunpack.c.l.b16 %v4787
      %v4888 = vunpack.c.l.b16 %v4788
      %v4889 = vunpack.c.l.b16 %v4789
      %v4890 = vunpack.c.l.b16 %v4790
      %v4891 = vunpack.c.l.b16 %v4791
      %v4892 = vunpack.c.l.b16 %v4792
      %v4893 = vunpack.c.l.b16 %v4793
      %v4894 = vunpack.c.l.b16 %v4794
      %v4895 = vunpack.c.l.b16 %v4795
      %v4896 = vunpack.c.l.b16 %v4796
      %v4897 = vunpack.c.l.b16 %v4797
      %v4898 = vunpack.c.l.b16 %v4798
      %v4899 = vpack.c.b16 %v4888, %v4887
      %v4900 = vpack.c.b16 %v4890, %v4889
      %v4901 = vpack.c.b16 %v4892, %v4891
      %v4902 = vpack.c.b16 %v4894, %v4893
      %v4903 = vpack.c.b16 %v4896, %v4895
      %v4904 = vpack.c.b16 %v4898, %v4897
      %v4906 = vsel %vm4093, %v4899, 0
      %v4909 = vsel %vm4093, %v4900, 0
      %v4912 = vsel %vm4093, %v4901, 0
      %v4915 = vsel %vm4093, %v4902, 0
      %v4918 = vsel %vm4093, %v4903, 0
      %v4921 = vsel %vm4093, %v4904, 0
      %4923 = vmatprep.subr.bf16.mxu0 %v4800
      %4924 = vmatpush1.bf16.msra.mxu0 %v4799
      %4925 = vmatprep.subr.bf16.mxu0 %v4802
      %4926 = vmatpush1.bf16.msra.mxu0 %v4801
      %4927 = vmatprep.subr.bf16.mxu0 0
      %4928 = vmatpush1.bf16.msra.mxu0 0
      %4929 = vmatprep.subr.bf16.mxu0 0
      %4930 = vmatpush1.bf16.msra.mxu0 0
      %4931 = vmatprep.subr.bf16.mxu0 0
      %4932 = vmatpush1.bf16.msra.mxu0 0
      %4933 = vmatprep.subr.bf16.mxu0 0
      %4934 = vmatpush1.bf16.msra.mxu0 0
      %4935 = vmatprep.subr.bf16.mxu0 0
      %4936 = vmatpush1.bf16.msra.mxu0 0
      %4937 = vmatprep.subr.bf16.mxu0 0
      %4938 = vmatpush1.bf16.msra.mxu0 0
      %4939 = vmatprep.subr.bf16.mxu0 0
      %4940 = vmatpush1.bf16.msra.mxu0 0
      %4941 = vmatprep.subr.bf16.mxu0 0
      %4942 = vmatpush1.bf16.msra.mxu0 0
      %4943 = vmatprep.subr.bf16.mxu0 0
      %4944 = vmatpush1.bf16.msra.mxu0 0
      %4945 = vmatprep.subr.bf16.mxu0 0
      %4946 = vmatpush1.bf16.msra.mxu0 0
      %4947 = vmatprep.subr.bf16.mxu0 0
      %4948 = vmatpush1.bf16.msra.mxu0 0
      %4949 = vmatprep.subr.bf16.mxu0 0
      %4950 = vmatpush1.bf16.msra.mxu0 0
      %4951 = vmatprep.subr.bf16.mxu0 0
      %4952 = vmatpush1.bf16.msra.mxu0 0
      %4953 = vmatprep.subr.bf16.mxu0 0
      %4954 = vmatpush1.bf16.msra.mxu0 0
      %4955 = vmatprep.mubr.bf16.mxu0 0
      %4956 = vmatmul.mubr.bf16.gmra.mrb[0].mxu0 %v4906
      %v4957 = vpop.f32.mrb[0].mxu0
      %v4958 = vadd.f32 %v4818, %v4957
      %v4959 = vpop.f32.mrb[0].mxu0
      %v4960 = vadd.f32 %v4818, %v4959
      %v4961 = vpop.f32.mrb[0].mxu0
      %v4962 = vadd.f32 %v4823, %v4961
      %v4963 = vpop.f32.mrb[0].mxu0
      %v4964 = vadd.f32 %v4823, %v4963
      %4965 = vmatprep.mubr.bf16.mxu0 0
      %4966 = vmatmul.mubr.bf16.gmra.mrb[0].mxu0 %v4909
      %v4967 = vpop.f32.mrb[0].mxu0
      %v4968 = vadd.f32 %v4828, %v4967
      %v4969 = vpop.f32.mrb[0].mxu0
      %v4970 = vadd.f32 %v4828, %v4969
      %v4971 = vpop.f32.mrb[0].mxu0
      %v4972 = vadd.f32 %v4833, %v4971
      %v4973 = vpop.f32.mrb[0].mxu0
      %v4974 = vadd.f32 %v4833, %v4973
      %4975 = vmatprep.mubr.bf16.mxu0 0
      %4976 = vmatmul.mubr.bf16.gmra.mrb[0].mxu0 %v4912
      %v4977 = vpop.f32.mrb[0].mxu0
      %v4978 = vadd.f32 %v4838, %v4977
      %v4979 = vpop.f32.mrb[0].mxu0
      %v4980 = vadd.f32 %v4838, %v4979
      %v4981 = vpop.f32.mrb[0].mxu0
      %v4982 = vadd.f32 %v4843, %v4981
      %v4983 = vpop.f32.mrb[0].mxu0
      %v4984 = vadd.f32 %v4843, %v4983
      %4985 = vmatprep.mubr.bf16.mxu0 0
      %4986 = vmatmul.mubr.bf16.gmra.mrb[0].mxu0 %v4915
      %v4987 = vpop.f32.mrb[0].mxu0
      %v4988 = vadd.f32 %v4848, %v4987
      %v4989 = vpop.f32.mrb[0].mxu0
      %v4990 = vadd.f32 %v4848, %v4989
      %v4991 = vpop.f32.mrb[0].mxu0
      %v4992 = vadd.f32 %v4853, %v4991
      %v4993 = vpop.f32.mrb[0].mxu0
      %v4994 = vadd.f32 %v4853, %v4993
      %4995 = vmatprep.mubr.bf16.mxu0 0
      %4996 = vmatmul.mubr.bf16.gmra.mrb[0].mxu0 %v4918
      %v4997 = vpop.f32.mrb[0].mxu0
      %v4998 = vadd.f32 %v4858, %v4997
      %v4999 = vpop.f32.mrb[0].mxu0
      %v5000 = vadd.f32 %v4858, %v4999
      %v5001 = vpop.f32.mrb[0].mxu0
      %v5002 = vadd.f32 %v4863, %v5001
      %v5003 = vpop.f32.mrb[0].mxu0
      %v5004 = vadd.f32 %v4863, %v5003
      %5005 = vmatprep.mubr.bf16.mxu0 0
      %5006 = vmatmul.mubr.bf16.gmra.mrb[0].mxu0 %v4921
      %v5007 = vpop.f32.mrb[0].mxu0
      %v5008 = vadd.f32 %v4868, %v5007
      %v5009 = vpop.f32.mrb[0].mxu0
      %v5010 = vadd.f32 %v4868, %v5009
      %v5011 = vpop.f32.mrb[0].mxu0
      %v5012 = vadd.f32 %v4873, %v5011
      %v5013 = vpop.f32.mrb[0].mxu0
      %v5014 = vadd.f32 %v4873, %v5013
      %5015 = vdwg.mxu0
      %v5016 = vmul.f32 %v4958, 0.35355338
      %v5017 = vmul.f32 %v4960, 0.35355338
      %v5018 = vmul.f32 %v4962, 0.35355338
      %v5019 = vmul.f32 %v4964, 0.35355338
      %v5020 = vmul.f32 %v4968, 0.35355338
      %v5021 = vmul.f32 %v4970, 0.35355338
      %v5022 = vmul.f32 %v4972, 0.35355338
      %v5023 = vmul.f32 %v4974, 0.35355338
      %v5024 = vpack.c.bf16 %v5018, %v5016
      %v5025 = vpack.c.bf16 %v5019, %v5017
      %v5026 = vpack.c.bf16 %v5022, %v5020
      %v5027 = vpack.c.bf16 %v5023, %v5021
      %5028 = vxpose.xlu0.c.b16.start [1/8] %v5024, 128
      %5029 = vxpose.xlu0.c.b16.cont [2/8] %v5026, 128
      %5030 = vxpose.xlu0.c.b16.cont [3/8] 0, 128
      %5031 = vxpose.xlu0.c.b16.cont [4/8] 0, 128
      %5032 = vxpose.xlu0.c.b16.cont [5/8] 0, 128
      %5033 = vxpose.xlu0.c.b16.cont [6/8] 0, 128
      %5034 = vxpose.xlu0.c.b16.cont [7/8] 0, 128
      %5035 = vxpose.xlu0.c.b16.end [8/8] 0, 128
      %v5036 = vpop.trf.xlu0
      %v5037 = vpop.trf.xlu0
      %v5038 = vpop.trf.xlu0
      %v5039 = vpop.trf.xlu0
      %v5040 = vpop.trf.xlu0
      %v5041 = vpop.trf.xlu0
      %v5042 = vpop.trf.xlu0
      %v5043 = vpop.trf.xlu0
      %5044 = vxpose.xlu0.c.b16.start [1/8] %v5025, 128
      %5045 = vxpose.xlu0.c.b16.cont [2/8] %v5027, 128
      %5046 = vxpose.xlu0.c.b16.cont [3/8] 0, 128
      %5047 = vxpose.xlu0.c.b16.cont [4/8] 0, 128
      %5048 = vxpose.xlu0.c.b16.cont [5/8] 0, 128
      %5049 = vxpose.xlu0.c.b16.cont [6/8] 0, 128
      %5050 = vxpose.xlu0.c.b16.cont [7/8] 0, 128
      %5051 = vxpose.xlu0.c.b16.end [8/8] 0, 128
      %v5052 = vpop.trf.xlu0
      %v5053 = vpop.trf.xlu0
      %v5054 = vpop.trf.xlu0
      %v5055 = vpop.trf.xlu0
      %v5056 = vpop.trf.xlu0
      %v5057 = vpop.trf.xlu0
      %v5058 = vpop.trf.xlu0
      %v5059 = vpop.trf.xlu0
      %v5060 = vpack.c.bf16 %v4978, %v4978
      %v5061 = vpack.c.bf16 %v4980, %v4980
      %v5062 = vpack.c.bf16 %v4998, %v4998
      %v5063 = vpack.c.bf16 %v5000, %v5000
      %vm5064 = vcmask 1043456
      %v5067 = vsel %vm5064, %v5062, 1065369472
      %v5070 = vsel %vm5064, %v5063, 1065369472
      %vm5072 = vcmask 64512
      %v5074 = vsel %vm5072, %v5036, 0
      %v5077 = vsel %vm5072, %v5037, 0
      %v5080 = vsel %vm5072, %v5038, 0
      %v5083 = vsel %vm5072, %v5039, 0
      %v5086 = vsel %vm5072, %v5040, 0
      %v5089 = vsel %vm5072, %v5041, 0
      %v5092 = vsel %vm5072, %v5042, 0
      %v5095 = vsel %vm5072, %v5043, 0
      %v5098 = vsel %vm5064, %v5060, 0
      %v5101 = vsel %vm5064, %v5061, 0
      %5103 = vmatprep.subr.bf16.mxu0 %v5101
      %5104 = vmatpush1.bf16.msra.mxu0 %v5098
      %5105 = vmatprep.subr.bf16.mxu0 0
      %5106 = vmatpush1.bf16.msra.mxu0 0
      %5107 = vmatprep.subr.bf16.mxu0 0
      %5108 = vmatpush1.bf16.msra.mxu0 0
      %5109 = vmatprep.subr.bf16.mxu0 0
      %5110 = vmatpush1.bf16.msra.mxu0 0
      %5111 = vmatprep.subr.bf16.mxu0 0
      %5112 = vmatpush1.bf16.msra.mxu0 0
      %5113 = vmatprep.subr.bf16.mxu0 0
      %5114 = vmatpush1.bf16.msra.mxu0 0
      %5115 = vmatprep.subr.bf16.mxu0 0
      %5116 = vmatpush1.bf16.msra.mxu0 0
      %5117 = vmatprep.subr.bf16.mxu0 0
      %5118 = vmatpush1.bf16.msra.mxu0 0
      %5119 = vmatprep.subr.bf16.mxu0 0
      %5120 = vmatpush1.bf16.msra.mxu0 0
      %5121 = vmatprep.subr.bf16.mxu0 0
      %5122 = vmatpush1.bf16.msra.mxu0 0
      %5123 = vmatprep.subr.bf16.mxu0 0
      %5124 = vmatpush1.bf16.msra.mxu0 0
      %5125 = vmatprep.subr.bf16.mxu0 0
      %5126 = vmatpush1.bf16.msra.mxu0 0
      %5127 = vmatprep.subr.bf16.mxu0 0
      %5128 = vmatpush1.bf16.msra.mxu0 0
      %5129 = vmatprep.subr.bf16.mxu0 0
      %5130 = vmatpush1.bf16.msra.mxu0 0
      %5131 = vmatprep.subr.bf16.mxu0 0
      %5132 = vmatpush1.bf16.msra.mxu0 0
      %5133 = vmatprep.subr.bf16.mxu0 0
      %5134 = vmatpush1.bf16.msra.mxu0 0
      %5135 = vmatprep.mubr.bf16.mxu0 0
      %5136 = vmatmul.mubr.bf16.gmra.mrb[0].mxu0 %v5074
      %v5137 = vpop.f32.mrb[0].mxu0
      %v5138 = vadd.f32 0.0, %v5137
      %v5139 = vpop.f32.mrb[0].mxu0
      %v5140 = vadd.f32 0.0, %v5139
      %v5141 = vpop.f32.mrb[0].mxu0
      %v5142 = vadd.f32 0.0, %v5141
      %v5143 = vpop.f32.mrb[0].mxu0
      %v5144 = vadd.f32 0.0, %v5143
      %5145 = vmatprep.mubr.bf16.mxu0 0
      %5146 = vmatmul.mubr.bf16.gmra.mrb[0].mxu0 %v5077
      %v5147 = vpop.f32.mrb[0].mxu0
      %v5148 = vadd.f32 0.0, %v5147
      %v5149 = vpop.f32.mrb[0].mxu0
      %v5150 = vadd.f32 0.0, %v5149
      %v5151 = vpop.f32.mrb[0].mxu0
      %v5152 = vadd.f32 0.0, %v5151
      %v5153 = vpop.f32.mrb[0].mxu0
      %v5154 = vadd.f32 0.0, %v5153
      %5155 = vmatprep.mubr.bf16.mxu0 0
      %5156 = vmatmul.mubr.bf16.gmra.mrb[0].mxu0 %v5080
      %v5157 = vpop.f32.mrb[0].mxu0
      %v5158 = vadd.f32 0.0, %v5157
      %v5159 = vpop.f32.mrb[0].mxu0
      %v5160 = vadd.f32 0.0, %v5159
      %v5161 = vpop.f32.mrb[0].mxu0
      %v5162 = vadd.f32 0.0, %v5161
      %v5163 = vpop.f32.mrb[0].mxu0
      %v5164 = vadd.f32 0.0, %v5163
      %5165 = vmatprep.mubr.bf16.mxu0 0
      %5166 = vmatmul.mubr.bf16.gmra.mrb[0].mxu0 %v5083
      %v5167 = vpop.f32.mrb[0].mxu0
      %v5168 = vadd.f32 0.0, %v5167
      %v5169 = vpop.f32.mrb[0].mxu0
      %v5170 = vadd.f32 0.0, %v5169
      %v5171 = vpop.f32.mrb[0].mxu0
      %v5172 = vadd.f32 0.0, %v5171
      %v5173 = vpop.f32.mrb[0].mxu0
      %v5174 = vadd.f32 0.0, %v5173
      %5175 = vmatprep.mubr.bf16.mxu0 0
      %5176 = vmatmul.mubr.bf16.gmra.mrb[0].mxu0 %v5086
      %v5177 = vpop.f32.mrb[0].mxu0
      %v5178 = vadd.f32 0.0, %v5177
      %v5179 = vpop.f32.mrb[0].mxu0
      %v5180 = vadd.f32 0.0, %v5179
      %v5181 = vpop.f32.mrb[0].mxu0
      %v5182 = vadd.f32 0.0, %v5181
      %v5183 = vpop.f32.mrb[0].mxu0
      %v5184 = vadd.f32 0.0, %v5183
      %5185 = vmatprep.mubr.bf16.mxu0 0
      %5186 = vmatmul.mubr.bf16.gmra.mrb[0].mxu0 %v5089
      %v5187 = vpop.f32.mrb[0].mxu0
      %v5188 = vadd.f32 0.0, %v5187
      %v5189 = vpop.f32.mrb[0].mxu0
      %v5190 = vadd.f32 0.0, %v5189
      %v5191 = vpop.f32.mrb[0].mxu0
      %v5192 = vadd.f32 0.0, %v5191
      %v5193 = vpop.f32.mrb[0].mxu0
      %v5194 = vadd.f32 0.0, %v5193
      %5195 = vmatprep.mubr.bf16.mxu0 0
      %5196 = vmatmul.mubr.bf16.gmra.mrb[0].mxu0 %v5092
      %v5197 = vpop.f32.mrb[0].mxu0
      %v5198 = vadd.f32 0.0, %v5197
      %v5199 = vpop.f32.mrb[0].mxu0
      %v5200 = vadd.f32 0.0, %v5199
      %v5201 = vpop.f32.mrb[0].mxu0
      %v5202 = vadd.f32 0.0, %v5201
      %v5203 = vpop.f32.mrb[0].mxu0
      %v5204 = vadd.f32 0.0, %v5203
      %5205 = vmatprep.mubr.bf16.mxu0 0
      %5206 = vmatmul.mubr.bf16.gmra.mrb[0].mxu0 %v5095
      %v5207 = vpop.f32.mrb[0].mxu0
      %v5208 = vadd.f32 0.0, %v5207
      %v5209 = vpop.f32.mrb[0].mxu0
      %v5210 = vadd.f32 0.0, %v5209
      %v5211 = vpop.f32.mrb[0].mxu0
      %v5212 = vadd.f32 0.0, %v5211
      %v5213 = vpop.f32.mrb[0].mxu0
      %v5214 = vadd.f32 0.0, %v5213
      %5215 = vdwg.mxu0
      %v5216 = vmax.f32 %v5138, %v5140
      %5217 = vmax.xlane.f32.xlu0 %v5216
      %v5218 = vpop.xlane.xlu0 %5217
      %v5219 = vmax.f32 %v5142, %v5144
      %5220 = vmax.xlane.f32.xlu0 %v5219
      %v5221 = vpop.xlane.xlu0 %5220
      %v5222 = vmax.f32 %v5148, %v5150
      %5223 = vmax.xlane.f32.xlu0 %v5222
      %v5224 = vpop.xlane.xlu0 %5223
      %v5225 = vmax.f32 %v5152, %v5154
      %5226 = vmax.xlane.f32.xlu0 %v5225
      %v5227 = vpop.xlane.xlu0 %5226
      %v5228 = vmax.f32 %v5158, %v5160
      %5229 = vmax.xlane.f32.xlu0 %v5228
      %v5230 = vpop.xlane.xlu0 %5229
      %v5231 = vmax.f32 %v5162, %v5164
      %5232 = vmax.xlane.f32.xlu0 %v5231
      %v5233 = vpop.xlane.xlu0 %5232
      %v5234 = vmax.f32 %v5168, %v5170
      %5235 = vmax.xlane.f32.xlu0 %v5234
      %v5236 = vpop.xlane.xlu0 %5235
      %v5237 = vmax.f32 %v5172, %v5174
      %5238 = vmax.xlane.f32.xlu0 %v5237
      %v5239 = vpop.xlane.xlu0 %5238
      %v5240 = vmax.f32 %v5178, %v5180
      %5241 = vmax.xlane.f32.xlu0 %v5240
      %v5242 = vpop.xlane.xlu0 %5241
      %v5243 = vmax.f32 %v5182, %v5184
      %5244 = vmax.xlane.f32.xlu0 %v5243
      %v5245 = vpop.xlane.xlu0 %5244
      %v5246 = vmax.f32 %v5188, %v5190
      %5247 = vmax.xlane.f32.xlu0 %v5246
      %v5248 = vpop.xlane.xlu0 %5247
      %v5249 = vmax.f32 %v5192, %v5194
      %5250 = vmax.xlane.f32.xlu0 %v5249
      %v5251 = vpop.xlane.xlu0 %5250
      %v5252 = vmax.f32 %v5198, %v5200
      %5253 = vmax.xlane.f32.xlu0 %v5252
      %v5254 = vpop.xlane.xlu0 %5253
      %v5255 = vmax.f32 %v5202, %v5204
      %5256 = vmax.xlane.f32.xlu0 %v5255
      %v5257 = vpop.xlane.xlu0 %5256
      %v5258 = vmax.f32 %v5208, %v5210
      %5259 = vmax.xlane.f32.xlu0 %v5258
      %v5260 = vpop.xlane.xlu0 %5259
      %v5261 = vmax.f32 %v5212, %v5214
      %5262 = vmax.xlane.f32.xlu0 %v5261
      %v5263 = vpop.xlane.xlu0 %5262
      %v5264 = vsub.f32 %v5138, %v5218
      %v5265 = vsub.f32 %v5140, %v5218
      %v5266 = vsub.f32 %v5142, %v5221
      %v5267 = vsub.f32 %v5144, %v5221
      %v5268 = vsub.f32 %v5148, %v5224
      %v5269 = vsub.f32 %v5150, %v5224
      %v5270 = vsub.f32 %v5152, %v5227
      %v5271 = vsub.f32 %v5154, %v5227
      %v5272 = vsub.f32 %v5158, %v5230
      %v5273 = vsub.f32 %v5160, %v5230
      %v5274 = vsub.f32 %v5162, %v5233
      %v5275 = vsub.f32 %v5164, %v5233
      %v5276 = vsub.f32 %v5168, %v5236
      %v5277 = vsub.f32 %v5170, %v5236
      %v5278 = vsub.f32 %v5172, %v5239
      %v5279 = vsub.f32 %v5174, %v5239
      %v5280 = vsub.f32 %v5178, %v5242
      %v5281 = vsub.f32 %v5180, %v5242
      %v5282 = vsub.f32 %v5182, %v5245
      %v5283 = vsub.f32 %v5184, %v5245
      %v5284 = vsub.f32 %v5188, %v5248
      %v5285 = vsub.f32 %v5190, %v5248
      %v5286 = vsub.f32 %v5192, %v5251
      %v5287 = vsub.f32 %v5194, %v5251
      %v5288 = vsub.f32 %v5198, %v5254
      %v5289 = vsub.f32 %v5200, %v5254
      %v5290 = vsub.f32 %v5202, %v5257
      %v5291 = vsub.f32 %v5204, %v5257
      %v5292 = vsub.f32 %v5208, %v5260
      %v5293 = vsub.f32 %v5210, %v5260
      %v5294 = vsub.f32 %v5212, %v5263
      %v5295 = vsub.f32 %v5214, %v5263
      %v5296 = vmul.f32 %v5264, 1.442695
      %v5297 = vpow.pop %v5296
      %v5298 = vmul.f32 %v5265, 1.442695
      %v5299 = vpow.pop %v5298
      %v5300 = vmul.f32 %v5266, 1.442695
      %v5301 = vpow.pop %v5300
      %v5302 = vmul.f32 %v5267, 1.442695
      %v5303 = vpow.pop %v5302
      %v5304 = vmul.f32 %v5268, 1.442695
      %v5305 = vpow.pop %v5304
      %v5306 = vmul.f32 %v5269, 1.442695
      %v5307 = vpow.pop %v5306
      %v5308 = vmul.f32 %v5270, 1.442695
      %v5309 = vpow.pop %v5308
      %v5310 = vmul.f32 %v5271, 1.442695
      %v5311 = vpow.pop %v5310
      %v5312 = vmul.f32 %v5272, 1.442695
      %v5313 = vpow.pop %v5312
      %v5314 = vmul.f32 %v5273, 1.442695
      %v5315 = vpow.pop %v5314
      %v5316 = vmul.f32 %v5274, 1.442695
      %v5317 = vpow.pop %v5316
      %v5318 = vmul.f32 %v5275, 1.442695
      %v5319 = vpow.pop %v5318
      %v5320 = vmul.f32 %v5276, 1.442695
      %v5321 = vpow.pop %v5320
      %v5322 = vmul.f32 %v5277, 1.442695
      %v5323 = vpow.pop %v5322
      %v5324 = vmul.f32 %v5278, 1.442695
      %v5325 = vpow.pop %v5324
      %v5326 = vmul.f32 %v5279, 1.442695
      %v5327 = vpow.pop %v5326
      %v5328 = vmul.f32 %v5280, 1.442695
      %v5329 = vpow.pop %v5328
      %v5330 = vmul.f32 %v5281, 1.442695
      %v5331 = vpow.pop %v5330
      %v5332 = vmul.f32 %v5282, 1.442695
      %v5333 = vpow.pop %v5332
      %v5334 = vmul.f32 %v5283, 1.442695
      %v5335 = vpow.pop %v5334
      %v5336 = vmul.f32 %v5284, 1.442695
      %v5337 = vpow.pop %v5336
      %v5338 = vmul.f32 %v5285, 1.442695
      %v5339 = vpow.pop %v5338
      %v5340 = vmul.f32 %v5286, 1.442695
      %v5341 = vpow.pop %v5340
      %v5342 = vmul.f32 %v5287, 1.442695
      %v5343 = vpow.pop %v5342
      %v5344 = vmul.f32 %v5288, 1.442695
      %v5345 = vpow.pop %v5344
      %v5346 = vmul.f32 %v5289, 1.442695
      %v5347 = vpow.pop %v5346
      %v5348 = vmul.f32 %v5290, 1.442695
      %v5349 = vpow.pop %v5348
      %v5350 = vmul.f32 %v5291, 1.442695
      %v5351 = vpow.pop %v5350
      %v5352 = vmul.f32 %v5292, 1.442695
      %v5353 = vpow.pop %v5352
      %v5354 = vmul.f32 %v5293, 1.442695
      %v5355 = vpow.pop %v5354
      %v5356 = vmul.f32 %v5294, 1.442695
      %v5357 = vpow.pop %v5356
      %v5358 = vmul.f32 %v5295, 1.442695
      %v5359 = vpow.pop %v5358
      %v5360 = vpack.c.bf16 %v5301, %v5297
      %v5361 = vpack.c.bf16 %v5303, %v5299
      %v5362 = vpack.c.bf16 %v5309, %v5305
      %v5363 = vpack.c.bf16 %v5311, %v5307
      %v5364 = vpack.c.bf16 %v5317, %v5313
      %v5365 = vpack.c.bf16 %v5319, %v5315
      %v5366 = vpack.c.bf16 %v5325, %v5321
      %v5367 = vpack.c.bf16 %v5327, %v5323
      %v5368 = vpack.c.bf16 %v5333, %v5329
      %v5369 = vpack.c.bf16 %v5335, %v5331
      %v5370 = vpack.c.bf16 %v5341, %v5337
      %v5371 = vpack.c.bf16 %v5343, %v5339
      %v5372 = vpack.c.bf16 %v5349, %v5345
      %v5373 = vpack.c.bf16 %v5351, %v5347
      %v5374 = vpack.c.bf16 %v5357, %v5353
      %v5375 = vpack.c.bf16 %v5359, %v5355
      %5376 = vmatprep.subr.bf16.mxu0 %v5361
      %5377 = vmatpush1.bf16.xpose.msra.mxu0 %v5360
      %5378 = vmatprep.subr.bf16.mxu0 %v5363
      %5379 = vmatpush1.bf16.xpose.msra.mxu0 %v5362
      %5380 = vmatprep.subr.bf16.mxu0 %v5365
      %5381 = vmatpush1.bf16.xpose.msra.mxu0 %v5364
      %5382 = vmatprep.subr.bf16.mxu0 %v5367
      %5383 = vmatpush1.bf16.xpose.msra.mxu0 %v5366
      %5384 = vmatprep.subr.bf16.mxu0 %v5369
      %5385 = vmatpush1.bf16.xpose.msra.mxu0 %v5368
      %5386 = vmatprep.subr.bf16.mxu0 %v5371
      %5387 = vmatpush1.bf16.xpose.msra.mxu0 %v5370
      %5388 = vmatprep.subr.bf16.mxu0 %v5373
      %5389 = vmatpush1.bf16.xpose.msra.mxu0 %v5372
      %5390 = vmatprep.subr.bf16.mxu0 %v5375
      %5391 = vmatpush1.bf16.xpose.msra.mxu0 %v5374
      %5392 = vmatprep.subr.bf16.mxu0 0
      %5393 = vmatpush1.bf16.xpose.msra.mxu0 0
      %5394 = vmatprep.subr.bf16.mxu0 0
      %5395 = vmatpush1.bf16.xpose.msra.mxu0 0
      %5396 = vmatprep.subr.bf16.mxu0 0
      %5397 = vmatpush1.bf16.xpose.msra.mxu0 0
      %5398 = vmatprep.subr.bf16.mxu0 0
      %5399 = vmatpush1.bf16.xpose.msra.mxu0 0
      %5400 = vmatprep.subr.bf16.mxu0 0
      %5401 = vmatpush1.bf16.xpose.msra.mxu0 0
      %5402 = vmatprep.subr.bf16.mxu0 0
      %5403 = vmatpush1.bf16.xpose.msra.mxu0 0
      %5404 = vmatprep.subr.bf16.mxu0 0
      %5405 = vmatpush1.bf16.xpose.msra.mxu0 0
      %5406 = vmatprep.subr.bf16.mxu0 0
      %5407 = vmatpush1.bf16.xpose.msra.mxu0 0
      %5408 = vmatprep.mubr.bf16.mxu0 %v5070
      %5409 = vmatmul.mubr.bf16.gmra.mrb[0].mxu0 %v5067
      %v5410 = vpop.f32.mrb[0].mxu0
      %v5411 = vadd.f32 0.0, %v5410
      %v5412 = vpop.f32.mrb[0].mxu0
      %v5413 = vpop.f32.mrb[0].mxu0
      %v5414 = vadd.f32 0.0, %v5413
      %v5415 = vpop.f32.mrb[0].mxu0
      %5416 = vdwg.mxu0
      %v5417 = vrcp.pop %v5414
      %v5418 = vlaneseq
      %v5419 = vshrl.u32 %v5418, 7
      %v5420 = vsub.s32 0, %v5419
      %v5421 = vrot.slane %v5417, %v5420
      %v5422 = vmul.f32 %v5411, %v5421
      %v5423 = vpack.c.bf16 %v5422, %v5422
      %5424 = vst [vmem:[#allocation4] sm:$0xf] %v5423
      %v5426 = vsel %vm5072, %v5052, 0
      %v5429 = vsel %vm5072, %v5053, 0
      %v5432 = vsel %vm5072, %v5054, 0
      %v5435 = vsel %vm5072, %v5055, 0
      %v5438 = vsel %vm5072, %v5056, 0
      %v5441 = vsel %vm5072, %v5057, 0
      %v5444 = vsel %vm5072, %v5058, 0
      %v5447 = vsel %vm5072, %v5059, 0
      %5449 = vmatprep.subr.bf16.mxu0 %v5101
      %5450 = vmatpush1.bf16.msra.mxu0 %v5098
      %5451 = vmatprep.subr.bf16.mxu0 0
      %5452 = vmatpush1.bf16.msra.mxu0 0
      %5453 = vmatprep.subr.bf16.mxu0 0
      %5454 = vmatpush1.bf16.msra.mxu0 0
      %5455 = vmatprep.subr.bf16.mxu0 0
      %5456 = vmatpush1.bf16.msra.mxu0 0
      %5457 = vmatprep.subr.bf16.mxu0 0
      %5458 = vmatpush1.bf16.msra.mxu0 0
      %5459 = vmatprep.subr.bf16.mxu0 0
      %5460 = vmatpush1.bf16.msra.mxu0 0
      %5461 = vmatprep.subr.bf16.mxu0 0
      %5462 = vmatpush1.bf16.msra.mxu0 0
      %5463 = vmatprep.subr.bf16.mxu0 0
      %5464 = vmatpush1.bf16.msra.mxu0 0
      %5465 = vmatprep.subr.bf16.mxu0 0
      %5466 = vmatpush1.bf16.msra.mxu0 0
      %5467 = vmatprep.subr.bf16.mxu0 0
      %5468 = vmatpush1.bf16.msra.mxu0 0
      %5469 = vmatprep.subr.bf16.mxu0 0
      %5470 = vmatpush1.bf16.msra.mxu0 0
      %5471 = vmatprep.subr.bf16.mxu0 0
      %5472 = vmatpush1.bf16.msra.mxu0 0
      %5473 = vmatprep.subr.bf16.mxu0 0
      %5474 = vmatpush1.bf16.msra.mxu0 0
      %5475 = vmatprep.subr.bf16.mxu0 0
      %5476 = vmatpush1.bf16.msra.mxu0 0
      %5477 = vmatprep.subr.bf16.mxu0 0
      %5478 = vmatpush1.bf16.msra.mxu0 0
      %5479 = vmatprep.subr.bf16.mxu0 0
      %5480 = vmatpush1.bf16.msra.mxu0 0
      %5481 = vmatprep.mubr.bf16.mxu0 0
      %5482 = vmatmul.mubr.bf16.gmra.mrb[0].mxu0 %v5426
      %v5483 = vpop.f32.mrb[0].mxu0
      %v5484 = vadd.f32 0.0, %v5483
      %v5485 = vpop.f32.mrb[0].mxu0
      %v5486 = vadd.f32 0.0, %v5485
      %v5487 = vpop.f32.mrb[0].mxu0
      %v5488 = vadd.f32 0.0, %v5487
      %v5489 = vpop.f32.mrb[0].mxu0
      %v5490 = vadd.f32 0.0, %v5489
      %5491 = vmatprep.mubr.bf16.mxu0 0
      %5492 = vmatmul.mubr.bf16.gmra.mrb[0].mxu0 %v5429
      %v5493 = vpop.f32.mrb[0].mxu0
      %v5494 = vadd.f32 0.0, %v5493
      %v5495 = vpop.f32.mrb[0].mxu0
      %v5496 = vadd.f32 0.0, %v5495
      %v5497 = vpop.f32.mrb[0].mxu0
      %v5498 = vadd.f32 0.0, %v5497
      %v5499 = vpop.f32.mrb[0].mxu0
      %v5500 = vadd.f32 0.0, %v5499
      %5501 = vmatprep.mubr.bf16.mxu0 0
      %5502 = vmatmul.mubr.bf16.gmra.mrb[0].mxu0 %v5432
      %v5503 = vpop.f32.mrb[0].mxu0
      %v5504 = vadd.f32 0.0, %v5503
      %v5505 = vpop.f32.mrb[0].mxu0
      %v5506 = vadd.f32 0.0, %v5505
      %v5507 = vpop.f32.mrb[0].mxu0
      %v5508 = vadd.f32 0.0, %v5507
      %v5509 = vpop.f32.mrb[0].mxu0
      %v5510 = vadd.f32 0.0, %v5509
      %5511 = vmatprep.mubr.bf16.mxu0 0
      %5512 = vmatmul.mubr.bf16.gmra.mrb[0].mxu0 %v5435
      %v5513 = vpop.f32.mrb[0].mxu0
      %v5514 = vadd.f32 0.0, %v5513
      %v5515 = vpop.f32.mrb[0].mxu0
      %v5516 = vadd.f32 0.0, %v5515
      %v5517 = vpop.f32.mrb[0].mxu0
      %v5518 = vadd.f32 0.0, %v5517
      %v5519 = vpop.f32.mrb[0].mxu0
      %v5520 = vadd.f32 0.0, %v5519
      %5521 = vmatprep.mubr.bf16.mxu0 0
      %5522 = vmatmul.mubr.bf16.gmra.mrb[0].mxu0 %v5438
      %v5523 = vpop.f32.mrb[0].mxu0
      %v5524 = vadd.f32 0.0, %v5523
      %v5525 = vpop.f32.mrb[0].mxu0
      %v5526 = vadd.f32 0.0, %v5525
      %v5527 = vpop.f32.mrb[0].mxu0
      %v5528 = vadd.f32 0.0, %v5527
      %v5529 = vpop.f32.mrb[0].mxu0
      %v5530 = vadd.f32 0.0, %v5529
      %5531 = vmatprep.mubr.bf16.mxu0 0
      %5532 = vmatmul.mubr.bf16.gmra.mrb[0].mxu0 %v5441
      %v5533 = vpop.f32.mrb[0].mxu0
      %v5534 = vadd.f32 0.0, %v5533
      %v5535 = vpop.f32.mrb[0].mxu0
      %v5536 = vadd.f32 0.0, %v5535
      %v5537 = vpop.f32.mrb[0].mxu0
      %v5538 = vadd.f32 0.0, %v5537
      %v5539 = vpop.f32.mrb[0].mxu0
      %v5540 = vadd.f32 0.0, %v5539
      %5541 = vmatprep.mubr.bf16.mxu0 0
      %5542 = vmatmul.mubr.bf16.gmra.mrb[0].mxu0 %v5444
      %v5543 = vpop.f32.mrb[0].mxu0
      %v5544 = vadd.f32 0.0, %v5543
      %v5545 = vpop.f32.mrb[0].mxu0
      %v5546 = vadd.f32 0.0, %v5545
      %v5547 = vpop.f32.mrb[0].mxu0
      %v5548 = vadd.f32 0.0, %v5547
      %v5549 = vpop.f32.mrb[0].mxu0
      %v5550 = vadd.f32 0.0, %v5549
      %5551 = vmatprep.mubr.bf16.mxu0 0
      %5552 = vmatmul.mubr.bf16.gmra.mrb[0].mxu0 %v5447
      %v5553 = vpop.f32.mrb[0].mxu0
      %v5554 = vadd.f32 0.0, %v5553
      %v5555 = vpop.f32.mrb[0].mxu0
      %v5556 = vadd.f32 0.0, %v5555
      %v5557 = vpop.f32.mrb[0].mxu0
      %v5558 = vadd.f32 0.0, %v5557
      %v5559 = vpop.f32.mrb[0].mxu0
      %v5560 = vadd.f32 0.0, %v5559
      %5561 = vdwg.mxu0
      %v5562 = vmax.f32 %v5484, %v5486
      %5563 = vmax.xlane.f32.xlu0 %v5562
      %v5564 = vpop.xlane.xlu0 %5563
      %v5565 = vmax.f32 %v5488, %v5490
      %5566 = vmax.xlane.f32.xlu0 %v5565
      %v5567 = vpop.xlane.xlu0 %5566
      %v5568 = vmax.f32 %v5494, %v5496
      %5569 = vmax.xlane.f32.xlu0 %v5568
      %v5570 = vpop.xlane.xlu0 %5569
      %v5571 = vmax.f32 %v5498, %v5500
      %5572 = vmax.xlane.f32.xlu0 %v5571
      %v5573 = vpop.xlane.xlu0 %5572
      %v5574 = vmax.f32 %v5504, %v5506
      %5575 = vmax.xlane.f32.xlu0 %v5574
      %v5576 = vpop.xlane.xlu0 %5575
      %v5577 = vmax.f32 %v5508, %v5510
      %5578 = vmax.xlane.f32.xlu0 %v5577
      %v5579 = vpop.xlane.xlu0 %5578
      %v5580 = vmax.f32 %v5514, %v5516
      %5581 = vmax.xlane.f32.xlu0 %v5580
      %v5582 = vpop.xlane.xlu0 %5581
      %v5583 = vmax.f32 %v5518, %v5520
      %5584 = vmax.xlane.f32.xlu0 %v5583
      %v5585 = vpop.xlane.xlu0 %5584
      %v5586 = vmax.f32 %v5524, %v5526
      %5587 = vmax.xlane.f32.xlu0 %v5586
      %v5588 = vpop.xlane.xlu0 %5587
      %v5589 = vmax.f32 %v5528, %v5530
      %5590 = vmax.xlane.f32.xlu0 %v5589
      %v5591 = vpop.xlane.xlu0 %5590
      %v5592 = vmax.f32 %v5534, %v5536
      %5593 = vmax.xlane.f32.xlu0 %v5592
      %v5594 = vpop.xlane.xlu0 %5593
      %v5595 = vmax.f32 %v5538, %v5540
      %5596 = vmax.xlane.f32.xlu0 %v5595
      %v5597 = vpop.xlane.xlu0 %5596
      %v5598 = vmax.f32 %v5544, %v5546
      %5599 = vmax.xlane.f32.xlu0 %v5598
      %v5600 = vpop.xlane.xlu0 %5599
      %v5601 = vmax.f32 %v5548, %v5550
      %5602 = vmax.xlane.f32.xlu0 %v5601
      %v5603 = vpop.xlane.xlu0 %5602
      %v5604 = vmax.f32 %v5554, %v5556
      %5605 = vmax.xlane.f32.xlu0 %v5604
      %v5606 = vpop.xlane.xlu0 %5605
      %v5607 = vmax.f32 %v5558, %v5560
      %5608 = vmax.xlane.f32.xlu0 %v5607
      %v5609 = vpop.xlane.xlu0 %5608
      %v5610 = vsub.f32 %v5484, %v5564
      %v5611 = vsub.f32 %v5486, %v5564
      %v5612 = vsub.f32 %v5488, %v5567
      %v5613 = vsub.f32 %v5490, %v5567
      %v5614 = vsub.f32 %v5494, %v5570
      %v5615 = vsub.f32 %v5496, %v5570
      %v5616 = vsub.f32 %v5498, %v5573
      %v5617 = vsub.f32 %v5500, %v5573
      %v5618 = vsub.f32 %v5504, %v5576
      %v5619 = vsub.f32 %v5506, %v5576
      %v5620 = vsub.f32 %v5508, %v5579
      %v5621 = vsub.f32 %v5510, %v5579
      %v5622 = vsub.f32 %v5514, %v5582
      %v5623 = vsub.f32 %v5516, %v5582
      %v5624 = vsub.f32 %v5518, %v5585
      %v5625 = vsub.f32 %v5520, %v5585
      %v5626 = vsub.f32 %v5524, %v5588
      %v5627 = vsub.f32 %v5526, %v5588
      %v5628 = vsub.f32 %v5528, %v5591
      %v5629 = vsub.f32 %v5530, %v5591
      %v5630 = vsub.f32 %v5534, %v5594
      %v5631 = vsub.f32 %v5536, %v5594
      %v5632 = vsub.f32 %v5538, %v5597
      %v5633 = vsub.f32 %v5540, %v5597
      %v5634 = vsub.f32 %v5544, %v5600
      %v5635 = vsub.f32 %v5546, %v5600
      %v5636 = vsub.f32 %v5548, %v5603
      %v5637 = vsub.f32 %v5550, %v5603
      %v5638 = vsub.f32 %v5554, %v5606
      %v5639 = vsub.f32 %v5556, %v5606
      %v5640 = vsub.f32 %v5558, %v5609
      %v5641 = vsub.f32 %v5560, %v5609
      %v5642 = vmul.f32 %v5610, 1.442695
      %v5643 = vpow.pop %v5642
      %v5644 = vmul.f32 %v5611, 1.442695
      %v5645 = vpow.pop %v5644
      %v5646 = vmul.f32 %v5612, 1.442695
      %v5647 = vpow.pop %v5646
      %v5648 = vmul.f32 %v5613, 1.442695
      %v5649 = vpow.pop %v5648
      %v5650 = vmul.f32 %v5614, 1.442695
      %v5651 = vpow.pop %v5650
      %v5652 = vmul.f32 %v5615, 1.442695
      %v5653 = vpow.pop %v5652
      %v5654 = vmul.f32 %v5616, 1.442695
      %v5655 = vpow.pop %v5654
      %v5656 = vmul.f32 %v5617, 1.442695
      %v5657 = vpow.pop %v5656
      %v5658 = vmul.f32 %v5618, 1.442695
      %v5659 = vpow.pop %v5658
      %v5660 = vmul.f32 %v5619, 1.442695
      %v5661 = vpow.pop %v5660
      %v5662 = vmul.f32 %v5620, 1.442695
      %v5663 = vpow.pop %v5662
      %v5664 = vmul.f32 %v5621, 1.442695
      %v5665 = vpow.pop %v5664
      %v5666 = vmul.f32 %v5622, 1.442695
      %v5667 = vpow.pop %v5666
      %v5668 = vmul.f32 %v5623, 1.442695
      %v5669 = vpow.pop %v5668
      %v5670 = vmul.f32 %v5624, 1.442695
      %v5671 = vpow.pop %v5670
      %v5672 = vmul.f32 %v5625, 1.442695
      %v5673 = vpow.pop %v5672
      %v5674 = vmul.f32 %v5626, 1.442695
      %v5675 = vpow.pop %v5674
      %v5676 = vmul.f32 %v5627, 1.442695
      %v5677 = vpow.pop %v5676
      %v5678 = vmul.f32 %v5628, 1.442695
      %v5679 = vpow.pop %v5678
      %v5680 = vmul.f32 %v5629, 1.442695
      %v5681 = vpow.pop %v5680
      %v5682 = vmul.f32 %v5630, 1.442695
      %v5683 = vpow.pop %v5682
      %v5684 = vmul.f32 %v5631, 1.442695
      %v5685 = vpow.pop %v5684
      %v5686 = vmul.f32 %v5632, 1.442695
      %v5687 = vpow.pop %v5686
      %v5688 = vmul.f32 %v5633, 1.442695
      %v5689 = vpow.pop %v5688
      %v5690 = vmul.f32 %v5634, 1.442695
      %v5691 = vpow.pop %v5690
      %v5692 = vmul.f32 %v5635, 1.442695
      %v5693 = vpow.pop %v5692
      %v5694 = vmul.f32 %v5636, 1.442695
      %v5695 = vpow.pop %v5694
      %v5696 = vmul.f32 %v5637, 1.442695
      %v5697 = vpow.pop %v5696
      %v5698 = vmul.f32 %v5638, 1.442695
      %v5699 = vpow.pop %v5698
      %v5700 = vmul.f32 %v5639, 1.442695
      %v5701 = vpow.pop %v5700
      %v5702 = vmul.f32 %v5640, 1.442695
      %v5703 = vpow.pop %v5702
      %v5704 = vmul.f32 %v5641, 1.442695
      %v5705 = vpow.pop %v5704
      %v5706 = vpack.c.bf16 %v5647, %v5643
      %v5707 = vpack.c.bf16 %v5649, %v5645
      %v5708 = vpack.c.bf16 %v5655, %v5651
      %v5709 = vpack.c.bf16 %v5657, %v5653
      %v5710 = vpack.c.bf16 %v5663, %v5659
      %v5711 = vpack.c.bf16 %v5665, %v5661
      %v5712 = vpack.c.bf16 %v5671, %v5667
      %v5713 = vpack.c.bf16 %v5673, %v5669
      %v5714 = vpack.c.bf16 %v5679, %v5675
      %v5715 = vpack.c.bf16 %v5681, %v5677
      %v5716 = vpack.c.bf16 %v5687, %v5683
      %v5717 = vpack.c.bf16 %v5689, %v5685
      %v5718 = vpack.c.bf16 %v5695, %v5691
      %v5719 = vpack.c.bf16 %v5697, %v5693
      %v5720 = vpack.c.bf16 %v5703, %v5699
      %v5721 = vpack.c.bf16 %v5705, %v5701
      %5722 = vmatprep.subr.bf16.mxu0 %v5707
      %5723 = vmatpush1.bf16.xpose.msra.mxu0 %v5706
      %5724 = vmatprep.subr.bf16.mxu0 %v5709
      %5725 = vmatpush1.bf16.xpose.msra.mxu0 %v5708
      %5726 = vmatprep.subr.bf16.mxu0 %v5711
      %5727 = vmatpush1.bf16.xpose.msra.mxu0 %v5710
      %5728 = vmatprep.subr.bf16.mxu0 %v5713
      %5729 = vmatpush1.bf16.xpose.msra.mxu0 %v5712
      %5730 = vmatprep.subr.bf16.mxu0 %v5715
      %5731 = vmatpush1.bf16.xpose.msra.mxu0 %v5714
      %5732 = vmatprep.subr.bf16.mxu0 %v5717
      %5733 = vmatpush1.bf16.xpose.msra.mxu0 %v5716
      %5734 = vmatprep.subr.bf16.mxu0 %v5719
      %5735 = vmatpush1.bf16.xpose.msra.mxu0 %v5718
      %5736 = vmatprep.subr.bf16.mxu0 %v5721
      %5737 = vmatpush1.bf16.xpose.msra.mxu0 %v5720
      %5738 = vmatprep.subr.bf16.mxu0 0
      %5739 = vmatpush1.bf16.xpose.msra.mxu0 0
      %5740 = vmatprep.subr.bf16.mxu0 0
      %5741 = vmatpush1.bf16.xpose.msra.mxu0 0
      %5742 = vmatprep.subr.bf16.mxu0 0
      %5743 = vmatpush1.bf16.xpose.msra.mxu0 0
      %5744 = vmatprep.subr.bf16.mxu0 0
      %5745 = vmatpush1.bf16.xpose.msra.mxu0 0
      %5746 = vmatprep.subr.bf16.mxu0 0
      %5747 = vmatpush1.bf16.xpose.msra.mxu0 0
      %5748 = vmatprep.subr.bf16.mxu0 0
      %5749 = vmatpush1.bf16.xpose.msra.mxu0 0
      %5750 = vmatprep.subr.bf16.mxu0 0
      %5751 = vmatpush1.bf16.xpose.msra.mxu0 0
      %5752 = vmatprep.subr.bf16.mxu0 0
      %5753 = vmatpush1.bf16.xpose.msra.mxu0 0
      %5754 = vmatprep.mubr.bf16.mxu0 %v5070
      %5755 = vmatmul.mubr.bf16.gmra.mrb[0].mxu0 %v5067
      %v5756 = vpop.f32.mrb[0].mxu0
      %v5757 = vadd.f32 0.0, %v5756
      %v5758 = vpop.f32.mrb[0].mxu0
      %v5759 = vpop.f32.mrb[0].mxu0
      %v5760 = vadd.f32 0.0, %v5759
      %v5761 = vpop.f32.mrb[0].mxu0
      %5762 = vdwg.mxu0
      %v5763 = vrcp.pop %v5760
      %v5764 = vlaneseq
      %v5765 = vshrl.u32 %v5764, 7
      %v5766 = vsub.s32 0, %v5765
      %v5767 = vrot.slane %v5763, %v5766
      %v5768 = vmul.f32 %v5757, %v5767
      %v5769 = vpack.c.bf16 %v5768, %v5768
      %5770 = vst [vmem:[#allocation4 + $0x8] sm:$0xf] %v5769
      %v5771 = vpack.c.bf16 %v4982, %v4982
      %v5772 = vpack.c.bf16 %v4984, %v4984
      %v5773 = vpack.c.bf16 %v5002, %v5002
      %v5774 = vpack.c.bf16 %v5004, %v5004
      %v5776 = vsel %vm5064, %v5773, 1065369472
      %v5779 = vsel %vm5064, %v5774, 1065369472
      %5789 = vrot.lane.b32.xlu0 %v5036, 120
      %v5790 = vpop.permute.xlu0 %5789
      %5791 = vrot.lane.b32.xlu0 %v5037, 120
      %v5792 = vpop.permute.xlu0 %5791
      %5793 = vrot.lane.b32.xlu0 %v5038, 120
      %v5794 = vpop.permute.xlu0 %5793
      %5795 = vrot.lane.b32.xlu0 %v5039, 120
      %v5796 = vpop.permute.xlu0 %5795
      %5797 = vrot.lane.b32.xlu0 %v5040, 120
      %v5798 = vpop.permute.xlu0 %5797
      %5799 = vrot.lane.b32.xlu0 %v5041, 120
      %v5800 = vpop.permute.xlu0 %5799
      %5801 = vrot.lane.b32.xlu0 %v5042, 120
      %v5802 = vpop.permute.xlu0 %5801
      %5803 = vrot.lane.b32.xlu0 %v5043, 120
      %v5804 = vpop.permute.xlu0 %5803
      %v5806 = vsel %vm5072, %v5790, 0
      %v5809 = vsel %vm5072, %v5792, 0
      %v5812 = vsel %vm5072, %v5794, 0
      %v5815 = vsel %vm5072, %v5796, 0
      %v5818 = vsel %vm5072, %v5798, 0
      %v5821 = vsel %vm5072, %v5800, 0
      %v5824 = vsel %vm5072, %v5802, 0
      %v5827 = vsel %vm5072, %v5804, 0
      %v5830 = vsel %vm5064, %v5771, 0
      %v5833 = vsel %vm5064, %v5772, 0
      %5835 = vmatprep.subr.bf16.mxu0 %v5833
      %5836 = vmatpush1.bf16.msra.mxu0 %v5830
      %5837 = vmatprep.subr.bf16.mxu0 0
      %5838 = vmatpush1.bf16.msra.mxu0 0
      %5839 = vmatprep.subr.bf16.mxu0 0
      %5840 = vmatpush1.bf16.msra.mxu0 0
      %5841 = vmatprep.subr.bf16.mxu0 0
      %5842 = vmatpush1.bf16.msra.mxu0 0
      %5843 = vmatprep.subr.bf16.mxu0 0
      %5844 = vmatpush1.bf16.msra.mxu0 0
      %5845 = vmatprep.subr.bf16.mxu0 0
      %5846 = vmatpush1.bf16.msra.mxu0 0
      %5847 = vmatprep.subr.bf16.mxu0 0
      %5848 = vmatpush1.bf16.msra.mxu0 0
      %5849 = vmatprep.subr.bf16.mxu0 0
      %5850 = vmatpush1.bf16.msra.mxu0 0
      %5851 = vmatprep.subr.bf16.mxu0 0
      %5852 = vmatpush1.bf16.msra.mxu0 0
      %5853 = vmatprep.subr.bf16.mxu0 0
      %5854 = vmatpush1.bf16.msra.mxu0 0
      %5855 = vmatprep.subr.bf16.mxu0 0
      %5856 = vmatpush1.bf16.msra.mxu0 0
      %5857 = vmatprep.subr.bf16.mxu0 0
      %5858 = vmatpush1.bf16.msra.mxu0 0
      %5859 = vmatprep.subr.bf16.mxu0 0
      %5860 = vmatpush1.bf16.msra.mxu0 0
      %5861 = vmatprep.subr.bf16.mxu0 0
      %5862 = vmatpush1.bf16.msra.mxu0 0
      %5863 = vmatprep.subr.bf16.mxu0 0
      %5864 = vmatpush1.bf16.msra.mxu0 0
      %5865 = vmatprep.subr.bf16.mxu0 0
      %5866 = vmatpush1.bf16.msra.mxu0 0
      %5867 = vmatprep.mubr.bf16.mxu0 0
      %5868 = vmatmul.mubr.bf16.gmra.mrb[0].mxu0 %v5806
      %v5869 = vpop.f32.mrb[0].mxu0
      %v5870 = vadd.f32 0.0, %v5869
      %v5871 = vpop.f32.mrb[0].mxu0
      %v5872 = vadd.f32 0.0, %v5871
      %v5873 = vpop.f32.mrb[0].mxu0
      %v5874 = vadd.f32 0.0, %v5873
      %v5875 = vpop.f32.mrb[0].mxu0
      %v5876 = vadd.f32 0.0, %v5875
      %5877 = vmatprep.mubr.bf16.mxu0 0
      %5878 = vmatmul.mubr.bf16.gmra.mrb[0].mxu0 %v5809
      %v5879 = vpop.f32.mrb[0].mxu0
      %v5880 = vadd.f32 0.0, %v5879
      %v5881 = vpop.f32.mrb[0].mxu0
      %v5882 = vadd.f32 0.0, %v5881
      %v5883 = vpop.f32.mrb[0].mxu0
      %v5884 = vadd.f32 0.0, %v5883
      %v5885 = vpop.f32.mrb[0].mxu0
      %v5886 = vadd.f32 0.0, %v5885
      %5887 = vmatprep.mubr.bf16.mxu0 0
      %5888 = vmatmul.mubr.bf16.gmra.mrb[0].mxu0 %v5812
      %v5889 = vpop.f32.mrb[0].mxu0
      %v5890 = vadd.f32 0.0, %v5889
      %v5891 = vpop.f32.mrb[0].mxu0
      %v5892 = vadd.f32 0.0, %v5891
      %v5893 = vpop.f32.mrb[0].mxu0
      %v5894 = vadd.f32 0.0, %v5893
      %v5895 = vpop.f32.mrb[0].mxu0
      %v5896 = vadd.f32 0.0, %v5895
      %5897 = vmatprep.mubr.bf16.mxu0 0
      %5898 = vmatmul.mubr.bf16.gmra.mrb[0].mxu0 %v5815
      %v5899 = vpop.f32.mrb[0].mxu0
      %v5900 = vadd.f32 0.0, %v5899
      %v5901 = vpop.f32.mrb[0].mxu0
      %v5902 = vadd.f32 0.0, %v5901
      %v5903 = vpop.f32.mrb[0].mxu0
      %v5904 = vadd.f32 0.0, %v5903
      %v5905 = vpop.f32.mrb[0].mxu0
      %v5906 = vadd.f32 0.0, %v5905
      %5907 = vmatprep.mubr.bf16.mxu0 0
      %5908 = vmatmul.mubr.bf16.gmra.mrb[0].mxu0 %v5818
      %v5909 = vpop.f32.mrb[0].mxu0
      %v5910 = vadd.f32 0.0, %v5909
      %v5911 = vpop.f32.mrb[0].mxu0
      %v5912 = vadd.f32 0.0, %v5911
      %v5913 = vpop.f32.mrb[0].mxu0
      %v5914 = vadd.f32 0.0, %v5913
      %v5915 = vpop.f32.mrb[0].mxu0
      %v5916 = vadd.f32 0.0, %v5915
      %5917 = vmatprep.mubr.bf16.mxu0 0
      %5918 = vmatmul.mubr.bf16.gmra.mrb[0].mxu0 %v5821
      %v5919 = vpop.f32.mrb[0].mxu0
      %v5920 = vadd.f32 0.0, %v5919
      %v5921 = vpop.f32.mrb[0].mxu0
      %v5922 = vadd.f32 0.0, %v5921
      %v5923 = vpop.f32.mrb[0].mxu0
      %v5924 = vadd.f32 0.0, %v5923
      %v5925 = vpop.f32.mrb[0].mxu0
      %v5926 = vadd.f32 0.0, %v5925
      %5927 = vmatprep.mubr.bf16.mxu0 0
      %5928 = vmatmul.mubr.bf16.gmra.mrb[0].mxu0 %v5824
      %v5929 = vpop.f32.mrb[0].mxu0
      %v5930 = vadd.f32 0.0, %v5929
      %v5931 = vpop.f32.mrb[0].mxu0
      %v5932 = vadd.f32 0.0, %v5931
      %v5933 = vpop.f32.mrb[0].mxu0
      %v5934 = vadd.f32 0.0, %v5933
      %v5935 = vpop.f32.mrb[0].mxu0
      %v5936 = vadd.f32 0.0, %v5935
      %5937 = vmatprep.mubr.bf16.mxu0 0
      %5938 = vmatmul.mubr.bf16.gmra.mrb[0].mxu0 %v5827
      %v5939 = vpop.f32.mrb[0].mxu0
      %v5940 = vadd.f32 0.0, %v5939
      %v5941 = vpop.f32.mrb[0].mxu0
      %v5942 = vadd.f32 0.0, %v5941
      %v5943 = vpop.f32.mrb[0].mxu0
      %v5944 = vadd.f32 0.0, %v5943
      %v5945 = vpop.f32.mrb[0].mxu0
      %v5946 = vadd.f32 0.0, %v5945
      %5947 = vdwg.mxu0
      %v5948 = vmax.f32 %v5870, %v5872
      %5949 = vmax.xlane.f32.xlu0 %v5948
      %v5950 = vpop.xlane.xlu0 %5949
      %v5951 = vmax.f32 %v5874, %v5876
      %5952 = vmax.xlane.f32.xlu0 %v5951
      %v5953 = vpop.xlane.xlu0 %5952
      %v5954 = vmax.f32 %v5880, %v5882
      %5955 = vmax.xlane.f32.xlu0 %v5954
      %v5956 = vpop.xlane.xlu0 %5955
      %v5957 = vmax.f32 %v5884, %v5886
      %5958 = vmax.xlane.f32.xlu0 %v5957
      %v5959 = vpop.xlane.xlu0 %5958
      %v5960 = vmax.f32 %v5890, %v5892
      %5961 = vmax.xlane.f32.xlu0 %v5960
      %v5962 = vpop.xlane.xlu0 %5961
      %v5963 = vmax.f32 %v5894, %v5896
      %5964 = vmax.xlane.f32.xlu0 %v5963
      %v5965 = vpop.xlane.xlu0 %5964
      %v5966 = vmax.f32 %v5900, %v5902
      %5967 = vmax.xlane.f32.xlu0 %v5966
      %v5968 = vpop.xlane.xlu0 %5967
      %v5969 = vmax.f32 %v5904, %v5906
      %5970 = vmax.xlane.f32.xlu0 %v5969
      %v5971 = vpop.xlane.xlu0 %5970
      %v5972 = vmax.f32 %v5910, %v5912
      %5973 = vmax.xlane.f32.xlu0 %v5972
      %v5974 = vpop.xlane.xlu0 %5973
      %v5975 = vmax.f32 %v5914, %v5916
      %5976 = vmax.xlane.f32.xlu0 %v5975
      %v5977 = vpop.xlane.xlu0 %5976
      %v5978 = vmax.f32 %v5920, %v5922
      %5979 = vmax.xlane.f32.xlu0 %v5978
      %v5980 = vpop.xlane.xlu0 %5979
      %v5981 = vmax.f32 %v5924, %v5926
      %5982 = vmax.xlane.f32.xlu0 %v5981
      %v5983 = vpop.xlane.xlu0 %5982
      %v5984 = vmax.f32 %v5930, %v5932
      %5985 = vmax.xlane.f32.xlu0 %v5984
      %v5986 = vpop.xlane.xlu0 %5985
      %v5987 = vmax.f32 %v5934, %v5936
      %5988 = vmax.xlane.f32.xlu0 %v5987
      %v5989 = vpop.xlane.xlu0 %5988
      %v5990 = vmax.f32 %v5940, %v5942
      %5991 = vmax.xlane.f32.xlu0 %v5990
      %v5992 = vpop.xlane.xlu0 %5991
      %v5993 = vmax.f32 %v5944, %v5946
      %5994 = vmax.xlane.f32.xlu0 %v5993
      %v5995 = vpop.xlane.xlu0 %5994
      %v5996 = vsub.f32 %v5870, %v5950
      %v5997 = vsub.f32 %v5872, %v5950
      %v5998 = vsub.f32 %v5874, %v5953
      %v5999 = vsub.f32 %v5876, %v5953
      %v6000 = vsub.f32 %v5880, %v5956
      %v6001 = vsub.f32 %v5882, %v5956
      %v6002 = vsub.f32 %v5884, %v5959
      %v6003 = vsub.f32 %v5886, %v5959
      %v6004 = vsub.f32 %v5890, %v5962
      %v6005 = vsub.f32 %v5892, %v5962
      %v6006 = vsub.f32 %v5894, %v5965
      %v6007 = vsub.f32 %v5896, %v5965
      %v6008 = vsub.f32 %v5900, %v5968
      %v6009 = vsub.f32 %v5902, %v5968
      %v6010 = vsub.f32 %v5904, %v5971
      %v6011 = vsub.f32 %v5906, %v5971
      %v6012 = vsub.f32 %v5910, %v5974
      %v6013 = vsub.f32 %v5912, %v5974
      %v6014 = vsub.f32 %v5914, %v5977
      %v6015 = vsub.f32 %v5916, %v5977
      %v6016 = vsub.f32 %v5920, %v5980
      %v6017 = vsub.f32 %v5922, %v5980
      %v6018 = vsub.f32 %v5924, %v5983
      %v6019 = vsub.f32 %v5926, %v5983
      %v6020 = vsub.f32 %v5930, %v5986
      %v6021 = vsub.f32 %v5932, %v5986
      %v6022 = vsub.f32 %v5934, %v5989
      %v6023 = vsub.f32 %v5936, %v5989
      %v6024 = vsub.f32 %v5940, %v5992
      %v6025 = vsub.f32 %v5942, %v5992
      %v6026 = vsub.f32 %v5944, %v5995
      %v6027 = vsub.f32 %v5946, %v5995
      %v6028 = vmul.f32 %v5996, 1.442695
      %v6029 = vpow.pop %v6028
      %v6030 = vmul.f32 %v5997, 1.442695
      %v6031 = vpow.pop %v6030
      %v6032 = vmul.f32 %v5998, 1.442695
      %v6033 = vpow.pop %v6032
      %v6034 = vmul.f32 %v5999, 1.442695
      %v6035 = vpow.pop %v6034
      %v6036 = vmul.f32 %v6000, 1.442695
      %v6037 = vpow.pop %v6036
      %v6038 = vmul.f32 %v6001, 1.442695
      %v6039 = vpow.pop %v6038
      %v6040 = vmul.f32 %v6002, 1.442695
      %v6041 = vpow.pop %v6040
      %v6042 = vmul.f32 %v6003, 1.442695
      %v6043 = vpow.pop %v6042
      %v6044 = vmul.f32 %v6004, 1.442695
      %v6045 = vpow.pop %v6044
      %v6046 = vmul.f32 %v6005, 1.442695
      %v6047 = vpow.pop %v6046
      %v6048 = vmul.f32 %v6006, 1.442695
      %v6049 = vpow.pop %v6048
      %v6050 = vmul.f32 %v6007, 1.442695
      %v6051 = vpow.pop %v6050
      %v6052 = vmul.f32 %v6008, 1.442695
      %v6053 = vpow.pop %v6052
      %v6054 = vmul.f32 %v6009, 1.442695
      %v6055 = vpow.pop %v6054
      %v6056 = vmul.f32 %v6010, 1.442695
      %v6057 = vpow.pop %v6056
      %v6058 = vmul.f32 %v6011, 1.442695
      %v6059 = vpow.pop %v6058
      %v6060 = vmul.f32 %v6012, 1.442695
      %v6061 = vpow.pop %v6060
      %v6062 = vmul.f32 %v6013, 1.442695
      %v6063 = vpow.pop %v6062
      %v6064 = vmul.f32 %v6014, 1.442695
      %v6065 = vpow.pop %v6064
      %v6066 = vmul.f32 %v6015, 1.442695
      %v6067 = vpow.pop %v6066
      %v6068 = vmul.f32 %v6016, 1.442695
      %v6069 = vpow.pop %v6068
      %v6070 = vmul.f32 %v6017, 1.442695
      %v6071 = vpow.pop %v6070
      %v6072 = vmul.f32 %v6018, 1.442695
      %v6073 = vpow.pop %v6072
      %v6074 = vmul.f32 %v6019, 1.442695
      %v6075 = vpow.pop %v6074
      %v6076 = vmul.f32 %v6020, 1.442695
      %v6077 = vpow.pop %v6076
      %v6078 = vmul.f32 %v6021, 1.442695
      %v6079 = vpow.pop %v6078
      %v6080 = vmul.f32 %v6022, 1.442695
      %v6081 = vpow.pop %v6080
      %v6082 = vmul.f32 %v6023, 1.442695
      %v6083 = vpow.pop %v6082
      %v6084 = vmul.f32 %v6024, 1.442695
      %v6085 = vpow.pop %v6084
      %v6086 = vmul.f32 %v6025, 1.442695
      %v6087 = vpow.pop %v6086
      %v6088 = vmul.f32 %v6026, 1.442695
      %v6089 = vpow.pop %v6088
      %v6090 = vmul.f32 %v6027, 1.442695
      %v6091 = vpow.pop %v6090
      %v6092 = vpack.c.bf16 %v6033, %v6029
      %v6093 = vpack.c.bf16 %v6035, %v6031
      %v6094 = vpack.c.bf16 %v6041, %v6037
      %v6095 = vpack.c.bf16 %v6043, %v6039
      %v6096 = vpack.c.bf16 %v6049, %v6045
      %v6097 = vpack.c.bf16 %v6051, %v6047
      %v6098 = vpack.c.bf16 %v6057, %v6053
      %v6099 = vpack.c.bf16 %v6059, %v6055
      %v6100 = vpack.c.bf16 %v6065, %v6061
      %v6101 = vpack.c.bf16 %v6067, %v6063
      %v6102 = vpack.c.bf16 %v6073, %v6069
      %v6103 = vpack.c.bf16 %v6075, %v6071
      %v6104 = vpack.c.bf16 %v6081, %v6077
      %v6105 = vpack.c.bf16 %v6083, %v6079
      %v6106 = vpack.c.bf16 %v6089, %v6085
      %v6107 = vpack.c.bf16 %v6091, %v6087
      %6108 = vmatprep.subr.bf16.mxu0 %v6093
      %6109 = vmatpush1.bf16.xpose.msra.mxu0 %v6092
      %6110 = vmatprep.subr.bf16.mxu0 %v6095
      %6111 = vmatpush1.bf16.xpose.msra.mxu0 %v6094
      %6112 = vmatprep.subr.bf16.mxu0 %v6097
      %6113 = vmatpush1.bf16.xpose.msra.mxu0 %v6096
      %6114 = vmatprep.subr.bf16.mxu0 %v6099
      %6115 = vmatpush1.bf16.xpose.msra.mxu0 %v6098
      %6116 = vmatprep.subr.bf16.mxu0 %v6101
      %6117 = vmatpush1.bf16.xpose.msra.mxu0 %v6100
      %6118 = vmatprep.subr.bf16.mxu0 %v6103
      %6119 = vmatpush1.bf16.xpose.msra.mxu0 %v6102
      %6120 = vmatprep.subr.bf16.mxu0 %v6105
      %6121 = vmatpush1.bf16.xpose.msra.mxu0 %v6104
      %6122 = vmatprep.subr.bf16.mxu0 %v6107
      %6123 = vmatpush1.bf16.xpose.msra.mxu0 %v6106
      %6124 = vmatprep.subr.bf16.mxu0 0
      %6125 = vmatpush1.bf16.xpose.msra.mxu0 0
      %6126 = vmatprep.subr.bf16.mxu0 0
      %6127 = vmatpush1.bf16.xpose.msra.mxu0 0
      %6128 = vmatprep.subr.bf16.mxu0 0
      %6129 = vmatpush1.bf16.xpose.msra.mxu0 0
      %6130 = vmatprep.subr.bf16.mxu0 0
      %6131 = vmatpush1.bf16.xpose.msra.mxu0 0
      %6132 = vmatprep.subr.bf16.mxu0 0
      %6133 = vmatpush1.bf16.xpose.msra.mxu0 0
      %6134 = vmatprep.subr.bf16.mxu0 0
      %6135 = vmatpush1.bf16.xpose.msra.mxu0 0
      %6136 = vmatprep.subr.bf16.mxu0 0
      %6137 = vmatpush1.bf16.xpose.msra.mxu0 0
      %6138 = vmatprep.subr.bf16.mxu0 0
      %6139 = vmatpush1.bf16.xpose.msra.mxu0 0
      %6140 = vmatprep.mubr.bf16.mxu0 %v5779
      %6141 = vmatmul.mubr.bf16.gmra.mrb[0].mxu0 %v5776
      %v6142 = vpop.f32.mrb[0].mxu0
      %v6143 = vadd.f32 0.0, %v6142
      %v6144 = vpop.f32.mrb[0].mxu0
      %v6145 = vpop.f32.mrb[0].mxu0
      %v6146 = vadd.f32 0.0, %v6145
      %v6147 = vpop.f32.mrb[0].mxu0
      %6148 = vdwg.mxu0
      %v6149 = vrcp.pop %v6146
      %v6150 = vlaneseq
      %v6151 = vshrl.u32 %v6150, 7
      %v6152 = vsub.s32 0, %v6151
      %v6153 = vrot.slane %v6149, %v6152
      %v6154 = vmul.f32 %v6143, %v6153
      %v6155 = vpack.c.bf16 %v6154, %v6154
      %v6157 = vrot.slane %v6155, 4
      %6159 = vst [vmem:[#allocation4] sm:$0xf0] %v6157
      %6168 = vrot.lane.b32.xlu0 %v5052, 120
      %v6169 = vpop.permute.xlu0 %6168
      %6170 = vrot.lane.b32.xlu0 %v5053, 120
      %v6171 = vpop.permute.xlu0 %6170
      %6172 = vrot.lane.b32.xlu0 %v5054, 120
      %v6173 = vpop.permute.xlu0 %6172
      %6174 = vrot.lane.b32.xlu0 %v5055, 120
      %v6175 = vpop.permute.xlu0 %6174
      %6176 = vrot.lane.b32.xlu0 %v5056, 120
      %v6177 = vpop.permute.xlu0 %6176
      %6178 = vrot.lane.b32.xlu0 %v5057, 120
      %v6179 = vpop.permute.xlu0 %6178
      %6180 = vrot.lane.b32.xlu0 %v5058, 120
      %v6181 = vpop.permute.xlu0 %6180
      %6182 = vrot.lane.b32.xlu0 %v5059, 120
      %v6183 = vpop.permute.xlu0 %6182
      %v6185 = vsel %vm5072, %v6169, 0
      %v6188 = vsel %vm5072, %v6171, 0
      %v6191 = vsel %vm5072, %v6173, 0
      %v6194 = vsel %vm5072, %v6175, 0
      %v6197 = vsel %vm5072, %v6177, 0
      %v6200 = vsel %vm5072, %v6179, 0
      %v6203 = vsel %vm5072, %v6181, 0
      %v6206 = vsel %vm5072, %v6183, 0
      %6208 = vmatprep.subr.bf16.mxu0 %v5833
      %6209 = vmatpush1.bf16.msra.mxu0 %v5830
      %6210 = vmatprep.subr.bf16.mxu0 0
      %6211 = vmatpush1.bf16.msra.mxu0 0
      %6212 = vmatprep.subr.bf16.mxu0 0
      %6213 = vmatpush1.bf16.msra.mxu0 0
      %6214 = vmatprep.subr.bf16.mxu0 0
      %6215 = vmatpush1.bf16.msra.mxu0 0
      %6216 = vmatprep.subr.bf16.mxu0 0
      %6217 = vmatpush1.bf16.msra.mxu0 0
      %6218 = vmatprep.subr.bf16.mxu0 0
      %6219 = vmatpush1.bf16.msra.mxu0 0
      %6220 = vmatprep.subr.bf16.mxu0 0
      %6221 = vmatpush1.bf16.msra.mxu0 0
      %6222 = vmatprep.subr.bf16.mxu0 0
      %6223 = vmatpush1.bf16.msra.mxu0 0
      %6224 = vmatprep.subr.bf16.mxu0 0
      %6225 = vmatpush1.bf16.msra.mxu0 0
      %6226 = vmatprep.subr.bf16.mxu0 0
      %6227 = vmatpush1.bf16.msra.mxu0 0
      %6228 = vmatprep.subr.bf16.mxu0 0
      %6229 = vmatpush1.bf16.msra.mxu0 0
      %6230 = vmatprep.subr.bf16.mxu0 0
      %6231 = vmatpush1.bf16.msra.mxu0 0
      %6232 = vmatprep.subr.bf16.mxu0 0
      %6233 = vmatpush1.bf16.msra.mxu0 0
      %6234 = vmatprep.subr.bf16.mxu0 0
      %6235 = vmatpush1.bf16.msra.mxu0 0
      %6236 = vmatprep.subr.bf16.mxu0 0
      %6237 = vmatpush1.bf16.msra.mxu0 0
      %6238 = vmatprep.subr.bf16.mxu0 0
      %6239 = vmatpush1.bf16.msra.mxu0 0
      %6240 = vmatprep.mubr.bf16.mxu0 0
      %6241 = vmatmul.mubr.bf16.gmra.mrb[0].mxu0 %v6185
      %v6242 = vpop.f32.mrb[0].mxu0
      %v6243 = vadd.f32 0.0, %v6242
      %v6244 = vpop.f32.mrb[0].mxu0
      %v6245 = vadd.f32 0.0, %v6244
      %v6246 = vpop.f32.mrb[0].mxu0
      %v6247 = vadd.f32 0.0, %v6246
      %v6248 = vpop.f32.mrb[0].mxu0
      %v6249 = vadd.f32 0.0, %v6248
      %6250 = vmatprep.mubr.bf16.mxu0 0
      %6251 = vmatmul.mubr.bf16.gmra.mrb[0].mxu0 %v6188
      %v6252 = vpop.f32.mrb[0].mxu0
      %v6253 = vadd.f32 0.0, %v6252
      %v6254 = vpop.f32.mrb[0].mxu0
      %v6255 = vadd.f32 0.0, %v6254
      %v6256 = vpop.f32.mrb[0].mxu0
      %v6257 = vadd.f32 0.0, %v6256
      %v6258 = vpop.f32.mrb[0].mxu0
      %v6259 = vadd.f32 0.0, %v6258
      %6260 = vmatprep.mubr.bf16.mxu0 0
      %6261 = vmatmul.mubr.bf16.gmra.mrb[0].mxu0 %v6191
      %v6262 = vpop.f32.mrb[0].mxu0
      %v6263 = vadd.f32 0.0, %v6262
      %v6264 = vpop.f32.mrb[0].mxu0
      %v6265 = vadd.f32 0.0, %v6264
      %v6266 = vpop.f32.mrb[0].mxu0
      %v6267 = vadd.f32 0.0, %v6266
      %v6268 = vpop.f32.mrb[0].mxu0
      %v6269 = vadd.f32 0.0, %v6268
      %6270 = vmatprep.mubr.bf16.mxu0 0
      %6271 = vmatmul.mubr.bf16.gmra.mrb[0].mxu0 %v6194
      %v6272 = vpop.f32.mrb[0].mxu0
      %v6273 = vadd.f32 0.0, %v6272
      %v6274 = vpop.f32.mrb[0].mxu0
      %v6275 = vadd.f32 0.0, %v6274
      %v6276 = vpop.f32.mrb[0].mxu0
      %v6277 = vadd.f32 0.0, %v6276
      %v6278 = vpop.f32.mrb[0].mxu0
      %v6279 = vadd.f32 0.0, %v6278
      %6280 = vmatprep.mubr.bf16.mxu0 0
      %6281 = vmatmul.mubr.bf16.gmra.mrb[0].mxu0 %v6197
      %v6282 = vpop.f32.mrb[0].mxu0
      %v6283 = vadd.f32 0.0, %v6282
      %v6284 = vpop.f32.mrb[0].mxu0
      %v6285 = vadd.f32 0.0, %v6284
      %v6286 = vpop.f32.mrb[0].mxu0
      %v6287 = vadd.f32 0.0, %v6286
      %v6288 = vpop.f32.mrb[0].mxu0
      %v6289 = vadd.f32 0.0, %v6288
      %6290 = vmatprep.mubr.bf16.mxu0 0
      %6291 = vmatmul.mubr.bf16.gmra.mrb[0].mxu0 %v6200
      %v6292 = vpop.f32.mrb[0].mxu0
      %v6293 = vadd.f32 0.0, %v6292
      %v6294 = vpop.f32.mrb[0].mxu0
      %v6295 = vadd.f32 0.0, %v6294
      %v6296 = vpop.f32.mrb[0].mxu0
      %v6297 = vadd.f32 0.0, %v6296
      %v6298 = vpop.f32.mrb[0].mxu0
      %v6299 = vadd.f32 0.0, %v6298
      %6300 = vmatprep.mubr.bf16.mxu0 0
      %6301 = vmatmul.mubr.bf16.gmra.mrb[0].mxu0 %v6203
      %v6302 = vpop.f32.mrb[0].mxu0
      %v6303 = vadd.f32 0.0, %v6302
      %v6304 = vpop.f32.mrb[0].mxu0
      %v6305 = vadd.f32 0.0, %v6304
      %v6306 = vpop.f32.mrb[0].mxu0
      %v6307 = vadd.f32 0.0, %v6306
      %v6308 = vpop.f32.mrb[0].mxu0
      %v6309 = vadd.f32 0.0, %v6308
      %6310 = vmatprep.mubr.bf16.mxu0 0
      %6311 = vmatmul.mubr.bf16.gmra.mrb[0].mxu0 %v6206
      %v6312 = vpop.f32.mrb[0].mxu0
      %v6313 = vadd.f32 0.0, %v6312
      %v6314 = vpop.f32.mrb[0].mxu0
      %v6315 = vadd.f32 0.0, %v6314
      %v6316 = vpop.f32.mrb[0].mxu0
      %v6317 = vadd.f32 0.0, %v6316
      %v6318 = vpop.f32.mrb[0].mxu0
      %v6319 = vadd.f32 0.0, %v6318
      %6320 = vdwg.mxu0
      %v6321 = vmax.f32 %v6243, %v6245
      %6322 = vmax.xlane.f32.xlu0 %v6321
      %v6323 = vpop.xlane.xlu0 %6322
      %v6324 = vmax.f32 %v6247, %v6249
      %6325 = vmax.xlane.f32.xlu0 %v6324
      %v6326 = vpop.xlane.xlu0 %6325
      %v6327 = vmax.f32 %v6253, %v6255
      %6328 = vmax.xlane.f32.xlu0 %v6327
      %v6329 = vpop.xlane.xlu0 %6328
      %v6330 = vmax.f32 %v6257, %v6259
      %6331 = vmax.xlane.f32.xlu0 %v6330
      %v6332 = vpop.xlane.xlu0 %6331
      %v6333 = vmax.f32 %v6263, %v6265
      %6334 = vmax.xlane.f32.xlu0 %v6333
      %v6335 = vpop.xlane.xlu0 %6334
      %v6336 = vmax.f32 %v6267, %v6269
      %6337 = vmax.xlane.f32.xlu0 %v6336
      %v6338 = vpop.xlane.xlu0 %6337
      %v6339 = vmax.f32 %v6273, %v6275
      %6340 = vmax.xlane.f32.xlu0 %v6339
      %v6341 = vpop.xlane.xlu0 %6340
      %v6342 = vmax.f32 %v6277, %v6279
      %6343 = vmax.xlane.f32.xlu0 %v6342
      %v6344 = vpop.xlane.xlu0 %6343
      %v6345 = vmax.f32 %v6283, %v6285
      %6346 = vmax.xlane.f32.xlu0 %v6345
      %v6347 = vpop.xlane.xlu0 %6346
      %v6348 = vmax.f32 %v6287, %v6289
      %6349 = vmax.xlane.f32.xlu0 %v6348
      %v6350 = vpop.xlane.xlu0 %6349
      %v6351 = vmax.f32 %v6293, %v6295
      %6352 = vmax.xlane.f32.xlu0 %v6351
      %v6353 = vpop.xlane.xlu0 %6352
      %v6354 = vmax.f32 %v6297, %v6299
      %6355 = vmax.xlane.f32.xlu0 %v6354
      %v6356 = vpop.xlane.xlu0 %6355
      %v6357 = vmax.f32 %v6303, %v6305
      %6358 = vmax.xlane.f32.xlu0 %v6357
      %v6359 = vpop.xlane.xlu0 %6358
      %v6360 = vmax.f32 %v6307, %v6309
      %6361 = vmax.xlane.f32.xlu0 %v6360
      %v6362 = vpop.xlane.xlu0 %6361
      %v6363 = vmax.f32 %v6313, %v6315
      %6364 = vmax.xlane.f32.xlu0 %v6363
      %v6365 = vpop.xlane.xlu0 %6364
      %v6366 = vmax.f32 %v6317, %v6319
      %6367 = vmax.xlane.f32.xlu0 %v6366
      %v6368 = vpop.xlane.xlu0 %6367
      %v6369 = vsub.f32 %v6243, %v6323
      %v6370 = vsub.f32 %v6245, %v6323
      %v6371 = vsub.f32 %v6247, %v6326
      %v6372 = vsub.f32 %v6249, %v6326
      %v6373 = vsub.f32 %v6253, %v6329
      %v6374 = vsub.f32 %v6255, %v6329
      %v6375 = vsub.f32 %v6257, %v6332
      %v6376 = vsub.f32 %v6259, %v6332
      %v6377 = vsub.f32 %v6263, %v6335
      %v6378 = vsub.f32 %v6265, %v6335
      %v6379 = vsub.f32 %v6267, %v6338
      %v6380 = vsub.f32 %v6269, %v6338
      %v6381 = vsub.f32 %v6273, %v6341
      %v6382 = vsub.f32 %v6275, %v6341
      %v6383 = vsub.f32 %v6277, %v6344
      %v6384 = vsub.f32 %v6279, %v6344
      %v6385 = vsub.f32 %v6283, %v6347
      %v6386 = vsub.f32 %v6285, %v6347
      %v6387 = vsub.f32 %v6287, %v6350
      %v6388 = vsub.f32 %v6289, %v6350
      %v6389 = vsub.f32 %v6293, %v6353
      %v6390 = vsub.f32 %v6295, %v6353
      %v6391 = vsub.f32 %v6297, %v6356
      %v6392 = vsub.f32 %v6299, %v6356
      %v6393 = vsub.f32 %v6303, %v6359
      %v6394 = vsub.f32 %v6305, %v6359
      %v6395 = vsub.f32 %v6307, %v6362
      %v6396 = vsub.f32 %v6309, %v6362
      %v6397 = vsub.f32 %v6313, %v6365
      %v6398 = vsub.f32 %v6315, %v6365
      %v6399 = vsub.f32 %v6317, %v6368
      %v6400 = vsub.f32 %v6319, %v6368
      %v6401 = vmul.f32 %v6369, 1.442695
      %v6402 = vpow.pop %v6401
      %v6403 = vmul.f32 %v6370, 1.442695
      %v6404 = vpow.pop %v6403
      %v6405 = vmul.f32 %v6371, 1.442695
      %v6406 = vpow.pop %v6405
      %v6407 = vmul.f32 %v6372, 1.442695
      %v6408 = vpow.pop %v6407
      %v6409 = vmul.f32 %v6373, 1.442695
      %v6410 = vpow.pop %v6409
      %v6411 = vmul.f32 %v6374, 1.442695
      %v6412 = vpow.pop %v6411
      %v6413 = vmul.f32 %v6375, 1.442695
      %v6414 = vpow.pop %v6413
      %v6415 = vmul.f32 %v6376, 1.442695
      %v6416 = vpow.pop %v6415
      %v6417 = vmul.f32 %v6377, 1.442695
      %v6418 = vpow.pop %v6417
      %v6419 = vmul.f32 %v6378, 1.442695
      %v6420 = vpow.pop %v6419
      %v6421 = vmul.f32 %v6379, 1.442695
      %v6422 = vpow.pop %v6421
      %v6423 = vmul.f32 %v6380, 1.442695
      %v6424 = vpow.pop %v6423
      %v6425 = vmul.f32 %v6381, 1.442695
      %v6426 = vpow.pop %v6425
      %v6427 = vmul.f32 %v6382, 1.442695
      %v6428 = vpow.pop %v6427
      %v6429 = vmul.f32 %v6383, 1.442695
      %v6430 = vpow.pop %v6429
      %v6431 = vmul.f32 %v6384, 1.442695
      %v6432 = vpow.pop %v6431
      %v6433 = vmul.f32 %v6385, 1.442695
      %v6434 = vpow.pop %v6433
      %v6435 = vmul.f32 %v6386, 1.442695
      %v6436 = vpow.pop %v6435
      %v6437 = vmul.f32 %v6387, 1.442695
      %v6438 = vpow.pop %v6437
      %v6439 = vmul.f32 %v6388, 1.442695
      %v6440 = vpow.pop %v6439
      %v6441 = vmul.f32 %v6389, 1.442695
      %v6442 = vpow.pop %v6441
      %v6443 = vmul.f32 %v6390, 1.442695
      %v6444 = vpow.pop %v6443
      %v6445 = vmul.f32 %v6391, 1.442695
      %v6446 = vpow.pop %v6445
      %v6447 = vmul.f32 %v6392, 1.442695
      %v6448 = vpow.pop %v6447
      %v6449 = vmul.f32 %v6393, 1.442695
      %v6450 = vpow.pop %v6449
      %v6451 = vmul.f32 %v6394, 1.442695
      %v6452 = vpow.pop %v6451
      %v6453 = vmul.f32 %v6395, 1.442695
      %v6454 = vpow.pop %v6453
      %v6455 = vmul.f32 %v6396, 1.442695
      %v6456 = vpow.pop %v6455
      %v6457 = vmul.f32 %v6397, 1.442695
      %v6458 = vpow.pop %v6457
      %v6459 = vmul.f32 %v6398, 1.442695
      %v6460 = vpow.pop %v6459
      %v6461 = vmul.f32 %v6399, 1.442695
      %v6462 = vpow.pop %v6461
      %v6463 = vmul.f32 %v6400, 1.442695
      %v6464 = vpow.pop %v6463
      %v6465 = vpack.c.bf16 %v6406, %v6402
      %v6466 = vpack.c.bf16 %v6408, %v6404
      %v6467 = vpack.c.bf16 %v6414, %v6410
      %v6468 = vpack.c.bf16 %v6416, %v6412
      %v6469 = vpack.c.bf16 %v6422, %v6418
      %v6470 = vpack.c.bf16 %v6424, %v6420
      %v6471 = vpack.c.bf16 %v6430, %v6426
      %v6472 = vpack.c.bf16 %v6432, %v6428
      %v6473 = vpack.c.bf16 %v6438, %v6434
      %v6474 = vpack.c.bf16 %v6440, %v6436
      %v6475 = vpack.c.bf16 %v6446, %v6442
      %v6476 = vpack.c.bf16 %v6448, %v6444
      %v6477 = vpack.c.bf16 %v6454, %v6450
      %v6478 = vpack.c.bf16 %v6456, %v6452
      %v6479 = vpack.c.bf16 %v6462, %v6458
      %v6480 = vpack.c.bf16 %v6464, %v6460
      %6481 = vmatprep.subr.bf16.mxu0 %v6466
      %6482 = vmatpush1.bf16.xpose.msra.mxu0 %v6465
      %6483 = vmatprep.subr.bf16.mxu0 %v6468
      %6484 = vmatpush1.bf16.xpose.msra.mxu0 %v6467
      %6485 = vmatprep.subr.bf16.mxu0 %v6470
      %6486 = vmatpush1.bf16.xpose.msra.mxu0 %v6469
      %6487 = vmatprep.subr.bf16.mxu0 %v6472
      %6488 = vmatpush1.bf16.xpose.msra.mxu0 %v6471
      %6489 = vmatprep.subr.bf16.mxu0 %v6474
      %6490 = vmatpush1.bf16.xpose.msra.mxu0 %v6473
      %6491 = vmatprep.subr.bf16.mxu0 %v6476
      %6492 = vmatpush1.bf16.xpose.msra.mxu0 %v6475
      %6493 = vmatprep.subr.bf16.mxu0 %v6478
      %6494 = vmatpush1.bf16.xpose.msra.mxu0 %v6477
      %6495 = vmatprep.subr.bf16.mxu0 %v6480
      %6496 = vmatpush1.bf16.xpose.msra.mxu0 %v6479
      %6497 = vmatprep.subr.bf16.mxu0 0
      %6498 = vmatpush1.bf16.xpose.msra.mxu0 0
      %6499 = vmatprep.subr.bf16.mxu0 0
      %6500 = vmatpush1.bf16.xpose.msra.mxu0 0
      %6501 = vmatprep.subr.bf16.mxu0 0
      %6502 = vmatpush1.bf16.xpose.msra.mxu0 0
      %6503 = vmatprep.subr.bf16.mxu0 0
      %6504 = vmatpush1.bf16.xpose.msra.mxu0 0
      %6505 = vmatprep.subr.bf16.mxu0 0
      %6506 = vmatpush1.bf16.xpose.msra.mxu0 0
      %6507 = vmatprep.subr.bf16.mxu0 0
      %6508 = vmatpush1.bf16.xpose.msra.mxu0 0
      %6509 = vmatprep.subr.bf16.mxu0 0
      %6510 = vmatpush1.bf16.xpose.msra.mxu0 0
      %6511 = vmatprep.subr.bf16.mxu0 0
      %6512 = vmatpush1.bf16.xpose.msra.mxu0 0
      %6513 = vmatprep.mubr.bf16.mxu0 %v5779
      %6514 = vmatmul.mubr.bf16.gmra.mrb[0].mxu0 %v5776
      %v6515 = vpop.f32.mrb[0].mxu0
      %v6516 = vadd.f32 0.0, %v6515
      %v6517 = vpop.f32.mrb[0].mxu0
      %v6518 = vpop.f32.mrb[0].mxu0
      %v6519 = vadd.f32 0.0, %v6518
      %v6520 = vpop.f32.mrb[0].mxu0
      %6521 = vdwg.mxu0
      %v6522 = vrcp.pop %v6519
      %v6523 = vlaneseq
      %v6524 = vshrl.u32 %v6523, 7
      %v6525 = vsub.s32 0, %v6524
      %v6526 = vrot.slane %v6522, %v6525
      %v6527 = vmul.f32 %v6516, %v6526
      %v6528 = vpack.c.bf16 %v6527, %v6527
      %v6530 = vrot.slane %v6528, 4
      %6532 = vst [vmem:[#allocation4 + $0x8] sm:$0xf0] %v6530
      %v6533 = vpack.c.bf16 %v4988, %v4988
      %v6534 = vpack.c.bf16 %v4990, %v4990
      %v6535 = vpack.c.bf16 %v5008, %v5008
      %v6536 = vpack.c.bf16 %v5010, %v5010
      %v6538 = vsel %vm5064, %v6535, 1065369472
      %v6541 = vsel %vm5064, %v6536, 1065369472
      %6543 = vrot.lane.b32.xlu0 %v5036, 112
      %v6544 = vpop.permute.xlu0 %6543
      %6545 = vrot.lane.b32.xlu0 %v5037, 112
      %v6546 = vpop.permute.xlu0 %6545
      %6547 = vrot.lane.b32.xlu0 %v5038, 112
      %v6548 = vpop.permute.xlu0 %6547
      %6549 = vrot.lane.b32.xlu0 %v5039, 112
      %v6550 = vpop.permute.xlu0 %6549
      %6551 = vrot.lane.b32.xlu0 %v5040, 112
      %v6552 = vpop.permute.xlu0 %6551
      %6553 = vrot.lane.b32.xlu0 %v5041, 112
      %v6554 = vpop.permute.xlu0 %6553
      %6555 = vrot.lane.b32.xlu0 %v5042, 112
      %v6556 = vpop.permute.xlu0 %6555
      %6557 = vrot.lane.b32.xlu0 %v5043, 112
      %v6558 = vpop.permute.xlu0 %6557
      %v6560 = vsel %vm5072, %v6544, 0
      %v6563 = vsel %vm5072, %v6546, 0
      %v6566 = vsel %vm5072, %v6548, 0
      %v6569 = vsel %vm5072, %v6550, 0
      %v6572 = vsel %vm5072, %v6552, 0
      %v6575 = vsel %vm5072, %v6554, 0
      %v6578 = vsel %vm5072, %v6556, 0
      %v6581 = vsel %vm5072, %v6558, 0
      %v6584 = vsel %vm5064, %v6533, 0
      %v6587 = vsel %vm5064, %v6534, 0
      %6589 = vmatprep.subr.bf16.mxu0 %v6587
      %6590 = vmatpush1.bf16.msra.mxu0 %v6584
      %6591 = vmatprep.subr.bf16.mxu0 0
      %6592 = vmatpush1.bf16.msra.mxu0 0
      %6593 = vmatprep.subr.bf16.mxu0 0
      %6594 = vmatpush1.bf16.msra.mxu0 0
      %6595 = vmatprep.subr.bf16.mxu0 0
      %6596 = vmatpush1.bf16.msra.mxu0 0
      %6597 = vmatprep.subr.bf16.mxu0 0
      %6598 = vmatpush1.bf16.msra.mxu0 0
      %6599 = vmatprep.subr.bf16.mxu0 0
      %6600 = vmatpush1.bf16.msra.mxu0 0
      %6601 = vmatprep.subr.bf16.mxu0 0
      %6602 = vmatpush1.bf16.msra.mxu0 0
      %6603 = vmatprep.subr.bf16.mxu0 0
      %6604 = vmatpush1.bf16.msra.mxu0 0
      %6605 = vmatprep.subr.bf16.mxu0 0
      %6606 = vmatpush1.bf16.msra.mxu0 0
      %6607 = vmatprep.subr.bf16.mxu0 0
      %6608 = vmatpush1.bf16.msra.mxu0 0
      %6609 = vmatprep.subr.bf16.mxu0 0
      %6610 = vmatpush1.bf16.msra.mxu0 0
      %6611 = vmatprep.subr.bf16.mxu0 0
      %6612 = vmatpush1.bf16.msra.mxu0 0
      %6613 = vmatprep.subr.bf16.mxu0 0
      %6614 = vmatpush1.bf16.msra.mxu0 0
      %6615 = vmatprep.subr.bf16.mxu0 0
      %6616 = vmatpush1.bf16.msra.mxu0 0
      %6617 = vmatprep.subr.bf16.mxu0 0
      %6618 = vmatpush1.bf16.msra.mxu0 0
      %6619 = vmatprep.subr.bf16.mxu0 0
      %6620 = vmatpush1.bf16.msra.mxu0 0
      %6621 = vmatprep.mubr.bf16.mxu0 0
      %6622 = vmatmul.mubr.bf16.gmra.mrb[0].mxu0 %v6560
      %v6623 = vpop.f32.mrb[0].mxu0
      %v6624 = vadd.f32 0.0, %v6623
      %v6625 = vpop.f32.mrb[0].mxu0
      %v6626 = vadd.f32 0.0, %v6625
      %v6627 = vpop.f32.mrb[0].mxu0
      %v6628 = vadd.f32 0.0, %v6627
      %v6629 = vpop.f32.mrb[0].mxu0
      %v6630 = vadd.f32 0.0, %v6629
      %6631 = vmatprep.mubr.bf16.mxu0 0
      %6632 = vmatmul.mubr.bf16.gmra.mrb[0].mxu0 %v6563
      %v6633 = vpop.f32.mrb[0].mxu0
      %v6634 = vadd.f32 0.0, %v6633
      %v6635 = vpop.f32.mrb[0].mxu0
      %v6636 = vadd.f32 0.0, %v6635
      %v6637 = vpop.f32.mrb[0].mxu0
      %v6638 = vadd.f32 0.0, %v6637
      %v6639 = vpop.f32.mrb[0].mxu0
      %v6640 = vadd.f32 0.0, %v6639
      %6641 = vmatprep.mubr.bf16.mxu0 0
      %6642 = vmatmul.mubr.bf16.gmra.mrb[0].mxu0 %v6566
      %v6643 = vpop.f32.mrb[0].mxu0
      %v6644 = vadd.f32 0.0, %v6643
      %v6645 = vpop.f32.mrb[0].mxu0
      %v6646 = vadd.f32 0.0, %v6645
      %v6647 = vpop.f32.mrb[0].mxu0
      %v6648 = vadd.f32 0.0, %v6647
      %v6649 = vpop.f32.mrb[0].mxu0
      %v6650 = vadd.f32 0.0, %v6649
      %6651 = vmatprep.mubr.bf16.mxu0 0
      %6652 = vmatmul.mubr.bf16.gmra.mrb[0].mxu0 %v6569
      %v6653 = vpop.f32.mrb[0].mxu0
      %v6654 = vadd.f32 0.0, %v6653
      %v6655 = vpop.f32.mrb[0].mxu0
      %v6656 = vadd.f32 0.0, %v6655
      %v6657 = vpop.f32.mrb[0].mxu0
      %v6658 = vadd.f32 0.0, %v6657
      %v6659 = vpop.f32.mrb[0].mxu0
      %v6660 = vadd.f32 0.0, %v6659
      %6661 = vmatprep.mubr.bf16.mxu0 0
      %6662 = vmatmul.mubr.bf16.gmra.mrb[0].mxu0 %v6572
      %v6663 = vpop.f32.mrb[0].mxu0
      %v6664 = vadd.f32 0.0, %v6663
      %v6665 = vpop.f32.mrb[0].mxu0
      %v6666 = vadd.f32 0.0, %v6665
      %v6667 = vpop.f32.mrb[0].mxu0
      %v6668 = vadd.f32 0.0, %v6667
      %v6669 = vpop.f32.mrb[0].mxu0
      %v6670 = vadd.f32 0.0, %v6669
      %6671 = vmatprep.mubr.bf16.mxu0 0
      %6672 = vmatmul.mubr.bf16.gmra.mrb[0].mxu0 %v6575
      %v6673 = vpop.f32.mrb[0].mxu0
      %v6674 = vadd.f32 0.0, %v6673
      %v6675 = vpop.f32.mrb[0].mxu0
      %v6676 = vadd.f32 0.0, %v6675
      %v6677 = vpop.f32.mrb[0].mxu0
      %v6678 = vadd.f32 0.0, %v6677
      %v6679 = vpop.f32.mrb[0].mxu0
      %v6680 = vadd.f32 0.0, %v6679
      %6681 = vmatprep.mubr.bf16.mxu0 0
      %6682 = vmatmul.mubr.bf16.gmra.mrb[0].mxu0 %v6578
      %v6683 = vpop.f32.mrb[0].mxu0
      %v6684 = vadd.f32 0.0, %v6683
      %v6685 = vpop.f32.mrb[0].mxu0
      %v6686 = vadd.f32 0.0, %v6685
      %v6687 = vpop.f32.mrb[0].mxu0
      %v6688 = vadd.f32 0.0, %v6687
      %v6689 = vpop.f32.mrb[0].mxu0
      %v6690 = vadd.f32 0.0, %v6689
      %6691 = vmatprep.mubr.bf16.mxu0 0
      %6692 = vmatmul.mubr.bf16.gmra.mrb[0].mxu0 %v6581
      %v6693 = vpop.f32.mrb[0].mxu0
      %v6694 = vadd.f32 0.0, %v6693
      %v6695 = vpop.f32.mrb[0].mxu0
      %v6696 = vadd.f32 0.0, %v6695
      %v6697 = vpop.f32.mrb[0].mxu0
      %v6698 = vadd.f32 0.0, %v6697
      %v6699 = vpop.f32.mrb[0].mxu0
      %v6700 = vadd.f32 0.0, %v6699
      %6701 = vdwg.mxu0
      %v6702 = vmax.f32 %v6624, %v6626
      %6703 = vmax.xlane.f32.xlu0 %v6702
      %v6704 = vpop.xlane.xlu0 %6703
      %v6705 = vmax.f32 %v6628, %v6630
      %6706 = vmax.xlane.f32.xlu0 %v6705
      %v6707 = vpop.xlane.xlu0 %6706
      %v6708 = vmax.f32 %v6634, %v6636
      %6709 = vmax.xlane.f32.xlu0 %v6708
      %v6710 = vpop.xlane.xlu0 %6709
      %v6711 = vmax.f32 %v6638, %v6640
      %6712 = vmax.xlane.f32.xlu0 %v6711
      %v6713 = vpop.xlane.xlu0 %6712
      %v6714 = vmax.f32 %v6644, %v6646
      %6715 = vmax.xlane.f32.xlu0 %v6714
      %v6716 = vpop.xlane.xlu0 %6715
      %v6717 = vmax.f32 %v6648, %v6650
      %6718 = vmax.xlane.f32.xlu0 %v6717
      %v6719 = vpop.xlane.xlu0 %6718
      %v6720 = vmax.f32 %v6654, %v6656
      %6721 = vmax.xlane.f32.xlu0 %v6720
      %v6722 = vpop.xlane.xlu0 %6721
      %v6723 = vmax.f32 %v6658, %v6660
      %6724 = vmax.xlane.f32.xlu0 %v6723
      %v6725 = vpop.xlane.xlu0 %6724
      %v6726 = vmax.f32 %v6664, %v6666
      %6727 = vmax.xlane.f32.xlu0 %v6726
      %v6728 = vpop.xlane.xlu0 %6727
      %v6729 = vmax.f32 %v6668, %v6670
      %6730 = vmax.xlane.f32.xlu0 %v6729
      %v6731 = vpop.xlane.xlu0 %6730
      %v6732 = vmax.f32 %v6674, %v6676
      %6733 = vmax.xlane.f32.xlu0 %v6732
      %v6734 = vpop.xlane.xlu0 %6733
      %v6735 = vmax.f32 %v6678, %v6680
      %6736 = vmax.xlane.f32.xlu0 %v6735
      %v6737 = vpop.xlane.xlu0 %6736
      %v6738 = vmax.f32 %v6684, %v6686
      %6739 = vmax.xlane.f32.xlu0 %v6738
      %v6740 = vpop.xlane.xlu0 %6739
      %v6741 = vmax.f32 %v6688, %v6690
      %6742 = vmax.xlane.f32.xlu0 %v6741
      %v6743 = vpop.xlane.xlu0 %6742
      %v6744 = vmax.f32 %v6694, %v6696
      %6745 = vmax.xlane.f32.xlu0 %v6744
      %v6746 = vpop.xlane.xlu0 %6745
      %v6747 = vmax.f32 %v6698, %v6700
      %6748 = vmax.xlane.f32.xlu0 %v6747
      %v6749 = vpop.xlane.xlu0 %6748
      %v6750 = vsub.f32 %v6624, %v6704
      %v6751 = vsub.f32 %v6626, %v6704
      %v6752 = vsub.f32 %v6628, %v6707
      %v6753 = vsub.f32 %v6630, %v6707
      %v6754 = vsub.f32 %v6634, %v6710
      %v6755 = vsub.f32 %v6636, %v6710
      %v6756 = vsub.f32 %v6638, %v6713
      %v6757 = vsub.f32 %v6640, %v6713
      %v6758 = vsub.f32 %v6644, %v6716
      %v6759 = vsub.f32 %v6646, %v6716
      %v6760 = vsub.f32 %v6648, %v6719
      %v6761 = vsub.f32 %v6650, %v6719
      %v6762 = vsub.f32 %v6654, %v6722
      %v6763 = vsub.f32 %v6656, %v6722
      %v6764 = vsub.f32 %v6658, %v6725
      %v6765 = vsub.f32 %v6660, %v6725
      %v6766 = vsub.f32 %v6664, %v6728
      %v6767 = vsub.f32 %v6666, %v6728
      %v6768 = vsub.f32 %v6668, %v6731
      %v6769 = vsub.f32 %v6670, %v6731
      %v6770 = vsub.f32 %v6674, %v6734
      %v6771 = vsub.f32 %v6676, %v6734
      %v6772 = vsub.f32 %v6678, %v6737
      %v6773 = vsub.f32 %v6680, %v6737
      %v6774 = vsub.f32 %v6684, %v6740
      %v6775 = vsub.f32 %v6686, %v6740
      %v6776 = vsub.f32 %v6688, %v6743
      %v6777 = vsub.f32 %v6690, %v6743
      %v6778 = vsub.f32 %v6694, %v6746
      %v6779 = vsub.f32 %v6696, %v6746
      %v6780 = vsub.f32 %v6698, %v6749
      %v6781 = vsub.f32 %v6700, %v6749
      %v6782 = vmul.f32 %v6750, 1.442695
      %v6783 = vpow.pop %v6782
      %v6784 = vmul.f32 %v6751, 1.442695
      %v6785 = vpow.pop %v6784
      %v6786 = vmul.f32 %v6752, 1.442695
      %v6787 = vpow.pop %v6786
      %v6788 = vmul.f32 %v6753, 1.442695
      %v6789 = vpow.pop %v6788
      %v6790 = vmul.f32 %v6754, 1.442695
      %v6791 = vpow.pop %v6790
      %v6792 = vmul.f32 %v6755, 1.442695
      %v6793 = vpow.pop %v6792
      %v6794 = vmul.f32 %v6756, 1.442695
      %v6795 = vpow.pop %v6794
      %v6796 = vmul.f32 %v6757, 1.442695
      %v6797 = vpow.pop %v6796
      %v6798 = vmul.f32 %v6758, 1.442695
      %v6799 = vpow.pop %v6798
      %v6800 = vmul.f32 %v6759, 1.442695
      %v6801 = vpow.pop %v6800
      %v6802 = vmul.f32 %v6760, 1.442695
      %v6803 = vpow.pop %v6802
      %v6804 = vmul.f32 %v6761, 1.442695
      %v6805 = vpow.pop %v6804
      %v6806 = vmul.f32 %v6762, 1.442695
      %v6807 = vpow.pop %v6806
      %v6808 = vmul.f32 %v6763, 1.442695
      %v6809 = vpow.pop %v6808
      %v6810 = vmul.f32 %v6764, 1.442695
      %v6811 = vpow.pop %v6810
      %v6812 = vmul.f32 %v6765, 1.442695
      %v6813 = vpow.pop %v6812
      %v6814 = vmul.f32 %v6766, 1.442695
      %v6815 = vpow.pop %v6814
      %v6816 = vmul.f32 %v6767, 1.442695
      %v6817 = vpow.pop %v6816
      %v6818 = vmul.f32 %v6768, 1.442695
      %v6819 = vpow.pop %v6818
      %v6820 = vmul.f32 %v6769, 1.442695
      %v6821 = vpow.pop %v6820
      %v6822 = vmul.f32 %v6770, 1.442695
      %v6823 = vpow.pop %v6822
      %v6824 = vmul.f32 %v6771, 1.442695
      %v6825 = vpow.pop %v6824
      %v6826 = vmul.f32 %v6772, 1.442695
      %v6827 = vpow.pop %v6826
      %v6828 = vmul.f32 %v6773, 1.442695
      %v6829 = vpow.pop %v6828
      %v6830 = vmul.f32 %v6774, 1.442695
      %v6831 = vpow.pop %v6830
      %v6832 = vmul.f32 %v6775, 1.442695
      %v6833 = vpow.pop %v6832
      %v6834 = vmul.f32 %v6776, 1.442695
      %v6835 = vpow.pop %v6834
      %v6836 = vmul.f32 %v6777, 1.442695
      %v6837 = vpow.pop %v6836
      %v6838 = vmul.f32 %v6778, 1.442695
      %v6839 = vpow.pop %v6838
      %v6840 = vmul.f32 %v6779, 1.442695
      %v6841 = vpow.pop %v6840
      %v6842 = vmul.f32 %v6780, 1.442695
      %v6843 = vpow.pop %v6842
      %v6844 = vmul.f32 %v6781, 1.442695
      %v6845 = vpow.pop %v6844
      %v6846 = vpack.c.bf16 %v6787, %v6783
      %v6847 = vpack.c.bf16 %v6789, %v6785
      %v6848 = vpack.c.bf16 %v6795, %v6791
      %v6849 = vpack.c.bf16 %v6797, %v6793
      %v6850 = vpack.c.bf16 %v6803, %v6799
      %v6851 = vpack.c.bf16 %v6805, %v6801
      %v6852 = vpack.c.bf16 %v6811, %v6807
      %v6853 = vpack.c.bf16 %v6813, %v6809
      %v6854 = vpack.c.bf16 %v6819, %v6815
      %v6855 = vpack.c.bf16 %v6821, %v6817
      %v6856 = vpack.c.bf16 %v6827, %v6823
      %v6857 = vpack.c.bf16 %v6829, %v6825
      %v6858 = vpack.c.bf16 %v6835, %v6831
      %v6859 = vpack.c.bf16 %v6837, %v6833
      %v6860 = vpack.c.bf16 %v6843, %v6839
      %v6861 = vpack.c.bf16 %v6845, %v6841
      %6862 = vmatprep.subr.bf16.mxu0 %v6847
      %6863 = vmatpush1.bf16.xpose.msra.mxu0 %v6846
      %6864 = vmatprep.subr.bf16.mxu0 %v6849
      %6865 = vmatpush1.bf16.xpose.msra.mxu0 %v6848
      %6866 = vmatprep.subr.bf16.mxu0 %v6851
      %6867 = vmatpush1.bf16.xpose.msra.mxu0 %v6850
      %6868 = vmatprep.subr.bf16.mxu0 %v6853
      %6869 = vmatpush1.bf16.xpose.msra.mxu0 %v6852
      %6870 = vmatprep.subr.bf16.mxu0 %v6855
      %6871 = vmatpush1.bf16.xpose.msra.mxu0 %v6854
      %6872 = vmatprep.subr.bf16.mxu0 %v6857
      %6873 = vmatpush1.bf16.xpose.msra.mxu0 %v6856
      %6874 = vmatprep.subr.bf16.mxu0 %v6859
      %6875 = vmatpush1.bf16.xpose.msra.mxu0 %v6858
      %6876 = vmatprep.subr.bf16.mxu0 %v6861
      %6877 = vmatpush1.bf16.xpose.msra.mxu0 %v6860
      %6878 = vmatprep.subr.bf16.mxu0 0
      %6879 = vmatpush1.bf16.xpose.msra.mxu0 0
      %6880 = vmatprep.subr.bf16.mxu0 0
      %6881 = vmatpush1.bf16.xpose.msra.mxu0 0
      %6882 = vmatprep.subr.bf16.mxu0 0
      %6883 = vmatpush1.bf16.xpose.msra.mxu0 0
      %6884 = vmatprep.subr.bf16.mxu0 0
      %6885 = vmatpush1.bf16.xpose.msra.mxu0 0
      %6886 = vmatprep.subr.bf16.mxu0 0
      %6887 = vmatpush1.bf16.xpose.msra.mxu0 0
      %6888 = vmatprep.subr.bf16.mxu0 0
      %6889 = vmatpush1.bf16.xpose.msra.mxu0 0
      %6890 = vmatprep.subr.bf16.mxu0 0
      %6891 = vmatpush1.bf16.xpose.msra.mxu0 0
      %6892 = vmatprep.subr.bf16.mxu0 0
      %6893 = vmatpush1.bf16.xpose.msra.mxu0 0
      %6894 = vmatprep.mubr.bf16.mxu0 %v6541
      %6895 = vmatmul.mubr.bf16.gmra.mrb[0].mxu0 %v6538
      %v6896 = vpop.f32.mrb[0].mxu0
      %v6897 = vadd.f32 0.0, %v6896
      %v6898 = vpop.f32.mrb[0].mxu0
      %v6899 = vpop.f32.mrb[0].mxu0
      %v6900 = vadd.f32 0.0, %v6899
      %v6901 = vpop.f32.mrb[0].mxu0
      %6902 = vdwg.mxu0
      %v6903 = vrcp.pop %v6900
      %v6904 = vlaneseq
      %v6905 = vshrl.u32 %v6904, 7
      %v6906 = vsub.s32 0, %v6905
      %v6907 = vrot.slane %v6903, %v6906
      %v6908 = vmul.f32 %v6897, %v6907
      %v6909 = vpack.c.bf16 %v6908, %v6908
      %6910 = vst [vmem:[#allocation4 + $0x10] sm:$0xf] %v6909
      %6911 = vrot.lane.b32.xlu0 %v5052, 112
      %v6912 = vpop.permute.xlu0 %6911
      %6913 = vrot.lane.b32.xlu0 %v5053, 112
      %v6914 = vpop.permute.xlu0 %6913
      %6915 = vrot.lane.b32.xlu0 %v5054, 112
      %v6916 = vpop.permute.xlu0 %6915
      %6917 = vrot.lane.b32.xlu0 %v5055, 112
      %v6918 = vpop.permute.xlu0 %6917
      %6919 = vrot.lane.b32.xlu0 %v5056, 112
      %v6920 = vpop.permute.xlu0 %6919
      %6921 = vrot.lane.b32.xlu0 %v5057, 112
      %v6922 = vpop.permute.xlu0 %6921
      %6923 = vrot.lane.b32.xlu0 %v5058, 112
      %v6924 = vpop.permute.xlu0 %6923
      %6925 = vrot.lane.b32.xlu0 %v5059, 112
      %v6926 = vpop.permute.xlu0 %6925
      %v6928 = vsel %vm5072, %v6912, 0
      %v6931 = vsel %vm5072, %v6914, 0
      %v6934 = vsel %vm5072, %v6916, 0
      %v6937 = vsel %vm5072, %v6918, 0
      %v6940 = vsel %vm5072, %v6920, 0
      %v6943 = vsel %vm5072, %v6922, 0
      %v6946 = vsel %vm5072, %v6924, 0
      %v6949 = vsel %vm5072, %v6926, 0
      %6951 = vmatprep.subr.bf16.mxu0 %v6587
      %6952 = vmatpush1.bf16.msra.mxu0 %v6584
      %6953 = vmatprep.subr.bf16.mxu0 0
      %6954 = vmatpush1.bf16.msra.mxu0 0
      %6955 = vmatprep.subr.bf16.mxu0 0
      %6956 = vmatpush1.bf16.msra.mxu0 0
      %6957 = vmatprep.subr.bf16.mxu0 0
      %6958 = vmatpush1.bf16.msra.mxu0 0
      %6959 = vmatprep.subr.bf16.mxu0 0
      %6960 = vmatpush1.bf16.msra.mxu0 0
      %6961 = vmatprep.subr.bf16.mxu0 0
      %6962 = vmatpush1.bf16.msra.mxu0 0
      %6963 = vmatprep.subr.bf16.mxu0 0
      %6964 = vmatpush1.bf16.msra.mxu0 0
      %6965 = vmatprep.subr.bf16.mxu0 0
      %6966 = vmatpush1.bf16.msra.mxu0 0
      %6967 = vmatprep.subr.bf16.mxu0 0
      %6968 = vmatpush1.bf16.msra.mxu0 0
      %6969 = vmatprep.subr.bf16.mxu0 0
      %6970 = vmatpush1.bf16.msra.mxu0 0
      %6971 = vmatprep.subr.bf16.mxu0 0
      %6972 = vmatpush1.bf16.msra.mxu0 0
      %6973 = vmatprep.subr.bf16.mxu0 0
      %6974 = vmatpush1.bf16.msra.mxu0 0
      %6975 = vmatprep.subr.bf16.mxu0 0
      %6976 = vmatpush1.bf16.msra.mxu0 0
      %6977 = vmatprep.subr.bf16.mxu0 0
      %6978 = vmatpush1.bf16.msra.mxu0 0
      %6979 = vmatprep.subr.bf16.mxu0 0
      %6980 = vmatpush1.bf16.msra.mxu0 0
      %6981 = vmatprep.subr.bf16.mxu0 0
      %6982 = vmatpush1.bf16.msra.mxu0 0
      %6983 = vmatprep.mubr.bf16.mxu0 0
      %6984 = vmatmul.mubr.bf16.gmra.mrb[0].mxu0 %v6928
      %v6985 = vpop.f32.mrb[0].mxu0
      %v6986 = vadd.f32 0.0, %v6985
      %v6987 = vpop.f32.mrb[0].mxu0
      %v6988 = vadd.f32 0.0, %v6987
      %v6989 = vpop.f32.mrb[0].mxu0
      %v6990 = vadd.f32 0.0, %v6989
      %v6991 = vpop.f32.mrb[0].mxu0
      %v6992 = vadd.f32 0.0, %v6991
      %6993 = vmatprep.mubr.bf16.mxu0 0
      %6994 = vmatmul.mubr.bf16.gmra.mrb[0].mxu0 %v6931
      %v6995 = vpop.f32.mrb[0].mxu0
      %v6996 = vadd.f32 0.0, %v6995
      %v6997 = vpop.f32.mrb[0].mxu0
      %v6998 = vadd.f32 0.0, %v6997
      %v6999 = vpop.f32.mrb[0].mxu0
      %v7000 = vadd.f32 0.0, %v6999
      %v7001 = vpop.f32.mrb[0].mxu0
      %v7002 = vadd.f32 0.0, %v7001
      %7003 = vmatprep.mubr.bf16.mxu0 0
      %7004 = vmatmul.mubr.bf16.gmra.mrb[0].mxu0 %v6934
      %v7005 = vpop.f32.mrb[0].mxu0
      %v7006 = vadd.f32 0.0, %v7005
      %v7007 = vpop.f32.mrb[0].mxu0
      %v7008 = vadd.f32 0.0, %v7007
      %v7009 = vpop.f32.mrb[0].mxu0
      %v7010 = vadd.f32 0.0, %v7009
      %v7011 = vpop.f32.mrb[0].mxu0
      %v7012 = vadd.f32 0.0, %v7011
      %7013 = vmatprep.mubr.bf16.mxu0 0
      %7014 = vmatmul.mubr.bf16.gmra.mrb[0].mxu0 %v6937
      %v7015 = vpop.f32.mrb[0].mxu0
      %v7016 = vadd.f32 0.0, %v7015
      %v7017 = vpop.f32.mrb[0].mxu0
      %v7018 = vadd.f32 0.0, %v7017
      %v7019 = vpop.f32.mrb[0].mxu0
      %v7020 = vadd.f32 0.0, %v7019
      %v7021 = vpop.f32.mrb[0].mxu0
      %v7022 = vadd.f32 0.0, %v7021
      %7023 = vmatprep.mubr.bf16.mxu0 0
      %7024 = vmatmul.mubr.bf16.gmra.mrb[0].mxu0 %v6940
      %v7025 = vpop.f32.mrb[0].mxu0
      %v7026 = vadd.f32 0.0, %v7025
      %v7027 = vpop.f32.mrb[0].mxu0
      %v7028 = vadd.f32 0.0, %v7027
      %v7029 = vpop.f32.mrb[0].mxu0
      %v7030 = vadd.f32 0.0, %v7029
      %v7031 = vpop.f32.mrb[0].mxu0
      %v7032 = vadd.f32 0.0, %v7031
      %7033 = vmatprep.mubr.bf16.mxu0 0
      %7034 = vmatmul.mubr.bf16.gmra.mrb[0].mxu0 %v6943
      %v7035 = vpop.f32.mrb[0].mxu0
      %v7036 = vadd.f32 0.0, %v7035
      %v7037 = vpop.f32.mrb[0].mxu0
      %v7038 = vadd.f32 0.0, %v7037
      %v7039 = vpop.f32.mrb[0].mxu0
      %v7040 = vadd.f32 0.0, %v7039
      %v7041 = vpop.f32.mrb[0].mxu0
      %v7042 = vadd.f32 0.0, %v7041
      %7043 = vmatprep.mubr.bf16.mxu0 0
      %7044 = vmatmul.mubr.bf16.gmra.mrb[0].mxu0 %v6946
      %v7045 = vpop.f32.mrb[0].mxu0
      %v7046 = vadd.f32 0.0, %v7045
      %v7047 = vpop.f32.mrb[0].mxu0
      %v7048 = vadd.f32 0.0, %v7047
      %v7049 = vpop.f32.mrb[0].mxu0
      %v7050 = vadd.f32 0.0, %v7049
      %v7051 = vpop.f32.mrb[0].mxu0
      %v7052 = vadd.f32 0.0, %v7051
      %7053 = vmatprep.mubr.bf16.mxu0 0
      %7054 = vmatmul.mubr.bf16.gmra.mrb[0].mxu0 %v6949
      %v7055 = vpop.f32.mrb[0].mxu0
      %v7056 = vadd.f32 0.0, %v7055
      %v7057 = vpop.f32.mrb[0].mxu0
      %v7058 = vadd.f32 0.0, %v7057
      %v7059 = vpop.f32.mrb[0].mxu0
      %v7060 = vadd.f32 0.0, %v7059
      %v7061 = vpop.f32.mrb[0].mxu0
      %v7062 = vadd.f32 0.0, %v7061
      %7063 = vdwg.mxu0
      %v7064 = vmax.f32 %v6986, %v6988
      %7065 = vmax.xlane.f32.xlu0 %v7064
      %v7066 = vpop.xlane.xlu0 %7065
      %v7067 = vmax.f32 %v6990, %v6992
      %7068 = vmax.xlane.f32.xlu0 %v7067
      %v7069 = vpop.xlane.xlu0 %7068
      %v7070 = vmax.f32 %v6996, %v6998
      %7071 = vmax.xlane.f32.xlu0 %v7070
      %v7072 = vpop.xlane.xlu0 %7071
      %v7073 = vmax.f32 %v7000, %v7002
      %7074 = vmax.xlane.f32.xlu0 %v7073
      %v7075 = vpop.xlane.xlu0 %7074
      %v7076 = vmax.f32 %v7006, %v7008
      %7077 = vmax.xlane.f32.xlu0 %v7076
      %v7078 = vpop.xlane.xlu0 %7077
      %v7079 = vmax.f32 %v7010, %v7012
      %7080 = vmax.xlane.f32.xlu0 %v7079
      %v7081 = vpop.xlane.xlu0 %7080
      %v7082 = vmax.f32 %v7016, %v7018
      %7083 = vmax.xlane.f32.xlu0 %v7082
      %v7084 = vpop.xlane.xlu0 %7083
      %v7085 = vmax.f32 %v7020, %v7022
      %7086 = vmax.xlane.f32.xlu0 %v7085
      %v7087 = vpop.xlane.xlu0 %7086
      %v7088 = vmax.f32 %v7026, %v7028
      %7089 = vmax.xlane.f32.xlu0 %v7088
      %v7090 = vpop.xlane.xlu0 %7089
      %v7091 = vmax.f32 %v7030, %v7032
      %7092 = vmax.xlane.f32.xlu0 %v7091
      %v7093 = vpop.xlane.xlu0 %7092
      %v7094 = vmax.f32 %v7036, %v7038
      %7095 = vmax.xlane.f32.xlu0 %v7094
      %v7096 = vpop.xlane.xlu0 %7095
      %v7097 = vmax.f32 %v7040, %v7042
      %7098 = vmax.xlane.f32.xlu0 %v7097
      %v7099 = vpop.xlane.xlu0 %7098
      %v7100 = vmax.f32 %v7046, %v7048
      %7101 = vmax.xlane.f32.xlu0 %v7100
      %v7102 = vpop.xlane.xlu0 %7101
      %v7103 = vmax.f32 %v7050, %v7052
      %7104 = vmax.xlane.f32.xlu0 %v7103
      %v7105 = vpop.xlane.xlu0 %7104
      %v7106 = vmax.f32 %v7056, %v7058
      %7107 = vmax.xlane.f32.xlu0 %v7106
      %v7108 = vpop.xlane.xlu0 %7107
      %v7109 = vmax.f32 %v7060, %v7062
      %7110 = vmax.xlane.f32.xlu0 %v7109
      %v7111 = vpop.xlane.xlu0 %7110
      %v7112 = vsub.f32 %v6986, %v7066
      %v7113 = vsub.f32 %v6988, %v7066
      %v7114 = vsub.f32 %v6990, %v7069
      %v7115 = vsub.f32 %v6992, %v7069
      %v7116 = vsub.f32 %v6996, %v7072
      %v7117 = vsub.f32 %v6998, %v7072
      %v7118 = vsub.f32 %v7000, %v7075
      %v7119 = vsub.f32 %v7002, %v7075
      %v7120 = vsub.f32 %v7006, %v7078
      %v7121 = vsub.f32 %v7008, %v7078
      %v7122 = vsub.f32 %v7010, %v7081
      %v7123 = vsub.f32 %v7012, %v7081
      %v7124 = vsub.f32 %v7016, %v7084
      %v7125 = vsub.f32 %v7018, %v7084
      %v7126 = vsub.f32 %v7020, %v7087
      %v7127 = vsub.f32 %v7022, %v7087
      %v7128 = vsub.f32 %v7026, %v7090
      %v7129 = vsub.f32 %v7028, %v7090
      %v7130 = vsub.f32 %v7030, %v7093
      %v7131 = vsub.f32 %v7032, %v7093
      %v7132 = vsub.f32 %v7036, %v7096
      %v7133 = vsub.f32 %v7038, %v7096
      %v7134 = vsub.f32 %v7040, %v7099
      %v7135 = vsub.f32 %v7042, %v7099
      %v7136 = vsub.f32 %v7046, %v7102
      %v7137 = vsub.f32 %v7048, %v7102
      %v7138 = vsub.f32 %v7050, %v7105
      %v7139 = vsub.f32 %v7052, %v7105
      %v7140 = vsub.f32 %v7056, %v7108
      %v7141 = vsub.f32 %v7058, %v7108
      %v7142 = vsub.f32 %v7060, %v7111
      %v7143 = vsub.f32 %v7062, %v7111
      %v7144 = vmul.f32 %v7112, 1.442695
      %v7145 = vpow.pop %v7144
      %v7146 = vmul.f32 %v7113, 1.442695
      %v7147 = vpow.pop %v7146
      %v7148 = vmul.f32 %v7114, 1.442695
      %v7149 = vpow.pop %v7148
      %v7150 = vmul.f32 %v7115, 1.442695
      %v7151 = vpow.pop %v7150
      %v7152 = vmul.f32 %v7116, 1.442695
      %v7153 = vpow.pop %v7152
      %v7154 = vmul.f32 %v7117, 1.442695
      %v7155 = vpow.pop %v7154
      %v7156 = vmul.f32 %v7118, 1.442695
      %v7157 = vpow.pop %v7156
      %v7158 = vmul.f32 %v7119, 1.442695
      %v7159 = vpow.pop %v7158
      %v7160 = vmul.f32 %v7120, 1.442695
      %v7161 = vpow.pop %v7160
      %v7162 = vmul.f32 %v7121, 1.442695
      %v7163 = vpow.pop %v7162
      %v7164 = vmul.f32 %v7122, 1.442695
      %v7165 = vpow.pop %v7164
      %v7166 = vmul.f32 %v7123, 1.442695
      %v7167 = vpow.pop %v7166
      %v7168 = vmul.f32 %v7124, 1.442695
      %v7169 = vpow.pop %v7168
      %v7170 = vmul.f32 %v7125, 1.442695
      %v7171 = vpow.pop %v7170
      %v7172 = vmul.f32 %v7126, 1.442695
      %v7173 = vpow.pop %v7172
      %v7174 = vmul.f32 %v7127, 1.442695
      %v7175 = vpow.pop %v7174
      %v7176 = vmul.f32 %v7128, 1.442695
      %v7177 = vpow.pop %v7176
      %v7178 = vmul.f32 %v7129, 1.442695
      %v7179 = vpow.pop %v7178
      %v7180 = vmul.f32 %v7130, 1.442695
      %v7181 = vpow.pop %v7180
      %v7182 = vmul.f32 %v7131, 1.442695
      %v7183 = vpow.pop %v7182
      %v7184 = vmul.f32 %v7132, 1.442695
      %v7185 = vpow.pop %v7184
      %v7186 = vmul.f32 %v7133, 1.442695
      %v7187 = vpow.pop %v7186
      %v7188 = vmul.f32 %v7134, 1.442695
      %v7189 = vpow.pop %v7188
      %v7190 = vmul.f32 %v7135, 1.442695
      %v7191 = vpow.pop %v7190
      %v7192 = vmul.f32 %v7136, 1.442695
      %v7193 = vpow.pop %v7192
      %v7194 = vmul.f32 %v7137, 1.442695
      %v7195 = vpow.pop %v7194
      %v7196 = vmul.f32 %v7138, 1.442695
      %v7197 = vpow.pop %v7196
      %v7198 = vmul.f32 %v7139, 1.442695
      %v7199 = vpow.pop %v7198
      %v7200 = vmul.f32 %v7140, 1.442695
      %v7201 = vpow.pop %v7200
      %v7202 = vmul.f32 %v7141, 1.442695
      %v7203 = vpow.pop %v7202
      %v7204 = vmul.f32 %v7142, 1.442695
      %v7205 = vpow.pop %v7204
      %v7206 = vmul.f32 %v7143, 1.442695
      %v7207 = vpow.pop %v7206
      %v7208 = vpack.c.bf16 %v7149, %v7145
      %v7209 = vpack.c.bf16 %v7151, %v7147
      %v7210 = vpack.c.bf16 %v7157, %v7153
      %v7211 = vpack.c.bf16 %v7159, %v7155
      %v7212 = vpack.c.bf16 %v7165, %v7161
      %v7213 = vpack.c.bf16 %v7167, %v7163
      %v7214 = vpack.c.bf16 %v7173, %v7169
      %v7215 = vpack.c.bf16 %v7175, %v7171
      %v7216 = vpack.c.bf16 %v7181, %v7177
      %v7217 = vpack.c.bf16 %v7183, %v7179
      %v7218 = vpack.c.bf16 %v7189, %v7185
      %v7219 = vpack.c.bf16 %v7191, %v7187
      %v7220 = vpack.c.bf16 %v7197, %v7193
      %v7221 = vpack.c.bf16 %v7199, %v7195
      %v7222 = vpack.c.bf16 %v7205, %v7201
      %v7223 = vpack.c.bf16 %v7207, %v7203
      %7224 = vmatprep.subr.bf16.mxu0 %v7209
      %7225 = vmatpush1.bf16.xpose.msra.mxu0 %v7208
      %7226 = vmatprep.subr.bf16.mxu0 %v7211
      %7227 = vmatpush1.bf16.xpose.msra.mxu0 %v7210
      %7228 = vmatprep.subr.bf16.mxu0 %v7213
      %7229 = vmatpush1.bf16.xpose.msra.mxu0 %v7212
      %7230 = vmatprep.subr.bf16.mxu0 %v7215
      %7231 = vmatpush1.bf16.xpose.msra.mxu0 %v7214
      %7232 = vmatprep.subr.bf16.mxu0 %v7217
      %7233 = vmatpush1.bf16.xpose.msra.mxu0 %v7216
      %7234 = vmatprep.subr.bf16.mxu0 %v7219
      %7235 = vmatpush1.bf16.xpose.msra.mxu0 %v7218
      %7236 = vmatprep.subr.bf16.mxu0 %v7221
      %7237 = vmatpush1.bf16.xpose.msra.mxu0 %v7220
      %7238 = vmatprep.subr.bf16.mxu0 %v7223
      %7239 = vmatpush1.bf16.xpose.msra.mxu0 %v7222
      %7240 = vmatprep.subr.bf16.mxu0 0
      %7241 = vmatpush1.bf16.xpose.msra.mxu0 0
      %7242 = vmatprep.subr.bf16.mxu0 0
      %7243 = vmatpush1.bf16.xpose.msra.mxu0 0
      %7244 = vmatprep.subr.bf16.mxu0 0
      %7245 = vmatpush1.bf16.xpose.msra.mxu0 0
      %7246 = vmatprep.subr.bf16.mxu0 0
      %7247 = vmatpush1.bf16.xpose.msra.mxu0 0
      %7248 = vmatprep.subr.bf16.mxu0 0
      %7249 = vmatpush1.bf16.xpose.msra.mxu0 0
      %7250 = vmatprep.subr.bf16.mxu0 0
      %7251 = vmatpush1.bf16.xpose.msra.mxu0 0
      %7252 = vmatprep.subr.bf16.mxu0 0
      %7253 = vmatpush1.bf16.xpose.msra.mxu0 0
      %7254 = vmatprep.subr.bf16.mxu0 0
      %7255 = vmatpush1.bf16.xpose.msra.mxu0 0
      %7256 = vmatprep.mubr.bf16.mxu0 %v6541
      %7257 = vmatmul.mubr.bf16.gmra.mrb[0].mxu0 %v6538
      %v7258 = vpop.f32.mrb[0].mxu0
      %v7259 = vadd.f32 0.0, %v7258
      %v7260 = vpop.f32.mrb[0].mxu0
      %v7261 = vpop.f32.mrb[0].mxu0
      %v7262 = vadd.f32 0.0, %v7261
      %v7263 = vpop.f32.mrb[0].mxu0
      %7264 = vdwg.mxu0
      %v7265 = vrcp.pop %v7262
      %v7266 = vlaneseq
      %v7267 = vshrl.u32 %v7266, 7
      %v7268 = vsub.s32 0, %v7267
      %v7269 = vrot.slane %v7265, %v7268
      %v7270 = vmul.f32 %v7259, %v7269
      %v7271 = vpack.c.bf16 %v7270, %v7270
      %7272 = vst [vmem:[#allocation4 + $0x18] sm:$0xf] %v7271
      %v7273 = vpack.c.bf16 %v4992, %v4992
      %v7274 = vpack.c.bf16 %v4994, %v4994
      %v7275 = vpack.c.bf16 %v5012, %v5012
      %v7276 = vpack.c.bf16 %v5014, %v5014
      %v7278 = vsel %vm5064, %v7275, 1065369472
      %v7281 = vsel %vm5064, %v7276, 1065369472
      %7283 = vrot.lane.b32.xlu0 %v5036, 104
      %v7284 = vpop.permute.xlu0 %7283
      %7285 = vrot.lane.b32.xlu0 %v5037, 104
      %v7286 = vpop.permute.xlu0 %7285
      %7287 = vrot.lane.b32.xlu0 %v5038, 104
      %v7288 = vpop.permute.xlu0 %7287
      %7289 = vrot.lane.b32.xlu0 %v5039, 104
      %v7290 = vpop.permute.xlu0 %7289
      %7291 = vrot.lane.b32.xlu0 %v5040, 104
      %v7292 = vpop.permute.xlu0 %7291
      %7293 = vrot.lane.b32.xlu0 %v5041, 104
      %v7294 = vpop.permute.xlu0 %7293
      %7295 = vrot.lane.b32.xlu0 %v5042, 104
      %v7296 = vpop.permute.xlu0 %7295
      %7297 = vrot.lane.b32.xlu0 %v5043, 104
      %v7298 = vpop.permute.xlu0 %7297
      %v7300 = vsel %vm5072, %v7284, 0
      %v7303 = vsel %vm5072, %v7286, 0
      %v7306 = vsel %vm5072, %v7288, 0
      %v7309 = vsel %vm5072, %v7290, 0
      %v7312 = vsel %vm5072, %v7292, 0
      %v7315 = vsel %vm5072, %v7294, 0
      %v7318 = vsel %vm5072, %v7296, 0
      %v7321 = vsel %vm5072, %v7298, 0
      %v7324 = vsel %vm5064, %v7273, 0
      %v7327 = vsel %vm5064, %v7274, 0
      %7329 = vmatprep.subr.bf16.mxu0 %v7327
      %7330 = vmatpush1.bf16.msra.mxu0 %v7324
      %7331 = vmatprep.subr.bf16.mxu0 0
      %7332 = vmatpush1.bf16.msra.mxu0 0
      %7333 = vmatprep.subr.bf16.mxu0 0
      %7334 = vmatpush1.bf16.msra.mxu0 0
      %7335 = vmatprep.subr.bf16.mxu0 0
      %7336 = vmatpush1.bf16.msra.mxu0 0
      %7337 = vmatprep.subr.bf16.mxu0 0
      %7338 = vmatpush1.bf16.msra.mxu0 0
      %7339 = vmatprep.subr.bf16.mxu0 0
      %7340 = vmatpush1.bf16.msra.mxu0 0
      %7341 = vmatprep.subr.bf16.mxu0 0
      %7342 = vmatpush1.bf16.msra.mxu0 0
      %7343 = vmatprep.subr.bf16.mxu0 0
      %7344 = vmatpush1.bf16.msra.mxu0 0
      %7345 = vmatprep.subr.bf16.mxu0 0
      %7346 = vmatpush1.bf16.msra.mxu0 0
      %7347 = vmatprep.subr.bf16.mxu0 0
      %7348 = vmatpush1.bf16.msra.mxu0 0
      %7349 = vmatprep.subr.bf16.mxu0 0
      %7350 = vmatpush1.bf16.msra.mxu0 0
      %7351 = vmatprep.subr.bf16.mxu0 0
      %7352 = vmatpush1.bf16.msra.mxu0 0
      %7353 = vmatprep.subr.bf16.mxu0 0
      %7354 = vmatpush1.bf16.msra.mxu0 0
      %7355 = vmatprep.subr.bf16.mxu0 0
      %7356 = vmatpush1.bf16.msra.mxu0 0
      %7357 = vmatprep.subr.bf16.mxu0 0
      %7358 = vmatpush1.bf16.msra.mxu0 0
      %7359 = vmatprep.subr.bf16.mxu0 0
      %7360 = vmatpush1.bf16.msra.mxu0 0
      %7361 = vmatprep.mubr.bf16.mxu0 0
      %7362 = vmatmul.mubr.bf16.gmra.mrb[0].mxu0 %v7300
      %v7363 = vpop.f32.mrb[0].mxu0
      %v7364 = vadd.f32 0.0, %v7363
      %v7365 = vpop.f32.mrb[0].mxu0
      %v7366 = vadd.f32 0.0, %v7365
      %v7367 = vpop.f32.mrb[0].mxu0
      %v7368 = vadd.f32 0.0, %v7367
      %v7369 = vpop.f32.mrb[0].mxu0
      %v7370 = vadd.f32 0.0, %v7369
      %7371 = vmatprep.mubr.bf16.mxu0 0
      %7372 = vmatmul.mubr.bf16.gmra.mrb[0].mxu0 %v7303
      %v7373 = vpop.f32.mrb[0].mxu0
      %v7374 = vadd.f32 0.0, %v7373
      %v7375 = vpop.f32.mrb[0].mxu0
      %v7376 = vadd.f32 0.0, %v7375
      %v7377 = vpop.f32.mrb[0].mxu0
      %v7378 = vadd.f32 0.0, %v7377
      %v7379 = vpop.f32.mrb[0].mxu0
      %v7380 = vadd.f32 0.0, %v7379
      %7381 = vmatprep.mubr.bf16.mxu0 0
      %7382 = vmatmul.mubr.bf16.gmra.mrb[0].mxu0 %v7306
      %v7383 = vpop.f32.mrb[0].mxu0
      %v7384 = vadd.f32 0.0, %v7383
      %v7385 = vpop.f32.mrb[0].mxu0
      %v7386 = vadd.f32 0.0, %v7385
      %v7387 = vpop.f32.mrb[0].mxu0
      %v7388 = vadd.f32 0.0, %v7387
      %v7389 = vpop.f32.mrb[0].mxu0
      %v7390 = vadd.f32 0.0, %v7389
      %7391 = vmatprep.mubr.bf16.mxu0 0
      %7392 = vmatmul.mubr.bf16.gmra.mrb[0].mxu0 %v7309
      %v7393 = vpop.f32.mrb[0].mxu0
      %v7394 = vadd.f32 0.0, %v7393
      %v7395 = vpop.f32.mrb[0].mxu0
      %v7396 = vadd.f32 0.0, %v7395
      %v7397 = vpop.f32.mrb[0].mxu0
      %v7398 = vadd.f32 0.0, %v7397
      %v7399 = vpop.f32.mrb[0].mxu0
      %v7400 = vadd.f32 0.0, %v7399
      %7401 = vmatprep.mubr.bf16.mxu0 0
      %7402 = vmatmul.mubr.bf16.gmra.mrb[0].mxu0 %v7312
      %v7403 = vpop.f32.mrb[0].mxu0
      %v7404 = vadd.f32 0.0, %v7403
      %v7405 = vpop.f32.mrb[0].mxu0
      %v7406 = vadd.f32 0.0, %v7405
      %v7407 = vpop.f32.mrb[0].mxu0
      %v7408 = vadd.f32 0.0, %v7407
      %v7409 = vpop.f32.mrb[0].mxu0
      %v7410 = vadd.f32 0.0, %v7409
      %7411 = vmatprep.mubr.bf16.mxu0 0
      %7412 = vmatmul.mubr.bf16.gmra.mrb[0].mxu0 %v7315
      %v7413 = vpop.f32.mrb[0].mxu0
      %v7414 = vadd.f32 0.0, %v7413
      %v7415 = vpop.f32.mrb[0].mxu0
      %v7416 = vadd.f32 0.0, %v7415
      %v7417 = vpop.f32.mrb[0].mxu0
      %v7418 = vadd.f32 0.0, %v7417
      %v7419 = vpop.f32.mrb[0].mxu0
      %v7420 = vadd.f32 0.0, %v7419
      %7421 = vmatprep.mubr.bf16.mxu0 0
      %7422 = vmatmul.mubr.bf16.gmra.mrb[0].mxu0 %v7318
      %v7423 = vpop.f32.mrb[0].mxu0
      %v7424 = vadd.f32 0.0, %v7423
      %v7425 = vpop.f32.mrb[0].mxu0
      %v7426 = vadd.f32 0.0, %v7425
      %v7427 = vpop.f32.mrb[0].mxu0
      %v7428 = vadd.f32 0.0, %v7427
      %v7429 = vpop.f32.mrb[0].mxu0
      %v7430 = vadd.f32 0.0, %v7429
      %7431 = vmatprep.mubr.bf16.mxu0 0
      %7432 = vmatmul.mubr.bf16.gmra.mrb[0].mxu0 %v7321
      %v7433 = vpop.f32.mrb[0].mxu0
      %v7434 = vadd.f32 0.0, %v7433
      %v7435 = vpop.f32.mrb[0].mxu0
      %v7436 = vadd.f32 0.0, %v7435
      %v7437 = vpop.f32.mrb[0].mxu0
      %v7438 = vadd.f32 0.0, %v7437
      %v7439 = vpop.f32.mrb[0].mxu0
      %v7440 = vadd.f32 0.0, %v7439
      %7441 = vdwg.mxu0
      %v7442 = vmax.f32 %v7364, %v7366
      %7443 = vmax.xlane.f32.xlu0 %v7442
      %v7444 = vpop.xlane.xlu0 %7443
      %v7445 = vmax.f32 %v7368, %v7370
      %7446 = vmax.xlane.f32.xlu0 %v7445
      %v7447 = vpop.xlane.xlu0 %7446
      %v7448 = vmax.f32 %v7374, %v7376
      %7449 = vmax.xlane.f32.xlu0 %v7448
      %v7450 = vpop.xlane.xlu0 %7449
      %v7451 = vmax.f32 %v7378, %v7380
      %7452 = vmax.xlane.f32.xlu0 %v7451
      %v7453 = vpop.xlane.xlu0 %7452
      %v7454 = vmax.f32 %v7384, %v7386
      %7455 = vmax.xlane.f32.xlu0 %v7454
      %v7456 = vpop.xlane.xlu0 %7455
      %v7457 = vmax.f32 %v7388, %v7390
      %7458 = vmax.xlane.f32.xlu0 %v7457
      %v7459 = vpop.xlane.xlu0 %7458
      %v7460 = vmax.f32 %v7394, %v7396
      %7461 = vmax.xlane.f32.xlu0 %v7460
      %v7462 = vpop.xlane.xlu0 %7461
      %v7463 = vmax.f32 %v7398, %v7400
      %7464 = vmax.xlane.f32.xlu0 %v7463
      %v7465 = vpop.xlane.xlu0 %7464
      %v7466 = vmax.f32 %v7404, %v7406
      %7467 = vmax.xlane.f32.xlu0 %v7466
      %v7468 = vpop.xlane.xlu0 %7467
      %v7469 = vmax.f32 %v7408, %v7410
      %7470 = vmax.xlane.f32.xlu0 %v7469
      %v7471 = vpop.xlane.xlu0 %7470
      %v7472 = vmax.f32 %v7414, %v7416
      %7473 = vmax.xlane.f32.xlu0 %v7472
      %v7474 = vpop.xlane.xlu0 %7473
      %v7475 = vmax.f32 %v7418, %v7420
      %7476 = vmax.xlane.f32.xlu0 %v7475
      %v7477 = vpop.xlane.xlu0 %7476
      %v7478 = vmax.f32 %v7424, %v7426
      %7479 = vmax.xlane.f32.xlu0 %v7478
      %v7480 = vpop.xlane.xlu0 %7479
      %v7481 = vmax.f32 %v7428, %v7430
      %7482 = vmax.xlane.f32.xlu0 %v7481
      %v7483 = vpop.xlane.xlu0 %7482
      %v7484 = vmax.f32 %v7434, %v7436
      %7485 = vmax.xlane.f32.xlu0 %v7484
      %v7486 = vpop.xlane.xlu0 %7485
      %v7487 = vmax.f32 %v7438, %v7440
      %7488 = vmax.xlane.f32.xlu0 %v7487
      %v7489 = vpop.xlane.xlu0 %7488
      %v7490 = vsub.f32 %v7364, %v7444
      %v7491 = vsub.f32 %v7366, %v7444
      %v7492 = vsub.f32 %v7368, %v7447
      %v7493 = vsub.f32 %v7370, %v7447
      %v7494 = vsub.f32 %v7374, %v7450
      %v7495 = vsub.f32 %v7376, %v7450
      %v7496 = vsub.f32 %v7378, %v7453
      %v7497 = vsub.f32 %v7380, %v7453
      %v7498 = vsub.f32 %v7384, %v7456
      %v7499 = vsub.f32 %v7386, %v7456
      %v7500 = vsub.f32 %v7388, %v7459
      %v7501 = vsub.f32 %v7390, %v7459
      %v7502 = vsub.f32 %v7394, %v7462
      %v7503 = vsub.f32 %v7396, %v7462
      %v7504 = vsub.f32 %v7398, %v7465
      %v7505 = vsub.f32 %v7400, %v7465
      %v7506 = vsub.f32 %v7404, %v7468
      %v7507 = vsub.f32 %v7406, %v7468
      %v7508 = vsub.f32 %v7408, %v7471
      %v7509 = vsub.f32 %v7410, %v7471
      %v7510 = vsub.f32 %v7414, %v7474
      %v7511 = vsub.f32 %v7416, %v7474
      %v7512 = vsub.f32 %v7418, %v7477
      %v7513 = vsub.f32 %v7420, %v7477
      %v7514 = vsub.f32 %v7424, %v7480
      %v7515 = vsub.f32 %v7426, %v7480
      %v7516 = vsub.f32 %v7428, %v7483
      %v7517 = vsub.f32 %v7430, %v7483
      %v7518 = vsub.f32 %v7434, %v7486
      %v7519 = vsub.f32 %v7436, %v7486
      %v7520 = vsub.f32 %v7438, %v7489
      %v7521 = vsub.f32 %v7440, %v7489
      %v7522 = vmul.f32 %v7490, 1.442695
      %v7523 = vpow.pop %v7522
      %v7524 = vmul.f32 %v7491, 1.442695
      %v7525 = vpow.pop %v7524
      %v7526 = vmul.f32 %v7492, 1.442695
      %v7527 = vpow.pop %v7526
      %v7528 = vmul.f32 %v7493, 1.442695
      %v7529 = vpow.pop %v7528
      %v7530 = vmul.f32 %v7494, 1.442695
      %v7531 = vpow.pop %v7530
      %v7532 = vmul.f32 %v7495, 1.442695
      %v7533 = vpow.pop %v7532
      %v7534 = vmul.f32 %v7496, 1.442695
      %v7535 = vpow.pop %v7534
      %v7536 = vmul.f32 %v7497, 1.442695
      %v7537 = vpow.pop %v7536
      %v7538 = vmul.f32 %v7498, 1.442695
      %v7539 = vpow.pop %v7538
      %v7540 = vmul.f32 %v7499, 1.442695
      %v7541 = vpow.pop %v7540
      %v7542 = vmul.f32 %v7500, 1.442695
      %v7543 = vpow.pop %v7542
      %v7544 = vmul.f32 %v7501, 1.442695
      %v7545 = vpow.pop %v7544
      %v7546 = vmul.f32 %v7502, 1.442695
      %v7547 = vpow.pop %v7546
      %v7548 = vmul.f32 %v7503, 1.442695
      %v7549 = vpow.pop %v7548
      %v7550 = vmul.f32 %v7504, 1.442695
      %v7551 = vpow.pop %v7550
      %v7552 = vmul.f32 %v7505, 1.442695
      %v7553 = vpow.pop %v7552
      %v7554 = vmul.f32 %v7506, 1.442695
      %v7555 = vpow.pop %v7554
      %v7556 = vmul.f32 %v7507, 1.442695
      %v7557 = vpow.pop %v7556
      %v7558 = vmul.f32 %v7508, 1.442695
      %v7559 = vpow.pop %v7558
      %v7560 = vmul.f32 %v7509, 1.442695
      %v7561 = vpow.pop %v7560
      %v7562 = vmul.f32 %v7510, 1.442695
      %v7563 = vpow.pop %v7562
      %v7564 = vmul.f32 %v7511, 1.442695
      %v7565 = vpow.pop %v7564
      %v7566 = vmul.f32 %v7512, 1.442695
      %v7567 = vpow.pop %v7566
      %v7568 = vmul.f32 %v7513, 1.442695
      %v7569 = vpow.pop %v7568
      %v7570 = vmul.f32 %v7514, 1.442695
      %v7571 = vpow.pop %v7570
      %v7572 = vmul.f32 %v7515, 1.442695
      %v7573 = vpow.pop %v7572
      %v7574 = vmul.f32 %v7516, 1.442695
      %v7575 = vpow.pop %v7574
      %v7576 = vmul.f32 %v7517, 1.442695
      %v7577 = vpow.pop %v7576
      %v7578 = vmul.f32 %v7518, 1.442695
      %v7579 = vpow.pop %v7578
      %v7580 = vmul.f32 %v7519, 1.442695
      %v7581 = vpow.pop %v7580
      %v7582 = vmul.f32 %v7520, 1.442695
      %v7583 = vpow.pop %v7582
      %v7584 = vmul.f32 %v7521, 1.442695
      %v7585 = vpow.pop %v7584
      %v7586 = vpack.c.bf16 %v7527, %v7523
      %v7587 = vpack.c.bf16 %v7529, %v7525
      %v7588 = vpack.c.bf16 %v7535, %v7531
      %v7589 = vpack.c.bf16 %v7537, %v7533
      %v7590 = vpack.c.bf16 %v7543, %v7539
      %v7591 = vpack.c.bf16 %v7545, %v7541
      %v7592 = vpack.c.bf16 %v7551, %v7547
      %v7593 = vpack.c.bf16 %v7553, %v7549
      %v7594 = vpack.c.bf16 %v7559, %v7555
      %v7595 = vpack.c.bf16 %v7561, %v7557
      %v7596 = vpack.c.bf16 %v7567, %v7563
      %v7597 = vpack.c.bf16 %v7569, %v7565
      %v7598 = vpack.c.bf16 %v7575, %v7571
      %v7599 = vpack.c.bf16 %v7577, %v7573
      %v7600 = vpack.c.bf16 %v7583, %v7579
      %v7601 = vpack.c.bf16 %v7585, %v7581
      %7602 = vmatprep.subr.bf16.mxu0 %v7587
      %7603 = vmatpush1.bf16.xpose.msra.mxu0 %v7586
      %7604 = vmatprep.subr.bf16.mxu0 %v7589
      %7605 = vmatpush1.bf16.xpose.msra.mxu0 %v7588
      %7606 = vmatprep.subr.bf16.mxu0 %v7591
      %7607 = vmatpush1.bf16.xpose.msra.mxu0 %v7590
      %7608 = vmatprep.subr.bf16.mxu0 %v7593
      %7609 = vmatpush1.bf16.xpose.msra.mxu0 %v7592
      %7610 = vmatprep.subr.bf16.mxu0 %v7595
      %7611 = vmatpush1.bf16.xpose.msra.mxu0 %v7594
      %7612 = vmatprep.subr.bf16.mxu0 %v7597
      %7613 = vmatpush1.bf16.xpose.msra.mxu0 %v7596
      %7614 = vmatprep.subr.bf16.mxu0 %v7599
      %7615 = vmatpush1.bf16.xpose.msra.mxu0 %v7598
      %7616 = vmatprep.subr.bf16.mxu0 %v7601
      %7617 = vmatpush1.bf16.xpose.msra.mxu0 %v7600
      %7618 = vmatprep.subr.bf16.mxu0 0
      %7619 = vmatpush1.bf16.xpose.msra.mxu0 0
      %7620 = vmatprep.subr.bf16.mxu0 0
      %7621 = vmatpush1.bf16.xpose.msra.mxu0 0
      %7622 = vmatprep.subr.bf16.mxu0 0
      %7623 = vmatpush1.bf16.xpose.msra.mxu0 0
      %7624 = vmatprep.subr.bf16.mxu0 0
      %7625 = vmatpush1.bf16.xpose.msra.mxu0 0
      %7626 = vmatprep.subr.bf16.mxu0 0
      %7627 = vmatpush1.bf16.xpose.msra.mxu0 0
      %7628 = vmatprep.subr.bf16.mxu0 0
      %7629 = vmatpush1.bf16.xpose.msra.mxu0 0
      %7630 = vmatprep.subr.bf16.mxu0 0
      %7631 = vmatpush1.bf16.xpose.msra.mxu0 0
      %7632 = vmatprep.subr.bf16.mxu0 0
      %7633 = vmatpush1.bf16.xpose.msra.mxu0 0
      %7634 = vmatprep.mubr.bf16.mxu0 %v7281
      %7635 = vmatmul.mubr.bf16.gmra.mrb[0].mxu0 %v7278
      %v7636 = vpop.f32.mrb[0].mxu0
      %v7637 = vadd.f32 0.0, %v7636
      %v7638 = vpop.f32.mrb[0].mxu0
      %v7639 = vpop.f32.mrb[0].mxu0
      %v7640 = vadd.f32 0.0, %v7639
      %v7641 = vpop.f32.mrb[0].mxu0
      %7642 = vdwg.mxu0
      %v7643 = vrcp.pop %v7640
      %v7644 = vlaneseq
      %v7645 = vshrl.u32 %v7644, 7
      %v7646 = vsub.s32 0, %v7645
      %v7647 = vrot.slane %v7643, %v7646
      %v7648 = vmul.f32 %v7637, %v7647
      %v7649 = vpack.c.bf16 %v7648, %v7648
      %v7651 = vrot.slane %v7649, 4
      %7653 = vst [vmem:[#allocation4 + $0x10] sm:$0xf0] %v7651
      %7654 = vrot.lane.b32.xlu0 %v5052, 104
      %v7655 = vpop.permute.xlu0 %7654
      %7656 = vrot.lane.b32.xlu0 %v5053, 104
      %v7657 = vpop.permute.xlu0 %7656
      %7658 = vrot.lane.b32.xlu0 %v5054, 104
      %v7659 = vpop.permute.xlu0 %7658
      %7660 = vrot.lane.b32.xlu0 %v5055, 104
      %v7661 = vpop.permute.xlu0 %7660
      %7662 = vrot.lane.b32.xlu0 %v5056, 104
      %v7663 = vpop.permute.xlu0 %7662
      %7664 = vrot.lane.b32.xlu0 %v5057, 104
      %v7665 = vpop.permute.xlu0 %7664
      %7666 = vrot.lane.b32.xlu0 %v5058, 104
      %v7667 = vpop.permute.xlu0 %7666
      %7668 = vrot.lane.b32.xlu0 %v5059, 104
      %v7669 = vpop.permute.xlu0 %7668
      %v7671 = vsel %vm5072, %v7655, 0
      %v7674 = vsel %vm5072, %v7657, 0
      %v7677 = vsel %vm5072, %v7659, 0
      %v7680 = vsel %vm5072, %v7661, 0
      %v7683 = vsel %vm5072, %v7663, 0
      %v7686 = vsel %vm5072, %v7665, 0
      %v7689 = vsel %vm5072, %v7667, 0
      %v7692 = vsel %vm5072, %v7669, 0
      %7694 = vmatprep.subr.bf16.mxu0 %v7327
      %7695 = vmatpush1.bf16.msra.mxu0 %v7324
      %7696 = vmatprep.subr.bf16.mxu0 0
      %7697 = vmatpush1.bf16.msra.mxu0 0
      %7698 = vmatprep.subr.bf16.mxu0 0
      %7699 = vmatpush1.bf16.msra.mxu0 0
      %7700 = vmatprep.subr.bf16.mxu0 0
      %7701 = vmatpush1.bf16.msra.mxu0 0
      %7702 = vmatprep.subr.bf16.mxu0 0
      %7703 = vmatpush1.bf16.msra.mxu0 0
      %7704 = vmatprep.subr.bf16.mxu0 0
      %7705 = vmatpush1.bf16.msra.mxu0 0
      %7706 = vmatprep.subr.bf16.mxu0 0
      %7707 = vmatpush1.bf16.msra.mxu0 0
      %7708 = vmatprep.subr.bf16.mxu0 0
      %7709 = vmatpush1.bf16.msra.mxu0 0
      %7710 = vmatprep.subr.bf16.mxu0 0
      %7711 = vmatpush1.bf16.msra.mxu0 0
      %7712 = vmatprep.subr.bf16.mxu0 0
      %7713 = vmatpush1.bf16.msra.mxu0 0
      %7714 = vmatprep.subr.bf16.mxu0 0
      %7715 = vmatpush1.bf16.msra.mxu0 0
      %7716 = vmatprep.subr.bf16.mxu0 0
      %7717 = vmatpush1.bf16.msra.mxu0 0
      %7718 = vmatprep.subr.bf16.mxu0 0
      %7719 = vmatpush1.bf16.msra.mxu0 0
      %7720 = vmatprep.subr.bf16.mxu0 0
      %7721 = vmatpush1.bf16.msra.mxu0 0
      %7722 = vmatprep.subr.bf16.mxu0 0
      %7723 = vmatpush1.bf16.msra.mxu0 0
      %7724 = vmatprep.subr.bf16.mxu0 0
      %7725 = vmatpush1.bf16.msra.mxu0 0
      %7726 = vmatprep.mubr.bf16.mxu0 0
      %7727 = vmatmul.mubr.bf16.gmra.mrb[0].mxu0 %v7671
      %v7728 = vpop.f32.mrb[0].mxu0
      %v7729 = vadd.f32 0.0, %v7728
      %v7730 = vpop.f32.mrb[0].mxu0
      %v7731 = vadd.f32 0.0, %v7730
      %v7732 = vpop.f32.mrb[0].mxu0
      %v7733 = vadd.f32 0.0, %v7732
      %v7734 = vpop.f32.mrb[0].mxu0
      %v7735 = vadd.f32 0.0, %v7734
      %7736 = vmatprep.mubr.bf16.mxu0 0
      %7737 = vmatmul.mubr.bf16.gmra.mrb[0].mxu0 %v7674
      %v7738 = vpop.f32.mrb[0].mxu0
      %v7739 = vadd.f32 0.0, %v7738
      %v7740 = vpop.f32.mrb[0].mxu0
      %v7741 = vadd.f32 0.0, %v7740
      %v7742 = vpop.f32.mrb[0].mxu0
      %v7743 = vadd.f32 0.0, %v7742
      %v7744 = vpop.f32.mrb[0].mxu0
      %v7745 = vadd.f32 0.0, %v7744
      %7746 = vmatprep.mubr.bf16.mxu0 0
      %7747 = vmatmul.mubr.bf16.gmra.mrb[0].mxu0 %v7677
      %v7748 = vpop.f32.mrb[0].mxu0
      %v7749 = vadd.f32 0.0, %v7748
      %v7750 = vpop.f32.mrb[0].mxu0
      %v7751 = vadd.f32 0.0, %v7750
      %v7752 = vpop.f32.mrb[0].mxu0
      %v7753 = vadd.f32 0.0, %v7752
      %v7754 = vpop.f32.mrb[0].mxu0
      %v7755 = vadd.f32 0.0, %v7754
      %7756 = vmatprep.mubr.bf16.mxu0 0
      %7757 = vmatmul.mubr.bf16.gmra.mrb[0].mxu0 %v7680
      %v7758 = vpop.f32.mrb[0].mxu0
      %v7759 = vadd.f32 0.0, %v7758
      %v7760 = vpop.f32.mrb[0].mxu0
      %v7761 = vadd.f32 0.0, %v7760
      %v7762 = vpop.f32.mrb[0].mxu0
      %v7763 = vadd.f32 0.0, %v7762
      %v7764 = vpop.f32.mrb[0].mxu0
      %v7765 = vadd.f32 0.0, %v7764
      %7766 = vmatprep.mubr.bf16.mxu0 0
      %7767 = vmatmul.mubr.bf16.gmra.mrb[0].mxu0 %v7683
      %v7768 = vpop.f32.mrb[0].mxu0
      %v7769 = vadd.f32 0.0, %v7768
      %v7770 = vpop.f32.mrb[0].mxu0
      %v7771 = vadd.f32 0.0, %v7770
      %v7772 = vpop.f32.mrb[0].mxu0
      %v7773 = vadd.f32 0.0, %v7772
      %v7774 = vpop.f32.mrb[0].mxu0
      %v7775 = vadd.f32 0.0, %v7774
      %7776 = vmatprep.mubr.bf16.mxu0 0
      %7777 = vmatmul.mubr.bf16.gmra.mrb[0].mxu0 %v7686
      %v7778 = vpop.f32.mrb[0].mxu0
      %v7779 = vadd.f32 0.0, %v7778
      %v7780 = vpop.f32.mrb[0].mxu0
      %v7781 = vadd.f32 0.0, %v7780
      %v7782 = vpop.f32.mrb[0].mxu0
      %v7783 = vadd.f32 0.0, %v7782
      %v7784 = vpop.f32.mrb[0].mxu0
      %v7785 = vadd.f32 0.0, %v7784
      %7786 = vmatprep.mubr.bf16.mxu0 0
      %7787 = vmatmul.mubr.bf16.gmra.mrb[0].mxu0 %v7689
      %v7788 = vpop.f32.mrb[0].mxu0
      %v7789 = vadd.f32 0.0, %v7788
      %v7790 = vpop.f32.mrb[0].mxu0
      %v7791 = vadd.f32 0.0, %v7790
      %v7792 = vpop.f32.mrb[0].mxu0
      %v7793 = vadd.f32 0.0, %v7792
      %v7794 = vpop.f32.mrb[0].mxu0
      %v7795 = vadd.f32 0.0, %v7794
      %7796 = vmatprep.mubr.bf16.mxu0 0
      %7797 = vmatmul.mubr.bf16.gmra.mrb[0].mxu0 %v7692
      %v7798 = vpop.f32.mrb[0].mxu0
      %v7799 = vadd.f32 0.0, %v7798
      %v7800 = vpop.f32.mrb[0].mxu0
      %v7801 = vadd.f32 0.0, %v7800
      %v7802 = vpop.f32.mrb[0].mxu0
      %v7803 = vadd.f32 0.0, %v7802
      %v7804 = vpop.f32.mrb[0].mxu0
      %v7805 = vadd.f32 0.0, %v7804
      %7806 = vdwg.mxu0
      %v7807 = vmax.f32 %v7729, %v7731
      %7808 = vmax.xlane.f32.xlu0 %v7807
      %v7809 = vpop.xlane.xlu0 %7808
      %v7810 = vmax.f32 %v7733, %v7735
      %7811 = vmax.xlane.f32.xlu0 %v7810
      %v7812 = vpop.xlane.xlu0 %7811
      %v7813 = vmax.f32 %v7739, %v7741
      %7814 = vmax.xlane.f32.xlu0 %v7813
      %v7815 = vpop.xlane.xlu0 %7814
      %v7816 = vmax.f32 %v7743, %v7745
      %7817 = vmax.xlane.f32.xlu0 %v7816
      %v7818 = vpop.xlane.xlu0 %7817
      %v7819 = vmax.f32 %v7749, %v7751
      %7820 = vmax.xlane.f32.xlu0 %v7819
      %v7821 = vpop.xlane.xlu0 %7820
      %v7822 = vmax.f32 %v7753, %v7755
      %7823 = vmax.xlane.f32.xlu0 %v7822
      %v7824 = vpop.xlane.xlu0 %7823
      %v7825 = vmax.f32 %v7759, %v7761
      %7826 = vmax.xlane.f32.xlu0 %v7825
      %v7827 = vpop.xlane.xlu0 %7826
      %v7828 = vmax.f32 %v7763, %v7765
      %7829 = vmax.xlane.f32.xlu0 %v7828
      %v7830 = vpop.xlane.xlu0 %7829
      %v7831 = vmax.f32 %v7769, %v7771
      %7832 = vmax.xlane.f32.xlu0 %v7831
      %v7833 = vpop.xlane.xlu0 %7832
      %v7834 = vmax.f32 %v7773, %v7775
      %7835 = vmax.xlane.f32.xlu0 %v7834
      %v7836 = vpop.xlane.xlu0 %7835
      %v7837 = vmax.f32 %v7779, %v7781
      %7838 = vmax.xlane.f32.xlu0 %v7837
      %v7839 = vpop.xlane.xlu0 %7838
      %v7840 = vmax.f32 %v7783, %v7785
      %7841 = vmax.xlane.f32.xlu0 %v7840
      %v7842 = vpop.xlane.xlu0 %7841
      %v7843 = vmax.f32 %v7789, %v7791
      %7844 = vmax.xlane.f32.xlu0 %v7843
      %v7845 = vpop.xlane.xlu0 %7844
      %v7846 = vmax.f32 %v7793, %v7795
      %7847 = vmax.xlane.f32.xlu0 %v7846
      %v7848 = vpop.xlane.xlu0 %7847
      %v7849 = vmax.f32 %v7799, %v7801
      %7850 = vmax.xlane.f32.xlu0 %v7849
      %v7851 = vpop.xlane.xlu0 %7850
      %v7852 = vmax.f32 %v7803, %v7805
      %7853 = vmax.xlane.f32.xlu0 %v7852
      %v7854 = vpop.xlane.xlu0 %7853
      %v7855 = vsub.f32 %v7729, %v7809
      %v7856 = vsub.f32 %v7731, %v7809
      %v7857 = vsub.f32 %v7733, %v7812
      %v7858 = vsub.f32 %v7735, %v7812
      %v7859 = vsub.f32 %v7739, %v7815
      %v7860 = vsub.f32 %v7741, %v7815
      %v7861 = vsub.f32 %v7743, %v7818
      %v7862 = vsub.f32 %v7745, %v7818
      %v7863 = vsub.f32 %v7749, %v7821
      %v7864 = vsub.f32 %v7751, %v7821
      %v7865 = vsub.f32 %v7753, %v7824
      %v7866 = vsub.f32 %v7755, %v7824
      %v7867 = vsub.f32 %v7759, %v7827
      %v7868 = vsub.f32 %v7761, %v7827
      %v7869 = vsub.f32 %v7763, %v7830
      %v7870 = vsub.f32 %v7765, %v7830
      %v7871 = vsub.f32 %v7769, %v7833
      %v7872 = vsub.f32 %v7771, %v7833
      %v7873 = vsub.f32 %v7773, %v7836
      %v7874 = vsub.f32 %v7775, %v7836
      %v7875 = vsub.f32 %v7779, %v7839
      %v7876 = vsub.f32 %v7781, %v7839
      %v7877 = vsub.f32 %v7783, %v7842
      %v7878 = vsub.f32 %v7785, %v7842
      %v7879 = vsub.f32 %v7789, %v7845
      %v7880 = vsub.f32 %v7791, %v7845
      %v7881 = vsub.f32 %v7793, %v7848
      %v7882 = vsub.f32 %v7795, %v7848
      %v7883 = vsub.f32 %v7799, %v7851
      %v7884 = vsub.f32 %v7801, %v7851
      %v7885 = vsub.f32 %v7803, %v7854
      %v7886 = vsub.f32 %v7805, %v7854
      %v7887 = vmul.f32 %v7855, 1.442695
      %v7888 = vpow.pop %v7887
      %v7889 = vmul.f32 %v7856, 1.442695
      %v7890 = vpow.pop %v7889
      %v7891 = vmul.f32 %v7857, 1.442695
      %v7892 = vpow.pop %v7891
      %v7893 = vmul.f32 %v7858, 1.442695
      %v7894 = vpow.pop %v7893
      %v7895 = vmul.f32 %v7859, 1.442695
      %v7896 = vpow.pop %v7895
      %v7897 = vmul.f32 %v7860, 1.442695
      %v7898 = vpow.pop %v7897
      %v7899 = vmul.f32 %v7861, 1.442695
      %v7900 = vpow.pop %v7899
      %v7901 = vmul.f32 %v7862, 1.442695
      %v7902 = vpow.pop %v7901
      %v7903 = vmul.f32 %v7863, 1.442695
      %v7904 = vpow.pop %v7903
      %v7905 = vmul.f32 %v7864, 1.442695
      %v7906 = vpow.pop %v7905
      %v7907 = vmul.f32 %v7865, 1.442695
      %v7908 = vpow.pop %v7907
      %v7909 = vmul.f32 %v7866, 1.442695
      %v7910 = vpow.pop %v7909
      %v7911 = vmul.f32 %v7867, 1.442695
      %v7912 = vpow.pop %v7911
      %v7913 = vmul.f32 %v7868, 1.442695
      %v7914 = vpow.pop %v7913
      %v7915 = vmul.f32 %v7869, 1.442695
      %v7916 = vpow.pop %v7915
      %v7917 = vmul.f32 %v7870, 1.442695
      %v7918 = vpow.pop %v7917
      %v7919 = vmul.f32 %v7871, 1.442695
      %v7920 = vpow.pop %v7919
      %v7921 = vmul.f32 %v7872, 1.442695
      %v7922 = vpow.pop %v7921
      %v7923 = vmul.f32 %v7873, 1.442695
      %v7924 = vpow.pop %v7923
      %v7925 = vmul.f32 %v7874, 1.442695
      %v7926 = vpow.pop %v7925
      %v7927 = vmul.f32 %v7875, 1.442695
      %v7928 = vpow.pop %v7927
      %v7929 = vmul.f32 %v7876, 1.442695
      %v7930 = vpow.pop %v7929
      %v7931 = vmul.f32 %v7877, 1.442695
      %v7932 = vpow.pop %v7931
      %v7933 = vmul.f32 %v7878, 1.442695
      %v7934 = vpow.pop %v7933
      %v7935 = vmul.f32 %v7879, 1.442695
      %v7936 = vpow.pop %v7935
      %v7937 = vmul.f32 %v7880, 1.442695
      %v7938 = vpow.pop %v7937
      %v7939 = vmul.f32 %v7881, 1.442695
      %v7940 = vpow.pop %v7939
      %v7941 = vmul.f32 %v7882, 1.442695
      %v7942 = vpow.pop %v7941
      %v7943 = vmul.f32 %v7883, 1.442695
      %v7944 = vpow.pop %v7943
      %v7945 = vmul.f32 %v7884, 1.442695
      %v7946 = vpow.pop %v7945
      %v7947 = vmul.f32 %v7885, 1.442695
      %v7948 = vpow.pop %v7947
      %v7949 = vmul.f32 %v7886, 1.442695
      %v7950 = vpow.pop %v7949
      %v7951 = vpack.c.bf16 %v7892, %v7888
      %v7952 = vpack.c.bf16 %v7894, %v7890
      %v7953 = vpack.c.bf16 %v7900, %v7896
      %v7954 = vpack.c.bf16 %v7902, %v7898
      %v7955 = vpack.c.bf16 %v7908, %v7904
      %v7956 = vpack.c.bf16 %v7910, %v7906
      %v7957 = vpack.c.bf16 %v7916, %v7912
      %v7958 = vpack.c.bf16 %v7918, %v7914
      %v7959 = vpack.c.bf16 %v7924, %v7920
      %v7960 = vpack.c.bf16 %v7926, %v7922
      %v7961 = vpack.c.bf16 %v7932, %v7928
      %v7962 = vpack.c.bf16 %v7934, %v7930
      %v7963 = vpack.c.bf16 %v7940, %v7936
      %v7964 = vpack.c.bf16 %v7942, %v7938
      %v7965 = vpack.c.bf16 %v7948, %v7944
      %v7966 = vpack.c.bf16 %v7950, %v7946
      %7967 = vmatprep.subr.bf16.mxu0 %v7952
      %7968 = vmatpush1.bf16.xpose.msra.mxu0 %v7951
      %7969 = vmatprep.subr.bf16.mxu0 %v7954
      %7970 = vmatpush1.bf16.xpose.msra.mxu0 %v7953
      %7971 = vmatprep.subr.bf16.mxu0 %v7956
      %7972 = vmatpush1.bf16.xpose.msra.mxu0 %v7955
      %7973 = vmatprep.subr.bf16.mxu0 %v7958
      %7974 = vmatpush1.bf16.xpose.msra.mxu0 %v7957
      %7975 = vmatprep.subr.bf16.mxu0 %v7960
      %7976 = vmatpush1.bf16.xpose.msra.mxu0 %v7959
      %7977 = vmatprep.subr.bf16.mxu0 %v7962
      %7978 = vmatpush1.bf16.xpose.msra.mxu0 %v7961
      %7979 = vmatprep.subr.bf16.mxu0 %v7964
      %7980 = vmatpush1.bf16.xpose.msra.mxu0 %v7963
      %7981 = vmatprep.subr.bf16.mxu0 %v7966
      %7982 = vmatpush1.bf16.xpose.msra.mxu0 %v7965
      %7983 = vmatprep.subr.bf16.mxu0 0
      %7984 = vmatpush1.bf16.xpose.msra.mxu0 0
      %7985 = vmatprep.subr.bf16.mxu0 0
      %7986 = vmatpush1.bf16.xpose.msra.mxu0 0
      %7987 = vmatprep.subr.bf16.mxu0 0
      %7988 = vmatpush1.bf16.xpose.msra.mxu0 0
      %7989 = vmatprep.subr.bf16.mxu0 0
      %7990 = vmatpush1.bf16.xpose.msra.mxu0 0
      %7991 = vmatprep.subr.bf16.mxu0 0
      %7992 = vmatpush1.bf16.xpose.msra.mxu0 0
      %7993 = vmatprep.subr.bf16.mxu0 0
      %7994 = vmatpush1.bf16.xpose.msra.mxu0 0
      %7995 = vmatprep.subr.bf16.mxu0 0
      %7996 = vmatpush1.bf16.xpose.msra.mxu0 0
      %7997 = vmatprep.subr.bf16.mxu0 0
      %7998 = vmatpush1.bf16.xpose.msra.mxu0 0
      %7999 = vmatprep.mubr.bf16.mxu0 %v7281
      %8000 = vmatmul.mubr.bf16.gmra.mrb[0].mxu0 %v7278
      %v8001 = vpop.f32.mrb[0].mxu0
      %v8002 = vadd.f32 0.0, %v8001
      %v8003 = vpop.f32.mrb[0].mxu0
      %v8004 = vpop.f32.mrb[0].mxu0
      %v8005 = vadd.f32 0.0, %v8004
      %v8006 = vpop.f32.mrb[0].mxu0
      %8007 = vdwg.mxu0
      %v8008 = vrcp.pop %v8005
      %v8009 = vlaneseq
      %v8010 = vshrl.u32 %v8009, 7
      %v8011 = vsub.s32 0, %v8010
      %v8012 = vrot.slane %v8008, %v8011
      %v8013 = vmul.f32 %v8002, %v8012
      %v8014 = vpack.c.bf16 %v8013, %v8013
      %v8016 = vrot.slane %v8014, 4
      %8018 = vst [vmem:[#allocation4 + $0x18] sm:$0xf0] %v8016
      %v8019 = vld [vmem:[%s15] sm:$0xf]
      %v8020 = vld [vmem:[%s15 + $0x4] sm:$0xf]
      %v8021 = vld [vmem:[%s15 + $0x8] sm:$0xf]
      %v8022 = vld [vmem:[%s15 + $0xc] sm:$0xf]
      %v8023 = vld [vmem:[#allocation4] sm:$0xff]
      %v8024 = vld [vmem:[#allocation4 + $0x8] sm:$0xff]
      %v8025 = vld [vmem:[#allocation4 + $0x10] sm:$0xff]
      %v8026 = vld [vmem:[#allocation4 + $0x18] sm:$0xff]
      %v8027 = vld [vmem:[%s16] sm:$0xff]
      %v8028 = vld [vmem:[%s16 + $0x8] sm:$0xff]
      %v8029 = vld [vmem:[%s16 + $0x10] sm:$0xff]
      %v8030 = vld [vmem:[%s16 + $0x18] sm:$0xff]
      %8032 = vset.pattern.permute.xlu0 0
      %8033 = vperm.xlu0 %8032, %v8027
      %v8034 = vpop.permute.xlu0 %8033
      %8037 = vset.pattern.permute.xlu0 0
      %8038 = vperm.xlu0 %8037, %v8028
      %v8039 = vpop.permute.xlu0 %8038
      %8042 = vset.pattern.permute.xlu0 0
      %8043 = vperm.xlu0 %8042, %v8029
      %v8044 = vpop.permute.xlu0 %8043
      %8047 = vset.pattern.permute.xlu0 0
      %8048 = vperm.xlu0 %8047, %v8030
      %v8049 = vpop.permute.xlu0 %8048
      %v8055 = vunpack.c.l.b16 %v8019
      %v8056 = vunpack.c.l.b16 %v8020
      %v8057 = vunpack.c.l.b16 %v8021
      %v8058 = vunpack.c.l.b16 %v8022
      %v8059 = vpack.c.b16 %v8056, %v8055
      %v8060 = vpack.c.b16 %v8058, %v8057
      %v8062 = vsel %vm4093, %v8059, 0
      %v8065 = vsel %vm4093, %v8060, 0
      %8067 = vmatprep.subr.bf16.mxu0 %v8024
      %8068 = vmatpush1.bf16.msra.mxu0 %v8023
      %8069 = vmatprep.subr.bf16.mxu0 %v8026
      %8070 = vmatpush1.bf16.msra.mxu0 %v8025
      %8071 = vmatprep.subr.bf16.mxu0 0
      %8072 = vmatpush1.bf16.msra.mxu0 0
      %8073 = vmatprep.subr.bf16.mxu0 0
      %8074 = vmatpush1.bf16.msra.mxu0 0
      %8075 = vmatprep.subr.bf16.mxu0 0
      %8076 = vmatpush1.bf16.msra.mxu0 0
      %8077 = vmatprep.subr.bf16.mxu0 0
      %8078 = vmatpush1.bf16.msra.mxu0 0
      %8079 = vmatprep.subr.bf16.mxu0 0
      %8080 = vmatpush1.bf16.msra.mxu0 0
      %8081 = vmatprep.subr.bf16.mxu0 0
      %8082 = vmatpush1.bf16.msra.mxu0 0
      %8083 = vmatprep.subr.bf16.mxu0 0
      %8084 = vmatpush1.bf16.msra.mxu0 0
      %8085 = vmatprep.subr.bf16.mxu0 0
      %8086 = vmatpush1.bf16.msra.mxu0 0
      %8087 = vmatprep.subr.bf16.mxu0 0
      %8088 = vmatpush1.bf16.msra.mxu0 0
      %8089 = vmatprep.subr.bf16.mxu0 0
      %8090 = vmatpush1.bf16.msra.mxu0 0
      %8091 = vmatprep.subr.bf16.mxu0 0
      %8092 = vmatpush1.bf16.msra.mxu0 0
      %8093 = vmatprep.subr.bf16.mxu0 0
      %8094 = vmatpush1.bf16.msra.mxu0 0
      %8095 = vmatprep.subr.bf16.mxu0 0
      %8096 = vmatpush1.bf16.msra.mxu0 0
      %8097 = vmatprep.subr.bf16.mxu0 0
      %8098 = vmatpush1.bf16.msra.mxu0 0
      %8099 = vmatprep.mubr.bf16.mxu0 0
      %8100 = vmatmul.mubr.bf16.gmra.mrb[0].mxu0 %v8062
      %v8101 = vpop.f32.mrb[0].mxu0
      %v8102 = vadd.f32 %v8034, %v8101
      %v8103 = vpop.f32.mrb[0].mxu0
      %v8104 = vadd.f32 %v8034, %v8103
      %v8105 = vpop.f32.mrb[0].mxu0
      %v8106 = vadd.f32 %v8039, %v8105
      %v8107 = vpop.f32.mrb[0].mxu0
      %v8108 = vadd.f32 %v8039, %v8107
      %8109 = vmatprep.mubr.bf16.mxu0 0
      %8110 = vmatmul.mubr.bf16.gmra.mrb[0].mxu0 %v8065
      %v8111 = vpop.f32.mrb[0].mxu0
      %v8112 = vadd.f32 %v8044, %v8111
      %v8113 = vpop.f32.mrb[0].mxu0
      %v8114 = vadd.f32 %v8044, %v8113
      %v8115 = vpop.f32.mrb[0].mxu0
      %v8116 = vadd.f32 %v8049, %v8115
      %v8117 = vpop.f32.mrb[0].mxu0
      %v8118 = vadd.f32 %v8049, %v8117
      %8119 = vdwg.mxu0
      %v8120 = vadd.f32 %v4311, %v8102
      %v8121 = vadd.f32 %v4312, %v8104
      %v8122 = vadd.f32 %v4313, %v8106
      %v8123 = vadd.f32 %v4314, %v8108
      %v8124 = vadd.f32 %v4315, %v8112
      %v8125 = vadd.f32 %v4316, %v8114
      %v8126 = vadd.f32 %v4317, %v8116
      %v8127 = vadd.f32 %v4318, %v8118
      %8128 = vst [vmem:[%s568] sm:$0xff] %v8120
      %8129 = vst [vmem:[%s568 + $0x8] sm:$0xff] %v8121
      %8130 = vst [vmem:[%s568 + $0x10] sm:$0xff] %v8122
      %8131 = vst [vmem:[%s568 + $0x18] sm:$0xff] %v8123
      %8132 = vst [vmem:[%s568 + $0x20] sm:$0xff] %v8124
      %8133 = vst [vmem:[%s568 + $0x28] sm:$0xff] %v8125
      %8134 = vst [vmem:[%s568 + $0x30] sm:$0xff] %v8126
      %8135 = vst [vmem:[%s568 + $0x38] sm:$0xff] %v8127
      %p8136 = scmp.lt.s32.totalorder %s28, 1
      %s8137 = scalar_select %p8136, %s28, 1
      %s8138 = smul.addr %s8137, 8
      %s8139 = smul.addr %s8138, 8
      %s8140 = scalar_lea.vmem %s17, %s8139
      // Predicated region
      $region89: #{up_block_forward.3} parent=87 // pred_check
        %p8141 = pneg %p413
      $region90: #{up_block_forward.3} parent=87 // pred_check_branch
        %8143 = sbr.rel (%p8141) target = $region92
      $region91: #{up_block_forward.3} parent=87 // pred_region
        _
      $region92: #{up_block_forward.3} parent=87 // pred_fallthru
        _
    $region88: #{up_block_forward.3} parent=5 // pred_fallthru
      _
    %p8144 = scmp.le.s32.totalorder 2, %s23
    // Predicated region
    $region93: #{up_block_forward.3} parent=5 // pred_check
      %p8145 = pneg %p8144
    $region94: #{up_block_forward.3} parent=5 // pred_check_branch
      %8147 = sbr.rel (%p8145) target = $region96
    $region95: #{up_block_forward.3} parent=5 // pred_region
      %s8148 = ssub.s32 %s23, 2
      // Predicated region
      $region97: #{up_block_forward.3} parent=95 // pred_check
        %p8149 = pneg %p419
      $region98: #{up_block_forward.3} parent=95 // pred_check_branch
        %8151 = sbr.rel (%p8149) target = $region100
      $region99: #{up_block_forward.3} parent=95 // pred_region
        %p8152 = scmp.lt.s32.totalorder %s29, 1
        %s8153 = scalar_select %p8152, %s29, 1
        %s8154 = smul.addr %s8153, 8
        %s8155 = smul.addr %s8154, 8
        %s8156 = scalar_lea.vmem %s17, %s8155
      $region100: #{up_block_forward.3} parent=95 // pred_fallthru
        _
    $region96: #{up_block_forward.3} parent=5 // pred_fallthru
      _
  $region6: #{up_block_forward.3} parent=0 // loop_footer
    %s27 = sadd.s32 1, %s23
  $region7: #{up_block_forward.3} parent=0 // loop_footer_branch
    %22 = sbr.rel target = $region3
  $region8: #{up_block_forward.3} parent=0 // loop_exit
    _

</llo_original>
